<compile_context>
chip_gen: v6e
topology: v6e:2x2x1
jax: 0.10.0
libtpu: 0.0.40
codegen_flags: <defaults>
</compile_context>

<pallas_src>
import functools

import jax
import jax.numpy as jnp
from jax.experimental import pallas as pl
from jax.experimental.pallas import tpu as pltpu

C1, C2 = 64, 128              # encoder channel widths (1->64, 64->128)
MXU_DTYPE = jnp.bfloat16      # operand dtype for the two big matmuls (f32 accumulate)


def _elu(x):
    # ELU(alpha=1): x if x > 0 else exp(x) - 1  (clamp arg to avoid inf paths)
    return jnp.where(x > 0, x, jnp.exp(jnp.minimum(x, 0.0)) - 1.0)


def _tap_src(p, d):
    """3x3/pad-1 conv on a 2x2-phase-decomposed image.

    Along one axis: output phase p (0/1) with tap d (0..2) reads source phase `sp`
    at start index `start` of that phase's 1-pixel-zero-haloed buffer.
    """
    t = p + d - 1
    sp = t % 2
    return sp, 1 + (t - sp) // 2          # start in {0, 1, 2}


def _zero_halo(buf_ref, Hp, Wp):
    """Zero only the 1-pixel halo of the (4, Hp+2, Wp+2, C) phase buffers."""
    C = buf_ref.shape[-1]
    zrow = jnp.zeros((1, Wp + 2, C), jnp.float32)
    zcol = jnp.zeros((Hp + 2, 1, C), jnp.float32)
    for ph in range(4):
        buf_ref[ph, pl.ds(0, 1), :, :] = zrow
        buf_ref[ph, pl.ds(Hp + 1, 1), :, :] = zrow
        buf_ref[ph, :, pl.ds(0, 1), :] = zcol
        buf_ref[ph, :, pl.ds(Wp + 1, 1), :] = zcol


def _phase_im2col(buf_ref, Hp, Wp):
    """(4, Hp+2, Wp+2, C) zero-haloed phase buffers -> (4*Hp*Wp, 9*C) im2col.

    Rows are phase-major ((py,px) outer, (i,j) inner); columns ordered (dy, dx, c)
    to match weights reshaped to (9*C, Cout).
    """
    C = buf_ref.shape[-1]
    slabs = []
    for py in range(2):
        for px in range(2):
            pieces = []
            for dy in range(3):
                for dx in range(3):
                    sy, ys = _tap_src(py, dy)
                    sx, xs = _tap_src(px, dx)
                    pieces.append(
                        buf_ref[sy * 2 + sx, pl.ds(ys, Hp), pl.ds(xs, Wp), :]
                        .reshape(Hp * Wp, C))
            slabs.append(jnp.concatenate(pieces, axis=-1))    # (Hp*Wp, 9*C)
    return jnp.concatenate(slabs, axis=0)                     # (4*Hp*Wp, 9*C)


def _fused_kernel(H, W,
                  x9_ref, skip_ref, w1_ref, b1_ref, w2_ref, b2_ref,
                  wt_ref, bt_ref, w3_ref, b3_ref,
                  out_ref, h1pad_ref, uppad_ref):
    Hp, Wp = H // 2, W // 2
    P = Hp * Wp

    # -- Conv2d(1->64,3,p1) + folded BatchNorm + ELU  (Dropout(0.3) = identity) --
    # conv1 as a single im2col MXU matmul (K=9) instead of 9 VPU broadcast-FMAs.
    h1 = jnp.dot(x9_ref[0], w1_ref[...], preferred_element_type=jnp.float32)
    h1 = _elu(h1 + b1_ref[...])                       # (4*P, 64), phase-major rows

    # scatter the 4 phases into zero-haloed VMEM buffers (interiors only)
    _zero_halo(h1pad_ref, Hp, Wp)
    for ph in range(4):
        h1pad_ref[ph, pl.ds(1, Hp), pl.ds(1, Wp), :] = (
            h1[ph * P:(ph + 1) * P, :].reshape(Hp, Wp, C1))

    # -- Conv2d(64->128,3,p1) + ELU: ONE (4P,576)x(576,128) bf16 matmul ----------
    im1 = _phase_im2col(h1pad_ref, Hp, Wp).astype(MXU_DTYPE)
    h2 = jnp.dot(im1, w2_ref[...], preferred_element_type=jnp.float32)
    h2 = _elu(h2 + b2_ref[...])                       # (4*P, 128), lane-dense

    # -- MaxPool2d(2,2): max over the four phase row-blocks (no strided access) --
    pooled = jnp.maximum(jnp.maximum(h2[0:P], h2[P:2 * P]),
                         jnp.maximum(h2[2 * P:3 * P], h2[3 * P:4 * P]))

    # -- ConvTranspose2d(128->64,k=2,s=2) + ELU: ONE (P,128)x(128,256) matmul ----
    up = jnp.dot(pooled.astype(MXU_DTYPE), wt_ref[...],
                 preferred_element_type=jnp.float32)
    up = _elu(up + bt_ref[...])                       # (P, 256) = 4 phases x 64 ch

    _zero_halo(uppad_ref, Hp, Wp)
    for ph in range(4):
        uppad_ref[ph, pl.ds(1, Hp), pl.ds(1, Wp), :] = (
            up[:, ph * C1:(ph + 1) * C1].reshape(Hp, Wp, C1))

    # -- Conv2d(64->1,3,p1): one (4P,576)x(576,128) matmul (w3 zero-padded to 128
    #    lanes; the MXU processes full lane width anyway, column 0 is the output) --
    im2 = _phase_im2col(uppad_ref, Hp, Wp)
    y = jnp.dot(im2, w3_ref[...], preferred_element_type=jnp.float32)
    y = y[:, 0:1] + b3_ref[...]                       # (4*P, 1)

    # -- Sigmoid + skip connection (skip is pre-arranged in the same layout) -----
    out_ref[0] = 1.0 / (1.0 + jnp.exp(-y)) + skip_ref[0]


def _make_fused(N, H, W):
    Hp, Wp = H // 2, W // 2
    HW = H * W
    kernel = functools.partial(_fused_kernel, H, W)
    return pl.pallas_call(
        kernel,
        out_shape=jax.ShapeDtypeStruct((N, HW, 1), jnp.float32),
        grid=(N,),
        in_specs=[
            pl.BlockSpec((1, HW, 9), lambda n: (n, 0, 0)),      # conv1 im2col (phase-major)
            pl.BlockSpec((1, HW, 1), lambda n: (n, 0, 0)),      # skip (phase-major)
            pl.BlockSpec((9, C1), lambda n: (0, 0)),            # w1 (BN folded)
            pl.BlockSpec((1, C1), lambda n: (0, 0)),            # b1 (BN folded)
            pl.BlockSpec((9 * C1, C2), lambda n: (0, 0)),       # w2 (576,128) bf16
            pl.BlockSpec((1, C2), lambda n: (0, 0)),            # b2
            pl.BlockSpec((C2, 4 * C1), lambda n: (0, 0)),       # wt (128,256) bf16
            pl.BlockSpec((1, 4 * C1), lambda n: (0, 0)),        # bt tiled x4
            pl.BlockSpec((9 * C1, C2), lambda n: (0, 0)),       # w3 zero-padded to 128 cols
            pl.BlockSpec((1, 1), lambda n: (0, 0)),             # b3
        ],
        out_specs=pl.BlockSpec((1, HW, 1), lambda n: (n, 0, 0)),
        scratch_shapes=[
            pltpu.VMEM((4, Hp + 2, Wp + 2, C1), jnp.float32),   # h1 phase halo buffers
            pltpu.VMEM((4, Hp + 2, Wp + 2, C1), jnp.float32),   # upsample phase halo buffers
        ],
        compiler_params=pltpu.CompilerParams(
            dimension_semantics=("parallel",),       # batch elems -> both v7x TCs
            vmem_limit_bytes=32 * 1024 * 1024),
    )


def depthmap_cnn_forward(x_nchw, params):
    N, C, H, W = x_nchw.shape
    assert C == 1 and H % 2 == 0 and W % 2 == 0
    Hp, Wp = H // 2, W // 2
    x2d = x_nchw[:, 0].astype(jnp.float32)                     # (N, H, W)
    xpad = jnp.pad(x2d, ((0, 0), (1, 1), (1, 1)))

    # Phase-major conv1 im2col + skip.  This is pure XLA glue on the *tiny*
    # 1-channel input (9x the input bytes); the 64/128-channel activations never
    # leave VMEM inside the fused kernel.
    im_blocks, skip_blocks = [], []
    for py in range(2):
        for px in range(2):
            taps = [
                xpad[:, py + dy:py + dy + H - 1:2,
                        px + dx:px + dx + W - 1:2].reshape(N, Hp * Wp)
                for dy in range(3) for dx in range(3)
            ]
            im_blocks.append(jnp.stack(taps, axis=-1))          # (N, Hp*Wp, 9)
            skip_blocks.append(x2d[:, py::2, px::2].reshape(N, Hp * Wp))
    x9 = jnp.concatenate(im_blocks, axis=1)                     # (N, H*W, 9)
    skip_pm = jnp.concatenate(skip_blocks, axis=1)[..., None]   # (N, H*W, 1)

    # Fold eval-mode BatchNorm into conv1 weight/bias.
    inv = 1.0 / jnp.sqrt(params["bn_var"] + 1e-5)
    scale = params["bn_gamma"] * inv
    shift = params["bn_beta"] - params["bn_mean"] * scale
    w1f = (params["w1"].reshape(9, C1) * scale[None, :]).astype(jnp.float32)
    b1f = (params["b1"] * scale + shift).reshape(1, C1)

    w2f = params["w2"].reshape(9 * C1, C2).astype(MXU_DTYPE)    # (576, 128)
    b2 = params["b2"].reshape(1, C2)
    # ConvTranspose2d(k=2,s=2): wt[ky,kx,cin,cout] -> (cin, (ky*2+kx)*64 + cout)
    wtf = jnp.transpose(params["wt"], (2, 0, 1, 3)).reshape(C2, 4 * C1)
    wtf = wtf.astype(MXU_DTYPE)
    bt4 = jnp.tile(params["bt"], 4).reshape(1, 4 * C1)
    # conv3 weights, zero-padded to 128 output lanes (column 0 is the real output).
    w3f = jnp.pad(params["w3"].reshape(9 * C1, 1), ((0, 0), (0, C2 - 1)))
    b3 = params["b3"].reshape(1, 1)

    out_pm = _make_fused(N, H, W)(
        x9, skip_pm, w1f, b1f, w2f, b2, wtf, bt4, w3f, b3)      # (N, H*W, 1)

    # Un-permute the tiny 1-channel phase-major output back to NCHW.
    out = (out_pm.reshape(N, 2, 2, Hp, Wp)
           .transpose(0, 3, 1, 4, 2)
           .reshape(N, H, W))
    return out[:, None, :, :]


# ----------------------------- pure-JAX reference -----------------------------
def _reference_forward(x_nchw, p):
    N, _, H, W = x_nchw.shape
    x = x_nchw[:, 0].astype(jnp.float32)
    inv = 1.0 / jnp.sqrt(p["bn_var"] + 1e-5)
    scale = p["bn_gamma"] * inv
    shift = p["bn_beta"] - p["bn_mean"] * scale

    xp = jnp.pad(x, ((0, 0), (1, 1), (1, 1)))
    h1 = jnp.zeros((N, H, W, C1), jnp.float32)
    for dy in range(3):
        for dx in range(3):
            h1 = h1 + xp[:, dy:dy + H, dx:dx + W, None] * p["w1"][dy, dx, 0]
    h1 = _elu((h1 + p["b1"]) * scale + shift)

    h1p = jnp.pad(h1, ((0, 0), (1, 1), (1, 1), (0, 0)))
    h2 = jnp.zeros((N, H, W, C2), jnp.float32)
    for dy in range(3):
        for dx in range(3):
            h2 = h2 + jnp.einsum("nhwc,cd->nhwd",
                                 h1p[:, dy:dy + H, dx:dx + W, :], p["w2"][dy, dx])
    h2 = _elu(h2 + p["b2"])

    pooled = jnp.maximum(jnp.maximum(h2[:, 0::2, 0::2], h2[:, 0::2, 1::2]),
                         jnp.maximum(h2[:, 1::2, 0::2], h2[:, 1::2, 1::2]))

    phases = [jnp.einsum("nhwc,cd->nhwd", pooled, p["wt"][ky, kx]) + p["bt"]
              for ky in range(2) for kx in range(2)]
    up = jnp.stack(phases, axis=1).reshape(N, 2, 2, H // 2, W // 2, C1)
    up = jnp.transpose(up, (0, 3, 1, 4, 2, 5)).reshape(N, H, W, C1)
    up = _elu(up)

    upp = jnp.pad(up, ((0, 0), (1, 1), (1, 1), (0, 0)))
    y = jnp.zeros((N, H, W), jnp.float32)
    for dy in range(3):
        for dx in range(3):
            y = y + jnp.einsum("nhwc,c->nhw",
                               upp[:, dy:dy + H, dx:dx + W, :], p["w3"][dy, dx, :, 0])
    y = y + p["b3"]
    return (1.0 / (1.0 + jnp.exp(-y)) + x)[:, None]


def init_params(key):
    ks = jax.random.split(key, 12)
    p = {}
    p["w1"] = 0.2 * jax.random.normal(ks[0], (3, 3, 1, C1), jnp.float32)   # HWIO
    p["b1"] = 0.05 * jax.random.normal(ks[1], (C1,), jnp.float32)
    p["bn_gamma"] = 1.0 + 0.1 * jax.random.normal(ks[2], (C1,), jnp.float32)
    p["bn_beta"] = 0.05 * jax.random.normal(ks[3], (C1,), jnp.float32)
    p["bn_mean"] = 0.1 * jax.random.normal(ks[4], (C1,), jnp.float32)
    p["bn_var"] = 0.5 + jax.random.uniform(ks[5], (C1,), jnp.float32)
    p["w2"] = 0.05 * jax.random.normal(ks[6], (3, 3, C1, C2), jnp.float32)  # HWIO
    p["b2"] = 0.05 * jax.random.normal(ks[7], (C2,), jnp.float32)
    p["wt"] = 0.05 * jax.random.normal(ks[8], (2, 2, C2, C1), jnp.float32)  # (ky,kx,cin,cout)
    p["bt"] = 0.05 * jax.random.normal(ks[9], (C1,), jnp.float32)
    p["w3"] = 0.05 * jax.random.normal(ks[10], (3, 3, C1, 1), jnp.float32)  # HWIO
    p["b3"] = 0.05 * jax.random.normal(ks[11], (), jnp.float32)
    return p


if __name__ == "__main__":
    key = jax.random.PRNGKey(0)
    params = init_params(key)
    x = jax.random.normal(jax.random.fold_in(key, 7), (2, 1, 16, 16), jnp.float32)

    fwd = jax.jit(depthmap_cnn_forward)
    y = jax.block_until_ready(fwd(x, params))
    assert y.shape == (2, 1, 16, 16), y.shape
    assert bool(jnp.all(jnp.isfinite(y)))

    ref = _reference_forward(x, params)
    err = float(jnp.max(jnp.abs(y - ref)))
    assert err < 5e-2, f"max |err| vs pure-JAX reference = {err}"
    print("KERNEL_OK")
</pallas_src>

<mosaic_0001>
module attributes {stable_mosaic.version = 11 : i64} {
  func.func @_fused_kernel(%arg0: i32, %arg1: memref<1x256x9xf32, #tpu.memory_space<vmem>>, %arg2: memref<1x256x1xf32, #tpu.memory_space<vmem>>, %arg3: memref<9x64xf32, #tpu.memory_space<vmem>>, %arg4: memref<1x64xf32, #tpu.memory_space<vmem>>, %arg5: memref<576x128xbf16, #tpu.memory_space<vmem>>, %arg6: memref<1x128xf32, #tpu.memory_space<vmem>>, %arg7: memref<128x256xbf16, #tpu.memory_space<vmem>>, %arg8: memref<1x256xf32, #tpu.memory_space<vmem>>, %arg9: memref<576x128xf32, #tpu.memory_space<vmem>>, %arg10: memref<1x1xf32, #tpu.memory_space<vmem>>, %arg11: memref<1x256x1xf32, #tpu.memory_space<vmem>>, %arg12: memref<4x10x10x64xf32, #tpu.memory_space<vmem>>, %arg13: memref<4x10x10x64xf32, #tpu.memory_space<vmem>>) attributes {dimension_semantics = [#tpu.dimension_semantics<parallel>], iteration_bounds = array<i64: 2>, scalar_prefetch = 0 : i64, scratch_operands = 2 : i64, tpu.core_type = #tpu.core_type<tc>, window_params = [{transform_indices = @transform_0, window_bounds = array<i64: 1, 256, 9>}, {transform_indices = @transform_1, window_bounds = array<i64: 1, 256, 1>}, {pipeline_mode = #tpu.pipeline_mode<synchronous>, transform_indices = @transform_2, window_bounds = array<i64: 9, 64>}, {pipeline_mode = #tpu.pipeline_mode<synchronous>, transform_indices = @transform_3, window_bounds = array<i64: 1, 64>}, {pipeline_mode = #tpu.pipeline_mode<synchronous>, transform_indices = @transform_4, window_bounds = array<i64: 576, 128>}, {pipeline_mode = #tpu.pipeline_mode<synchronous>, transform_indices = @transform_5, window_bounds = array<i64: 1, 128>}, {pipeline_mode = #tpu.pipeline_mode<synchronous>, transform_indices = @transform_6, window_bounds = array<i64: 128, 256>}, {pipeline_mode = #tpu.pipeline_mode<synchronous>, transform_indices = @transform_7, window_bounds = array<i64: 1, 256>}, {pipeline_mode = #tpu.pipeline_mode<synchronous>, transform_indices = @transform_8, window_bounds = array<i64: 576, 128>}, {pipeline_mode = #tpu.pipeline_mode<synchronous>, transform_indices = @transform_9, window_bounds = array<i64: 1, 1>}, {transform_indices = @transform_10, window_bounds = array<i64: 1, 256, 1>}]} {
    %c0 = arith.constant 0 : index
    %c0_0 = arith.constant 0 : index
    %c0_1 = arith.constant 0 : index
    %0 = vector.load %arg1[%c0, %c0_0, %c0_1] : memref<1x256x9xf32, #tpu.memory_space<vmem>>, vector<1x256x9xf32>
    %1 = vector.shape_cast %0 : vector<1x256x9xf32> to vector<256x9xf32>
    %c0_2 = arith.constant 0 : index
    %c0_3 = arith.constant 0 : index
    %2 = vector.load %arg3[%c0_2, %c0_3] : memref<9x64xf32, #tpu.memory_space<vmem>>, vector<9x64xf32>
    %cst = arith.constant dense<0.000000e+00> : vector<256x64xf32>
    %3 = tpu.matmul %1, %2, %cst {dimension_numbers = #tpu.dot_dimension_numbers<[1], [0], [0], [1], [0, 0, 1, 1], [], []>} : vector<256x9xf32>, vector<9x64xf32>, vector<256x64xf32> -> vector<256x64xf32>
    %c0_4 = arith.constant 0 : index
    %c0_5 = arith.constant 0 : index
    %4 = vector.load %arg4[%c0_4, %c0_5] : memref<1x64xf32, #tpu.memory_space<vmem>>, vector<1x64xf32>
    %5 = vector.broadcast %4 : vector<1x64xf32> to vector<256x64xf32>
    %6 = arith.addf %3, %5 : vector<256x64xf32>
    %cst_6 = arith.constant 0.000000e+00 : f32
    %7 = vector.broadcast %cst_6 : f32 to vector<256x64xf32>
    %8 = arith.cmpf ogt, %6, %7 : vector<256x64xf32>
    %cst_7 = arith.constant 0.000000e+00 : f32
    %9 = vector.broadcast %cst_7 : f32 to vector<256x64xf32>
    %10 = arith.minimumf %6, %9 : vector<256x64xf32>
    %11 = math.exp %10 : vector<256x64xf32>
    %cst_8 = arith.constant 1.000000e+00 : f32
    %12 = vector.broadcast %cst_8 : f32 to vector<256x64xf32>
    %13 = arith.subf %11, %12 : vector<256x64xf32>
    %14 = arith.select %8, %6, %13 : vector<256x64xi1>, vector<256x64xf32>
    %cst_9 = arith.constant 0.000000e+00 : f32
    %15 = vector.broadcast %cst_9 : f32 to vector<1x10x64xf32>
    %cst_10 = arith.constant 0.000000e+00 : f32
    %16 = vector.broadcast %cst_10 : f32 to vector<10x1x64xf32>
    %c0_11 = arith.constant 0 : index
    %c0_12 = arith.constant 0 : index
    %c0_13 = arith.constant 0 : index
    %c0_14 = arith.constant 0 : index
    %17 = vector.load %arg12[%c0_11, %c0_12, %c0_13, %c0_14] : memref<4x10x10x64xf32, #tpu.memory_space<vmem>>, vector<1x1x10x64xf32>
    %18 = vector.shape_cast %17 : vector<1x1x10x64xf32> to vector<1x10x64xf32>
    %19 = vector.shape_cast %15 : vector<1x10x64xf32> to vector<1x1x10x64xf32>
    tpu.vector_store %arg12[%c0_11, %c0_12, %c0_13, %c0_14], %19 {strides = array<i32>} : memref<4x10x10x64xf32, #tpu.memory_space<vmem>>, vector<1x1x10x64xf32>,
    %c0_15 = arith.constant 0 : index
    %c9 = arith.constant 9 : index
    %c0_16 = arith.constant 0 : index
    %c0_17 = arith.constant 0 : index
    %20 = vector.load %arg12[%c0_15, %c9, %c0_16, %c0_17] : memref<4x10x10x64xf32, #tpu.memory_space<vmem>>, vector<1x1x10x64xf32>
    %21 = vector.shape_cast %20 : vector<1x1x10x64xf32> to vector<1x10x64xf32>
    %22 = vector.shape_cast %15 : vector<1x10x64xf32> to vector<1x1x10x64xf32>
    tpu.vector_store %arg12[%c0_15, %c9, %c0_16, %c0_17], %22 {strides = array<i32>} : memref<4x10x10x64xf32, #tpu.memory_space<vmem>>, vector<1x1x10x64xf32>,
    %c0_18 = arith.constant 0 : index
    %c0_19 = arith.constant 0 : index
    %c0_20 = arith.constant 0 : index
    %c0_21 = arith.constant 0 : index
    %23 = vector.load %arg12[%c0_18, %c0_19, %c0_20, %c0_21] : memref<4x10x10x64xf32, #tpu.memory_space<vmem>>, vector<1x10x1x64xf32>
    %24 = vector.shape_cast %23 : vector<1x10x1x64xf32> to vector<10x1x64xf32>
    %25 = vector.shape_cast %16 : vector<10x1x64xf32> to vector<1x10x1x64xf32>
    tpu.vector_store %arg12[%c0_18, %c0_19, %c0_20, %c0_21], %25 {strides = array<i32>} : memref<4x10x10x64xf32, #tpu.memory_space<vmem>>, vector<1x10x1x64xf32>,
    %c0_22 = arith.constant 0 : index
    %c0_23 = arith.constant 0 : index
    %c9_24 = arith.constant 9 : index
    %c0_25 = arith.constant 0 : index
    %26 = vector.load %arg12[%c0_22, %c0_23, %c9_24, %c0_25] : memref<4x10x10x64xf32, #tpu.memory_space<vmem>>, vector<1x10x1x64xf32>
    %27 = vector.shape_cast %26 : vector<1x10x1x64xf32> to vector<10x1x64xf32>
    %28 = vector.shape_cast %16 : vector<10x1x64xf32> to vector<1x10x1x64xf32>
    tpu.vector_store %arg12[%c0_22, %c0_23, %c9_24, %c0_25], %28 {strides = array<i32>} : memref<4x10x10x64xf32, #tpu.memory_space<vmem>>, vector<1x10x1x64xf32>,
    %c1 = arith.constant 1 : index
    %c0_26 = arith.constant 0 : index
    %c0_27 = arith.constant 0 : index
    %c0_28 = arith.constant 0 : index
    %29 = vector.load %arg12[%c1, %c0_26, %c0_27, %c0_28] : memref<4x10x10x64xf32, #tpu.memory_space<vmem>>, vector<1x1x10x64xf32>
    %30 = vector.shape_cast %29 : vector<1x1x10x64xf32> to vector<1x10x64xf32>
    %31 = vector.shape_cast %15 : vector<1x10x64xf32> to vector<1x1x10x64xf32>
    tpu.vector_store %arg12[%c1, %c0_26, %c0_27, %c0_28], %31 {strides = array<i32>} : memref<4x10x10x64xf32, #tpu.memory_space<vmem>>, vector<1x1x10x64xf32>,
    %c1_29 = arith.constant 1 : index
    %c9_30 = arith.constant 9 : index
    %c0_31 = arith.constant 0 : index
    %c0_32 = arith.constant 0 : index
    %32 = vector.load %arg12[%c1_29, %c9_30, %c0_31, %c0_32] : memref<4x10x10x64xf32, #tpu.memory_space<vmem>>, vector<1x1x10x64xf32>
    %33 = vector.shape_cast %32 : vector<1x1x10x64xf32> to vector<1x10x64xf32>
    %34 = vector.shape_cast %15 : vector<1x10x64xf32> to vector<1x1x10x64xf32>
    tpu.vector_store %arg12[%c1_29, %c9_30, %c0_31, %c0_32], %34 {strides = array<i32>} : memref<4x10x10x64xf32, #tpu.memory_space<vmem>>, vector<1x1x10x64xf32>,
    %c1_33 = arith.constant 1 : index
    %c0_34 = arith.constant 0 : index
    %c0_35 = arith.constant 0 : index
    %c0_36 = arith.constant 0 : index
    %35 = vector.load %arg12[%c1_33, %c0_34, %c0_35, %c0_36] : memref<4x10x10x64xf32, #tpu.memory_space<vmem>>, vector<1x10x1x64xf32>
    %36 = vector.shape_cast %35 : vector<1x10x1x64xf32> to vector<10x1x64xf32>
    %37 = vector.shape_cast %16 : vector<10x1x64xf32> to vector<1x10x1x64xf32>
    tpu.vector_store %arg12[%c1_33, %c0_34, %c0_35, %c0_36], %37 {strides = array<i32>} : memref<4x10x10x64xf32, #tpu.memory_space<vmem>>, vector<1x10x1x64xf32>,
    %c1_37 = arith.constant 1 : index
    %c0_38 = arith.constant 0 : index
    %c9_39 = arith.constant 9 : index
    %c0_40 = arith.constant 0 : index
    %38 = vector.load %arg12[%c1_37, %c0_38, %c9_39, %c0_40] : memref<4x10x10x64xf32, #tpu.memory_space<vmem>>, vector<1x10x1x64xf32>
    %39 = vector.shape_cast %38 : vector<1x10x1x64xf32> to vector<10x1x64xf32>
    %40 = vector.shape_cast %16 : vector<10x1x64xf32> to vector<1x10x1x64xf32>
    tpu.vector_store %arg12[%c1_37, %c0_38, %c9_39, %c0_40], %40 {strides = array<i32>} : memref<4x10x10x64xf32, #tpu.memory_space<vmem>>, vector<1x10x1x64xf32>,
    %c2 = arith.constant 2 : index
    %c0_41 = arith.constant 0 : index
    %c0_42 = arith.constant 0 : index
    %c0_43 = arith.constant 0 : index
    %41 = vector.load %arg12[%c2, %c0_41, %c0_42, %c0_43] : memref<4x10x10x64xf32, #tpu.memory_space<vmem>>, vector<1x1x10x64xf32>
    %42 = vector.shape_cast %41 : vector<1x1x10x64xf32> to vector<1x10x64xf32>
    %43 = vector.shape_cast %15 : vector<1x10x64xf32> to vector<1x1x10x64xf32>
    tpu.vector_store %arg12[%c2, %c0_41, %c0_42, %c0_43], %43 {strides = array<i32>} : memref<4x10x10x64xf32, #tpu.memory_space<vmem>>, vector<1x1x10x64xf32>,
    %c2_44 = arith.constant 2 : index
    %c9_45 = arith.constant 9 : index
    %c0_46 = arith.constant 0 : index
    %c0_47 = arith.constant 0 : index
    %44 = vector.load %arg12[%c2_44, %c9_45, %c0_46, %c0_47] : memref<4x10x10x64xf32, #tpu.memory_space<vmem>>, vector<1x1x10x64xf32>
    %45 = vector.shape_cast %44 : vector<1x1x10x64xf32> to vector<1x10x64xf32>
    %46 = vector.shape_cast %15 : vector<1x10x64xf32> to vector<1x1x10x64xf32>
    tpu.vector_store %arg12[%c2_44, %c9_45, %c0_46, %c0_47], %46 {strides = array<i32>} : memref<4x10x10x64xf32, #tpu.memory_space<vmem>>, vector<1x1x10x64xf32>,
    %c2_48 = arith.constant 2 : index
    %c0_49 = arith.constant 0 : index
    %c0_50 = arith.constant 0 : index
    %c0_51 = arith.constant 0 : index
    %47 = vector.load %arg12[%c2_48, %c0_49, %c0_50, %c0_51] : memref<4x10x10x64xf32, #tpu.memory_space<vmem>>, vector<1x10x1x64xf32>
    %48 = vector.shape_cast %47 : vector<1x10x1x64xf32> to vector<10x1x64xf32>
    %49 = vector.shape_cast %16 : vector<10x1x64xf32> to vector<1x10x1x64xf32>
    tpu.vector_store %arg12[%c2_48, %c0_49, %c0_50, %c0_51], %49 {strides = array<i32>} : memref<4x10x10x64xf32, #tpu.memory_space<vmem>>, vector<1x10x1x64xf32>,
    %c2_52 = arith.constant 2 : index
    %c0_53 = arith.constant 0 : index
    %c9_54 = arith.constant 9 : index
    %c0_55 = arith.constant 0 : index
    %50 = vector.load %arg12[%c2_52, %c0_53, %c9_54, %c0_55] : memref<4x10x10x64xf32, #tpu.memory_space<vmem>>, vector<1x10x1x64xf32>
    %51 = vector.shape_cast %50 : vector<1x10x1x64xf32> to vector<10x1x64xf32>
    %52 = vector.shape_cast %16 : vector<10x1x64xf32> to vector<1x10x1x64xf32>
    tpu.vector_store %arg12[%c2_52, %c0_53, %c9_54, %c0_55], %52 {strides = array<i32>} : memref<4x10x10x64xf32, #tpu.memory_space<vmem>>, vector<1x10x1x64xf32>,
    %c3 = arith.constant 3 : index
    %c0_56 = arith.constant 0 : index
    %c0_57 = arith.constant 0 : index
    %c0_58 = arith.constant 0 : index
    %53 = vector.load %arg12[%c3, %c0_56, %c0_57, %c0_58] : memref<4x10x10x64xf32, #tpu.memory_space<vmem>>, vector<1x1x10x64xf32>
    %54 = vector.shape_cast %53 : vector<1x1x10x64xf32> to vector<1x10x64xf32>
    %55 = vector.shape_cast %15 : vector<1x10x64xf32> to vector<1x1x10x64xf32>
    tpu.vector_store %arg12[%c3, %c0_56, %c0_57, %c0_58], %55 {strides = array<i32>} : memref<4x10x10x64xf32, #tpu.memory_space<vmem>>, vector<1x1x10x64xf32>,
    %c3_59 = arith.constant 3 : index
    %c9_60 = arith.constant 9 : index
    %c0_61 = arith.constant 0 : index
    %c0_62 = arith.constant 0 : index
    %56 = vector.load %arg12[%c3_59, %c9_60, %c0_61, %c0_62] : memref<4x10x10x64xf32, #tpu.memory_space<vmem>>, vector<1x1x10x64xf32>
    %57 = vector.shape_cast %56 : vector<1x1x10x64xf32> to vector<1x10x64xf32>
    %58 = vector.shape_cast %15 : vector<1x10x64xf32> to vector<1x1x10x64xf32>
    tpu.vector_store %arg12[%c3_59, %c9_60, %c0_61, %c0_62], %58 {strides = array<i32>} : memref<4x10x10x64xf32, #tpu.memory_space<vmem>>, vector<1x1x10x64xf32>,
    %c3_63 = arith.constant 3 : index
    %c0_64 = arith.constant 0 : index
    %c0_65 = arith.constant 0 : index
    %c0_66 = arith.constant 0 : index
    %59 = vector.load %arg12[%c3_63, %c0_64, %c0_65, %c0_66] : memref<4x10x10x64xf32, #tpu.memory_space<vmem>>, vector<1x10x1x64xf32>
    %60 = vector.shape_cast %59 : vector<1x10x1x64xf32> to vector<10x1x64xf32>
    %61 = vector.shape_cast %16 : vector<10x1x64xf32> to vector<1x10x1x64xf32>
    tpu.vector_store %arg12[%c3_63, %c0_64, %c0_65, %c0_66], %61 {strides = array<i32>} : memref<4x10x10x64xf32, #tpu.memory_space<vmem>>, vector<1x10x1x64xf32>,
    %c3_67 = arith.constant 3 : index
    %c0_68 = arith.constant 0 : index
    %c9_69 = arith.constant 9 : index
    %c0_70 = arith.constant 0 : index
    %62 = vector.load %arg12[%c3_67, %c0_68, %c9_69, %c0_70] : memref<4x10x10x64xf32, #tpu.memory_space<vmem>>, vector<1x10x1x64xf32>
    %63 = vector.shape_cast %62 : vector<1x10x1x64xf32> to vector<10x1x64xf32>
    %64 = vector.shape_cast %16 : vector<10x1x64xf32> to vector<1x10x1x64xf32>
    tpu.vector_store %arg12[%c3_67, %c0_68, %c9_69, %c0_70], %64 {strides = array<i32>} : memref<4x10x10x64xf32, #tpu.memory_space<vmem>>, vector<1x10x1x64xf32>,
    %65 = vector.extract_strided_slice %14 {offsets = [0, 0], sizes = [64, 64], strides = [1, 1]} : vector<256x64xf32> to vector<64x64xf32>
    %66 = vector.shape_cast %65 : vector<64x64xf32> to vector<8x8x64xf32>
    %c0_71 = arith.constant 0 : index
    %c1_72 = arith.constant 1 : index
    %c1_73 = arith.constant 1 : index
    %c0_74 = arith.constant 0 : index
    %67 = vector.load %arg12[%c0_71, %c1_72, %c1_73, %c0_74] : memref<4x10x10x64xf32, #tpu.memory_space<vmem>>, vector<1x8x8x64xf32>
    %68 = vector.shape_cast %67 : vector<1x8x8x64xf32> to vector<8x8x64xf32>
    %69 = vector.shape_cast %66 : vector<8x8x64xf32> to vector<1x8x8x64xf32>
    tpu.vector_store %arg12[%c0_71, %c1_72, %c1_73, %c0_74], %69 {strides = array<i32>} : memref<4x10x10x64xf32, #tpu.memory_space<vmem>>, vector<1x8x8x64xf32>,
    %70 = vector.extract_strided_slice %14 {offsets = [64, 0], sizes = [64, 64], strides = [1, 1]} : vector<256x64xf32> to vector<64x64xf32>
    %71 = vector.shape_cast %70 : vector<64x64xf32> to vector<8x8x64xf32>
    %c1_75 = arith.constant 1 : index
    %c1_76 = arith.constant 1 : index
    %c1_77 = arith.constant 1 : index
    %c0_78 = arith.constant 0 : index
    %72 = vector.load %arg12[%c1_75, %c1_76, %c1_77, %c0_78] : memref<4x10x10x64xf32, #tpu.memory_space<vmem>>, vector<1x8x8x64xf32>
    %73 = vector.shape_cast %72 : vector<1x8x8x64xf32> to vector<8x8x64xf32>
    %74 = vector.shape_cast %71 : vector<8x8x64xf32> to vector<1x8x8x64xf32>
    tpu.vector_store %arg12[%c1_75, %c1_76, %c1_77, %c0_78], %74 {strides = array<i32>} : memref<4x10x10x64xf32, #tpu.memory_space<vmem>>, vector<1x8x8x64xf32>,
    %75 = vector.extract_strided_slice %14 {offsets = [128, 0], sizes = [64, 64], strides = [1, 1]} : vector<256x64xf32> to vector<64x64xf32>
    %76 = vector.shape_cast %75 : vector<64x64xf32> to vector<8x8x64xf32>
    %c2_79 = arith.constant 2 : index
    %c1_80 = arith.constant 1 : index
    %c1_81 = arith.constant 1 : index
    %c0_82 = arith.constant 0 : index
    %77 = vector.load %arg12[%c2_79, %c1_80, %c1_81, %c0_82] : memref<4x10x10x64xf32, #tpu.memory_space<vmem>>, vector<1x8x8x64xf32>
    %78 = vector.shape_cast %77 : vector<1x8x8x64xf32> to vector<8x8x64xf32>
    %79 = vector.shape_cast %76 : vector<8x8x64xf32> to vector<1x8x8x64xf32>
    tpu.vector_store %arg12[%c2_79, %c1_80, %c1_81, %c0_82], %79 {strides = array<i32>} : memref<4x10x10x64xf32, #tpu.memory_space<vmem>>, vector<1x8x8x64xf32>,
    %80 = vector.extract_strided_slice %14 {offsets = [192, 0], sizes = [64, 64], strides = [1, 1]} : vector<256x64xf32> to vector<64x64xf32>
    %81 = vector.shape_cast %80 : vector<64x64xf32> to vector<8x8x64xf32>
    %c3_83 = arith.constant 3 : index
    %c1_84 = arith.constant 1 : index
    %c1_85 = arith.constant 1 : index
    %c0_86 = arith.constant 0 : index
    %82 = vector.load %arg12[%c3_83, %c1_84, %c1_85, %c0_86] : memref<4x10x10x64xf32, #tpu.memory_space<vmem>>, vector<1x8x8x64xf32>
    %83 = vector.shape_cast %82 : vector<1x8x8x64xf32> to vector<8x8x64xf32>
    %84 = vector.shape_cast %81 : vector<8x8x64xf32> to vector<1x8x8x64xf32>
    tpu.vector_store %arg12[%c3_83, %c1_84, %c1_85, %c0_86], %84 {strides = array<i32>} : memref<4x10x10x64xf32, #tpu.memory_space<vmem>>, vector<1x8x8x64xf32>,
    %c3_87 = arith.constant 3 : index
    %c0_88 = arith.constant 0 : index
    %c0_89 = arith.constant 0 : index
    %c0_90 = arith.constant 0 : index
    %85 = vector.load %arg12[%c3_87, %c0_88, %c0_89, %c0_90] : memref<4x10x10x64xf32, #tpu.memory_space<vmem>>, vector<1x8x8x64xf32>
    %86 = vector.shape_cast %85 : vector<1x8x8x64xf32> to vector<8x8x64xf32>
    %87 = vector.shape_cast %86 : vector<8x8x64xf32> to vector<64x64xf32>
    %c2_91 = arith.constant 2 : index
    %c0_92 = arith.constant 0 : index
    %c1_93 = arith.constant 1 : index
    %c0_94 = arith.constant 0 : index
    %88 = vector.load %arg12[%c2_91, %c0_92, %c1_93, %c0_94] : memref<4x10x10x64xf32, #tpu.memory_space<vmem>>, vector<1x8x8x64xf32>
    %89 = vector.shape_cast %88 : vector<1x8x8x64xf32> to vector<8x8x64xf32>
    %90 = vector.shape_cast %89 : vector<8x8x64xf32> to vector<64x64xf32>
    %c3_95 = arith.constant 3 : index
    %c0_96 = arith.constant 0 : index
    %c1_97 = arith.constant 1 : index
    %c0_98 = arith.constant 0 : index
    %91 = vector.load %arg12[%c3_95, %c0_96, %c1_97, %c0_98] : memref<4x10x10x64xf32, #tpu.memory_space<vmem>>, vector<1x8x8x64xf32>
    %92 = vector.shape_cast %91 : vector<1x8x8x64xf32> to vector<8x8x64xf32>
    %93 = vector.shape_cast %92 : vector<8x8x64xf32> to vector<64x64xf32>
    %c1_99 = arith.constant 1 : index
    %c1_100 = arith.constant 1 : index
    %c0_101 = arith.constant 0 : index
    %c0_102 = arith.constant 0 : index
    %94 = vector.load %arg12[%c1_99, %c1_100, %c0_101, %c0_102] : memref<4x10x10x64xf32, #tpu.memory_space<vmem>>, vector<1x8x8x64xf32>
    %95 = vector.shape_cast %94 : vector<1x8x8x64xf32> to vector<8x8x64xf32>
    %96 = vector.shape_cast %95 : vector<8x8x64xf32> to vector<64x64xf32>
    %c0_103 = arith.constant 0 : index
    %c1_104 = arith.constant 1 : index
    %c1_105 = arith.constant 1 : index
    %c0_106 = arith.constant 0 : index
    %97 = vector.load %arg12[%c0_103, %c1_104, %c1_105, %c0_106] : memref<4x10x10x64xf32, #tpu.memory_space<vmem>>, vector<1x8x8x64xf32>
    %98 = vector.shape_cast %97 : vector<1x8x8x64xf32> to vector<8x8x64xf32>
    %99 = vector.shape_cast %98 : vector<8x8x64xf32> to vector<64x64xf32>
    %c1_107 = arith.constant 1 : index
    %c1_108 = arith.constant 1 : index
    %c1_109 = arith.constant 1 : index
    %c0_110 = arith.constant 0 : index
    %100 = vector.load %arg12[%c1_107, %c1_108, %c1_109, %c0_110] : memref<4x10x10x64xf32, #tpu.memory_space<vmem>>, vector<1x8x8x64xf32>
    %101 = vector.shape_cast %100 : vector<1x8x8x64xf32> to vector<8x8x64xf32>
    %102 = vector.shape_cast %101 : vector<8x8x64xf32> to vector<64x64xf32>
    %c3_111 = arith.constant 3 : index
    %c1_112 = arith.constant 1 : index
    %c0_113 = arith.constant 0 : index
    %c0_114 = arith.constant 0 : index
    %103 = vector.load %arg12[%c3_111, %c1_112, %c0_113, %c0_114] : memref<4x10x10x64xf32, #tpu.memory_space<vmem>>, vector<1x8x8x64xf32>
    %104 = vector.shape_cast %103 : vector<1x8x8x64xf32> to vector<8x8x64xf32>
    %105 = vector.shape_cast %104 : vector<8x8x64xf32> to vector<64x64xf32>
    %c2_115 = arith.constant 2 : index
    %c1_116 = arith.constant 1 : index
    %c1_117 = arith.constant 1 : index
    %c0_118 = arith.constant 0 : index
    %106 = vector.load %arg12[%c2_115, %c1_116, %c1_117, %c0_118] : memref<4x10x10x64xf32, #tpu.memory_space<vmem>>, vector<1x8x8x64xf32>
    %107 = vector.shape_cast %106 : vector<1x8x8x64xf32> to vector<8x8x64xf32>
    %108 = vector.shape_cast %107 : vector<8x8x64xf32> to vector<64x64xf32>
    %c3_119 = arith.constant 3 : index
    %c1_120 = arith.constant 1 : index
    %c1_121 = arith.constant 1 : index
    %c0_122 = arith.constant 0 : index
    %109 = vector.load %arg12[%c3_119, %c1_120, %c1_121, %c0_122] : memref<4x10x10x64xf32, #tpu.memory_space<vmem>>, vector<1x8x8x64xf32>
    %110 = vector.shape_cast %109 : vector<1x8x8x64xf32> to vector<8x8x64xf32>
    %111 = vector.shape_cast %110 : vector<8x8x64xf32> to vector<64x64xf32>
    %112 = tpu.concatenate %87, %90, %93, %96, %99, %102, %105, %108, %111 in 1 : vector<64x64xf32>, vector<64x64xf32>, vector<64x64xf32>, vector<64x64xf32>, vector<64x64xf32>, vector<64x64xf32>, vector<64x64xf32>, vector<64x64xf32>, vector<64x64xf32> -> vector<64x576xf32>
    %c2_123 = arith.constant 2 : index
    %c0_124 = arith.constant 0 : index
    %c1_125 = arith.constant 1 : index
    %c0_126 = arith.constant 0 : index
    %113 = vector.load %arg12[%c2_123, %c0_124, %c1_125, %c0_126] : memref<4x10x10x64xf32, #tpu.memory_space<vmem>>, vector<1x8x8x64xf32>
    %114 = vector.shape_cast %113 : vector<1x8x8x64xf32> to vector<8x8x64xf32>
    %115 = vector.shape_cast %114 : vector<8x8x64xf32> to vector<64x64xf32>
    %c3_127 = arith.constant 3 : index
    %c0_128 = arith.constant 0 : index
    %c1_129 = arith.constant 1 : index
    %c0_130 = arith.constant 0 : index
    %116 = vector.load %arg12[%c3_127, %c0_128, %c1_129, %c0_130] : memref<4x10x10x64xf32, #tpu.memory_space<vmem>>, vector<1x8x8x64xf32>
    %117 = vector.shape_cast %116 : vector<1x8x8x64xf32> to vector<8x8x64xf32>
    %118 = vector.shape_cast %117 : vector<8x8x64xf32> to vector<64x64xf32>
    %c2_131 = arith.constant 2 : index
    %c0_132 = arith.constant 0 : index
    %c2_133 = arith.constant 2 : index
    %c0_134 = arith.constant 0 : index
    %119 = vector.load %arg12[%c2_131, %c0_132, %c2_133, %c0_134] : memref<4x10x10x64xf32, #tpu.memory_space<vmem>>, vector<1x8x8x64xf32>
    %120 = vector.shape_cast %119 : vector<1x8x8x64xf32> to vector<8x8x64xf32>
    %121 = vector.shape_cast %120 : vector<8x8x64xf32> to vector<64x64xf32>
    %c0_135 = arith.constant 0 : index
    %c1_136 = arith.constant 1 : index
    %c1_137 = arith.constant 1 : index
    %c0_138 = arith.constant 0 : index
    %122 = vector.load %arg12[%c0_135, %c1_136, %c1_137, %c0_138] : memref<4x10x10x64xf32, #tpu.memory_space<vmem>>, vector<1x8x8x64xf32>
    %123 = vector.shape_cast %122 : vector<1x8x8x64xf32> to vector<8x8x64xf32>
    %124 = vector.shape_cast %123 : vector<8x8x64xf32> to vector<64x64xf32>
    %c1_139 = arith.constant 1 : index
    %c1_140 = arith.constant 1 : index
    %c1_141 = arith.constant 1 : index
    %c0_142 = arith.constant 0 : index
    %125 = vector.load %arg12[%c1_139, %c1_140, %c1_141, %c0_142] : memref<4x10x10x64xf32, #tpu.memory_space<vmem>>, vector<1x8x8x64xf32>
    %126 = vector.shape_cast %125 : vector<1x8x8x64xf32> to vector<8x8x64xf32>
    %127 = vector.shape_cast %126 : vector<8x8x64xf32> to vector<64x64xf32>
    %c0_143 = arith.constant 0 : index
    %c1_144 = arith.constant 1 : index
    %c2_145 = arith.constant 2 : index
    %c0_146 = arith.constant 0 : index
    %128 = vector.load %arg12[%c0_143, %c1_144, %c2_145, %c0_146] : memref<4x10x10x64xf32, #tpu.memory_space<vmem>>, vector<1x8x8x64xf32>
    %129 = vector.shape_cast %128 : vector<1x8x8x64xf32> to vector<8x8x64xf32>
    %130 = vector.shape_cast %129 : vector<8x8x64xf32> to vector<64x64xf32>
    %c2_147 = arith.constant 2 : index
    %c1_148 = arith.constant 1 : index
    %c1_149 = arith.constant 1 : index
    %c0_150 = arith.constant 0 : index
    %131 = vector.load %arg12[%c2_147, %c1_148, %c1_149, %c0_150] : memref<4x10x10x64xf32, #tpu.memory_space<vmem>>, vector<1x8x8x64xf32>
    %132 = vector.shape_cast %131 : vector<1x8x8x64xf32> to vector<8x8x64xf32>
    %133 = vector.shape_cast %132 : vector<8x8x64xf32> to vector<64x64xf32>
    %c3_151 = arith.constant 3 : index
    %c1_152 = arith.constant 1 : index
    %c1_153 = arith.constant 1 : index
    %c0_154 = arith.constant 0 : index
    %134 = vector.load %arg12[%c3_151, %c1_152, %c1_153, %c0_154] : memref<4x10x10x64xf32, #tpu.memory_space<vmem>>, vector<1x8x8x64xf32>
    %135 = vector.shape_cast %134 : vector<1x8x8x64xf32> to vector<8x8x64xf32>
    %136 = vector.shape_cast %135 : vector<8x8x64xf32> to vector<64x64xf32>
    %c2_155 = arith.constant 2 : index
    %c1_156 = arith.constant 1 : index
    %c2_157 = arith.constant 2 : index
    %c0_158 = arith.constant 0 : index
    %137 = vector.load %arg12[%c2_155, %c1_156, %c2_157, %c0_158] : memref<4x10x10x64xf32, #tpu.memory_space<vmem>>, vector<1x8x8x64xf32>
    %138 = vector.shape_cast %137 : vector<1x8x8x64xf32> to vector<8x8x64xf32>
    %139 = vector.shape_cast %138 : vector<8x8x64xf32> to vector<64x64xf32>
    %140 = tpu.concatenate %115, %118, %121, %124, %127, %130, %133, %136, %139 in 1 : vector<64x64xf32>, vector<64x64xf32>, vector<64x64xf32>, vector<64x64xf32>, vector<64x64xf32>, vector<64x64xf32>, vector<64x64xf32>, vector<64x64xf32>, vector<64x64xf32> -> vector<64x576xf32>
    %c1_159 = arith.constant 1 : index
    %c1_160 = arith.constant 1 : index
    %c0_161 = arith.constant 0 : index
    %c0_162 = arith.constant 0 : index
    %141 = vector.load %arg12[%c1_159, %c1_160, %c0_161, %c0_162] : memref<4x10x10x64xf32, #tpu.memory_space<vmem>>, vector<1x8x8x64xf32>
    %142 = vector.shape_cast %141 : vector<1x8x8x64xf32> to vector<8x8x64xf32>
    %143 = vector.shape_cast %142 : vector<8x8x64xf32> to vector<64x64xf32>
    %c0_163 = arith.constant 0 : index
    %c1_164 = arith.constant 1 : index
    %c1_165 = arith.constant 1 : index
    %c0_166 = arith.constant 0 : index
    %144 = vector.load %arg12[%c0_163, %c1_164, %c1_165, %c0_166] : memref<4x10x10x64xf32, #tpu.memory_space<vmem>>, vector<1x8x8x64xf32>
    %145 = vector.shape_cast %144 : vector<1x8x8x64xf32> to vector<8x8x64xf32>
    %146 = vector.shape_cast %145 : vector<8x8x64xf32> to vector<64x64xf32>
    %c1_167 = arith.constant 1 : index
    %c1_168 = arith.constant 1 : index
    %c1_169 = arith.constant 1 : index
    %c0_170 = arith.constant 0 : index
    %147 = vector.load %arg12[%c1_167, %c1_168, %c1_169, %c0_170] : memref<4x10x10x64xf32, #tpu.memory_space<vmem>>, vector<1x8x8x64xf32>
    %148 = vector.shape_cast %147 : vector<1x8x8x64xf32> to vector<8x8x64xf32>
    %149 = vector.shape_cast %148 : vector<8x8x64xf32> to vector<64x64xf32>
    %c3_171 = arith.constant 3 : index
    %c1_172 = arith.constant 1 : index
    %c0_173 = arith.constant 0 : index
    %c0_174 = arith.constant 0 : index
    %150 = vector.load %arg12[%c3_171, %c1_172, %c0_173, %c0_174] : memref<4x10x10x64xf32, #tpu.memory_space<vmem>>, vector<1x8x8x64xf32>
    %151 = vector.shape_cast %150 : vector<1x8x8x64xf32> to vector<8x8x64xf32>
    %152 = vector.shape_cast %151 : vector<8x8x64xf32> to vector<64x64xf32>
    %c2_175 = arith.constant 2 : index
    %c1_176 = arith.constant 1 : index
    %c1_177 = arith.constant 1 : index
    %c0_178 = arith.constant 0 : index
    %153 = vector.load %arg12[%c2_175, %c1_176, %c1_177, %c0_178] : memref<4x10x10x64xf32, #tpu.memory_space<vmem>>, vector<1x8x8x64xf32>
    %154 = vector.shape_cast %153 : vector<1x8x8x64xf32> to vector<8x8x64xf32>
    %155 = vector.shape_cast %154 : vector<8x8x64xf32> to vector<64x64xf32>
    %c3_179 = arith.constant 3 : index
    %c1_180 = arith.constant 1 : index
    %c1_181 = arith.constant 1 : index
    %c0_182 = arith.constant 0 : index
    %156 = vector.load %arg12[%c3_179, %c1_180, %c1_181, %c0_182] : memref<4x10x10x64xf32, #tpu.memory_space<vmem>>, vector<1x8x8x64xf32>
    %157 = vector.shape_cast %156 : vector<1x8x8x64xf32> to vector<8x8x64xf32>
    %158 = vector.shape_cast %157 : vector<8x8x64xf32> to vector<64x64xf32>
    %c1_183 = arith.constant 1 : index
    %c2_184 = arith.constant 2 : index
    %c0_185 = arith.constant 0 : index
    %c0_186 = arith.constant 0 : index
    %159 = vector.load %arg12[%c1_183, %c2_184, %c0_185, %c0_186] : memref<4x10x10x64xf32, #tpu.memory_space<vmem>>, vector<1x8x8x64xf32>
    %160 = vector.shape_cast %159 : vector<1x8x8x64xf32> to vector<8x8x64xf32>
    %161 = vector.shape_cast %160 : vector<8x8x64xf32> to vector<64x64xf32>
    %c0_187 = arith.constant 0 : index
    %c2_188 = arith.constant 2 : index
    %c1_189 = arith.constant 1 : index
    %c0_190 = arith.constant 0 : index
    %162 = vector.load %arg12[%c0_187, %c2_188, %c1_189, %c0_190] : memref<4x10x10x64xf32, #tpu.memory_space<vmem>>, vector<1x8x8x64xf32>
    %163 = vector.shape_cast %162 : vector<1x8x8x64xf32> to vector<8x8x64xf32>
    %164 = vector.shape_cast %163 : vector<8x8x64xf32> to vector<64x64xf32>
    %c1_191 = arith.constant 1 : index
    %c2_192 = arith.constant 2 : index
    %c1_193 = arith.constant 1 : index
    %c0_194 = arith.constant 0 : index
    %165 = vector.load %arg12[%c1_191, %c2_192, %c1_193, %c0_194] : memref<4x10x10x64xf32, #tpu.memory_space<vmem>>, vector<1x8x8x64xf32>
    %166 = vector.shape_cast %165 : vector<1x8x8x64xf32> to vector<8x8x64xf32>
    %167 = vector.shape_cast %166 : vector<8x8x64xf32> to vector<64x64xf32>
    %168 = tpu.concatenate %143, %146, %149, %152, %155, %158, %161, %164, %167 in 1 : vector<64x64xf32>, vector<64x64xf32>, vector<64x64xf32>, vector<64x64xf32>, vector<64x64xf32>, vector<64x64xf32>, vector<64x64xf32>, vector<64x64xf32>, vector<64x64xf32> -> vector<64x576xf32>
    %c0_195 = arith.constant 0 : index
    %c1_196 = arith.constant 1 : index
    %c1_197 = arith.constant 1 : index
    %c0_198 = arith.constant 0 : index
    %169 = vector.load %arg12[%c0_195, %c1_196, %c1_197, %c0_198] : memref<4x10x10x64xf32, #tpu.memory_space<vmem>>, vector<1x8x8x64xf32>
    %170 = vector.shape_cast %169 : vector<1x8x8x64xf32> to vector<8x8x64xf32>
    %171 = vector.shape_cast %170 : vector<8x8x64xf32> to vector<64x64xf32>
    %c1_199 = arith.constant 1 : index
    %c1_200 = arith.constant 1 : index
    %c1_201 = arith.constant 1 : index
    %c0_202 = arith.constant 0 : index
    %172 = vector.load %arg12[%c1_199, %c1_200, %c1_201, %c0_202] : memref<4x10x10x64xf32, #tpu.memory_space<vmem>>, vector<1x8x8x64xf32>
    %173 = vector.shape_cast %172 : vector<1x8x8x64xf32> to vector<8x8x64xf32>
    %174 = vector.shape_cast %173 : vector<8x8x64xf32> to vector<64x64xf32>
    %c0_203 = arith.constant 0 : index
    %c1_204 = arith.constant 1 : index
    %c2_205 = arith.constant 2 : index
    %c0_206 = arith.constant 0 : index
    %175 = vector.load %arg12[%c0_203, %c1_204, %c2_205, %c0_206] : memref<4x10x10x64xf32, #tpu.memory_space<vmem>>, vector<1x8x8x64xf32>
    %176 = vector.shape_cast %175 : vector<1x8x8x64xf32> to vector<8x8x64xf32>
    %177 = vector.shape_cast %176 : vector<8x8x64xf32> to vector<64x64xf32>
    %c2_207 = arith.constant 2 : index
    %c1_208 = arith.constant 1 : index
    %c1_209 = arith.constant 1 : index
    %c0_210 = arith.constant 0 : index
    %178 = vector.load %arg12[%c2_207, %c1_208, %c1_209, %c0_210] : memref<4x10x10x64xf32, #tpu.memory_space<vmem>>, vector<1x8x8x64xf32>
    %179 = vector.shape_cast %178 : vector<1x8x8x64xf32> to vector<8x8x64xf32>
    %180 = vector.shape_cast %179 : vector<8x8x64xf32> to vector<64x64xf32>
    %c3_211 = arith.constant 3 : index
    %c1_212 = arith.constant 1 : index
    %c1_213 = arith.constant 1 : index
    %c0_214 = arith.constant 0 : index
    %181 = vector.load %arg12[%c3_211, %c1_212, %c1_213, %c0_214] : memref<4x10x10x64xf32, #tpu.memory_space<vmem>>, vector<1x8x8x64xf32>
    %182 = vector.shape_cast %181 : vector<1x8x8x64xf32> to vector<8x8x64xf32>
    %183 = vector.shape_cast %182 : vector<8x8x64xf32> to vector<64x64xf32>
    %c2_215 = arith.constant 2 : index
    %c1_216 = arith.constant 1 : index
    %c2_217 = arith.constant 2 : index
    %c0_218 = arith.constant 0 : index
    %184 = vector.load %arg12[%c2_215, %c1_216, %c2_217, %c0_218] : memref<4x10x10x64xf32, #tpu.memory_space<vmem>>, vector<1x8x8x64xf32>
    %185 = vector.shape_cast %184 : vector<1x8x8x64xf32> to vector<8x8x64xf32>
    %186 = vector.shape_cast %185 : vector<8x8x64xf32> to vector<64x64xf32>
    %c0_219 = arith.constant 0 : index
    %c2_220 = arith.constant 2 : index
    %c1_221 = arith.constant 1 : index
    %c0_222 = arith.constant 0 : index
    %187 = vector.load %arg12[%c0_219, %c2_220, %c1_221, %c0_222] : memref<4x10x10x64xf32, #tpu.memory_space<vmem>>, vector<1x8x8x64xf32>
    %188 = vector.shape_cast %187 : vector<1x8x8x64xf32> to vector<8x8x64xf32>
    %189 = vector.shape_cast %188 : vector<8x8x64xf32> to vector<64x64xf32>
    %c1_223 = arith.constant 1 : index
    %c2_224 = arith.constant 2 : index
    %c1_225 = arith.constant 1 : index
    %c0_226 = arith.constant 0 : index
    %190 = vector.load %arg12[%c1_223, %c2_224, %c1_225, %c0_226] : memref<4x10x10x64xf32, #tpu.memory_space<vmem>>, vector<1x8x8x64xf32>
    %191 = vector.shape_cast %190 : vector<1x8x8x64xf32> to vector<8x8x64xf32>
    %192 = vector.shape_cast %191 : vector<8x8x64xf32> to vector<64x64xf32>
    %c0_227 = arith.constant 0 : index
    %c2_228 = arith.constant 2 : index
    %c2_229 = arith.constant 2 : index
    %c0_230 = arith.constant 0 : index
    %193 = vector.load %arg12[%c0_227, %c2_228, %c2_229, %c0_230] : memref<4x10x10x64xf32, #tpu.memory_space<vmem>>, vector<1x8x8x64xf32>
    %194 = vector.shape_cast %193 : vector<1x8x8x64xf32> to vector<8x8x64xf32>
    %195 = vector.shape_cast %194 : vector<8x8x64xf32> to vector<64x64xf32>
    %196 = tpu.concatenate %171, %174, %177, %180, %183, %186, %189, %192, %195 in 1 : vector<64x64xf32>, vector<64x64xf32>, vector<64x64xf32>, vector<64x64xf32>, vector<64x64xf32>, vector<64x64xf32>, vector<64x64xf32>, vector<64x64xf32>, vector<64x64xf32> -> vector<64x576xf32>
    %197 = tpu.concatenate %112, %140, %168, %196 in 0 : vector<64x576xf32>, vector<64x576xf32>, vector<64x576xf32>, vector<64x576xf32> -> vector<256x576xf32>
    %198 = arith.truncf %197 : vector<256x576xf32> to vector<256x576xbf16>
    %c0_231 = arith.constant 0 : index
    %c0_232 = arith.constant 0 : index
    %199 = vector.load %arg5[%c0_231, %c0_232] : memref<576x128xbf16, #tpu.memory_space<vmem>>, vector<576x128xbf16>
    %cst_233 = arith.constant dense<0.000000e+00> : vector<256x128xf32>
    %200 = tpu.matmul %198, %199, %cst_233 {dimension_numbers = #tpu.dot_dimension_numbers<[1], [0], [0], [1], [0, 0, 1, 1], [], []>} : vector<256x576xbf16>, vector<576x128xbf16>, vector<256x128xf32> -> vector<256x128xf32>
    %c0_234 = arith.constant 0 : index
    %c0_235 = arith.constant 0 : index
    %201 = vector.load %arg6[%c0_234, %c0_235] : memref<1x128xf32, #tpu.memory_space<vmem>>, vector<1x128xf32>
    %202 = vector.broadcast %201 : vector<1x128xf32> to vector<256x128xf32>
    %203 = arith.addf %200, %202 : vector<256x128xf32>
    %cst_236 = arith.constant 0.000000e+00 : f32
    %204 = vector.broadcast %cst_236 : f32 to vector<256x128xf32>
    %205 = arith.cmpf ogt, %203, %204 : vector<256x128xf32>
    %cst_237 = arith.constant 0.000000e+00 : f32
    %206 = vector.broadcast %cst_237 : f32 to vector<256x128xf32>
    %207 = arith.minimumf %203, %206 : vector<256x128xf32>
    %208 = math.exp %207 : vector<256x128xf32>
    %cst_238 = arith.constant 1.000000e+00 : f32
    %209 = vector.broadcast %cst_238 : f32 to vector<256x128xf32>
    %210 = arith.subf %208, %209 : vector<256x128xf32>
    %211 = arith.select %205, %203, %210 : vector<256x128xi1>, vector<256x128xf32>
    %212 = vector.extract_strided_slice %211 {offsets = [0, 0], sizes = [64, 128], strides = [1, 1]} : vector<256x128xf32> to vector<64x128xf32>
    %213 = vector.extract_strided_slice %211 {offsets = [64, 0], sizes = [64, 128], strides = [1, 1]} : vector<256x128xf32> to vector<64x128xf32>
    %214 = arith.maximumf %212, %213 : vector<64x128xf32>
    %215 = vector.extract_strided_slice %211 {offsets = [128, 0], sizes = [64, 128], strides = [1, 1]} : vector<256x128xf32> to vector<64x128xf32>
    %216 = vector.extract_strided_slice %211 {offsets = [192, 0], sizes = [64, 128], strides = [1, 1]} : vector<256x128xf32> to vector<64x128xf32>
    %217 = arith.maximumf %215, %216 : vector<64x128xf32>
    %218 = arith.maximumf %214, %217 : vector<64x128xf32>
    %219 = arith.truncf %218 : vector<64x128xf32> to vector<64x128xbf16>
    %c0_239 = arith.constant 0 : index
    %c0_240 = arith.constant 0 : index
    %220 = vector.load %arg7[%c0_239, %c0_240] : memref<128x256xbf16, #tpu.memory_space<vmem>>, vector<128x256xbf16>
    %cst_241 = arith.constant dense<0.000000e+00> : vector<64x256xf32>
    %221 = tpu.matmul %219, %220, %cst_241 {dimension_numbers = #tpu.dot_dimension_numbers<[1], [0], [0], [1], [0, 0, 1, 1], [], []>} : vector<64x128xbf16>, vector<128x256xbf16>, vector<64x256xf32> -> vector<64x256xf32>
    %c0_242 = arith.constant 0 : index
    %c0_243 = arith.constant 0 : index
    %222 = vector.load %arg8[%c0_242, %c0_243] : memref<1x256xf32, #tpu.memory_space<vmem>>, vector<1x256xf32>
    %223 = vector.broadcast %222 : vector<1x256xf32> to vector<64x256xf32>
    %224 = arith.addf %221, %223 : vector<64x256xf32>
    %cst_244 = arith.constant 0.000000e+00 : f32
    %225 = vector.broadcast %cst_244 : f32 to vector<64x256xf32>
    %226 = arith.cmpf ogt, %224, %225 : vector<64x256xf32>
    %cst_245 = arith.constant 0.000000e+00 : f32
    %227 = vector.broadcast %cst_245 : f32 to vector<64x256xf32>
    %228 = arith.minimumf %224, %227 : vector<64x256xf32>
    %229 = math.exp %228 : vector<64x256xf32>
    %cst_246 = arith.constant 1.000000e+00 : f32
    %230 = vector.broadcast %cst_246 : f32 to vector<64x256xf32>
    %231 = arith.subf %229, %230 : vector<64x256xf32>
    %232 = arith.select %226, %224, %231 : vector<64x256xi1>, vector<64x256xf32>
    %cst_247 = arith.constant 0.000000e+00 : f32
    %233 = vector.broadcast %cst_247 : f32 to vector<1x10x64xf32>
    %cst_248 = arith.constant 0.000000e+00 : f32
    %234 = vector.broadcast %cst_248 : f32 to vector<10x1x64xf32>
    %c0_249 = arith.constant 0 : index
    %c0_250 = arith.constant 0 : index
    %c0_251 = arith.constant 0 : index
    %c0_252 = arith.constant 0 : index
    %235 = vector.load %arg13[%c0_249, %c0_250, %c0_251, %c0_252] : memref<4x10x10x64xf32, #tpu.memory_space<vmem>>, vector<1x1x10x64xf32>
    %236 = vector.shape_cast %235 : vector<1x1x10x64xf32> to vector<1x10x64xf32>
    %237 = vector.shape_cast %233 : vector<1x10x64xf32> to vector<1x1x10x64xf32>
    tpu.vector_store %arg13[%c0_249, %c0_250, %c0_251, %c0_252], %237 {strides = array<i32>} : memref<4x10x10x64xf32, #tpu.memory_space<vmem>>, vector<1x1x10x64xf32>,
    %c0_253 = arith.constant 0 : index
    %c9_254 = arith.constant 9 : index
    %c0_255 = arith.constant 0 : index
    %c0_256 = arith.constant 0 : index
    %238 = vector.load %arg13[%c0_253, %c9_254, %c0_255, %c0_256] : memref<4x10x10x64xf32, #tpu.memory_space<vmem>>, vector<1x1x10x64xf32>
    %239 = vector.shape_cast %238 : vector<1x1x10x64xf32> to vector<1x10x64xf32>
    %240 = vector.shape_cast %233 : vector<1x10x64xf32> to vector<1x1x10x64xf32>
    tpu.vector_store %arg13[%c0_253, %c9_254, %c0_255, %c0_256], %240 {strides = array<i32>} : memref<4x10x10x64xf32, #tpu.memory_space<vmem>>, vector<1x1x10x64xf32>,
    %c0_257 = arith.constant 0 : index
    %c0_258 = arith.constant 0 : index
    %c0_259 = arith.constant 0 : index
    %c0_260 = arith.constant 0 : index
    %241 = vector.load %arg13[%c0_257, %c0_258, %c0_259, %c0_260] : memref<4x10x10x64xf32, #tpu.memory_space<vmem>>, vector<1x10x1x64xf32>
    %242 = vector.shape_cast %241 : vector<1x10x1x64xf32> to vector<10x1x64xf32>
    %243 = vector.shape_cast %234 : vector<10x1x64xf32> to vector<1x10x1x64xf32>
    tpu.vector_store %arg13[%c0_257, %c0_258, %c0_259, %c0_260], %243 {strides = array<i32>} : memref<4x10x10x64xf32, #tpu.memory_space<vmem>>, vector<1x10x1x64xf32>,
    %c0_261 = arith.constant 0 : index
    %c0_262 = arith.constant 0 : index
    %c9_263 = arith.constant 9 : index
    %c0_264 = arith.constant 0 : index
    %244 = vector.load %arg13[%c0_261, %c0_262, %c9_263, %c0_264] : memref<4x10x10x64xf32, #tpu.memory_space<vmem>>, vector<1x10x1x64xf32>
    %245 = vector.shape_cast %244 : vector<1x10x1x64xf32> to vector<10x1x64xf32>
    %246 = vector.shape_cast %234 : vector<10x1x64xf32> to vector<1x10x1x64xf32>
    tpu.vector_store %arg13[%c0_261, %c0_262, %c9_263, %c0_264], %246 {strides = array<i32>} : memref<4x10x10x64xf32, #tpu.memory_space<vmem>>, vector<1x10x1x64xf32>,
    %c1_265 = arith.constant 1 : index
    %c0_266 = arith.constant 0 : index
    %c0_267 = arith.constant 0 : index
    %c0_268 = arith.constant 0 : index
    %247 = vector.load %arg13[%c1_265, %c0_266, %c0_267, %c0_268] : memref<4x10x10x64xf32, #tpu.memory_space<vmem>>, vector<1x1x10x64xf32>
    %248 = vector.shape_cast %247 : vector<1x1x10x64xf32> to vector<1x10x64xf32>
    %249 = vector.shape_cast %233 : vector<1x10x64xf32> to vector<1x1x10x64xf32>
    tpu.vector_store %arg13[%c1_265, %c0_266, %c0_267, %c0_268], %249 {strides = array<i32>} : memref<4x10x10x64xf32, #tpu.memory_space<vmem>>, vector<1x1x10x64xf32>,
    %c1_269 = arith.constant 1 : index
    %c9_270 = arith.constant 9 : index
    %c0_271 = arith.constant 0 : index
    %c0_272 = arith.constant 0 : index
    %250 = vector.load %arg13[%c1_269, %c9_270, %c0_271, %c0_272] : memref<4x10x10x64xf32, #tpu.memory_space<vmem>>, vector<1x1x10x64xf32>
    %251 = vector.shape_cast %250 : vector<1x1x10x64xf32> to vector<1x10x64xf32>
    %252 = vector.shape_cast %233 : vector<1x10x64xf32> to vector<1x1x10x64xf32>
    tpu.vector_store %arg13[%c1_269, %c9_270, %c0_271, %c0_272], %252 {strides = array<i32>} : memref<4x10x10x64xf32, #tpu.memory_space<vmem>>, vector<1x1x10x64xf32>,
    %c1_273 = arith.constant 1 : index
    %c0_274 = arith.constant 0 : index
    %c0_275 = arith.constant 0 : index
    %c0_276 = arith.constant 0 : index
    %253 = vector.load %arg13[%c1_273, %c0_274, %c0_275, %c0_276] : memref<4x10x10x64xf32, #tpu.memory_space<vmem>>, vector<1x10x1x64xf32>
    %254 = vector.shape_cast %253 : vector<1x10x1x64xf32> to vector<10x1x64xf32>
    %255 = vector.shape_cast %234 : vector<10x1x64xf32> to vector<1x10x1x64xf32>
    tpu.vector_store %arg13[%c1_273, %c0_274, %c0_275, %c0_276], %255 {strides = array<i32>} : memref<4x10x10x64xf32, #tpu.memory_space<vmem>>, vector<1x10x1x64xf32>,
    %c1_277 = arith.constant 1 : index
    %c0_278 = arith.constant 0 : index
    %c9_279 = arith.constant 9 : index
    %c0_280 = arith.constant 0 : index
    %256 = vector.load %arg13[%c1_277, %c0_278, %c9_279, %c0_280] : memref<4x10x10x64xf32, #tpu.memory_space<vmem>>, vector<1x10x1x64xf32>
    %257 = vector.shape_cast %256 : vector<1x10x1x64xf32> to vector<10x1x64xf32>
    %258 = vector.shape_cast %234 : vector<10x1x64xf32> to vector<1x10x1x64xf32>
    tpu.vector_store %arg13[%c1_277, %c0_278, %c9_279, %c0_280], %258 {strides = array<i32>} : memref<4x10x10x64xf32, #tpu.memory_space<vmem>>, vector<1x10x1x64xf32>,
    %c2_281 = arith.constant 2 : index
    %c0_282 = arith.constant 0 : index
    %c0_283 = arith.constant 0 : index
    %c0_284 = arith.constant 0 : index
    %259 = vector.load %arg13[%c2_281, %c0_282, %c0_283, %c0_284] : memref<4x10x10x64xf32, #tpu.memory_space<vmem>>, vector<1x1x10x64xf32>
    %260 = vector.shape_cast %259 : vector<1x1x10x64xf32> to vector<1x10x64xf32>
    %261 = vector.shape_cast %233 : vector<1x10x64xf32> to vector<1x1x10x64xf32>
    tpu.vector_store %arg13[%c2_281, %c0_282, %c0_283, %c0_284], %261 {strides = array<i32>} : memref<4x10x10x64xf32, #tpu.memory_space<vmem>>, vector<1x1x10x64xf32>,
    %c2_285 = arith.constant 2 : index
    %c9_286 = arith.constant 9 : index
    %c0_287 = arith.constant 0 : index
    %c0_288 = arith.constant 0 : index
    %262 = vector.load %arg13[%c2_285, %c9_286, %c0_287, %c0_288] : memref<4x10x10x64xf32, #tpu.memory_space<vmem>>, vector<1x1x10x64xf32>
    %263 = vector.shape_cast %262 : vector<1x1x10x64xf32> to vector<1x10x64xf32>
    %264 = vector.shape_cast %233 : vector<1x10x64xf32> to vector<1x1x10x64xf32>
    tpu.vector_store %arg13[%c2_285, %c9_286, %c0_287, %c0_288], %264 {strides = array<i32>} : memref<4x10x10x64xf32, #tpu.memory_space<vmem>>, vector<1x1x10x64xf32>,
    %c2_289 = arith.constant 2 : index
    %c0_290 = arith.constant 0 : index
    %c0_291 = arith.constant 0 : index
    %c0_292 = arith.constant 0 : index
    %265 = vector.load %arg13[%c2_289, %c0_290, %c0_291, %c0_292] : memref<4x10x10x64xf32, #tpu.memory_space<vmem>>, vector<1x10x1x64xf32>
    %266 = vector.shape_cast %265 : vector<1x10x1x64xf32> to vector<10x1x64xf32>
    %267 = vector.shape_cast %234 : vector<10x1x64xf32> to vector<1x10x1x64xf32>
    tpu.vector_store %arg13[%c2_289, %c0_290, %c0_291, %c0_292], %267 {strides = array<i32>} : memref<4x10x10x64xf32, #tpu.memory_space<vmem>>, vector<1x10x1x64xf32>,
    %c2_293 = arith.constant 2 : index
    %c0_294 = arith.constant 0 : index
    %c9_295 = arith.constant 9 : index
    %c0_296 = arith.constant 0 : index
    %268 = vector.load %arg13[%c2_293, %c0_294, %c9_295, %c0_296] : memref<4x10x10x64xf32, #tpu.memory_space<vmem>>, vector<1x10x1x64xf32>
    %269 = vector.shape_cast %268 : vector<1x10x1x64xf32> to vector<10x1x64xf32>
    %270 = vector.shape_cast %234 : vector<10x1x64xf32> to vector<1x10x1x64xf32>
    tpu.vector_store %arg13[%c2_293, %c0_294, %c9_295, %c0_296], %270 {strides = array<i32>} : memref<4x10x10x64xf32, #tpu.memory_space<vmem>>, vector<1x10x1x64xf32>,
    %c3_297 = arith.constant 3 : index
    %c0_298 = arith.constant 0 : index
    %c0_299 = arith.constant 0 : index
    %c0_300 = arith.constant 0 : index
    %271 = vector.load %arg13[%c3_297, %c0_298, %c0_299, %c0_300] : memref<4x10x10x64xf32, #tpu.memory_space<vmem>>, vector<1x1x10x64xf32>
    %272 = vector.shape_cast %271 : vector<1x1x10x64xf32> to vector<1x10x64xf32>
    %273 = vector.shape_cast %233 : vector<1x10x64xf32> to vector<1x1x10x64xf32>
    tpu.vector_store %arg13[%c3_297, %c0_298, %c0_299, %c0_300], %273 {strides = array<i32>} : memref<4x10x10x64xf32, #tpu.memory_space<vmem>>, vector<1x1x10x64xf32>,
    %c3_301 = arith.constant 3 : index
    %c9_302 = arith.constant 9 : index
    %c0_303 = arith.constant 0 : index
    %c0_304 = arith.constant 0 : index
    %274 = vector.load %arg13[%c3_301, %c9_302, %c0_303, %c0_304] : memref<4x10x10x64xf32, #tpu.memory_space<vmem>>, vector<1x1x10x64xf32>
    %275 = vector.shape_cast %274 : vector<1x1x10x64xf32> to vector<1x10x64xf32>
    %276 = vector.shape_cast %233 : vector<1x10x64xf32> to vector<1x1x10x64xf32>
    tpu.vector_store %arg13[%c3_301, %c9_302, %c0_303, %c0_304], %276 {strides = array<i32>} : memref<4x10x10x64xf32, #tpu.memory_space<vmem>>, vector<1x1x10x64xf32>,
    %c3_305 = arith.constant 3 : index
    %c0_306 = arith.constant 0 : index
    %c0_307 = arith.constant 0 : index
    %c0_308 = arith.constant 0 : index
    %277 = vector.load %arg13[%c3_305, %c0_306, %c0_307, %c0_308] : memref<4x10x10x64xf32, #tpu.memory_space<vmem>>, vector<1x10x1x64xf32>
    %278 = vector.shape_cast %277 : vector<1x10x1x64xf32> to vector<10x1x64xf32>
    %279 = vector.shape_cast %234 : vector<10x1x64xf32> to vector<1x10x1x64xf32>
    tpu.vector_store %arg13[%c3_305, %c0_306, %c0_307, %c0_308], %279 {strides = array<i32>} : memref<4x10x10x64xf32, #tpu.memory_space<vmem>>, vector<1x10x1x64xf32>,
    %c3_309 = arith.constant 3 : index
    %c0_310 = arith.constant 0 : index
    %c9_311 = arith.constant 9 : index
    %c0_312 = arith.constant 0 : index
    %280 = vector.load %arg13[%c3_309, %c0_310, %c9_311, %c0_312] : memref<4x10x10x64xf32, #tpu.memory_space<vmem>>, vector<1x10x1x64xf32>
    %281 = vector.shape_cast %280 : vector<1x10x1x64xf32> to vector<10x1x64xf32>
    %282 = vector.shape_cast %234 : vector<10x1x64xf32> to vector<1x10x1x64xf32>
    tpu.vector_store %arg13[%c3_309, %c0_310, %c9_311, %c0_312], %282 {strides = array<i32>} : memref<4x10x10x64xf32, #tpu.memory_space<vmem>>, vector<1x10x1x64xf32>,
    %283 = vector.extract_strided_slice %232 {offsets = [0, 0], sizes = [64, 64], strides = [1, 1]} : vector<64x256xf32> to vector<64x64xf32>
    %284 = vector.shape_cast %283 : vector<64x64xf32> to vector<8x8x64xf32>
    %c0_313 = arith.constant 0 : index
    %c1_314 = arith.constant 1 : index
    %c1_315 = arith.constant 1 : index
    %c0_316 = arith.constant 0 : index
    %285 = vector.load %arg13[%c0_313, %c1_314, %c1_315, %c0_316] : memref<4x10x10x64xf32, #tpu.memory_space<vmem>>, vector<1x8x8x64xf32>
    %286 = vector.shape_cast %285 : vector<1x8x8x64xf32> to vector<8x8x64xf32>
    %287 = vector.shape_cast %284 : vector<8x8x64xf32> to vector<1x8x8x64xf32>
    tpu.vector_store %arg13[%c0_313, %c1_314, %c1_315, %c0_316], %287 {strides = array<i32>} : memref<4x10x10x64xf32, #tpu.memory_space<vmem>>, vector<1x8x8x64xf32>,
    %288 = vector.extract_strided_slice %232 {offsets = [0, 64], sizes = [64, 64], strides = [1, 1]} : vector<64x256xf32> to vector<64x64xf32>
    %289 = vector.shape_cast %288 : vector<64x64xf32> to vector<8x8x64xf32>
    %c1_317 = arith.constant 1 : index
    %c1_318 = arith.constant 1 : index
    %c1_319 = arith.constant 1 : index
    %c0_320 = arith.constant 0 : index
    %290 = vector.load %arg13[%c1_317, %c1_318, %c1_319, %c0_320] : memref<4x10x10x64xf32, #tpu.memory_space<vmem>>, vector<1x8x8x64xf32>
    %291 = vector.shape_cast %290 : vector<1x8x8x64xf32> to vector<8x8x64xf32>
    %292 = vector.shape_cast %289 : vector<8x8x64xf32> to vector<1x8x8x64xf32>
    tpu.vector_store %arg13[%c1_317, %c1_318, %c1_319, %c0_320], %292 {strides = array<i32>} : memref<4x10x10x64xf32, #tpu.memory_space<vmem>>, vector<1x8x8x64xf32>,
    %293 = vector.extract_strided_slice %232 {offsets = [0, 128], sizes = [64, 64], strides = [1, 1]} : vector<64x256xf32> to vector<64x64xf32>
    %294 = vector.shape_cast %293 : vector<64x64xf32> to vector<8x8x64xf32>
    %c2_321 = arith.constant 2 : index
    %c1_322 = arith.constant 1 : index
    %c1_323 = arith.constant 1 : index
    %c0_324 = arith.constant 0 : index
    %295 = vector.load %arg13[%c2_321, %c1_322, %c1_323, %c0_324] : memref<4x10x10x64xf32, #tpu.memory_space<vmem>>, vector<1x8x8x64xf32>
    %296 = vector.shape_cast %295 : vector<1x8x8x64xf32> to vector<8x8x64xf32>
    %297 = vector.shape_cast %294 : vector<8x8x64xf32> to vector<1x8x8x64xf32>
    tpu.vector_store %arg13[%c2_321, %c1_322, %c1_323, %c0_324], %297 {strides = array<i32>} : memref<4x10x10x64xf32, #tpu.memory_space<vmem>>, vector<1x8x8x64xf32>,
    %298 = vector.extract_strided_slice %232 {offsets = [0, 192], sizes = [64, 64], strides = [1, 1]} : vector<64x256xf32> to vector<64x64xf32>
    %299 = vector.shape_cast %298 : vector<64x64xf32> to vector<8x8x64xf32>
    %c3_325 = arith.constant 3 : index
    %c1_326 = arith.constant 1 : index
    %c1_327 = arith.constant 1 : index
    %c0_328 = arith.constant 0 : index
    %300 = vector.load %arg13[%c3_325, %c1_326, %c1_327, %c0_328] : memref<4x10x10x64xf32, #tpu.memory_space<vmem>>, vector<1x8x8x64xf32>
    %301 = vector.shape_cast %300 : vector<1x8x8x64xf32> to vector<8x8x64xf32>
    %302 = vector.shape_cast %299 : vector<8x8x64xf32> to vector<1x8x8x64xf32>
    tpu.vector_store %arg13[%c3_325, %c1_326, %c1_327, %c0_328], %302 {strides = array<i32>} : memref<4x10x10x64xf32, #tpu.memory_space<vmem>>, vector<1x8x8x64xf32>,
    %c3_329 = arith.constant 3 : index
    %c0_330 = arith.constant 0 : index
    %c0_331 = arith.constant 0 : index
    %c0_332 = arith.constant 0 : index
    %303 = vector.load %arg13[%c3_329, %c0_330, %c0_331, %c0_332] : memref<4x10x10x64xf32, #tpu.memory_space<vmem>>, vector<1x8x8x64xf32>
    %304 = vector.shape_cast %303 : vector<1x8x8x64xf32> to vector<8x8x64xf32>
    %305 = vector.shape_cast %304 : vector<8x8x64xf32> to vector<64x64xf32>
    %c2_333 = arith.constant 2 : index
    %c0_334 = arith.constant 0 : index
    %c1_335 = arith.constant 1 : index
    %c0_336 = arith.constant 0 : index
    %306 = vector.load %arg13[%c2_333, %c0_334, %c1_335, %c0_336] : memref<4x10x10x64xf32, #tpu.memory_space<vmem>>, vector<1x8x8x64xf32>
    %307 = vector.shape_cast %306 : vector<1x8x8x64xf32> to vector<8x8x64xf32>
    %308 = vector.shape_cast %307 : vector<8x8x64xf32> to vector<64x64xf32>
    %c3_337 = arith.constant 3 : index
    %c0_338 = arith.constant 0 : index
    %c1_339 = arith.constant 1 : index
    %c0_340 = arith.constant 0 : index
    %309 = vector.load %arg13[%c3_337, %c0_338, %c1_339, %c0_340] : memref<4x10x10x64xf32, #tpu.memory_space<vmem>>, vector<1x8x8x64xf32>
    %310 = vector.shape_cast %309 : vector<1x8x8x64xf32> to vector<8x8x64xf32>
    %311 = vector.shape_cast %310 : vector<8x8x64xf32> to vector<64x64xf32>
    %c1_341 = arith.constant 1 : index
    %c1_342 = arith.constant 1 : index
    %c0_343 = arith.constant 0 : index
    %c0_344 = arith.constant 0 : index
    %312 = vector.load %arg13[%c1_341, %c1_342, %c0_343, %c0_344] : memref<4x10x10x64xf32, #tpu.memory_space<vmem>>, vector<1x8x8x64xf32>
    %313 = vector.shape_cast %312 : vector<1x8x8x64xf32> to vector<8x8x64xf32>
    %314 = vector.shape_cast %313 : vector<8x8x64xf32> to vector<64x64xf32>
    %c0_345 = arith.constant 0 : index
    %c1_346 = arith.constant 1 : index
    %c1_347 = arith.constant 1 : index
    %c0_348 = arith.constant 0 : index
    %315 = vector.load %arg13[%c0_345, %c1_346, %c1_347, %c0_348] : memref<4x10x10x64xf32, #tpu.memory_space<vmem>>, vector<1x8x8x64xf32>
    %316 = vector.shape_cast %315 : vector<1x8x8x64xf32> to vector<8x8x64xf32>
    %317 = vector.shape_cast %316 : vector<8x8x64xf32> to vector<64x64xf32>
    %c1_349 = arith.constant 1 : index
    %c1_350 = arith.constant 1 : index
    %c1_351 = arith.constant 1 : index
    %c0_352 = arith.constant 0 : index
    %318 = vector.load %arg13[%c1_349, %c1_350, %c1_351, %c0_352] : memref<4x10x10x64xf32, #tpu.memory_space<vmem>>, vector<1x8x8x64xf32>
    %319 = vector.shape_cast %318 : vector<1x8x8x64xf32> to vector<8x8x64xf32>
    %320 = vector.shape_cast %319 : vector<8x8x64xf32> to vector<64x64xf32>
    %c3_353 = arith.constant 3 : index
    %c1_354 = arith.constant 1 : index
    %c0_355 = arith.constant 0 : index
    %c0_356 = arith.constant 0 : index
    %321 = vector.load %arg13[%c3_353, %c1_354, %c0_355, %c0_356] : memref<4x10x10x64xf32, #tpu.memory_space<vmem>>, vector<1x8x8x64xf32>
    %322 = vector.shape_cast %321 : vector<1x8x8x64xf32> to vector<8x8x64xf32>
    %323 = vector.shape_cast %322 : vector<8x8x64xf32> to vector<64x64xf32>
    %c2_357 = arith.constant 2 : index
    %c1_358 = arith.constant 1 : index
    %c1_359 = arith.constant 1 : index
    %c0_360 = arith.constant 0 : index
    %324 = vector.load %arg13[%c2_357, %c1_358, %c1_359, %c0_360] : memref<4x10x10x64xf32, #tpu.memory_space<vmem>>, vector<1x8x8x64xf32>
    %325 = vector.shape_cast %324 : vector<1x8x8x64xf32> to vector<8x8x64xf32>
    %326 = vector.shape_cast %325 : vector<8x8x64xf32> to vector<64x64xf32>
    %c3_361 = arith.constant 3 : index
    %c1_362 = arith.constant 1 : index
    %c1_363 = arith.constant 1 : index
    %c0_364 = arith.constant 0 : index
    %327 = vector.load %arg13[%c3_361, %c1_362, %c1_363, %c0_364] : memref<4x10x10x64xf32, #tpu.memory_space<vmem>>, vector<1x8x8x64xf32>
    %328 = vector.shape_cast %327 : vector<1x8x8x64xf32> to vector<8x8x64xf32>
    %329 = vector.shape_cast %328 : vector<8x8x64xf32> to vector<64x64xf32>
    %330 = tpu.concatenate %305, %308, %311, %314, %317, %320, %323, %326, %329 in 1 : vector<64x64xf32>, vector<64x64xf32>, vector<64x64xf32>, vector<64x64xf32>, vector<64x64xf32>, vector<64x64xf32>, vector<64x64xf32>, vector<64x64xf32>, vector<64x64xf32> -> vector<64x576xf32>
    %c2_365 = arith.constant 2 : index
    %c0_366 = arith.constant 0 : index
    %c1_367 = arith.constant 1 : index
    %c0_368 = arith.constant 0 : index
    %331 = vector.load %arg13[%c2_365, %c0_366, %c1_367, %c0_368] : memref<4x10x10x64xf32, #tpu.memory_space<vmem>>, vector<1x8x8x64xf32>
    %332 = vector.shape_cast %331 : vector<1x8x8x64xf32> to vector<8x8x64xf32>
    %333 = vector.shape_cast %332 : vector<8x8x64xf32> to vector<64x64xf32>
    %c3_369 = arith.constant 3 : index
    %c0_370 = arith.constant 0 : index
    %c1_371 = arith.constant 1 : index
    %c0_372 = arith.constant 0 : index
    %334 = vector.load %arg13[%c3_369, %c0_370, %c1_371, %c0_372] : memref<4x10x10x64xf32, #tpu.memory_space<vmem>>, vector<1x8x8x64xf32>
    %335 = vector.shape_cast %334 : vector<1x8x8x64xf32> to vector<8x8x64xf32>
    %336 = vector.shape_cast %335 : vector<8x8x64xf32> to vector<64x64xf32>
    %c2_373 = arith.constant 2 : index
    %c0_374 = arith.constant 0 : index
    %c2_375 = arith.constant 2 : index
    %c0_376 = arith.constant 0 : index
    %337 = vector.load %arg13[%c2_373, %c0_374, %c2_375, %c0_376] : memref<4x10x10x64xf32, #tpu.memory_space<vmem>>, vector<1x8x8x64xf32>
    %338 = vector.shape_cast %337 : vector<1x8x8x64xf32> to vector<8x8x64xf32>
    %339 = vector.shape_cast %338 : vector<8x8x64xf32> to vector<64x64xf32>
    %c0_377 = arith.constant 0 : index
    %c1_378 = arith.constant 1 : index
    %c1_379 = arith.constant 1 : index
    %c0_380 = arith.constant 0 : index
    %340 = vector.load %arg13[%c0_377, %c1_378, %c1_379, %c0_380] : memref<4x10x10x64xf32, #tpu.memory_space<vmem>>, vector<1x8x8x64xf32>
    %341 = vector.shape_cast %340 : vector<1x8x8x64xf32> to vector<8x8x64xf32>
    %342 = vector.shape_cast %341 : vector<8x8x64xf32> to vector<64x64xf32>
    %c1_381 = arith.constant 1 : index
    %c1_382 = arith.constant 1 : index
    %c1_383 = arith.constant 1 : index
    %c0_384 = arith.constant 0 : index
    %343 = vector.load %arg13[%c1_381, %c1_382, %c1_383, %c0_384] : memref<4x10x10x64xf32, #tpu.memory_space<vmem>>, vector<1x8x8x64xf32>
    %344 = vector.shape_cast %343 : vector<1x8x8x64xf32> to vector<8x8x64xf32>
    %345 = vector.shape_cast %344 : vector<8x8x64xf32> to vector<64x64xf32>
    %c0_385 = arith.constant 0 : index
    %c1_386 = arith.constant 1 : index
    %c2_387 = arith.constant 2 : index
    %c0_388 = arith.constant 0 : index
    %346 = vector.load %arg13[%c0_385, %c1_386, %c2_387, %c0_388] : memref<4x10x10x64xf32, #tpu.memory_space<vmem>>, vector<1x8x8x64xf32>
    %347 = vector.shape_cast %346 : vector<1x8x8x64xf32> to vector<8x8x64xf32>
    %348 = vector.shape_cast %347 : vector<8x8x64xf32> to vector<64x64xf32>
    %c2_389 = arith.constant 2 : index
    %c1_390 = arith.constant 1 : index
    %c1_391 = arith.constant 1 : index
    %c0_392 = arith.constant 0 : index
    %349 = vector.load %arg13[%c2_389, %c1_390, %c1_391, %c0_392] : memref<4x10x10x64xf32, #tpu.memory_space<vmem>>, vector<1x8x8x64xf32>
    %350 = vector.shape_cast %349 : vector<1x8x8x64xf32> to vector<8x8x64xf32>
    %351 = vector.shape_cast %350 : vector<8x8x64xf32> to vector<64x64xf32>
    %c3_393 = arith.constant 3 : index
    %c1_394 = arith.constant 1 : index
    %c1_395 = arith.constant 1 : index
    %c0_396 = arith.constant 0 : index
    %352 = vector.load %arg13[%c3_393, %c1_394, %c1_395, %c0_396] : memref<4x10x10x64xf32, #tpu.memory_space<vmem>>, vector<1x8x8x64xf32>
    %353 = vector.shape_cast %352 : vector<1x8x8x64xf32> to vector<8x8x64xf32>
    %354 = vector.shape_cast %353 : vector<8x8x64xf32> to vector<64x64xf32>
    %c2_397 = arith.constant 2 : index
    %c1_398 = arith.constant 1 : index
    %c2_399 = arith.constant 2 : index
    %c0_400 = arith.constant 0 : index
    %355 = vector.load %arg13[%c2_397, %c1_398, %c2_399, %c0_400] : memref<4x10x10x64xf32, #tpu.memory_space<vmem>>, vector<1x8x8x64xf32>
    %356 = vector.shape_cast %355 : vector<1x8x8x64xf32> to vector<8x8x64xf32>
    %357 = vector.shape_cast %356 : vector<8x8x64xf32> to vector<64x64xf32>
    %358 = tpu.concatenate %333, %336, %339, %342, %345, %348, %351, %354, %357 in 1 : vector<64x64xf32>, vector<64x64xf32>, vector<64x64xf32>, vector<64x64xf32>, vector<64x64xf32>, vector<64x64xf32>, vector<64x64xf32>, vector<64x64xf32>, vector<64x64xf32> -> vector<64x576xf32>
    %c1_401 = arith.constant 1 : index
    %c1_402 = arith.constant 1 : index
    %c0_403 = arith.constant 0 : index
    %c0_404 = arith.constant 0 : index
    %359 = vector.load %arg13[%c1_401, %c1_402, %c0_403, %c0_404] : memref<4x10x10x64xf32, #tpu.memory_space<vmem>>, vector<1x8x8x64xf32>
    %360 = vector.shape_cast %359 : vector<1x8x8x64xf32> to vector<8x8x64xf32>
    %361 = vector.shape_cast %360 : vector<8x8x64xf32> to vector<64x64xf32>
    %c0_405 = arith.constant 0 : index
    %c1_406 = arith.constant 1 : index
    %c1_407 = arith.constant 1 : index
    %c0_408 = arith.constant 0 : index
    %362 = vector.load %arg13[%c0_405, %c1_406, %c1_407, %c0_408] : memref<4x10x10x64xf32, #tpu.memory_space<vmem>>, vector<1x8x8x64xf32>
    %363 = vector.shape_cast %362 : vector<1x8x8x64xf32> to vector<8x8x64xf32>
    %364 = vector.shape_cast %363 : vector<8x8x64xf32> to vector<64x64xf32>
    %c1_409 = arith.constant 1 : index
    %c1_410 = arith.constant 1 : index
    %c1_411 = arith.constant 1 : index
    %c0_412 = arith.constant 0 : index
    %365 = vector.load %arg13[%c1_409, %c1_410, %c1_411, %c0_412] : memref<4x10x10x64xf32, #tpu.memory_space<vmem>>, vector<1x8x8x64xf32>
    %366 = vector.shape_cast %365 : vector<1x8x8x64xf32> to vector<8x8x64xf32>
    %367 = vector.shape_cast %366 : vector<8x8x64xf32> to vector<64x64xf32>
    %c3_413 = arith.constant 3 : index
    %c1_414 = arith.constant 1 : index
    %c0_415 = arith.constant 0 : index
    %c0_416 = arith.constant 0 : index
    %368 = vector.load %arg13[%c3_413, %c1_414, %c0_415, %c0_416] : memref<4x10x10x64xf32, #tpu.memory_space<vmem>>, vector<1x8x8x64xf32>
    %369 = vector.shape_cast %368 : vector<1x8x8x64xf32> to vector<8x8x64xf32>
    %370 = vector.shape_cast %369 : vector<8x8x64xf32> to vector<64x64xf32>
    %c2_417 = arith.constant 2 : index
    %c1_418 = arith.constant 1 : index
    %c1_419 = arith.constant 1 : index
    %c0_420 = arith.constant 0 : index
    %371 = vector.load %arg13[%c2_417, %c1_418, %c1_419, %c0_420] : memref<4x10x10x64xf32, #tpu.memory_space<vmem>>, vector<1x8x8x64xf32>
    %372 = vector.shape_cast %371 : vector<1x8x8x64xf32> to vector<8x8x64xf32>
    %373 = vector.shape_cast %372 : vector<8x8x64xf32> to vector<64x64xf32>
    %c3_421 = arith.constant 3 : index
    %c1_422 = arith.constant 1 : index
    %c1_423 = arith.constant 1 : index
    %c0_424 = arith.constant 0 : index
    %374 = vector.load %arg13[%c3_421, %c1_422, %c1_423, %c0_424] : memref<4x10x10x64xf32, #tpu.memory_space<vmem>>, vector<1x8x8x64xf32>
    %375 = vector.shape_cast %374 : vector<1x8x8x64xf32> to vector<8x8x64xf32>
    %376 = vector.shape_cast %375 : vector<8x8x64xf32> to vector<64x64xf32>
    %c1_425 = arith.constant 1 : index
    %c2_426 = arith.constant 2 : index
    %c0_427 = arith.constant 0 : index
    %c0_428 = arith.constant 0 : index
    %377 = vector.load %arg13[%c1_425, %c2_426, %c0_427, %c0_428] : memref<4x10x10x64xf32, #tpu.memory_space<vmem>>, vector<1x8x8x64xf32>
    %378 = vector.shape_cast %377 : vector<1x8x8x64xf32> to vector<8x8x64xf32>
    %379 = vector.shape_cast %378 : vector<8x8x64xf32> to vector<64x64xf32>
    %c0_429 = arith.constant 0 : index
    %c2_430 = arith.constant 2 : index
    %c1_431 = arith.constant 1 : index
    %c0_432 = arith.constant 0 : index
    %380 = vector.load %arg13[%c0_429, %c2_430, %c1_431, %c0_432] : memref<4x10x10x64xf32, #tpu.memory_space<vmem>>, vector<1x8x8x64xf32>
    %381 = vector.shape_cast %380 : vector<1x8x8x64xf32> to vector<8x8x64xf32>
    %382 = vector.shape_cast %381 : vector<8x8x64xf32> to vector<64x64xf32>
    %c1_433 = arith.constant 1 : index
    %c2_434 = arith.constant 2 : index
    %c1_435 = arith.constant 1 : index
    %c0_436 = arith.constant 0 : index
    %383 = vector.load %arg13[%c1_433, %c2_434, %c1_435, %c0_436] : memref<4x10x10x64xf32, #tpu.memory_space<vmem>>, vector<1x8x8x64xf32>
    %384 = vector.shape_cast %383 : vector<1x8x8x64xf32> to vector<8x8x64xf32>
    %385 = vector.shape_cast %384 : vector<8x8x64xf32> to vector<64x64xf32>
    %386 = tpu.concatenate %361, %364, %367, %370, %373, %376, %379, %382, %385 in 1 : vector<64x64xf32>, vector<64x64xf32>, vector<64x64xf32>, vector<64x64xf32>, vector<64x64xf32>, vector<64x64xf32>, vector<64x64xf32>, vector<64x64xf32>, vector<64x64xf32> -> vector<64x576xf32>
    %c0_437 = arith.constant 0 : index
    %c1_438 = arith.constant 1 : index
    %c1_439 = arith.constant 1 : index
    %c0_440 = arith.constant 0 : index
    %387 = vector.load %arg13[%c0_437, %c1_438, %c1_439, %c0_440] : memref<4x10x10x64xf32, #tpu.memory_space<vmem>>, vector<1x8x8x64xf32>
    %388 = vector.shape_cast %387 : vector<1x8x8x64xf32> to vector<8x8x64xf32>
    %389 = vector.shape_cast %388 : vector<8x8x64xf32> to vector<64x64xf32>
    %c1_441 = arith.constant 1 : index
    %c1_442 = arith.constant 1 : index
    %c1_443 = arith.constant 1 : index
    %c0_444 = arith.constant 0 : index
    %390 = vector.load %arg13[%c1_441, %c1_442, %c1_443, %c0_444] : memref<4x10x10x64xf32, #tpu.memory_space<vmem>>, vector<1x8x8x64xf32>
    %391 = vector.shape_cast %390 : vector<1x8x8x64xf32> to vector<8x8x64xf32>
    %392 = vector.shape_cast %391 : vector<8x8x64xf32> to vector<64x64xf32>
    %c0_445 = arith.constant 0 : index
    %c1_446 = arith.constant 1 : index
    %c2_447 = arith.constant 2 : index
    %c0_448 = arith.constant 0 : index
    %393 = vector.load %arg13[%c0_445, %c1_446, %c2_447, %c0_448] : memref<4x10x10x64xf32, #tpu.memory_space<vmem>>, vector<1x8x8x64xf32>
    %394 = vector.shape_cast %393 : vector<1x8x8x64xf32> to vector<8x8x64xf32>
    %395 = vector.shape_cast %394 : vector<8x8x64xf32> to vector<64x64xf32>
    %c2_449 = arith.constant 2 : index
    %c1_450 = arith.constant 1 : index
    %c1_451 = arith.constant 1 : index
    %c0_452 = arith.constant 0 : index
    %396 = vector.load %arg13[%c2_449, %c1_450, %c1_451, %c0_452] : memref<4x10x10x64xf32, #tpu.memory_space<vmem>>, vector<1x8x8x64xf32>
    %397 = vector.shape_cast %396 : vector<1x8x8x64xf32> to vector<8x8x64xf32>
    %398 = vector.shape_cast %397 : vector<8x8x64xf32> to vector<64x64xf32>
    %c3_453 = arith.constant 3 : index
    %c1_454 = arith.constant 1 : index
    %c1_455 = arith.constant 1 : index
    %c0_456 = arith.constant 0 : index
    %399 = vector.load %arg13[%c3_453, %c1_454, %c1_455, %c0_456] : memref<4x10x10x64xf32, #tpu.memory_space<vmem>>, vector<1x8x8x64xf32>
    %400 = vector.shape_cast %399 : vector<1x8x8x64xf32> to vector<8x8x64xf32>
    %401 = vector.shape_cast %400 : vector<8x8x64xf32> to vector<64x64xf32>
    %c2_457 = arith.constant 2 : index
    %c1_458 = arith.constant 1 : index
    %c2_459 = arith.constant 2 : index
    %c0_460 = arith.constant 0 : index
    %402 = vector.load %arg13[%c2_457, %c1_458, %c2_459, %c0_460] : memref<4x10x10x64xf32, #tpu.memory_space<vmem>>, vector<1x8x8x64xf32>
    %403 = vector.shape_cast %402 : vector<1x8x8x64xf32> to vector<8x8x64xf32>
    %404 = vector.shape_cast %403 : vector<8x8x64xf32> to vector<64x64xf32>
    %c0_461 = arith.constant 0 : index
    %c2_462 = arith.constant 2 : index
    %c1_463 = arith.constant 1 : index
    %c0_464 = arith.constant 0 : index
    %405 = vector.load %arg13[%c0_461, %c2_462, %c1_463, %c0_464] : memref<4x10x10x64xf32, #tpu.memory_space<vmem>>, vector<1x8x8x64xf32>
    %406 = vector.shape_cast %405 : vector<1x8x8x64xf32> to vector<8x8x64xf32>
    %407 = vector.shape_cast %406 : vector<8x8x64xf32> to vector<64x64xf32>
    %c1_465 = arith.constant 1 : index
    %c2_466 = arith.constant 2 : index
    %c1_467 = arith.constant 1 : index
    %c0_468 = arith.constant 0 : index
    %408 = vector.load %arg13[%c1_465, %c2_466, %c1_467, %c0_468] : memref<4x10x10x64xf32, #tpu.memory_space<vmem>>, vector<1x8x8x64xf32>
    %409 = vector.shape_cast %408 : vector<1x8x8x64xf32> to vector<8x8x64xf32>
    %410 = vector.shape_cast %409 : vector<8x8x64xf32> to vector<64x64xf32>
    %c0_469 = arith.constant 0 : index
    %c2_470 = arith.constant 2 : index
    %c2_471 = arith.constant 2 : index
    %c0_472 = arith.constant 0 : index
    %411 = vector.load %arg13[%c0_469, %c2_470, %c2_471, %c0_472] : memref<4x10x10x64xf32, #tpu.memory_space<vmem>>, vector<1x8x8x64xf32>
    %412 = vector.shape_cast %411 : vector<1x8x8x64xf32> to vector<8x8x64xf32>
    %413 = vector.shape_cast %412 : vector<8x8x64xf32> to vector<64x64xf32>
    %414 = tpu.concatenate %389, %392, %395, %398, %401, %404, %407, %410, %413 in 1 : vector<64x64xf32>, vector<64x64xf32>, vector<64x64xf32>, vector<64x64xf32>, vector<64x64xf32>, vector<64x64xf32>, vector<64x64xf32>, vector<64x64xf32>, vector<64x64xf32> -> vector<64x576xf32>
    %415 = tpu.concatenate %330, %358, %386, %414 in 0 : vector<64x576xf32>, vector<64x576xf32>, vector<64x576xf32>, vector<64x576xf32> -> vector<256x576xf32>
    %c0_473 = arith.constant 0 : index
    %c0_474 = arith.constant 0 : index
    %416 = vector.load %arg9[%c0_473, %c0_474] : memref<576x128xf32, #tpu.memory_space<vmem>>, vector<576x128xf32>
    %cst_475 = arith.constant dense<0.000000e+00> : vector<256x128xf32>
    %417 = tpu.matmul %415, %416, %cst_475 {dimension_numbers = #tpu.dot_dimension_numbers<[1], [0], [0], [1], [0, 0, 1, 1], [], []>} : vector<256x576xf32>, vector<576x128xf32>, vector<256x128xf32> -> vector<256x128xf32>
    %418 = vector.extract_strided_slice %417 {offsets = [0, 0], sizes = [256, 1], strides = [1, 1]} : vector<256x128xf32> to vector<256x1xf32>
    %c0_476 = arith.constant 0 : index
    %c0_477 = arith.constant 0 : index
    %419 = vector.load %arg10[%c0_476, %c0_477] : memref<1x1xf32, #tpu.memory_space<vmem>>, vector<1x1xf32>
    %420 = vector.broadcast %419 : vector<1x1xf32> to vector<256x1xf32>
    %421 = arith.addf %418, %420 : vector<256x1xf32>
    %cst_478 = arith.constant 0.000000e+00 : f32
    %422 = vector.broadcast %cst_478 : f32 to vector<256x1xf32>
    %423 = arith.subf %422, %421 : vector<256x1xf32>
    %424 = math.exp %423 : vector<256x1xf32>
    %cst_479 = arith.constant 1.000000e+00 : f32
    %425 = vector.broadcast %cst_479 : f32 to vector<256x1xf32>
    %426 = arith.addf %425, %424 : vector<256x1xf32>
    %cst_480 = arith.constant 1.000000e+00 : f32
    %427 = vector.broadcast %cst_480 : f32 to vector<256x1xf32>
    %428 = arith.divf %427, %426 : vector<256x1xf32>
    %c0_481 = arith.constant 0 : index
    %c0_482 = arith.constant 0 : index
    %c0_483 = arith.constant 0 : index
    %429 = vector.load %arg2[%c0_481, %c0_482, %c0_483] : memref<1x256x1xf32, #tpu.memory_space<vmem>>, vector<1x256x1xf32>
    %430 = vector.shape_cast %429 : vector<1x256x1xf32> to vector<256x1xf32>
    %431 = arith.addf %428, %430 : vector<256x1xf32>
    %c0_484 = arith.constant 0 : index
    %c0_485 = arith.constant 0 : index
    %c0_486 = arith.constant 0 : index
    %432 = vector.load %arg11[%c0_484, %c0_485, %c0_486] : memref<1x256x1xf32, #tpu.memory_space<vmem>>, vector<1x256x1xf32>
    %433 = vector.shape_cast %432 : vector<1x256x1xf32> to vector<256x1xf32>
    %434 = vector.shape_cast %431 : vector<256x1xf32> to vector<1x256x1xf32>
    tpu.vector_store %arg11[%c0_484, %c0_485, %c0_486], %434 {strides = array<i32>} : memref<1x256x1xf32, #tpu.memory_space<vmem>>, vector<1x256x1xf32>,
    return
  }
  func.func @transform_0(%arg0: i32) -> (i32, i32, i32) {
    %c0_i32 = arith.constant 0 : i32
    %c0_i32_0 = arith.constant 0 : i32
    %c0_i32_1 = arith.constant 0 : i32
    return %arg0, %c0_i32, %c0_i32_0 : i32, i32, i32
  }
  func.func @transform_1(%arg0: i32) -> (i32, i32, i32) {
    %c0_i32 = arith.constant 0 : i32
    %c0_i32_0 = arith.constant 0 : i32
    %c0_i32_1 = arith.constant 0 : i32
    return %arg0, %c0_i32, %c0_i32_0 : i32, i32, i32
  }
  func.func @transform_2(%arg0: i32) -> (i32, i32) {
    %c0_i32 = arith.constant 0 : i32
    %c0_i32_0 = arith.constant 0 : i32
    %c0_i32_1 = arith.constant 0 : i32
    return %c0_i32, %c0_i32_0 : i32, i32
  }
  func.func @transform_3(%arg0: i32) -> (i32, i32) {
    %c0_i32 = arith.constant 0 : i32
    %c0_i32_0 = arith.constant 0 : i32
    %c0_i32_1 = arith.constant 0 : i32
    return %c0_i32, %c0_i32_0 : i32, i32
  }
  func.func @transform_4(%arg0: i32) -> (i32, i32) {
    %c0_i32 = arith.constant 0 : i32
    %c0_i32_0 = arith.constant 0 : i32
    %c0_i32_1 = arith.constant 0 : i32
    return %c0_i32, %c0_i32_0 : i32, i32
  }
  func.func @transform_5(%arg0: i32) -> (i32, i32) {
    %c0_i32 = arith.constant 0 : i32
    %c0_i32_0 = arith.constant 0 : i32
    %c0_i32_1 = arith.constant 0 : i32
    return %c0_i32, %c0_i32_0 : i32, i32
  }
  func.func @transform_6(%arg0: i32) -> (i32, i32) {
    %c0_i32 = arith.constant 0 : i32
    %c0_i32_0 = arith.constant 0 : i32
    %c0_i32_1 = arith.constant 0 : i32
    return %c0_i32, %c0_i32_0 : i32, i32
  }
  func.func @transform_7(%arg0: i32) -> (i32, i32) {
    %c0_i32 = arith.constant 0 : i32
    %c0_i32_0 = arith.constant 0 : i32
    %c0_i32_1 = arith.constant 0 : i32
    return %c0_i32, %c0_i32_0 : i32, i32
  }
  func.func @transform_8(%arg0: i32) -> (i32, i32) {
    %c0_i32 = arith.constant 0 : i32
    %c0_i32_0 = arith.constant 0 : i32
    %c0_i32_1 = arith.constant 0 : i32
    return %c0_i32, %c0_i32_0 : i32, i32
  }
  func.func @transform_9(%arg0: i32) -> (i32, i32) {
    %c0_i32 = arith.constant 0 : i32
    %c0_i32_0 = arith.constant 0 : i32
    %c0_i32_1 = arith.constant 0 : i32
    return %c0_i32, %c0_i32_0 : i32, i32
  }
  func.func @transform_10(%arg0: i32) -> (i32, i32, i32) {
    %c0_i32 = arith.constant 0 : i32
    %c0_i32_0 = arith.constant 0 : i32
    %c0_i32_1 = arith.constant 0 : i32
    return %arg0, %c0_i32, %c0_i32_0 : i32, i32, i32
  }
}

</mosaic_0001>

<llo_original>
// kernel: tile.8
$region0: #{tile.8}
  #allocation0 [shape = 's32[1]{0}', space=sflag, size = 0x4, scoped, tag = 'scoped memory for tile.8']
  %s0 = inlined_call_operand.vmem [shape: f32[64], index: 0, kind: input, shape index: {}]
  %s1 = inlined_call_operand.vmem [shape: f32[4,64], index: 1, kind: output, shape index: {}]
  // Predicated region
  $region2: #{tile.8} parent=0 // pred_check
    _
  $region3: #{tile.8} parent=0 // pred_check_branch
    %3 = sbr.rel (0) target = $region5
  $region4: #{tile.8} parent=0 // pred_region
    _
  $region5: #{tile.8} parent=0 // pred_fallthru
    _
  %v4 = vld [vmem:[%s0] ss:$0 sm:$0xff]
  %5 = vst [vmem:[%s1] sm:$0xf] %v4

// kernel: tile.9
$region0: #{tile.9}
  %s0 = inlined_call_operand.vmem [shape: f32[4,64], index: 0, kind: input, shape index: {}]
  %s1 = inlined_call_operand.vmem [shape: f32[1,256], index: 1, kind: output, shape index: {}]
  $region1: #{tile.9} parent=0
    #allocation0 [shape = 'u8[8192]{0}', space=vmem, size = 0x2000, scoped, tag = 'scoped mem for output reshape']
    #allocation1 [shape = 'u8[4096]{0}', space=vmem, size = 0x1000, scoped, tag = 'scoped mem for input reshape']
    %s3 = sshll.u32 1, 4
    %s4 = ssub.s32 %s3, 1
    %v5 = vld [vmem:[%s0] sm:%s4]
    %6 = vst [vmem:[#allocation1] sm:%s4] %v5
    %s7 = smov 3
    %v8 = vld [vmem:[#allocation1] ss:$2 sm:%s7]
    %vm9 = vcmask 523264
    %10 = vst.msk [vmem:[#allocation0] ss:$8 sm:$0x3] %vm9, %v8
    %s11 = scalar_lea.vmem [#allocation1], 1
    %s12 = smov 3
    %v13 = vld [vmem:[%s11] ss:$2 sm:%s12]
    %14 = vrot.lane.b32.xlu0 %v13, 64
    %v15 = vpop.permute.xlu0 %14
    %vm16 = vcmask 1048064
    %17 = vst.msk [vmem:[#allocation0] ss:$8 sm:$0x3] %vm16, %v15
    %s19 = sshll.u32 1, 1
    %s20 = ssub.s32 %s19, 1
    %v22 = vld [vmem:[#allocation0] sm:%s20]
    %s23 = sshll.u32 1, 1
    %s24 = ssub.s32 %s23, 1
    %25 = vst [vmem:[%s1] sm:%s24] %v22
    %s26 = scalar_lea.vmem [#allocation0], 8
    %v27 = vld [vmem:[%s26] sm:%s20]
    %s28 = sshll.u32 1, 1
    %s29 = ssub.s32 %s28, 1
    %s30 = scalar_lea.vmem %s1, 1
    %31 = vst [vmem:[%s30] sm:%s29] %v27

// kernel: depthmap_cnn_forward.1
$region0: #{depthmap_cnn_forward.1}
  #allocation0 [shape = 'u32[]', space=smem, size = 0x4, offset = 0x4, fixed_abs, tag = 'smem constant byte address 0x4 - core index']
  #allocation1 [shape = 'u32[144,128]{1,0:T(1,128)}', space=vmem, size = 0x12000, scoped, tag = 'internal scratch']
  #allocation2 [shape = 'f32[4,10,10,64]{3,2,1,0:T(8,128)}', space=vmem, size = 0x50000, scoped, tag = 'scratch operand']
  #allocation3 [shape = 'f32[4,10,10,64]{3,2,1,0:T(8,128)}', space=vmem, size = 0x50000, scoped, tag = 'scratch operand']
  #allocation4 [shape = 'f32[1,1]{1,0:T(1,128)S(1)}', space=vmem, size = 0x200, scoped, tag = 'scoped memory for depthmap_cnn_forward.1']
  %s0 = inlined_call_operand.vmem [shape: f32[2,256,9], index: 0, kind: input, shape index: {}]
  %s1 = inlined_call_operand.vmem [shape: f32[2,256,1], index: 1, kind: input, shape index: {}]
  %s2 = inlined_call_operand.vmem [shape: f32[9,64], index: 2, kind: input, shape index: {}]
  %s3 = inlined_call_operand.vmem [shape: f32[1,64], index: 3, kind: input, shape index: {}]
  %s4 = inlined_call_operand.vmem [shape: bf16[576,128], index: 4, kind: input, shape index: {}]
  %s5 = inlined_call_operand.vmem [shape: f32[1,128], index: 5, kind: input, shape index: {}]
  %s6 = inlined_call_operand.vmem [shape: bf16[128,256], index: 6, kind: input, shape index: {}]
  %s7 = inlined_call_operand.vmem [shape: f32[1,256], index: 7, kind: input, shape index: {}]
  %s8 = inlined_call_operand.vmem [shape: f32[576,128], index: 8, kind: input, shape index: {}]
  %s9 = inlined_call_operand.<no memory space> [shape: f32[1,1], index: 9, kind: input, shape index: {}]
  %s10 = inlined_call_operand.vmem [shape: f32[2,256,1], index: 10, kind: output, shape index: {}]
  %s11 = sld [smem:[#allocation0]]
  $region73: #{depthmap_cnn_forward.1} parent=0
    _
  %s13 = ssub.s32 1, %s11
  %s14 = scalar_select 0, %s13, %s11
  %v15 = vstv %s9
  %16 = vst [vmem:[#allocation4] sm:$0x1] %v15
  loop: start=0, step=1, limit=4
  $region2: #{depthmap_cnn_forward.1} parent=0 // loop_pre_header
    _
  $region3: #{depthmap_cnn_forward.1} parent=0 // loop_header
    %s18 = sphi 0, %s22
    %p19 = scmp.ge.s32.totalorder %s18, 4
    %s28 = sphi 0, %s30
    %s31 = sphi 0, %s28
    %s32 = sphi 0, %s31
    %s48 = sphi 0, %s32
    %s54 = sphi 0, %s56
    %s57 = sphi 0, %s54
    %s58 = sphi 0, %s57
    %s74 = sphi 0, %s58
    %s78 = sphi 0, %s78
    %s80 = sphi 0, %s78
    %s81 = sphi 0, %s80
    %s95 = sphi 0, %s81
    %s99 = sphi 0, %s99
    %s101 = sphi 0, %s99
    %s102 = sphi 0, %s101
    %s116 = sphi 0, %s102
    %s120 = sphi 0, %s120
    %s122 = sphi 0, %s120
    %s123 = sphi 0, %s122
    %s137 = sphi 0, %s123
    %s141 = sphi 0, %s141
    %s143 = sphi 0, %s141
    %s144 = sphi 0, %s143
    %s158 = sphi 0, %s144
    %s162 = sphi 0, %s162
    %s164 = sphi 0, %s162
    %s165 = sphi 0, %s164
    %s179 = sphi 0, %s165
    %s183 = sphi 0, %s183
    %s185 = sphi 0, %s183
    %s186 = sphi 0, %s185
    %s200 = sphi 0, %s186
    %s204 = sphi 0, %s204
    %s206 = sphi 0, %s204
    %s207 = sphi 0, %s206
    %s221 = sphi 0, %s207
    %s225 = sphi 0, %s225
    %s227 = sphi 0, %s225
    %s228 = sphi 0, %s227
    %s242 = sphi 0, %s228
    %s248 = sphi 0, %s250
    %s251 = sphi 0, %s248
    %s252 = sphi 0, %s251
    %s268 = sphi 0, %s252
  $region4: #{depthmap_cnn_forward.1} parent=0 // loop_header_branch
    %21 = sbr.rel (%p19) target = $region8
  $region5: #{depthmap_cnn_forward.1} parent=0 // loop_body
    %s23 = ssub.s32 %s18, 1
    %s24 = ssub.s32 %s18, 2
    %s25 = sadd.s32 %s18, 1
    %s26 = ssub.s32 %s18, %s25
    %p27 = scmp.eq.s32.totalorder %s26, 0
    %s29 = sadd.s32 %s28, 1
    %s30 = scalar_select %p27, %s28, %s29
    %p33 = pneg %p27
    %p34 = scmp.eq.s32.totalorder %s18, 1
    %p35 = por %p33, %p34
    %p36 = scmp.ne.s32.totalorder %s28, %s31
    %p37 = scmp.eq.s32.totalorder %s18, 0
    %p38 = por %p36, %p37
    %p39 = scmp.ne.s32.totalorder %s28, %s31
    %p40 = scmp.eq.s32.totalorder %s23, 1
    %p41 = por %p39, %p40
    %p42 = scmp.ne.s32.totalorder %s31, %s32
    %p43 = scmp.eq.s32.totalorder %s23, 0
    %p44 = por %p42, %p43
    %p45 = scmp.ne.s32.totalorder %s31, %s32
    %p46 = scmp.eq.s32.totalorder %s24, 1
    %p47 = por %p45, %p46
    %p49 = scmp.ne.s32.totalorder %s32, %s48
    %p50 = scmp.eq.s32.totalorder %s24, 0
    %p51 = por %p49, %p50
    %s52 = ssub.s32 %s18, %s25
    %p53 = scmp.eq.s32.totalorder %s52, 0
    %s55 = sadd.s32 %s54, 1
    %s56 = scalar_select %p53, %s54, %s55
    %p59 = pneg %p53
    %p60 = scmp.eq.s32.totalorder %s18, 1
    %p61 = por %p59, %p60
    %p62 = scmp.ne.s32.totalorder %s54, %s57
    %p63 = scmp.eq.s32.totalorder %s18, 0
    %p64 = por %p62, %p63
    %p65 = scmp.ne.s32.totalorder %s54, %s57
    %p66 = scmp.eq.s32.totalorder %s23, 1
    %p67 = por %p65, %p66
    %p68 = scmp.ne.s32.totalorder %s57, %s58
    %p69 = scmp.eq.s32.totalorder %s23, 0
    %p70 = por %p68, %p69
    %p71 = scmp.ne.s32.totalorder %s57, %s58
    %p72 = scmp.eq.s32.totalorder %s24, 1
    %p73 = por %p71, %p72
    %p75 = scmp.ne.s32.totalorder %s58, %s74
    %p76 = scmp.eq.s32.totalorder %s24, 0
    %p77 = por %p75, %p76
    %s79 = sadd.s32 %s78, 1
    %p82 = scmp.eq.s32.totalorder %s18, 1
    %p83 = scmp.ne.s32.totalorder %s78, %s80
    %p84 = scmp.eq.s32.totalorder %s18, 0
    %p85 = por %p83, %p84
    %p86 = scmp.ne.s32.totalorder %s78, %s80
    %p87 = scmp.eq.s32.totalorder %s23, 1
    %p88 = por %p86, %p87
    %p89 = scmp.ne.s32.totalorder %s80, %s81
    %p90 = scmp.eq.s32.totalorder %s23, 0
    %p91 = por %p89, %p90
    %p92 = scmp.ne.s32.totalorder %s80, %s81
    %p93 = scmp.eq.s32.totalorder %s24, 1
    %p94 = por %p92, %p93
    %p96 = scmp.ne.s32.totalorder %s81, %s95
    %p97 = scmp.eq.s32.totalorder %s24, 0
    %p98 = por %p96, %p97
    %s100 = sadd.s32 %s99, 1
    %p103 = scmp.eq.s32.totalorder %s18, 1
    %p104 = scmp.ne.s32.totalorder %s99, %s101
    %p105 = scmp.eq.s32.totalorder %s18, 0
    %p106 = por %p104, %p105
    %p107 = scmp.ne.s32.totalorder %s99, %s101
    %p108 = scmp.eq.s32.totalorder %s23, 1
    %p109 = por %p107, %p108
    %p110 = scmp.ne.s32.totalorder %s101, %s102
    %p111 = scmp.eq.s32.totalorder %s23, 0
    %p112 = por %p110, %p111
    %p113 = scmp.ne.s32.totalorder %s101, %s102
    %p114 = scmp.eq.s32.totalorder %s24, 1
    %p115 = por %p113, %p114
    %p117 = scmp.ne.s32.totalorder %s102, %s116
    %p118 = scmp.eq.s32.totalorder %s24, 0
    %p119 = por %p117, %p118
    %s121 = sadd.s32 %s120, 1
    %p124 = scmp.eq.s32.totalorder %s18, 1
    %p125 = scmp.ne.s32.totalorder %s120, %s122
    %p126 = scmp.eq.s32.totalorder %s18, 0
    %p127 = por %p125, %p126
    %p128 = scmp.ne.s32.totalorder %s120, %s122
    %p129 = scmp.eq.s32.totalorder %s23, 1
    %p130 = por %p128, %p129
    %p131 = scmp.ne.s32.totalorder %s122, %s123
    %p132 = scmp.eq.s32.totalorder %s23, 0
    %p133 = por %p131, %p132
    %p134 = scmp.ne.s32.totalorder %s122, %s123
    %p135 = scmp.eq.s32.totalorder %s24, 1
    %p136 = por %p134, %p135
    %p138 = scmp.ne.s32.totalorder %s123, %s137
    %p139 = scmp.eq.s32.totalorder %s24, 0
    %p140 = por %p138, %p139
    %s142 = sadd.s32 %s141, 1
    %p145 = scmp.eq.s32.totalorder %s18, 1
    %p146 = scmp.ne.s32.totalorder %s141, %s143
    %p147 = scmp.eq.s32.totalorder %s18, 0
    %p148 = por %p146, %p147
    %p149 = scmp.ne.s32.totalorder %s141, %s143
    %p150 = scmp.eq.s32.totalorder %s23, 1
    %p151 = por %p149, %p150
    %p152 = scmp.ne.s32.totalorder %s143, %s144
    %p153 = scmp.eq.s32.totalorder %s23, 0
    %p154 = por %p152, %p153
    %p155 = scmp.ne.s32.totalorder %s143, %s144
    %p156 = scmp.eq.s32.totalorder %s24, 1
    %p157 = por %p155, %p156
    %p159 = scmp.ne.s32.totalorder %s144, %s158
    %p160 = scmp.eq.s32.totalorder %s24, 0
    %p161 = por %p159, %p160
    %s163 = sadd.s32 %s162, 1
    %p166 = scmp.eq.s32.totalorder %s18, 1
    %p167 = scmp.ne.s32.totalorder %s162, %s164
    %p168 = scmp.eq.s32.totalorder %s18, 0
    %p169 = por %p167, %p168
    %p170 = scmp.ne.s32.totalorder %s162, %s164
    %p171 = scmp.eq.s32.totalorder %s23, 1
    %p172 = por %p170, %p171
    %p173 = scmp.ne.s32.totalorder %s164, %s165
    %p174 = scmp.eq.s32.totalorder %s23, 0
    %p175 = por %p173, %p174
    %p176 = scmp.ne.s32.totalorder %s164, %s165
    %p177 = scmp.eq.s32.totalorder %s24, 1
    %p178 = por %p176, %p177
    %p180 = scmp.ne.s32.totalorder %s165, %s179
    %p181 = scmp.eq.s32.totalorder %s24, 0
    %p182 = por %p180, %p181
    %s184 = sadd.s32 %s183, 1
    %p187 = scmp.eq.s32.totalorder %s18, 1
    %p188 = scmp.ne.s32.totalorder %s183, %s185
    %p189 = scmp.eq.s32.totalorder %s18, 0
    %p190 = por %p188, %p189
    %p191 = scmp.ne.s32.totalorder %s183, %s185
    %p192 = scmp.eq.s32.totalorder %s23, 1
    %p193 = por %p191, %p192
    %p194 = scmp.ne.s32.totalorder %s185, %s186
    %p195 = scmp.eq.s32.totalorder %s23, 0
    %p196 = por %p194, %p195
    %p197 = scmp.ne.s32.totalorder %s185, %s186
    %p198 = scmp.eq.s32.totalorder %s24, 1
    %p199 = por %p197, %p198
    %p201 = scmp.ne.s32.totalorder %s186, %s200
    %p202 = scmp.eq.s32.totalorder %s24, 0
    %p203 = por %p201, %p202
    %s205 = sadd.s32 %s204, 1
    %p208 = scmp.eq.s32.totalorder %s18, 1
    %p209 = scmp.ne.s32.totalorder %s204, %s206
    %p210 = scmp.eq.s32.totalorder %s18, 0
    %p211 = por %p209, %p210
    %p212 = scmp.ne.s32.totalorder %s204, %s206
    %p213 = scmp.eq.s32.totalorder %s23, 1
    %p214 = por %p212, %p213
    %p215 = scmp.ne.s32.totalorder %s206, %s207
    %p216 = scmp.eq.s32.totalorder %s23, 0
    %p217 = por %p215, %p216
    %p218 = scmp.ne.s32.totalorder %s206, %s207
    %p219 = scmp.eq.s32.totalorder %s24, 1
    %p220 = por %p218, %p219
    %p222 = scmp.ne.s32.totalorder %s207, %s221
    %p223 = scmp.eq.s32.totalorder %s24, 0
    %p224 = por %p222, %p223
    %s226 = sadd.s32 %s225, 1
    %p229 = scmp.eq.s32.totalorder %s18, 1
    %p230 = scmp.ne.s32.totalorder %s225, %s227
    %p231 = scmp.eq.s32.totalorder %s18, 0
    %p232 = por %p230, %p231
    %p233 = scmp.ne.s32.totalorder %s225, %s227
    %p234 = scmp.eq.s32.totalorder %s23, 1
    %p235 = por %p233, %p234
    %p236 = scmp.ne.s32.totalorder %s227, %s228
    %p237 = scmp.eq.s32.totalorder %s23, 0
    %p238 = por %p236, %p237
    %p239 = scmp.ne.s32.totalorder %s227, %s228
    %p240 = scmp.eq.s32.totalorder %s24, 1
    %p241 = por %p239, %p240
    %p243 = scmp.ne.s32.totalorder %s228, %s242
    %p244 = scmp.eq.s32.totalorder %s24, 0
    %p245 = por %p243, %p244
    %s246 = ssub.s32 %s18, %s25
    %p247 = scmp.eq.s32.totalorder %s246, 0
    %s249 = sadd.s32 %s248, 1
    %s250 = scalar_select %p247, %s248, %s249
    %p253 = pneg %p247
    %p254 = scmp.eq.s32.totalorder %s18, 1
    %p255 = por %p253, %p254
    %p256 = scmp.ne.s32.totalorder %s248, %s251
    %p257 = scmp.eq.s32.totalorder %s18, 0
    %p258 = por %p256, %p257
    %p259 = scmp.ne.s32.totalorder %s248, %s251
    %p260 = scmp.eq.s32.totalorder %s23, 1
    %p261 = por %p259, %p260
    %p262 = scmp.ne.s32.totalorder %s251, %s252
    %p263 = scmp.eq.s32.totalorder %s23, 0
    %p264 = por %p262, %p263
    %p265 = scmp.ne.s32.totalorder %s251, %s252
    %p266 = scmp.eq.s32.totalorder %s24, 1
    %p267 = por %p265, %p266
    %p269 = scmp.ne.s32.totalorder %s252, %s268
    %p270 = scmp.eq.s32.totalorder %s24, 0
    %p271 = por %p269, %p270
    %p272 = scmp.le.s32.totalorder 1, %s18
    %p273 = scmp.lt.s32.totalorder %s18, 3
    %p274 = pnand %p272, %p273
    %p275 = pneg %p274
    // Predicated region
    $region9: #{depthmap_cnn_forward.1} parent=5 // pred_check
      _
    $region10: #{depthmap_cnn_forward.1} parent=5 // pred_check_branch
      %277 = sbr.rel (%p274) target = $region12
    $region11: #{depthmap_cnn_forward.1} parent=5 // pred_region
      %s278 = ssub.s32 %s18, 1
      // Predicated region
      $region13: #{depthmap_cnn_forward.1} parent=11 // pred_check
        %p279 = pneg %p91
      $region14: #{depthmap_cnn_forward.1} parent=11 // pred_check_branch
        %281 = sbr.rel (%p279) target = $region16
      $region15: #{depthmap_cnn_forward.1} parent=11 // pred_region
        _
      $region16: #{depthmap_cnn_forward.1} parent=11 // pred_fallthru
        _
      // Predicated region
      $region17: #{depthmap_cnn_forward.1} parent=11 // pred_check
        %p282 = pneg %p112
      $region18: #{depthmap_cnn_forward.1} parent=11 // pred_check_branch
        %284 = sbr.rel (%p282) target = $region20
      $region19: #{depthmap_cnn_forward.1} parent=11 // pred_region
        _
      $region20: #{depthmap_cnn_forward.1} parent=11 // pred_fallthru
        _
      // Predicated region
      $region21: #{depthmap_cnn_forward.1} parent=11 // pred_check
        %p285 = pneg %p133
      $region22: #{depthmap_cnn_forward.1} parent=11 // pred_check_branch
        %287 = sbr.rel (%p285) target = $region24
      $region23: #{depthmap_cnn_forward.1} parent=11 // pred_region
        _
      $region24: #{depthmap_cnn_forward.1} parent=11 // pred_fallthru
        _
      // Predicated region
      $region25: #{depthmap_cnn_forward.1} parent=11 // pred_check
        %p288 = pneg %p154
      $region26: #{depthmap_cnn_forward.1} parent=11 // pred_check_branch
        %290 = sbr.rel (%p288) target = $region28
      $region27: #{depthmap_cnn_forward.1} parent=11 // pred_region
        _
      $region28: #{depthmap_cnn_forward.1} parent=11 // pred_fallthru
        _
      // Predicated region
      $region29: #{depthmap_cnn_forward.1} parent=11 // pred_check
        %p291 = pneg %p175
      $region30: #{depthmap_cnn_forward.1} parent=11 // pred_check_branch
        %293 = sbr.rel (%p291) target = $region32
      $region31: #{depthmap_cnn_forward.1} parent=11 // pred_region
        _
      $region32: #{depthmap_cnn_forward.1} parent=11 // pred_fallthru
        _
      // Predicated region
      $region33: #{depthmap_cnn_forward.1} parent=11 // pred_check
        %p294 = pneg %p196
      $region34: #{depthmap_cnn_forward.1} parent=11 // pred_check_branch
        %296 = sbr.rel (%p294) target = $region36
      $region35: #{depthmap_cnn_forward.1} parent=11 // pred_region
        _
      $region36: #{depthmap_cnn_forward.1} parent=11 // pred_fallthru
        _
      // Predicated region
      $region37: #{depthmap_cnn_forward.1} parent=11 // pred_check
        %p297 = pneg %p217
      $region38: #{depthmap_cnn_forward.1} parent=11 // pred_check_branch
        %299 = sbr.rel (%p297) target = $region40
      $region39: #{depthmap_cnn_forward.1} parent=11 // pred_region
        _
      $region40: #{depthmap_cnn_forward.1} parent=11 // pred_fallthru
        _
      // Predicated region
      $region41: #{depthmap_cnn_forward.1} parent=11 // pred_check
        %p300 = pneg %p238
      $region42: #{depthmap_cnn_forward.1} parent=11 // pred_check_branch
        %302 = sbr.rel (%p300) target = $region44
      $region43: #{depthmap_cnn_forward.1} parent=11 // pred_region
        _
      $region44: #{depthmap_cnn_forward.1} parent=11 // pred_fallthru
        _
    $region12: #{depthmap_cnn_forward.1} parent=5 // pred_fallthru
      _
    %p303 = scmp.lt.s32.totalorder %s18, 2
    // Predicated region
    $region45: #{depthmap_cnn_forward.1} parent=5 // pred_check
      %p304 = pneg %p303
    $region46: #{depthmap_cnn_forward.1} parent=5 // pred_check_branch
      %306 = sbr.rel (%p304) target = $region48
    $region47: #{depthmap_cnn_forward.1} parent=5 // pred_region
      // Predicated region
      $region49: #{depthmap_cnn_forward.1} parent=47 // pred_check
        %p307 = pneg %p38
      $region50: #{depthmap_cnn_forward.1} parent=47 // pred_check_branch
        %309 = sbr.rel (%p307) target = $region52
      $region51: #{depthmap_cnn_forward.1} parent=47 // pred_region
        %p310 = scmp.lt.s32.totalorder %s18, 1
        %s311 = scalar_select %p310, %s18, 1
        %s312 = smul.addr %s311, 32
        %s313 = smul.addr %s312, 8
        %s314 = scalar_lea.vmem %s0, %s313
      $region52: #{depthmap_cnn_forward.1} parent=47 // pred_fallthru
        _
      // Predicated region
      $region53: #{depthmap_cnn_forward.1} parent=47 // pred_check
        %p315 = pneg %p64
      $region54: #{depthmap_cnn_forward.1} parent=47 // pred_check_branch
        %317 = sbr.rel (%p315) target = $region56
      $region55: #{depthmap_cnn_forward.1} parent=47 // pred_region
        %p318 = scmp.lt.s32.totalorder %s18, 1
        %s319 = scalar_select %p318, %s18, 1
        %s320 = smul.addr %s319, 32
        %s321 = smul.addr %s320, 8
        %s322 = scalar_lea.vmem %s1, %s321
      $region56: #{depthmap_cnn_forward.1} parent=47 // pred_fallthru
        _
    $region48: #{depthmap_cnn_forward.1} parent=5 // pred_fallthru
      _
    %p323 = scmp.le.s32.totalorder 1, %s18
    %p324 = scmp.lt.s32.totalorder %s18, 3
    %p325 = pnand %p323, %p324
    %p326 = pneg %p325
    // Predicated region
    $region57: #{depthmap_cnn_forward.1} parent=5 // pred_check
      _
    $region58: #{depthmap_cnn_forward.1} parent=5 // pred_check_branch
      %328 = sbr.rel (%p325) target = $region60
    $region59: #{depthmap_cnn_forward.1} parent=5 // pred_region
      %s329 = ssub.s32 %s18, 1
      %p330 = scmp.lt.s32.totalorder %s23, 1
      %s331 = scalar_select %p330, %s23, 1
      %s332 = smul.addr %s331, 32
      %s333 = smul.addr %s332, 8
      %s334 = scalar_lea.vmem %s0, %s333
      %p335 = pneg %p44
      %p336 = pneg %p41
      %p337 = scmp.lt.s32.totalorder %s23, 1
      %s338 = scalar_select %p337, %s23, 1
      %s339 = smul.addr %s338, 32
      %s340 = smul.addr %s339, 8
      %s341 = scalar_lea.vmem %s1, %s340
      %p342 = pneg %p70
      %p343 = pneg %p67
      %p344 = pneg %p91
      %p345 = pneg %p88
      %p346 = pneg %p112
      %p347 = pneg %p109
      %p348 = pneg %p133
      %p349 = pneg %p130
      %p350 = pneg %p154
      %p351 = pneg %p151
      %p352 = pneg %p175
      %p353 = pneg %p172
      %p354 = pneg %p196
      %p355 = pneg %p193
      %p356 = pneg %p217
      %p357 = pneg %p214
      %p358 = pneg %p238
      %p359 = pneg %p235
      %p360 = pneg %p264
      %p361 = pneg %p261
      %p362 = scmp.lt.s32.totalorder %s23, 1
      %s363 = scalar_select %p362, %s23, 1
      %s364 = smul.addr %s363, 32
      %s365 = smul.addr %s364, 8
      %s366 = scalar_lea.vmem %s10, %s365
      %p367 = scmp.lt.s32.totalorder %s23, 1
      %s368 = scalar_select %p367, %s23, 1
      %s369 = smul.addr %s368, 32
      %s370 = smul.addr %s369, 8
      %s371 = scalar_lea.vmem %s0, %s370
      %p372 = scmp.lt.s32.totalorder %s23, 1
      %s373 = scalar_select %p372, %s23, 1
      %s374 = smul.addr %s373, 32
      %s375 = smul.addr %s374, 8
      %s376 = scalar_lea.vmem %s1, %s375
      %p377 = scmp.lt.s32.totalorder %s23, 1
      %s378 = scalar_select %p377, %s23, 1
      %s379 = smul.addr %s378, 32
      %s380 = smul.addr %s379, 8
      %s381 = scalar_lea.vmem %s10, %s380
      %v383 = vld [vmem:[%s371] sm:$0xff]
      %v384 = vld [vmem:[%s371 + $0x8] sm:$0xff]
      %v385 = vld [vmem:[%s371 + $0x10] sm:$0xff]
      %v386 = vld [vmem:[%s371 + $0x18] sm:$0xff]
      %v387 = vld [vmem:[%s371 + $0x20] sm:$0xff]
      %v388 = vld [vmem:[%s371 + $0x28] sm:$0xff]
      %v389 = vld [vmem:[%s371 + $0x30] sm:$0xff]
      %v390 = vld [vmem:[%s371 + $0x38] sm:$0xff]
      %v391 = vld [vmem:[%s371 + $0x40] sm:$0xff]
      %v392 = vld [vmem:[%s371 + $0x48] sm:$0xff]
      %v393 = vld [vmem:[%s371 + $0x50] sm:$0xff]
      %v394 = vld [vmem:[%s371 + $0x58] sm:$0xff]
      %v395 = vld [vmem:[%s371 + $0x60] sm:$0xff]
      %v396 = vld [vmem:[%s371 + $0x68] sm:$0xff]
      %v397 = vld [vmem:[%s371 + $0x70] sm:$0xff]
      %v398 = vld [vmem:[%s371 + $0x78] sm:$0xff]
      %v399 = vld [vmem:[%s371 + $0x80] sm:$0xff]
      %v400 = vld [vmem:[%s371 + $0x88] sm:$0xff]
      %v401 = vld [vmem:[%s371 + $0x90] sm:$0xff]
      %v402 = vld [vmem:[%s371 + $0x98] sm:$0xff]
      %v403 = vld [vmem:[%s371 + $0xa0] sm:$0xff]
      %v404 = vld [vmem:[%s371 + $0xa8] sm:$0xff]
      %v405 = vld [vmem:[%s371 + $0xb0] sm:$0xff]
      %v406 = vld [vmem:[%s371 + $0xb8] sm:$0xff]
      %v407 = vld [vmem:[%s371 + $0xc0] sm:$0xff]
      %v408 = vld [vmem:[%s371 + $0xc8] sm:$0xff]
      %v409 = vld [vmem:[%s371 + $0xd0] sm:$0xff]
      %v410 = vld [vmem:[%s371 + $0xd8] sm:$0xff]
      %v411 = vld [vmem:[%s371 + $0xe0] sm:$0xff]
      %v412 = vld [vmem:[%s371 + $0xe8] sm:$0xff]
      %v413 = vld [vmem:[%s371 + $0xf0] sm:$0xff]
      %v414 = vld [vmem:[%s371 + $0xf8] sm:$0xff]
      %v415 = vld [vmem:[%s2] sm:$0xff]
      %v416 = vld [vmem:[%s2 + $0x8] sm:$0x1]
      %v417 = vld [vmem:[%s3] sm:$0x1]
      %v419 = vlaneseq
      %v420 = vshrl.u32 %v419, 7
      %v421 = vsub.s32 0, %v420
      %v422 = vrot.slane %v417, %v421
      %vm424 = vcmask 72704
      %v426 = vsel %vm424, %v383, 0
      %v429 = vsel %vm424, %v384, 0
      %v432 = vsel %vm424, %v385, 0
      %v435 = vsel %vm424, %v386, 0
      %v438 = vsel %vm424, %v387, 0
      %v441 = vsel %vm424, %v388, 0
      %v444 = vsel %vm424, %v389, 0
      %v447 = vsel %vm424, %v390, 0
      %v450 = vsel %vm424, %v391, 0
      %v453 = vsel %vm424, %v392, 0
      %v456 = vsel %vm424, %v393, 0
      %v459 = vsel %vm424, %v394, 0
      %v462 = vsel %vm424, %v395, 0
      %v465 = vsel %vm424, %v396, 0
      %v468 = vsel %vm424, %v397, 0
      %v471 = vsel %vm424, %v398, 0
      %v474 = vsel %vm424, %v399, 0
      %v477 = vsel %vm424, %v400, 0
      %v480 = vsel %vm424, %v401, 0
      %v483 = vsel %vm424, %v402, 0
      %v486 = vsel %vm424, %v403, 0
      %v489 = vsel %vm424, %v404, 0
      %v492 = vsel %vm424, %v405, 0
      %v495 = vsel %vm424, %v406, 0
      %v498 = vsel %vm424, %v407, 0
      %v501 = vsel %vm424, %v408, 0
      %v504 = vsel %vm424, %v409, 0
      %v507 = vsel %vm424, %v410, 0
      %v510 = vsel %vm424, %v411, 0
      %v513 = vsel %vm424, %v412, 0
      %v516 = vsel %vm424, %v413, 0
      %v519 = vsel %vm424, %v414, 0
      %vm521 = vcmask 1040384
      %v523 = vsel %vm521, %v416, 0
      %525 = vmatprep.subr.mxu0 0.0
      %526 = vmatpush1.msra.mxu0 0.0
      %527 = vmatprep.subr.mxu0 0.0
      %528 = vmatpush1.msra.mxu0 0.0
      %529 = vmatprep.subr.mxu0 0.0
      %530 = vmatpush1.msra.mxu0 0.0
      %531 = vmatprep.subr.mxu0 0.0
      %532 = vmatpush1.msra.mxu0 0.0
      %533 = vmatprep.subr.mxu0 0.0
      %534 = vmatpush1.msra.mxu0 0.0
      %535 = vmatprep.subr.mxu0 0.0
      %536 = vmatpush1.msra.mxu0 0.0
      %537 = vmatprep.subr.mxu0 0.0
      %538 = vmatpush1.msra.mxu0 0.0
      %539 = vmatprep.subr.mxu0 0.0
      %540 = vmatpush1.msra.mxu0 0.0
      %541 = vmatprep.subr.mxu0 0.0
      %542 = vmatpush1.msra.mxu0 0.0
      %543 = vmatprep.subr.mxu0 0.0
      %544 = vmatpush1.msra.mxu0 0.0
      %545 = vmatprep.subr.mxu0 0.0
      %546 = vmatpush1.msra.mxu0 0.0
      %547 = vmatprep.subr.mxu0 0.0
      %548 = vmatpush1.msra.mxu0 0.0
      %549 = vmatprep.subr.mxu0 0.0
      %550 = vmatpush1.msra.mxu0 0.0
      %551 = vmatprep.subr.mxu0 0.0
      %552 = vmatpush1.msra.mxu0 0.0
      %553 = vmatprep.subr.mxu0 0.0
      %554 = vmatpush1.msra.mxu0 %v523
      %555 = vmatprep.subr.mxu0 0.0
      %556 = vmatpush1.msra.mxu0 %v415
      %557 = vmatprep.subr.mxu0 0.0
      %558 = vmatpush2.msra.mxu0 0.0
      %559 = vmatprep.subr.mxu0 0.0
      %560 = vmatpush2.msra.mxu0 0.0
      %561 = vmatprep.subr.mxu0 0.0
      %562 = vmatpush2.msra.mxu0 0.0
      %563 = vmatprep.subr.mxu0 0.0
      %564 = vmatpush2.msra.mxu0 0.0
      %565 = vmatprep.subr.mxu0 0.0
      %566 = vmatpush2.msra.mxu0 0.0
      %567 = vmatprep.subr.mxu0 0.0
      %568 = vmatpush2.msra.mxu0 0.0
      %569 = vmatprep.subr.mxu0 0.0
      %570 = vmatpush2.msra.mxu0 0.0
      %571 = vmatprep.subr.mxu0 0.0
      %572 = vmatpush2.msra.mxu0 0.0
      %573 = vmatprep.subr.mxu0 0.0
      %574 = vmatpush2.msra.mxu0 0.0
      %575 = vmatprep.subr.mxu0 0.0
      %576 = vmatpush2.msra.mxu0 0.0
      %577 = vmatprep.subr.mxu0 0.0
      %578 = vmatpush2.msra.mxu0 0.0
      %579 = vmatprep.subr.mxu0 0.0
      %580 = vmatpush2.msra.mxu0 0.0
      %581 = vmatprep.subr.mxu0 0.0
      %582 = vmatpush2.msra.mxu0 0.0
      %583 = vmatprep.subr.mxu0 0.0
      %584 = vmatpush2.msra.mxu0 0.0
      %585 = vmatprep.subr.mxu0 0.0
      %586 = vmatpush2.msra.mxu0 0.0
      %587 = vmatprep.subr.mxu0 0.0
      %588 = vmatpush2.msra.mxu0 0.0
      %589 = vmatprep.mubr.f32.mxu0 0.0
      %590 = vmatmul.mubr.f32.gmra.mxu0 %v426
      %v591 = vpop.f32.mrf.mxu0
      %v592 = vadd.f32 %v422, %v591
      %v593 = vpop.f32.mrf.mxu0
      %594 = vmatprep.mubr.f32.mxu0 0.0
      %595 = vmatmul.mubr.f32.gmra.mxu0 %v429
      %v596 = vpop.f32.mrf.mxu0
      %v597 = vadd.f32 %v422, %v596
      %v598 = vpop.f32.mrf.mxu0
      %599 = vmatprep.mubr.f32.mxu0 0.0
      %600 = vmatmul.mubr.f32.gmra.mxu0 %v432
      %v601 = vpop.f32.mrf.mxu0
      %v602 = vadd.f32 %v422, %v601
      %v603 = vpop.f32.mrf.mxu0
      %604 = vmatprep.mubr.f32.mxu0 0.0
      %605 = vmatmul.mubr.f32.gmra.mxu0 %v435
      %v606 = vpop.f32.mrf.mxu0
      %v607 = vadd.f32 %v422, %v606
      %v608 = vpop.f32.mrf.mxu0
      %609 = vmatprep.mubr.f32.mxu0 0.0
      %610 = vmatmul.mubr.f32.gmra.mxu0 %v438
      %v611 = vpop.f32.mrf.mxu0
      %v612 = vadd.f32 %v422, %v611
      %v613 = vpop.f32.mrf.mxu0
      %614 = vmatprep.mubr.f32.mxu0 0.0
      %615 = vmatmul.mubr.f32.gmra.mxu0 %v441
      %v616 = vpop.f32.mrf.mxu0
      %v617 = vadd.f32 %v422, %v616
      %v618 = vpop.f32.mrf.mxu0
      %619 = vmatprep.mubr.f32.mxu0 0.0
      %620 = vmatmul.mubr.f32.gmra.mxu0 %v444
      %v621 = vpop.f32.mrf.mxu0
      %v622 = vadd.f32 %v422, %v621
      %v623 = vpop.f32.mrf.mxu0
      %624 = vmatprep.mubr.f32.mxu0 0.0
      %625 = vmatmul.mubr.f32.gmra.mxu0 %v447
      %v626 = vpop.f32.mrf.mxu0
      %v627 = vadd.f32 %v422, %v626
      %v628 = vpop.f32.mrf.mxu0
      %629 = vmatprep.mubr.f32.mxu0 0.0
      %630 = vmatmul.mubr.f32.gmra.mxu0 %v450
      %v631 = vpop.f32.mrf.mxu0
      %v632 = vadd.f32 %v422, %v631
      %v633 = vpop.f32.mrf.mxu0
      %634 = vmatprep.mubr.f32.mxu0 0.0
      %635 = vmatmul.mubr.f32.gmra.mxu0 %v453
      %v636 = vpop.f32.mrf.mxu0
      %v637 = vadd.f32 %v422, %v636
      %v638 = vpop.f32.mrf.mxu0
      %639 = vmatprep.mubr.f32.mxu0 0.0
      %640 = vmatmul.mubr.f32.gmra.mxu0 %v456
      %v641 = vpop.f32.mrf.mxu0
      %v642 = vadd.f32 %v422, %v641
      %v643 = vpop.f32.mrf.mxu0
      %644 = vmatprep.mubr.f32.mxu0 0.0
      %645 = vmatmul.mubr.f32.gmra.mxu0 %v459
      %v646 = vpop.f32.mrf.mxu0
      %v647 = vadd.f32 %v422, %v646
      %v648 = vpop.f32.mrf.mxu0
      %649 = vmatprep.mubr.f32.mxu0 0.0
      %650 = vmatmul.mubr.f32.gmra.mxu0 %v462
      %v651 = vpop.f32.mrf.mxu0
      %v652 = vadd.f32 %v422, %v651
      %v653 = vpop.f32.mrf.mxu0
      %654 = vmatprep.mubr.f32.mxu0 0.0
      %655 = vmatmul.mubr.f32.gmra.mxu0 %v465
      %v656 = vpop.f32.mrf.mxu0
      %v657 = vadd.f32 %v422, %v656
      %v658 = vpop.f32.mrf.mxu0
      %659 = vmatprep.mubr.f32.mxu0 0.0
      %660 = vmatmul.mubr.f32.gmra.mxu0 %v468
      %v661 = vpop.f32.mrf.mxu0
      %v662 = vadd.f32 %v422, %v661
      %v663 = vpop.f32.mrf.mxu0
      %664 = vmatprep.mubr.f32.mxu0 0.0
      %665 = vmatmul.mubr.f32.gmra.mxu0 %v471
      %v666 = vpop.f32.mrf.mxu0
      %v667 = vadd.f32 %v422, %v666
      %v668 = vpop.f32.mrf.mxu0
      %669 = vmatprep.mubr.f32.mxu0 0.0
      %670 = vmatmul.mubr.f32.gmra.mxu0 %v474
      %v671 = vpop.f32.mrf.mxu0
      %v672 = vadd.f32 %v422, %v671
      %v673 = vpop.f32.mrf.mxu0
      %674 = vmatprep.mubr.f32.mxu0 0.0
      %675 = vmatmul.mubr.f32.gmra.mxu0 %v477
      %v676 = vpop.f32.mrf.mxu0
      %v677 = vadd.f32 %v422, %v676
      %v678 = vpop.f32.mrf.mxu0
      %679 = vmatprep.mubr.f32.mxu0 0.0
      %680 = vmatmul.mubr.f32.gmra.mxu0 %v480
      %v681 = vpop.f32.mrf.mxu0
      %v682 = vadd.f32 %v422, %v681
      %v683 = vpop.f32.mrf.mxu0
      %684 = vmatprep.mubr.f32.mxu0 0.0
      %685 = vmatmul.mubr.f32.gmra.mxu0 %v483
      %v686 = vpop.f32.mrf.mxu0
      %v687 = vadd.f32 %v422, %v686
      %v688 = vpop.f32.mrf.mxu0
      %689 = vmatprep.mubr.f32.mxu0 0.0
      %690 = vmatmul.mubr.f32.gmra.mxu0 %v486
      %v691 = vpop.f32.mrf.mxu0
      %v692 = vadd.f32 %v422, %v691
      %v693 = vpop.f32.mrf.mxu0
      %694 = vmatprep.mubr.f32.mxu0 0.0
      %695 = vmatmul.mubr.f32.gmra.mxu0 %v489
      %v696 = vpop.f32.mrf.mxu0
      %v697 = vadd.f32 %v422, %v696
      %v698 = vpop.f32.mrf.mxu0
      %699 = vmatprep.mubr.f32.mxu0 0.0
      %700 = vmatmul.mubr.f32.gmra.mxu0 %v492
      %v701 = vpop.f32.mrf.mxu0
      %v702 = vadd.f32 %v422, %v701
      %v703 = vpop.f32.mrf.mxu0
      %704 = vmatprep.mubr.f32.mxu0 0.0
      %705 = vmatmul.mubr.f32.gmra.mxu0 %v495
      %v706 = vpop.f32.mrf.mxu0
      %v707 = vadd.f32 %v422, %v706
      %v708 = vpop.f32.mrf.mxu0
      %709 = vmatprep.mubr.f32.mxu0 0.0
      %710 = vmatmul.mubr.f32.gmra.mxu0 %v498
      %v711 = vpop.f32.mrf.mxu0
      %v712 = vadd.f32 %v422, %v711
      %v713 = vpop.f32.mrf.mxu0
      %714 = vmatprep.mubr.f32.mxu0 0.0
      %715 = vmatmul.mubr.f32.gmra.mxu0 %v501
      %v716 = vpop.f32.mrf.mxu0
      %v717 = vadd.f32 %v422, %v716
      %v718 = vpop.f32.mrf.mxu0
      %719 = vmatprep.mubr.f32.mxu0 0.0
      %720 = vmatmul.mubr.f32.gmra.mxu0 %v504
      %v721 = vpop.f32.mrf.mxu0
      %v722 = vadd.f32 %v422, %v721
      %v723 = vpop.f32.mrf.mxu0
      %724 = vmatprep.mubr.f32.mxu0 0.0
      %725 = vmatmul.mubr.f32.gmra.mxu0 %v507
      %v726 = vpop.f32.mrf.mxu0
      %v727 = vadd.f32 %v422, %v726
      %v728 = vpop.f32.mrf.mxu0
      %729 = vmatprep.mubr.f32.mxu0 0.0
      %730 = vmatmul.mubr.f32.gmra.mxu0 %v510
      %v731 = vpop.f32.mrf.mxu0
      %v732 = vadd.f32 %v422, %v731
      %v733 = vpop.f32.mrf.mxu0
      %734 = vmatprep.mubr.f32.mxu0 0.0
      %735 = vmatmul.mubr.f32.gmra.mxu0 %v513
      %v736 = vpop.f32.mrf.mxu0
      %v737 = vadd.f32 %v422, %v736
      %v738 = vpop.f32.mrf.mxu0
      %739 = vmatprep.mubr.f32.mxu0 0.0
      %740 = vmatmul.mubr.f32.gmra.mxu0 %v516
      %v741 = vpop.f32.mrf.mxu0
      %v742 = vadd.f32 %v422, %v741
      %v743 = vpop.f32.mrf.mxu0
      %744 = vmatprep.mubr.f32.mxu0 0.0
      %745 = vmatmul.mubr.f32.gmra.mxu0 %v519
      %v746 = vpop.f32.mrf.mxu0
      %v747 = vadd.f32 %v422, %v746
      %v748 = vpop.f32.mrf.mxu0
      %749 = vdwg.mxu0
      %vm750 = vcmp.gt.f32.partialorder %v592, 0.0
      %vm751 = vcmp.gt.f32.partialorder %v597, 0.0
      %vm752 = vcmp.gt.f32.partialorder %v602, 0.0
      %vm753 = vcmp.gt.f32.partialorder %v607, 0.0
      %vm754 = vcmp.gt.f32.partialorder %v612, 0.0
      %vm755 = vcmp.gt.f32.partialorder %v617, 0.0
      %vm756 = vcmp.gt.f32.partialorder %v622, 0.0
      %vm757 = vcmp.gt.f32.partialorder %v627, 0.0
      %vm758 = vcmp.gt.f32.partialorder %v632, 0.0
      %vm759 = vcmp.gt.f32.partialorder %v637, 0.0
      %vm760 = vcmp.gt.f32.partialorder %v642, 0.0
      %vm761 = vcmp.gt.f32.partialorder %v647, 0.0
      %vm762 = vcmp.gt.f32.partialorder %v652, 0.0
      %vm763 = vcmp.gt.f32.partialorder %v657, 0.0
      %vm764 = vcmp.gt.f32.partialorder %v662, 0.0
      %vm765 = vcmp.gt.f32.partialorder %v667, 0.0
      %vm766 = vcmp.gt.f32.partialorder %v672, 0.0
      %vm767 = vcmp.gt.f32.partialorder %v677, 0.0
      %vm768 = vcmp.gt.f32.partialorder %v682, 0.0
      %vm769 = vcmp.gt.f32.partialorder %v687, 0.0
      %vm770 = vcmp.gt.f32.partialorder %v692, 0.0
      %vm771 = vcmp.gt.f32.partialorder %v697, 0.0
      %vm772 = vcmp.gt.f32.partialorder %v702, 0.0
      %vm773 = vcmp.gt.f32.partialorder %v707, 0.0
      %vm774 = vcmp.gt.f32.partialorder %v712, 0.0
      %vm775 = vcmp.gt.f32.partialorder %v717, 0.0
      %vm776 = vcmp.gt.f32.partialorder %v722, 0.0
      %vm777 = vcmp.gt.f32.partialorder %v727, 0.0
      %vm778 = vcmp.gt.f32.partialorder %v732, 0.0
      %vm779 = vcmp.gt.f32.partialorder %v737, 0.0
      %vm780 = vcmp.gt.f32.partialorder %v742, 0.0
      %vm781 = vcmp.gt.f32.partialorder %v747, 0.0
      %v782 = vmin.f32 %v592, 0.0
      %v783 = vmin.f32 %v597, 0.0
      %v784 = vmin.f32 %v602, 0.0
      %v785 = vmin.f32 %v607, 0.0
      %v786 = vmin.f32 %v612, 0.0
      %v787 = vmin.f32 %v617, 0.0
      %v788 = vmin.f32 %v622, 0.0
      %v789 = vmin.f32 %v627, 0.0
      %v790 = vmin.f32 %v632, 0.0
      %v791 = vmin.f32 %v637, 0.0
      %v792 = vmin.f32 %v642, 0.0
      %v793 = vmin.f32 %v647, 0.0
      %v794 = vmin.f32 %v652, 0.0
      %v795 = vmin.f32 %v657, 0.0
      %v796 = vmin.f32 %v662, 0.0
      %v797 = vmin.f32 %v667, 0.0
      %v798 = vmin.f32 %v672, 0.0
      %v799 = vmin.f32 %v677, 0.0
      %v800 = vmin.f32 %v682, 0.0
      %v801 = vmin.f32 %v687, 0.0
      %v802 = vmin.f32 %v692, 0.0
      %v803 = vmin.f32 %v697, 0.0
      %v804 = vmin.f32 %v702, 0.0
      %v805 = vmin.f32 %v707, 0.0
      %v806 = vmin.f32 %v712, 0.0
      %v807 = vmin.f32 %v717, 0.0
      %v808 = vmin.f32 %v722, 0.0
      %v809 = vmin.f32 %v727, 0.0
      %v810 = vmin.f32 %v732, 0.0
      %v811 = vmin.f32 %v737, 0.0
      %v812 = vmin.f32 %v742, 0.0
      %v813 = vmin.f32 %v747, 0.0
      %v814 = vmul.f32 %v782, 1.442695
      %v815 = vpow.pop %v814
      %v816 = vmul.f32 %v783, 1.442695
      %v817 = vpow.pop %v816
      %v818 = vmul.f32 %v784, 1.442695
      %v819 = vpow.pop %v818
      %v820 = vmul.f32 %v785, 1.442695
      %v821 = vpow.pop %v820
      %v822 = vmul.f32 %v786, 1.442695
      %v823 = vpow.pop %v822
      %v824 = vmul.f32 %v787, 1.442695
      %v825 = vpow.pop %v824
      %v826 = vmul.f32 %v788, 1.442695
      %v827 = vpow.pop %v826
      %v828 = vmul.f32 %v789, 1.442695
      %v829 = vpow.pop %v828
      %v830 = vmul.f32 %v790, 1.442695
      %v831 = vpow.pop %v830
      %v832 = vmul.f32 %v791, 1.442695
      %v833 = vpow.pop %v832
      %v834 = vmul.f32 %v792, 1.442695
      %v835 = vpow.pop %v834
      %v836 = vmul.f32 %v793, 1.442695
      %v837 = vpow.pop %v836
      %v838 = vmul.f32 %v794, 1.442695
      %v839 = vpow.pop %v838
      %v840 = vmul.f32 %v795, 1.442695
      %v841 = vpow.pop %v840
      %v842 = vmul.f32 %v796, 1.442695
      %v843 = vpow.pop %v842
      %v844 = vmul.f32 %v797, 1.442695
      %v845 = vpow.pop %v844
      %v846 = vmul.f32 %v798, 1.442695
      %v847 = vpow.pop %v846
      %v848 = vmul.f32 %v799, 1.442695
      %v849 = vpow.pop %v848
      %v850 = vmul.f32 %v800, 1.442695
      %v851 = vpow.pop %v850
      %v852 = vmul.f32 %v801, 1.442695
      %v853 = vpow.pop %v852
      %v854 = vmul.f32 %v802, 1.442695
      %v855 = vpow.pop %v854
      %v856 = vmul.f32 %v803, 1.442695
      %v857 = vpow.pop %v856
      %v858 = vmul.f32 %v804, 1.442695
      %v859 = vpow.pop %v858
      %v860 = vmul.f32 %v805, 1.442695
      %v861 = vpow.pop %v860
      %v862 = vmul.f32 %v806, 1.442695
      %v863 = vpow.pop %v862
      %v864 = vmul.f32 %v807, 1.442695
      %v865 = vpow.pop %v864
      %v866 = vmul.f32 %v808, 1.442695
      %v867 = vpow.pop %v866
      %v868 = vmul.f32 %v809, 1.442695
      %v869 = vpow.pop %v868
      %v870 = vmul.f32 %v810, 1.442695
      %v871 = vpow.pop %v870
      %v872 = vmul.f32 %v811, 1.442695
      %v873 = vpow.pop %v872
      %v874 = vmul.f32 %v812, 1.442695
      %v875 = vpow.pop %v874
      %v876 = vmul.f32 %v813, 1.442695
      %v877 = vpow.pop %v876
      %v878 = vsub.f32 %v815, 1.0
      %v879 = vsub.f32 %v817, 1.0
      %v880 = vsub.f32 %v819, 1.0
      %v881 = vsub.f32 %v821, 1.0
      %v882 = vsub.f32 %v823, 1.0
      %v883 = vsub.f32 %v825, 1.0
      %v884 = vsub.f32 %v827, 1.0
      %v885 = vsub.f32 %v829, 1.0
      %v886 = vsub.f32 %v831, 1.0
      %v887 = vsub.f32 %v833, 1.0
      %v888 = vsub.f32 %v835, 1.0
      %v889 = vsub.f32 %v837, 1.0
      %v890 = vsub.f32 %v839, 1.0
      %v891 = vsub.f32 %v841, 1.0
      %v892 = vsub.f32 %v843, 1.0
      %v893 = vsub.f32 %v845, 1.0
      %v894 = vsub.f32 %v847, 1.0
      %v895 = vsub.f32 %v849, 1.0
      %v896 = vsub.f32 %v851, 1.0
      %v897 = vsub.f32 %v853, 1.0
      %v898 = vsub.f32 %v855, 1.0
      %v899 = vsub.f32 %v857, 1.0
      %v900 = vsub.f32 %v859, 1.0
      %v901 = vsub.f32 %v861, 1.0
      %v902 = vsub.f32 %v863, 1.0
      %v903 = vsub.f32 %v865, 1.0
      %v904 = vsub.f32 %v867, 1.0
      %v905 = vsub.f32 %v869, 1.0
      %v906 = vsub.f32 %v871, 1.0
      %v907 = vsub.f32 %v873, 1.0
      %v908 = vsub.f32 %v875, 1.0
      %v909 = vsub.f32 %v877, 1.0
      %v910 = vsel %vm750, %v592, %v878
      %v911 = vsel %vm751, %v597, %v879
      %v912 = vsel %vm752, %v602, %v880
      %v913 = vsel %vm753, %v607, %v881
      %v914 = vsel %vm754, %v612, %v882
      %v915 = vsel %vm755, %v617, %v883
      %v916 = vsel %vm756, %v622, %v884
      %v917 = vsel %vm757, %v627, %v885
      %v918 = vsel %vm758, %v632, %v886
      %v919 = vsel %vm759, %v637, %v887
      %v920 = vsel %vm760, %v642, %v888
      %v921 = vsel %vm761, %v647, %v889
      %v922 = vsel %vm762, %v652, %v890
      %v923 = vsel %vm763, %v657, %v891
      %v924 = vsel %vm764, %v662, %v892
      %v925 = vsel %vm765, %v667, %v893
      %v926 = vsel %vm766, %v672, %v894
      %v927 = vsel %vm767, %v677, %v895
      %v928 = vsel %vm768, %v682, %v896
      %v929 = vsel %vm769, %v687, %v897
      %v930 = vsel %vm770, %v692, %v898
      %v931 = vsel %vm771, %v697, %v899
      %v932 = vsel %vm772, %v702, %v900
      %v933 = vsel %vm773, %v707, %v901
      %v934 = vsel %vm774, %v712, %v902
      %v935 = vsel %vm775, %v717, %v903
      %v936 = vsel %vm776, %v722, %v904
      %v937 = vsel %vm777, %v727, %v905
      %v938 = vsel %vm778, %v732, %v906
      %v939 = vsel %vm779, %v737, %v907
      %v940 = vsel %vm780, %v742, %v908
      %v941 = vsel %vm781, %v747, %v909
      %vm942 = vcmask 523264
      %943 = vst.msk [vmem:[#allocation2] sm:$0xff] %vm942, 0.0
      %vm944 = vcmask 517120
      %945 = vst.msk [vmem:[#allocation2 + $0x8] sm:$0x3] %vm944, 0.0
      %s946 = scalar_lea.vmem [#allocation2], 144
      %947 = vst.msk [vmem:[%s946] sm:$0xff] %vm942, 0.0
      %948 = vst.msk [vmem:[%s946 + $0x8] sm:$0x3] %vm944, 0.0
      %vm949 = vcmask 516096
      %950 = vst.msk [vmem:[#allocation2] sm:$0x1] %vm949, 0.0
      %951 = vst.msk [vmem:[#allocation2 + $0x10] sm:$0x1] %vm949, 0.0
      %952 = vst.msk [vmem:[#allocation2 + $0x20] sm:$0x1] %vm949, 0.0
      %953 = vst.msk [vmem:[#allocation2 + $0x30] sm:$0x1] %vm949, 0.0
      %954 = vst.msk [vmem:[#allocation2 + $0x40] sm:$0x1] %vm949, 0.0
      %955 = vst.msk [vmem:[#allocation2 + $0x50] sm:$0x1] %vm949, 0.0
      %956 = vst.msk [vmem:[#allocation2 + $0x60] sm:$0x1] %vm949, 0.0
      %957 = vst.msk [vmem:[#allocation2 + $0x70] sm:$0x1] %vm949, 0.0
      %958 = vst.msk [vmem:[#allocation2 + $0x80] sm:$0x1] %vm949, 0.0
      %959 = vst.msk [vmem:[#allocation2 + $0x90] sm:$0x1] %vm949, 0.0
      %960 = vst.msk [vmem:[#allocation2 + $0x9] sm:$0x1] %vm949, 0.0
      %961 = vst.msk [vmem:[#allocation2 + $0x19] sm:$0x1] %vm949, 0.0
      %962 = vst.msk [vmem:[#allocation2 + $0x29] sm:$0x1] %vm949, 0.0
      %963 = vst.msk [vmem:[#allocation2 + $0x39] sm:$0x1] %vm949, 0.0
      %964 = vst.msk [vmem:[#allocation2 + $0x49] sm:$0x1] %vm949, 0.0
      %965 = vst.msk [vmem:[#allocation2 + $0x59] sm:$0x1] %vm949, 0.0
      %966 = vst.msk [vmem:[#allocation2 + $0x69] sm:$0x1] %vm949, 0.0
      %967 = vst.msk [vmem:[#allocation2 + $0x79] sm:$0x1] %vm949, 0.0
      %968 = vst.msk [vmem:[#allocation2 + $0x89] sm:$0x1] %vm949, 0.0
      %969 = vst.msk [vmem:[#allocation2 + $0x99] sm:$0x1] %vm949, 0.0
      %s970 = scalar_lea.vmem [#allocation2], 160
      %971 = vst.msk [vmem:[%s970] sm:$0xff] %vm942, 0.0
      %972 = vst.msk [vmem:[%s970 + $0x8] sm:$0x3] %vm944, 0.0
      %s973 = scalar_lea.vmem [#allocation2], 304
      %974 = vst.msk [vmem:[%s973] sm:$0xff] %vm942, 0.0
      %975 = vst.msk [vmem:[%s973 + $0x8] sm:$0x3] %vm944, 0.0
      %976 = vst.msk [vmem:[%s970] sm:$0x1] %vm949, 0.0
      %977 = vst.msk [vmem:[%s970 + $0x10] sm:$0x1] %vm949, 0.0
      %978 = vst.msk [vmem:[%s970 + $0x20] sm:$0x1] %vm949, 0.0
      %979 = vst.msk [vmem:[%s970 + $0x30] sm:$0x1] %vm949, 0.0
      %980 = vst.msk [vmem:[%s970 + $0x40] sm:$0x1] %vm949, 0.0
      %981 = vst.msk [vmem:[%s970 + $0x50] sm:$0x1] %vm949, 0.0
      %982 = vst.msk [vmem:[%s970 + $0x60] sm:$0x1] %vm949, 0.0
      %983 = vst.msk [vmem:[%s970 + $0x70] sm:$0x1] %vm949, 0.0
      %984 = vst.msk [vmem:[%s970 + $0x80] sm:$0x1] %vm949, 0.0
      %985 = vst.msk [vmem:[%s970 + $0x90] sm:$0x1] %vm949, 0.0
      %986 = vst.msk [vmem:[%s970 + $0x9] sm:$0x1] %vm949, 0.0
      %987 = vst.msk [vmem:[%s970 + $0x19] sm:$0x1] %vm949, 0.0
      %988 = vst.msk [vmem:[%s970 + $0x29] sm:$0x1] %vm949, 0.0
      %989 = vst.msk [vmem:[%s970 + $0x39] sm:$0x1] %vm949, 0.0
      %990 = vst.msk [vmem:[%s970 + $0x49] sm:$0x1] %vm949, 0.0
      %991 = vst.msk [vmem:[%s970 + $0x59] sm:$0x1] %vm949, 0.0
      %992 = vst.msk [vmem:[%s970 + $0x69] sm:$0x1] %vm949, 0.0
      %993 = vst.msk [vmem:[%s970 + $0x79] sm:$0x1] %vm949, 0.0
      %994 = vst.msk [vmem:[%s970 + $0x89] sm:$0x1] %vm949, 0.0
      %995 = vst.msk [vmem:[%s970 + $0x99] sm:$0x1] %vm949, 0.0
      %s996 = scalar_lea.vmem [#allocation2], 320
      %997 = vst.msk [vmem:[%s996] sm:$0xff] %vm942, 0.0
      %998 = vst.msk [vmem:[%s996 + $0x8] sm:$0x3] %vm944, 0.0
      %s999 = scalar_lea.vmem [#allocation2], 464
      %1000 = vst.msk [vmem:[%s999] sm:$0xff] %vm942, 0.0
      %1001 = vst.msk [vmem:[%s999 + $0x8] sm:$0x3] %vm944, 0.0
      %1002 = vst.msk [vmem:[%s996] sm:$0x1] %vm949, 0.0
      %1003 = vst.msk [vmem:[%s996 + $0x10] sm:$0x1] %vm949, 0.0
      %1004 = vst.msk [vmem:[%s996 + $0x20] sm:$0x1] %vm949, 0.0
      %1005 = vst.msk [vmem:[%s996 + $0x30] sm:$0x1] %vm949, 0.0
      %1006 = vst.msk [vmem:[%s996 + $0x40] sm:$0x1] %vm949, 0.0
      %1007 = vst.msk [vmem:[%s996 + $0x50] sm:$0x1] %vm949, 0.0
      %1008 = vst.msk [vmem:[%s996 + $0x60] sm:$0x1] %vm949, 0.0
      %1009 = vst.msk [vmem:[%s996 + $0x70] sm:$0x1] %vm949, 0.0
      %1010 = vst.msk [vmem:[%s996 + $0x80] sm:$0x1] %vm949, 0.0
      %1011 = vst.msk [vmem:[%s996 + $0x90] sm:$0x1] %vm949, 0.0
      %1012 = vst.msk [vmem:[%s996 + $0x9] sm:$0x1] %vm949, 0.0
      %1013 = vst.msk [vmem:[%s996 + $0x19] sm:$0x1] %vm949, 0.0
      %1014 = vst.msk [vmem:[%s996 + $0x29] sm:$0x1] %vm949, 0.0
      %1015 = vst.msk [vmem:[%s996 + $0x39] sm:$0x1] %vm949, 0.0
      %1016 = vst.msk [vmem:[%s996 + $0x49] sm:$0x1] %vm949, 0.0
      %1017 = vst.msk [vmem:[%s996 + $0x59] sm:$0x1] %vm949, 0.0
      %1018 = vst.msk [vmem:[%s996 + $0x69] sm:$0x1] %vm949, 0.0
      %1019 = vst.msk [vmem:[%s996 + $0x79] sm:$0x1] %vm949, 0.0
      %1020 = vst.msk [vmem:[%s996 + $0x89] sm:$0x1] %vm949, 0.0
      %1021 = vst.msk [vmem:[%s996 + $0x99] sm:$0x1] %vm949, 0.0
      %s1022 = scalar_lea.vmem [#allocation2], 480
      %1023 = vst.msk [vmem:[%s1022] sm:$0xff] %vm942, 0.0
      %1024 = vst.msk [vmem:[%s1022 + $0x8] sm:$0x3] %vm944, 0.0
      %s1025 = scalar_lea.vmem [#allocation2], 624
      %1026 = vst.msk [vmem:[%s1025] sm:$0xff] %vm942, 0.0
      %1027 = vst.msk [vmem:[%s1025 + $0x8] sm:$0x3] %vm944, 0.0
      %1028 = vst.msk [vmem:[%s1022] sm:$0x1] %vm949, 0.0
      %1029 = vst.msk [vmem:[%s1022 + $0x10] sm:$0x1] %vm949, 0.0
      %1030 = vst.msk [vmem:[%s1022 + $0x20] sm:$0x1] %vm949, 0.0
      %1031 = vst.msk [vmem:[%s1022 + $0x30] sm:$0x1] %vm949, 0.0
      %1032 = vst.msk [vmem:[%s1022 + $0x40] sm:$0x1] %vm949, 0.0
      %1033 = vst.msk [vmem:[%s1022 + $0x50] sm:$0x1] %vm949, 0.0
      %1034 = vst.msk [vmem:[%s1022 + $0x60] sm:$0x1] %vm949, 0.0
      %1035 = vst.msk [vmem:[%s1022 + $0x70] sm:$0x1] %vm949, 0.0
      %1036 = vst.msk [vmem:[%s1022 + $0x80] sm:$0x1] %vm949, 0.0
      %1037 = vst.msk [vmem:[%s1022 + $0x90] sm:$0x1] %vm949, 0.0
      %1038 = vst.msk [vmem:[%s1022 + $0x9] sm:$0x1] %vm949, 0.0
      %1039 = vst.msk [vmem:[%s1022 + $0x19] sm:$0x1] %vm949, 0.0
      %1040 = vst.msk [vmem:[%s1022 + $0x29] sm:$0x1] %vm949, 0.0
      %1041 = vst.msk [vmem:[%s1022 + $0x39] sm:$0x1] %vm949, 0.0
      %1042 = vst.msk [vmem:[%s1022 + $0x49] sm:$0x1] %vm949, 0.0
      %1043 = vst.msk [vmem:[%s1022 + $0x59] sm:$0x1] %vm949, 0.0
      %1044 = vst.msk [vmem:[%s1022 + $0x69] sm:$0x1] %vm949, 0.0
      %1045 = vst.msk [vmem:[%s1022 + $0x79] sm:$0x1] %vm949, 0.0
      %1046 = vst.msk [vmem:[%s1022 + $0x89] sm:$0x1] %vm949, 0.0
      %1047 = vst.msk [vmem:[%s1022 + $0x99] sm:$0x1] %vm949, 0.0
      %s1048 = scalar_lea.vmem [#allocation2], 16
      %1049 = vst.msk [vmem:[%s1048 + $0x1] sm:$0xff] %vm942, %v910
      %1050 = vst.msk [vmem:[%s1048 + $0x11] sm:$0xff] %vm942, %v911
      %1051 = vst.msk [vmem:[%s1048 + $0x21] sm:$0xff] %vm942, %v912
      %1052 = vst.msk [vmem:[%s1048 + $0x31] sm:$0xff] %vm942, %v913
      %1053 = vst.msk [vmem:[%s1048 + $0x41] sm:$0xff] %vm942, %v914
      %1054 = vst.msk [vmem:[%s1048 + $0x51] sm:$0xff] %vm942, %v915
      %1055 = vst.msk [vmem:[%s1048 + $0x61] sm:$0xff] %vm942, %v916
      %1056 = vst.msk [vmem:[%s1048 + $0x71] sm:$0xff] %vm942, %v917
      %s1057 = scalar_lea.vmem [#allocation2], 176
      %1058 = vst.msk [vmem:[%s1057 + $0x1] sm:$0xff] %vm942, %v918
      %1059 = vst.msk [vmem:[%s1057 + $0x11] sm:$0xff] %vm942, %v919
      %1060 = vst.msk [vmem:[%s1057 + $0x21] sm:$0xff] %vm942, %v920
      %1061 = vst.msk [vmem:[%s1057 + $0x31] sm:$0xff] %vm942, %v921
      %1062 = vst.msk [vmem:[%s1057 + $0x41] sm:$0xff] %vm942, %v922
      %1063 = vst.msk [vmem:[%s1057 + $0x51] sm:$0xff] %vm942, %v923
      %1064 = vst.msk [vmem:[%s1057 + $0x61] sm:$0xff] %vm942, %v924
      %1065 = vst.msk [vmem:[%s1057 + $0x71] sm:$0xff] %vm942, %v925
      %s1066 = scalar_lea.vmem [#allocation2], 336
      %1067 = vst.msk [vmem:[%s1066 + $0x1] sm:$0xff] %vm942, %v926
      %1068 = vst.msk [vmem:[%s1066 + $0x11] sm:$0xff] %vm942, %v927
      %1069 = vst.msk [vmem:[%s1066 + $0x21] sm:$0xff] %vm942, %v928
      %1070 = vst.msk [vmem:[%s1066 + $0x31] sm:$0xff] %vm942, %v929
      %1071 = vst.msk [vmem:[%s1066 + $0x41] sm:$0xff] %vm942, %v930
      %1072 = vst.msk [vmem:[%s1066 + $0x51] sm:$0xff] %vm942, %v931
      %1073 = vst.msk [vmem:[%s1066 + $0x61] sm:$0xff] %vm942, %v932
      %1074 = vst.msk [vmem:[%s1066 + $0x71] sm:$0xff] %vm942, %v933
      %s1075 = scalar_lea.vmem [#allocation2], 496
      %1076 = vst.msk [vmem:[%s1075 + $0x1] sm:$0xff] %vm942, %v934
      %1077 = vst.msk [vmem:[%s1075 + $0x11] sm:$0xff] %vm942, %v935
      %1078 = vst.msk [vmem:[%s1075 + $0x21] sm:$0xff] %vm942, %v936
      %1079 = vst.msk [vmem:[%s1075 + $0x31] sm:$0xff] %vm942, %v937
      %1080 = vst.msk [vmem:[%s1075 + $0x41] sm:$0xff] %vm942, %v938
      %1081 = vst.msk [vmem:[%s1075 + $0x51] sm:$0xff] %vm942, %v939
      %1082 = vst.msk [vmem:[%s1075 + $0x61] sm:$0xff] %vm942, %v940
      %1083 = vst.msk [vmem:[%s1075 + $0x71] sm:$0xff] %vm942, %v941
      %v1084 = vld [vmem:[%s1022] sm:$0xff]
      %v1085 = vld [vmem:[%s1022 + $0x10] sm:$0xff]
      %v1086 = vld [vmem:[%s1022 + $0x20] sm:$0xff]
      %v1087 = vld [vmem:[%s1022 + $0x30] sm:$0xff]
      %v1088 = vld [vmem:[%s1022 + $0x40] sm:$0xff]
      %v1089 = vld [vmem:[%s1022 + $0x50] sm:$0xff]
      %v1090 = vld [vmem:[%s1022 + $0x60] sm:$0xff]
      %v1091 = vld [vmem:[%s1022 + $0x70] sm:$0xff]
      %v1092 = vld [vmem:[%s996 + $0x1] sm:$0xff]
      %v1093 = vld [vmem:[%s996 + $0x11] sm:$0xff]
      %v1094 = vld [vmem:[%s996 + $0x21] sm:$0xff]
      %v1095 = vld [vmem:[%s996 + $0x31] sm:$0xff]
      %v1096 = vld [vmem:[%s996 + $0x41] sm:$0xff]
      %v1097 = vld [vmem:[%s996 + $0x51] sm:$0xff]
      %v1098 = vld [vmem:[%s996 + $0x61] sm:$0xff]
      %v1099 = vld [vmem:[%s996 + $0x71] sm:$0xff]
      %v1100 = vld [vmem:[%s1022 + $0x1] sm:$0xff]
      %v1101 = vld [vmem:[%s1022 + $0x11] sm:$0xff]
      %v1102 = vld [vmem:[%s1022 + $0x21] sm:$0xff]
      %v1103 = vld [vmem:[%s1022 + $0x31] sm:$0xff]
      %v1104 = vld [vmem:[%s1022 + $0x41] sm:$0xff]
      %v1105 = vld [vmem:[%s1022 + $0x51] sm:$0xff]
      %v1106 = vld [vmem:[%s1022 + $0x61] sm:$0xff]
      %v1107 = vld [vmem:[%s1022 + $0x71] sm:$0xff]
      %v1108 = vld [vmem:[%s1057] sm:$0xff]
      %v1109 = vld [vmem:[%s1057 + $0x10] sm:$0xff]
      %v1110 = vld [vmem:[%s1057 + $0x20] sm:$0xff]
      %v1111 = vld [vmem:[%s1057 + $0x30] sm:$0xff]
      %v1112 = vld [vmem:[%s1057 + $0x40] sm:$0xff]
      %v1113 = vld [vmem:[%s1057 + $0x50] sm:$0xff]
      %v1114 = vld [vmem:[%s1057 + $0x60] sm:$0xff]
      %v1115 = vld [vmem:[%s1057 + $0x70] sm:$0xff]
      %v1116 = vld [vmem:[%s1048 + $0x1] sm:$0xff]
      %v1117 = vld [vmem:[%s1048 + $0x11] sm:$0xff]
      %v1118 = vld [vmem:[%s1048 + $0x21] sm:$0xff]
      %v1119 = vld [vmem:[%s1048 + $0x31] sm:$0xff]
      %v1120 = vld [vmem:[%s1048 + $0x41] sm:$0xff]
      %v1121 = vld [vmem:[%s1048 + $0x51] sm:$0xff]
      %v1122 = vld [vmem:[%s1048 + $0x61] sm:$0xff]
      %v1123 = vld [vmem:[%s1048 + $0x71] sm:$0xff]
      %v1124 = vld [vmem:[%s1057 + $0x1] sm:$0xff]
      %v1125 = vld [vmem:[%s1057 + $0x11] sm:$0xff]
      %v1126 = vld [vmem:[%s1057 + $0x21] sm:$0xff]
      %v1127 = vld [vmem:[%s1057 + $0x31] sm:$0xff]
      %v1128 = vld [vmem:[%s1057 + $0x41] sm:$0xff]
      %v1129 = vld [vmem:[%s1057 + $0x51] sm:$0xff]
      %v1130 = vld [vmem:[%s1057 + $0x61] sm:$0xff]
      %v1131 = vld [vmem:[%s1057 + $0x71] sm:$0xff]
      %v1132 = vld [vmem:[%s1075] sm:$0xff]
      %v1133 = vld [vmem:[%s1075 + $0x10] sm:$0xff]
      %v1134 = vld [vmem:[%s1075 + $0x20] sm:$0xff]
      %v1135 = vld [vmem:[%s1075 + $0x30] sm:$0xff]
      %v1136 = vld [vmem:[%s1075 + $0x40] sm:$0xff]
      %v1137 = vld [vmem:[%s1075 + $0x50] sm:$0xff]
      %v1138 = vld [vmem:[%s1075 + $0x60] sm:$0xff]
      %v1139 = vld [vmem:[%s1075 + $0x70] sm:$0xff]
      %v1140 = vld [vmem:[%s1066 + $0x1] sm:$0xff]
      %v1141 = vld [vmem:[%s1066 + $0x11] sm:$0xff]
      %v1142 = vld [vmem:[%s1066 + $0x21] sm:$0xff]
      %v1143 = vld [vmem:[%s1066 + $0x31] sm:$0xff]
      %v1144 = vld [vmem:[%s1066 + $0x41] sm:$0xff]
      %v1145 = vld [vmem:[%s1066 + $0x51] sm:$0xff]
      %v1146 = vld [vmem:[%s1066 + $0x61] sm:$0xff]
      %v1147 = vld [vmem:[%s1066 + $0x71] sm:$0xff]
      %v1148 = vld [vmem:[%s1075 + $0x1] sm:$0xff]
      %v1149 = vld [vmem:[%s1075 + $0x11] sm:$0xff]
      %v1150 = vld [vmem:[%s1075 + $0x21] sm:$0xff]
      %v1151 = vld [vmem:[%s1075 + $0x31] sm:$0xff]
      %v1152 = vld [vmem:[%s1075 + $0x41] sm:$0xff]
      %v1153 = vld [vmem:[%s1075 + $0x51] sm:$0xff]
      %v1154 = vld [vmem:[%s1075 + $0x61] sm:$0xff]
      %v1155 = vld [vmem:[%s1075 + $0x71] sm:$0xff]
      %1164 = vrot.lane.b32.xlu0 %v1092, 64
      %v1165 = vpop.permute.xlu0 %1164
      %1166 = vrot.lane.b32.xlu0 %v1093, 64
      %v1167 = vpop.permute.xlu0 %1166
      %1168 = vrot.lane.b32.xlu0 %v1094, 64
      %v1169 = vpop.permute.xlu0 %1168
      %1170 = vrot.lane.b32.xlu0 %v1095, 64
      %v1171 = vpop.permute.xlu0 %1170
      %1172 = vrot.lane.b32.xlu0 %v1096, 64
      %v1173 = vpop.permute.xlu0 %1172
      %1174 = vrot.lane.b32.xlu0 %v1097, 64
      %v1175 = vpop.permute.xlu0 %1174
      %1176 = vrot.lane.b32.xlu0 %v1098, 64
      %v1177 = vpop.permute.xlu0 %1176
      %1178 = vrot.lane.b32.xlu0 %v1099, 64
      %v1179 = vpop.permute.xlu0 %1178
      %1196 = vrot.lane.b32.xlu0 %v1108, 64
      %v1197 = vpop.permute.xlu0 %1196
      %1198 = vrot.lane.b32.xlu0 %v1109, 64
      %v1199 = vpop.permute.xlu0 %1198
      %1200 = vrot.lane.b32.xlu0 %v1110, 64
      %v1201 = vpop.permute.xlu0 %1200
      %1202 = vrot.lane.b32.xlu0 %v1111, 64
      %v1203 = vpop.permute.xlu0 %1202
      %1204 = vrot.lane.b32.xlu0 %v1112, 64
      %v1205 = vpop.permute.xlu0 %1204
      %1206 = vrot.lane.b32.xlu0 %v1113, 64
      %v1207 = vpop.permute.xlu0 %1206
      %1208 = vrot.lane.b32.xlu0 %v1114, 64
      %v1209 = vpop.permute.xlu0 %1208
      %1210 = vrot.lane.b32.xlu0 %v1115, 64
      %v1211 = vpop.permute.xlu0 %1210
      %1228 = vrot.lane.b32.xlu0 %v1124, 64
      %v1229 = vpop.permute.xlu0 %1228
      %1230 = vrot.lane.b32.xlu0 %v1125, 64
      %v1231 = vpop.permute.xlu0 %1230
      %1232 = vrot.lane.b32.xlu0 %v1126, 64
      %v1233 = vpop.permute.xlu0 %1232
      %1234 = vrot.lane.b32.xlu0 %v1127, 64
      %v1235 = vpop.permute.xlu0 %1234
      %1236 = vrot.lane.b32.xlu0 %v1128, 64
      %v1237 = vpop.permute.xlu0 %1236
      %1238 = vrot.lane.b32.xlu0 %v1129, 64
      %v1239 = vpop.permute.xlu0 %1238
      %1240 = vrot.lane.b32.xlu0 %v1130, 64
      %v1241 = vpop.permute.xlu0 %1240
      %1242 = vrot.lane.b32.xlu0 %v1131, 64
      %v1243 = vpop.permute.xlu0 %1242
      %1260 = vrot.lane.b32.xlu0 %v1140, 64
      %v1261 = vpop.permute.xlu0 %1260
      %1262 = vrot.lane.b32.xlu0 %v1141, 64
      %v1263 = vpop.permute.xlu0 %1262
      %1264 = vrot.lane.b32.xlu0 %v1142, 64
      %v1265 = vpop.permute.xlu0 %1264
      %1266 = vrot.lane.b32.xlu0 %v1143, 64
      %v1267 = vpop.permute.xlu0 %1266
      %1268 = vrot.lane.b32.xlu0 %v1144, 64
      %v1269 = vpop.permute.xlu0 %1268
      %1270 = vrot.lane.b32.xlu0 %v1145, 64
      %v1271 = vpop.permute.xlu0 %1270
      %1272 = vrot.lane.b32.xlu0 %v1146, 64
      %v1273 = vpop.permute.xlu0 %1272
      %1274 = vrot.lane.b32.xlu0 %v1147, 64
      %v1275 = vpop.permute.xlu0 %1274
      %v1284 = vsel %vm942, %v1084, %v1165
      %v1285 = vsel %vm942, %v1085, %v1167
      %v1286 = vsel %vm942, %v1086, %v1169
      %v1287 = vsel %vm942, %v1087, %v1171
      %v1288 = vsel %vm942, %v1088, %v1173
      %v1289 = vsel %vm942, %v1089, %v1175
      %v1290 = vsel %vm942, %v1090, %v1177
      %v1291 = vsel %vm942, %v1091, %v1179
      %v1292 = vsel %vm942, %v1100, %v1197
      %v1293 = vsel %vm942, %v1101, %v1199
      %v1294 = vsel %vm942, %v1102, %v1201
      %v1295 = vsel %vm942, %v1103, %v1203
      %v1296 = vsel %vm942, %v1104, %v1205
      %v1297 = vsel %vm942, %v1105, %v1207
      %v1298 = vsel %vm942, %v1106, %v1209
      %v1299 = vsel %vm942, %v1107, %v1211
      %v1300 = vsel %vm942, %v1116, %v1229
      %v1301 = vsel %vm942, %v1117, %v1231
      %v1302 = vsel %vm942, %v1118, %v1233
      %v1303 = vsel %vm942, %v1119, %v1235
      %v1304 = vsel %vm942, %v1120, %v1237
      %v1305 = vsel %vm942, %v1121, %v1239
      %v1306 = vsel %vm942, %v1122, %v1241
      %v1307 = vsel %vm942, %v1123, %v1243
      %v1308 = vsel %vm942, %v1132, %v1261
      %v1309 = vsel %vm942, %v1133, %v1263
      %v1310 = vsel %vm942, %v1134, %v1265
      %v1311 = vsel %vm942, %v1135, %v1267
      %v1312 = vsel %vm942, %v1136, %v1269
      %v1313 = vsel %vm942, %v1137, %v1271
      %v1314 = vsel %vm942, %v1138, %v1273
      %v1315 = vsel %vm942, %v1139, %v1275
      %v1316 = vld [vmem:[%s996 + $0x2] sm:$0xff]
      %v1317 = vld [vmem:[%s996 + $0x12] sm:$0xff]
      %v1318 = vld [vmem:[%s996 + $0x22] sm:$0xff]
      %v1319 = vld [vmem:[%s996 + $0x32] sm:$0xff]
      %v1320 = vld [vmem:[%s996 + $0x42] sm:$0xff]
      %v1321 = vld [vmem:[%s996 + $0x52] sm:$0xff]
      %v1322 = vld [vmem:[%s996 + $0x62] sm:$0xff]
      %v1323 = vld [vmem:[%s996 + $0x72] sm:$0xff]
      %v1324 = vld [vmem:[%s1048 + $0x2] sm:$0xff]
      %v1325 = vld [vmem:[%s1048 + $0x12] sm:$0xff]
      %v1326 = vld [vmem:[%s1048 + $0x22] sm:$0xff]
      %v1327 = vld [vmem:[%s1048 + $0x32] sm:$0xff]
      %v1328 = vld [vmem:[%s1048 + $0x42] sm:$0xff]
      %v1329 = vld [vmem:[%s1048 + $0x52] sm:$0xff]
      %v1330 = vld [vmem:[%s1048 + $0x62] sm:$0xff]
      %v1331 = vld [vmem:[%s1048 + $0x72] sm:$0xff]
      %v1332 = vld [vmem:[%s1066 + $0x2] sm:$0xff]
      %v1333 = vld [vmem:[%s1066 + $0x12] sm:$0xff]
      %v1334 = vld [vmem:[%s1066 + $0x22] sm:$0xff]
      %v1335 = vld [vmem:[%s1066 + $0x32] sm:$0xff]
      %v1336 = vld [vmem:[%s1066 + $0x42] sm:$0xff]
      %v1337 = vld [vmem:[%s1066 + $0x52] sm:$0xff]
      %v1338 = vld [vmem:[%s1066 + $0x62] sm:$0xff]
      %v1339 = vld [vmem:[%s1066 + $0x72] sm:$0xff]
      %1348 = vrot.lane.b32.xlu0 %v1100, 64
      %v1349 = vpop.permute.xlu0 %1348
      %1350 = vrot.lane.b32.xlu0 %v1101, 64
      %v1351 = vpop.permute.xlu0 %1350
      %1352 = vrot.lane.b32.xlu0 %v1102, 64
      %v1353 = vpop.permute.xlu0 %1352
      %1354 = vrot.lane.b32.xlu0 %v1103, 64
      %v1355 = vpop.permute.xlu0 %1354
      %1356 = vrot.lane.b32.xlu0 %v1104, 64
      %v1357 = vpop.permute.xlu0 %1356
      %1358 = vrot.lane.b32.xlu0 %v1105, 64
      %v1359 = vpop.permute.xlu0 %1358
      %1360 = vrot.lane.b32.xlu0 %v1106, 64
      %v1361 = vpop.permute.xlu0 %1360
      %1362 = vrot.lane.b32.xlu0 %v1107, 64
      %v1363 = vpop.permute.xlu0 %1362
      %1380 = vrot.lane.b32.xlu0 %v1116, 64
      %v1381 = vpop.permute.xlu0 %1380
      %1382 = vrot.lane.b32.xlu0 %v1117, 64
      %v1383 = vpop.permute.xlu0 %1382
      %1384 = vrot.lane.b32.xlu0 %v1118, 64
      %v1385 = vpop.permute.xlu0 %1384
      %1386 = vrot.lane.b32.xlu0 %v1119, 64
      %v1387 = vpop.permute.xlu0 %1386
      %1388 = vrot.lane.b32.xlu0 %v1120, 64
      %v1389 = vpop.permute.xlu0 %1388
      %1390 = vrot.lane.b32.xlu0 %v1121, 64
      %v1391 = vpop.permute.xlu0 %1390
      %1392 = vrot.lane.b32.xlu0 %v1122, 64
      %v1393 = vpop.permute.xlu0 %1392
      %1394 = vrot.lane.b32.xlu0 %v1123, 64
      %v1395 = vpop.permute.xlu0 %1394
      %1412 = vrot.lane.b32.xlu0 %v1324, 64
      %v1413 = vpop.permute.xlu0 %1412
      %1414 = vrot.lane.b32.xlu0 %v1325, 64
      %v1415 = vpop.permute.xlu0 %1414
      %1416 = vrot.lane.b32.xlu0 %v1326, 64
      %v1417 = vpop.permute.xlu0 %1416
      %1418 = vrot.lane.b32.xlu0 %v1327, 64
      %v1419 = vpop.permute.xlu0 %1418
      %1420 = vrot.lane.b32.xlu0 %v1328, 64
      %v1421 = vpop.permute.xlu0 %1420
      %1422 = vrot.lane.b32.xlu0 %v1329, 64
      %v1423 = vpop.permute.xlu0 %1422
      %1424 = vrot.lane.b32.xlu0 %v1330, 64
      %v1425 = vpop.permute.xlu0 %1424
      %1426 = vrot.lane.b32.xlu0 %v1331, 64
      %v1427 = vpop.permute.xlu0 %1426
      %1444 = vrot.lane.b32.xlu0 %v1148, 64
      %v1445 = vpop.permute.xlu0 %1444
      %1446 = vrot.lane.b32.xlu0 %v1149, 64
      %v1447 = vpop.permute.xlu0 %1446
      %1448 = vrot.lane.b32.xlu0 %v1150, 64
      %v1449 = vpop.permute.xlu0 %1448
      %1450 = vrot.lane.b32.xlu0 %v1151, 64
      %v1451 = vpop.permute.xlu0 %1450
      %1452 = vrot.lane.b32.xlu0 %v1152, 64
      %v1453 = vpop.permute.xlu0 %1452
      %1454 = vrot.lane.b32.xlu0 %v1153, 64
      %v1455 = vpop.permute.xlu0 %1454
      %1456 = vrot.lane.b32.xlu0 %v1154, 64
      %v1457 = vpop.permute.xlu0 %1456
      %1458 = vrot.lane.b32.xlu0 %v1155, 64
      %v1459 = vpop.permute.xlu0 %1458
      %v1468 = vsel %vm942, %v1092, %v1349
      %v1469 = vsel %vm942, %v1093, %v1351
      %v1470 = vsel %vm942, %v1094, %v1353
      %v1471 = vsel %vm942, %v1095, %v1355
      %v1472 = vsel %vm942, %v1096, %v1357
      %v1473 = vsel %vm942, %v1097, %v1359
      %v1474 = vsel %vm942, %v1098, %v1361
      %v1475 = vsel %vm942, %v1099, %v1363
      %v1476 = vsel %vm942, %v1316, %v1381
      %v1477 = vsel %vm942, %v1317, %v1383
      %v1478 = vsel %vm942, %v1318, %v1385
      %v1479 = vsel %vm942, %v1319, %v1387
      %v1480 = vsel %vm942, %v1320, %v1389
      %v1481 = vsel %vm942, %v1321, %v1391
      %v1482 = vsel %vm942, %v1322, %v1393
      %v1483 = vsel %vm942, %v1323, %v1395
      %v1484 = vsel %vm942, %v1124, %v1413
      %v1485 = vsel %vm942, %v1125, %v1415
      %v1486 = vsel %vm942, %v1126, %v1417
      %v1487 = vsel %vm942, %v1127, %v1419
      %v1488 = vsel %vm942, %v1128, %v1421
      %v1489 = vsel %vm942, %v1129, %v1423
      %v1490 = vsel %vm942, %v1130, %v1425
      %v1491 = vsel %vm942, %v1131, %v1427
      %v1492 = vsel %vm942, %v1140, %v1445
      %v1493 = vsel %vm942, %v1141, %v1447
      %v1494 = vsel %vm942, %v1142, %v1449
      %v1495 = vsel %vm942, %v1143, %v1451
      %v1496 = vsel %vm942, %v1144, %v1453
      %v1497 = vsel %vm942, %v1145, %v1455
      %v1498 = vsel %vm942, %v1146, %v1457
      %v1499 = vsel %vm942, %v1147, %v1459
      %s1500 = scalar_lea.vmem [#allocation2], 192
      %v1501 = vld [vmem:[%s1500] sm:$0xff]
      %v1502 = vld [vmem:[%s1500 + $0x10] sm:$0xff]
      %v1503 = vld [vmem:[%s1500 + $0x20] sm:$0xff]
      %v1504 = vld [vmem:[%s1500 + $0x30] sm:$0xff]
      %v1505 = vld [vmem:[%s1500 + $0x40] sm:$0xff]
      %v1506 = vld [vmem:[%s1500 + $0x50] sm:$0xff]
      %v1507 = vld [vmem:[%s1500 + $0x60] sm:$0xff]
      %v1508 = vld [vmem:[%s1500 + $0x70] sm:$0xff]
      %s1509 = scalar_lea.vmem [#allocation2], 32
      %v1510 = vld [vmem:[%s1509 + $0x1] sm:$0xff]
      %v1511 = vld [vmem:[%s1509 + $0x11] sm:$0xff]
      %v1512 = vld [vmem:[%s1509 + $0x21] sm:$0xff]
      %v1513 = vld [vmem:[%s1509 + $0x31] sm:$0xff]
      %v1514 = vld [vmem:[%s1509 + $0x41] sm:$0xff]
      %v1515 = vld [vmem:[%s1509 + $0x51] sm:$0xff]
      %v1516 = vld [vmem:[%s1509 + $0x61] sm:$0xff]
      %v1517 = vld [vmem:[%s1509 + $0x71] sm:$0xff]
      %v1518 = vld [vmem:[%s1500 + $0x1] sm:$0xff]
      %v1519 = vld [vmem:[%s1500 + $0x11] sm:$0xff]
      %v1520 = vld [vmem:[%s1500 + $0x21] sm:$0xff]
      %v1521 = vld [vmem:[%s1500 + $0x31] sm:$0xff]
      %v1522 = vld [vmem:[%s1500 + $0x41] sm:$0xff]
      %v1523 = vld [vmem:[%s1500 + $0x51] sm:$0xff]
      %v1524 = vld [vmem:[%s1500 + $0x61] sm:$0xff]
      %v1525 = vld [vmem:[%s1500 + $0x71] sm:$0xff]
      %1534 = vrot.lane.b32.xlu0 %v1132, 64
      %v1535 = vpop.permute.xlu0 %1534
      %1536 = vrot.lane.b32.xlu0 %v1133, 64
      %v1537 = vpop.permute.xlu0 %1536
      %1538 = vrot.lane.b32.xlu0 %v1134, 64
      %v1539 = vpop.permute.xlu0 %1538
      %1540 = vrot.lane.b32.xlu0 %v1135, 64
      %v1541 = vpop.permute.xlu0 %1540
      %1542 = vrot.lane.b32.xlu0 %v1136, 64
      %v1543 = vpop.permute.xlu0 %1542
      %1544 = vrot.lane.b32.xlu0 %v1137, 64
      %v1545 = vpop.permute.xlu0 %1544
      %1546 = vrot.lane.b32.xlu0 %v1138, 64
      %v1547 = vpop.permute.xlu0 %1546
      %1548 = vrot.lane.b32.xlu0 %v1139, 64
      %v1549 = vpop.permute.xlu0 %1548
      %1566 = vrot.lane.b32.xlu0 %v1510, 64
      %v1567 = vpop.permute.xlu0 %1566
      %1568 = vrot.lane.b32.xlu0 %v1511, 64
      %v1569 = vpop.permute.xlu0 %1568
      %1570 = vrot.lane.b32.xlu0 %v1512, 64
      %v1571 = vpop.permute.xlu0 %1570
      %1572 = vrot.lane.b32.xlu0 %v1513, 64
      %v1573 = vpop.permute.xlu0 %1572
      %1574 = vrot.lane.b32.xlu0 %v1514, 64
      %v1575 = vpop.permute.xlu0 %1574
      %1576 = vrot.lane.b32.xlu0 %v1515, 64
      %v1577 = vpop.permute.xlu0 %1576
      %1578 = vrot.lane.b32.xlu0 %v1516, 64
      %v1579 = vpop.permute.xlu0 %1578
      %1580 = vrot.lane.b32.xlu0 %v1517, 64
      %v1581 = vpop.permute.xlu0 %1580
      %v1590 = vsel %vm942, %v1108, %v1381
      %v1591 = vsel %vm942, %v1109, %v1383
      %v1592 = vsel %vm942, %v1110, %v1385
      %v1593 = vsel %vm942, %v1111, %v1387
      %v1594 = vsel %vm942, %v1112, %v1389
      %v1595 = vsel %vm942, %v1113, %v1391
      %v1596 = vsel %vm942, %v1114, %v1393
      %v1597 = vsel %vm942, %v1115, %v1395
      %v1598 = vsel %vm942, %v1124, %v1535
      %v1599 = vsel %vm942, %v1125, %v1537
      %v1600 = vsel %vm942, %v1126, %v1539
      %v1601 = vsel %vm942, %v1127, %v1541
      %v1602 = vsel %vm942, %v1128, %v1543
      %v1603 = vsel %vm942, %v1129, %v1545
      %v1604 = vsel %vm942, %v1130, %v1547
      %v1605 = vsel %vm942, %v1131, %v1549
      %v1606 = vsel %vm942, %v1501, %v1567
      %v1607 = vsel %vm942, %v1502, %v1569
      %v1608 = vsel %vm942, %v1503, %v1571
      %v1609 = vsel %vm942, %v1504, %v1573
      %v1610 = vsel %vm942, %v1505, %v1575
      %v1611 = vsel %vm942, %v1506, %v1577
      %v1612 = vsel %vm942, %v1507, %v1579
      %v1613 = vsel %vm942, %v1508, %v1581
      %v1614 = vld [vmem:[%s1509 + $0x2] sm:$0xff]
      %v1615 = vld [vmem:[%s1509 + $0x12] sm:$0xff]
      %v1616 = vld [vmem:[%s1509 + $0x22] sm:$0xff]
      %v1617 = vld [vmem:[%s1509 + $0x32] sm:$0xff]
      %v1618 = vld [vmem:[%s1509 + $0x42] sm:$0xff]
      %v1619 = vld [vmem:[%s1509 + $0x52] sm:$0xff]
      %v1620 = vld [vmem:[%s1509 + $0x62] sm:$0xff]
      %v1621 = vld [vmem:[%s1509 + $0x72] sm:$0xff]
      %1630 = vrot.lane.b32.xlu0 %v1332, 64
      %v1631 = vpop.permute.xlu0 %1630
      %1632 = vrot.lane.b32.xlu0 %v1333, 64
      %v1633 = vpop.permute.xlu0 %1632
      %1634 = vrot.lane.b32.xlu0 %v1334, 64
      %v1635 = vpop.permute.xlu0 %1634
      %1636 = vrot.lane.b32.xlu0 %v1335, 64
      %v1637 = vpop.permute.xlu0 %1636
      %1638 = vrot.lane.b32.xlu0 %v1336, 64
      %v1639 = vpop.permute.xlu0 %1638
      %1640 = vrot.lane.b32.xlu0 %v1337, 64
      %v1641 = vpop.permute.xlu0 %1640
      %1642 = vrot.lane.b32.xlu0 %v1338, 64
      %v1643 = vpop.permute.xlu0 %1642
      %1644 = vrot.lane.b32.xlu0 %v1339, 64
      %v1645 = vpop.permute.xlu0 %1644
      %1662 = vrot.lane.b32.xlu0 %v1518, 64
      %v1663 = vpop.permute.xlu0 %1662
      %1664 = vrot.lane.b32.xlu0 %v1519, 64
      %v1665 = vpop.permute.xlu0 %1664
      %1666 = vrot.lane.b32.xlu0 %v1520, 64
      %v1667 = vpop.permute.xlu0 %1666
      %1668 = vrot.lane.b32.xlu0 %v1521, 64
      %v1669 = vpop.permute.xlu0 %1668
      %1670 = vrot.lane.b32.xlu0 %v1522, 64
      %v1671 = vpop.permute.xlu0 %1670
      %1672 = vrot.lane.b32.xlu0 %v1523, 64
      %v1673 = vpop.permute.xlu0 %1672
      %1674 = vrot.lane.b32.xlu0 %v1524, 64
      %v1675 = vpop.permute.xlu0 %1674
      %1676 = vrot.lane.b32.xlu0 %v1525, 64
      %v1677 = vpop.permute.xlu0 %1676
      %v1686 = vsel %vm942, %v1324, %v1261
      %v1687 = vsel %vm942, %v1325, %v1263
      %v1688 = vsel %vm942, %v1326, %v1265
      %v1689 = vsel %vm942, %v1327, %v1267
      %v1690 = vsel %vm942, %v1328, %v1269
      %v1691 = vsel %vm942, %v1329, %v1271
      %v1692 = vsel %vm942, %v1330, %v1273
      %v1693 = vsel %vm942, %v1331, %v1275
      %v1694 = vsel %vm942, %v1148, %v1631
      %v1695 = vsel %vm942, %v1149, %v1633
      %v1696 = vsel %vm942, %v1150, %v1635
      %v1697 = vsel %vm942, %v1151, %v1637
      %v1698 = vsel %vm942, %v1152, %v1639
      %v1699 = vsel %vm942, %v1153, %v1641
      %v1700 = vsel %vm942, %v1154, %v1643
      %v1701 = vsel %vm942, %v1155, %v1645
      %v1702 = vsel %vm942, %v1510, %v1663
      %v1703 = vsel %vm942, %v1511, %v1665
      %v1704 = vsel %vm942, %v1512, %v1667
      %v1705 = vsel %vm942, %v1513, %v1669
      %v1706 = vsel %vm942, %v1514, %v1671
      %v1707 = vsel %vm942, %v1515, %v1673
      %v1708 = vsel %vm942, %v1516, %v1675
      %v1709 = vsel %vm942, %v1517, %v1677
      %v1710 = vpack.c.bf16 %v1285, %v1284
      %v1711 = vpack.c.bf16 %v1293, %v1292
      %v1712 = vpack.c.bf16 %v1301, %v1300
      %v1713 = vpack.c.bf16 %v1309, %v1308
      %v1714 = vpack.c.bf16 %v1149, %v1148
      %v1715 = vpack.c.bf16 %v1287, %v1286
      %v1716 = vpack.c.bf16 %v1295, %v1294
      %v1717 = vpack.c.bf16 %v1303, %v1302
      %v1718 = vpack.c.bf16 %v1311, %v1310
      %v1719 = vpack.c.bf16 %v1151, %v1150
      %v1720 = vpack.c.bf16 %v1289, %v1288
      %v1721 = vpack.c.bf16 %v1297, %v1296
      %v1722 = vpack.c.bf16 %v1305, %v1304
      %v1723 = vpack.c.bf16 %v1313, %v1312
      %v1724 = vpack.c.bf16 %v1153, %v1152
      %v1725 = vpack.c.bf16 %v1291, %v1290
      %v1726 = vpack.c.bf16 %v1299, %v1298
      %v1727 = vpack.c.bf16 %v1307, %v1306
      %v1728 = vpack.c.bf16 %v1315, %v1314
      %v1729 = vpack.c.bf16 %v1155, %v1154
      %v1730 = vpack.c.bf16 %v1469, %v1468
      %v1731 = vpack.c.bf16 %v1477, %v1476
      %v1732 = vpack.c.bf16 %v1485, %v1484
      %v1733 = vpack.c.bf16 %v1493, %v1492
      %v1734 = vpack.c.bf16 %v1333, %v1332
      %v1735 = vpack.c.bf16 %v1471, %v1470
      %v1736 = vpack.c.bf16 %v1479, %v1478
      %v1737 = vpack.c.bf16 %v1487, %v1486
      %v1738 = vpack.c.bf16 %v1495, %v1494
      %v1739 = vpack.c.bf16 %v1335, %v1334
      %v1740 = vpack.c.bf16 %v1473, %v1472
      %v1741 = vpack.c.bf16 %v1481, %v1480
      %v1742 = vpack.c.bf16 %v1489, %v1488
      %v1743 = vpack.c.bf16 %v1497, %v1496
      %v1744 = vpack.c.bf16 %v1337, %v1336
      %v1745 = vpack.c.bf16 %v1475, %v1474
      %v1746 = vpack.c.bf16 %v1483, %v1482
      %v1747 = vpack.c.bf16 %v1491, %v1490
      %v1748 = vpack.c.bf16 %v1499, %v1498
      %v1749 = vpack.c.bf16 %v1339, %v1338
      %v1750 = vpack.c.bf16 %v1591, %v1590
      %v1751 = vpack.c.bf16 %v1599, %v1598
      %v1752 = vpack.c.bf16 %v1607, %v1606
      %v1753 = vpack.c.bf16 %v1519, %v1518
      %v1754 = vpack.c.bf16 %v1593, %v1592
      %v1755 = vpack.c.bf16 %v1601, %v1600
      %v1756 = vpack.c.bf16 %v1609, %v1608
      %v1757 = vpack.c.bf16 %v1521, %v1520
      %v1758 = vpack.c.bf16 %v1595, %v1594
      %v1759 = vpack.c.bf16 %v1603, %v1602
      %v1760 = vpack.c.bf16 %v1611, %v1610
      %v1761 = vpack.c.bf16 %v1523, %v1522
      %v1762 = vpack.c.bf16 %v1597, %v1596
      %v1763 = vpack.c.bf16 %v1605, %v1604
      %v1764 = vpack.c.bf16 %v1613, %v1612
      %v1765 = vpack.c.bf16 %v1525, %v1524
      %v1766 = vpack.c.bf16 %v1687, %v1686
      %v1767 = vpack.c.bf16 %v1695, %v1694
      %v1768 = vpack.c.bf16 %v1703, %v1702
      %v1769 = vpack.c.bf16 %v1615, %v1614
      %v1770 = vpack.c.bf16 %v1689, %v1688
      %v1771 = vpack.c.bf16 %v1697, %v1696
      %v1772 = vpack.c.bf16 %v1705, %v1704
      %v1773 = vpack.c.bf16 %v1617, %v1616
      %v1774 = vpack.c.bf16 %v1691, %v1690
      %v1775 = vpack.c.bf16 %v1699, %v1698
      %v1776 = vpack.c.bf16 %v1707, %v1706
      %v1777 = vpack.c.bf16 %v1619, %v1618
      %v1778 = vpack.c.bf16 %v1693, %v1692
      %v1779 = vpack.c.bf16 %v1701, %v1700
      %v1780 = vpack.c.bf16 %v1709, %v1708
      %v1781 = vpack.c.bf16 %v1621, %v1620
      %v1782 = vld [vmem:[%s4] sm:$0xf]
      %v1783 = vld [vmem:[%s4 + $0x4] sm:$0xf]
      %v1784 = vld [vmem:[%s4 + $0x8] sm:$0xf]
      %v1785 = vld [vmem:[%s4 + $0xc] sm:$0xf]
      %v1786 = vld [vmem:[%s4 + $0x10] sm:$0xf]
      %v1787 = vld [vmem:[%s4 + $0x14] sm:$0xf]
      %v1788 = vld [vmem:[%s4 + $0x18] sm:$0xf]
      %v1789 = vld [vmem:[%s4 + $0x1c] sm:$0xf]
      %v1790 = vld [vmem:[%s4 + $0x20] sm:$0xf]
      %v1791 = vld [vmem:[%s4 + $0x24] sm:$0xf]
      %v1792 = vld [vmem:[%s4 + $0x28] sm:$0xf]
      %v1793 = vld [vmem:[%s4 + $0x2c] sm:$0xf]
      %v1794 = vld [vmem:[%s4 + $0x30] sm:$0xf]
      %v1795 = vld [vmem:[%s4 + $0x34] sm:$0xf]
      %v1796 = vld [vmem:[%s4 + $0x38] sm:$0xf]
      %v1797 = vld [vmem:[%s4 + $0x3c] sm:$0xf]
      %v1798 = vld [vmem:[%s4 + $0x40] sm:$0xf]
      %v1799 = vld [vmem:[%s4 + $0x44] sm:$0xf]
      %v1800 = vld [vmem:[%s4 + $0x48] sm:$0xf]
      %v1801 = vld [vmem:[%s4 + $0x4c] sm:$0xf]
      %v1802 = vld [vmem:[%s4 + $0x50] sm:$0xf]
      %v1803 = vld [vmem:[%s4 + $0x54] sm:$0xf]
      %v1804 = vld [vmem:[%s4 + $0x58] sm:$0xf]
      %v1805 = vld [vmem:[%s4 + $0x5c] sm:$0xf]
      %v1806 = vld [vmem:[%s4 + $0x60] sm:$0xf]
      %v1807 = vld [vmem:[%s4 + $0x64] sm:$0xf]
      %v1808 = vld [vmem:[%s4 + $0x68] sm:$0xf]
      %v1809 = vld [vmem:[%s4 + $0x6c] sm:$0xf]
      %v1810 = vld [vmem:[%s4 + $0x70] sm:$0xf]
      %v1811 = vld [vmem:[%s4 + $0x74] sm:$0xf]
      %v1812 = vld [vmem:[%s4 + $0x78] sm:$0xf]
      %v1813 = vld [vmem:[%s4 + $0x7c] sm:$0xf]
      %v1814 = vld [vmem:[%s4 + $0x80] sm:$0xf]
      %v1815 = vld [vmem:[%s4 + $0x84] sm:$0xf]
      %v1816 = vld [vmem:[%s4 + $0x88] sm:$0xf]
      %v1817 = vld [vmem:[%s4 + $0x8c] sm:$0xf]
      %v1818 = vld [vmem:[%s4 + $0x90] sm:$0xf]
      %v1819 = vld [vmem:[%s4 + $0x94] sm:$0xf]
      %v1820 = vld [vmem:[%s4 + $0x98] sm:$0xf]
      %v1821 = vld [vmem:[%s4 + $0x9c] sm:$0xf]
      %v1822 = vld [vmem:[%s4 + $0xa0] sm:$0xf]
      %v1823 = vld [vmem:[%s4 + $0xa4] sm:$0xf]
      %v1824 = vld [vmem:[%s4 + $0xa8] sm:$0xf]
      %v1825 = vld [vmem:[%s4 + $0xac] sm:$0xf]
      %v1826 = vld [vmem:[%s4 + $0xb0] sm:$0xf]
      %v1827 = vld [vmem:[%s4 + $0xb4] sm:$0xf]
      %v1828 = vld [vmem:[%s4 + $0xb8] sm:$0xf]
      %v1829 = vld [vmem:[%s4 + $0xbc] sm:$0xf]
      %v1830 = vld [vmem:[%s4 + $0xc0] sm:$0xf]
      %v1831 = vld [vmem:[%s4 + $0xc4] sm:$0xf]
      %v1832 = vld [vmem:[%s4 + $0xc8] sm:$0xf]
      %v1833 = vld [vmem:[%s4 + $0xcc] sm:$0xf]
      %v1834 = vld [vmem:[%s4 + $0xd0] sm:$0xf]
      %v1835 = vld [vmem:[%s4 + $0xd4] sm:$0xf]
      %v1836 = vld [vmem:[%s4 + $0xd8] sm:$0xf]
      %v1837 = vld [vmem:[%s4 + $0xdc] sm:$0xf]
      %v1838 = vld [vmem:[%s4 + $0xe0] sm:$0xf]
      %v1839 = vld [vmem:[%s4 + $0xe4] sm:$0xf]
      %v1840 = vld [vmem:[%s4 + $0xe8] sm:$0xf]
      %v1841 = vld [vmem:[%s4 + $0xec] sm:$0xf]
      %v1842 = vld [vmem:[%s4 + $0xf0] sm:$0xf]
      %v1843 = vld [vmem:[%s4 + $0xf4] sm:$0xf]
      %v1844 = vld [vmem:[%s4 + $0xf8] sm:$0xf]
      %v1845 = vld [vmem:[%s4 + $0xfc] sm:$0xf]
      %v1846 = vld [vmem:[%s4 + $0x100] sm:$0xf]
      %v1847 = vld [vmem:[%s4 + $0x104] sm:$0xf]
      %v1848 = vld [vmem:[%s4 + $0x108] sm:$0xf]
      %v1849 = vld [vmem:[%s4 + $0x10c] sm:$0xf]
      %v1850 = vld [vmem:[%s4 + $0x110] sm:$0xf]
      %v1851 = vld [vmem:[%s4 + $0x114] sm:$0xf]
      %v1852 = vld [vmem:[%s4 + $0x118] sm:$0xf]
      %v1853 = vld [vmem:[%s4 + $0x11c] sm:$0xf]
      %v1854 = vld [vmem:[%s5] sm:$0x1]
      %v1856 = vlaneseq
      %v1857 = vshrl.u32 %v1856, 7
      %v1858 = vsub.s32 0, %v1857
      %v1859 = vrot.slane %v1854, %v1858
      %v1933 = vunpack.c.l.b16 %v1782
      %v1934 = vunpack.c.l.b16 %v1783
      %v1935 = vunpack.c.l.b16 %v1784
      %v1936 = vunpack.c.l.b16 %v1785
      %v1937 = vunpack.c.l.b16 %v1786
      %v1938 = vunpack.c.l.b16 %v1787
      %v1939 = vunpack.c.l.b16 %v1788
      %v1940 = vunpack.c.l.b16 %v1789
      %v1941 = vunpack.c.l.b16 %v1790
      %v1942 = vunpack.c.l.b16 %v1791
      %v1943 = vunpack.c.l.b16 %v1792
      %v1944 = vunpack.c.l.b16 %v1793
      %v1945 = vunpack.c.l.b16 %v1794
      %v1946 = vunpack.c.l.b16 %v1795
      %v1947 = vunpack.c.l.b16 %v1796
      %v1948 = vunpack.c.l.b16 %v1797
      %v1949 = vunpack.c.l.b16 %v1798
      %v1950 = vunpack.c.l.b16 %v1799
      %v1951 = vunpack.c.l.b16 %v1800
      %v1952 = vunpack.c.l.b16 %v1801
      %v1953 = vunpack.c.l.b16 %v1802
      %v1954 = vunpack.c.l.b16 %v1803
      %v1955 = vunpack.c.l.b16 %v1804
      %v1956 = vunpack.c.l.b16 %v1805
      %v1957 = vunpack.c.l.b16 %v1806
      %v1958 = vunpack.c.l.b16 %v1807
      %v1959 = vunpack.c.l.b16 %v1808
      %v1960 = vunpack.c.l.b16 %v1809
      %v1961 = vunpack.c.l.b16 %v1810
      %v1962 = vunpack.c.l.b16 %v1811
      %v1963 = vunpack.c.l.b16 %v1812
      %v1964 = vunpack.c.l.b16 %v1813
      %v1965 = vunpack.c.l.b16 %v1814
      %v1966 = vunpack.c.l.b16 %v1815
      %v1967 = vunpack.c.l.b16 %v1816
      %v1968 = vunpack.c.l.b16 %v1817
      %v1969 = vunpack.c.l.b16 %v1818
      %v1970 = vunpack.c.l.b16 %v1819
      %v1971 = vunpack.c.l.b16 %v1820
      %v1972 = vunpack.c.l.b16 %v1821
      %v1973 = vunpack.c.l.b16 %v1822
      %v1974 = vunpack.c.l.b16 %v1823
      %v1975 = vunpack.c.l.b16 %v1824
      %v1976 = vunpack.c.l.b16 %v1825
      %v1977 = vunpack.c.l.b16 %v1826
      %v1978 = vunpack.c.l.b16 %v1827
      %v1979 = vunpack.c.l.b16 %v1828
      %v1980 = vunpack.c.l.b16 %v1829
      %v1981 = vunpack.c.l.b16 %v1830
      %v1982 = vunpack.c.l.b16 %v1831
      %v1983 = vunpack.c.l.b16 %v1832
      %v1984 = vunpack.c.l.b16 %v1833
      %v1985 = vunpack.c.l.b16 %v1834
      %v1986 = vunpack.c.l.b16 %v1835
      %v1987 = vunpack.c.l.b16 %v1836
      %v1988 = vunpack.c.l.b16 %v1837
      %v1989 = vunpack.c.l.b16 %v1838
      %v1990 = vunpack.c.l.b16 %v1839
      %v1991 = vunpack.c.l.b16 %v1840
      %v1992 = vunpack.c.l.b16 %v1841
      %v1993 = vunpack.c.l.b16 %v1842
      %v1994 = vunpack.c.l.b16 %v1843
      %v1995 = vunpack.c.l.b16 %v1844
      %v1996 = vunpack.c.l.b16 %v1845
      %v1997 = vunpack.c.l.b16 %v1846
      %v1998 = vunpack.c.l.b16 %v1847
      %v1999 = vunpack.c.l.b16 %v1848
      %v2000 = vunpack.c.l.b16 %v1849
      %v2001 = vunpack.c.l.b16 %v1850
      %v2002 = vunpack.c.l.b16 %v1851
      %v2003 = vunpack.c.l.b16 %v1852
      %v2004 = vunpack.c.l.b16 %v1853
      %v2005 = vpack.c.b16 %v1934, %v1933
      %v2006 = vpack.c.b16 %v1936, %v1935
      %v2007 = vpack.c.b16 %v1938, %v1937
      %v2008 = vpack.c.b16 %v1940, %v1939
      %v2009 = vpack.c.b16 %v1942, %v1941
      %v2010 = vpack.c.b16 %v1944, %v1943
      %v2011 = vpack.c.b16 %v1946, %v1945
      %v2012 = vpack.c.b16 %v1948, %v1947
      %v2013 = vpack.c.b16 %v1950, %v1949
      %v2014 = vpack.c.b16 %v1952, %v1951
      %v2015 = vpack.c.b16 %v1954, %v1953
      %v2016 = vpack.c.b16 %v1956, %v1955
      %v2017 = vpack.c.b16 %v1958, %v1957
      %v2018 = vpack.c.b16 %v1960, %v1959
      %v2019 = vpack.c.b16 %v1962, %v1961
      %v2020 = vpack.c.b16 %v1964, %v1963
      %v2021 = vpack.c.b16 %v1966, %v1965
      %v2022 = vpack.c.b16 %v1968, %v1967
      %v2023 = vpack.c.b16 %v1970, %v1969
      %v2024 = vpack.c.b16 %v1972, %v1971
      %v2025 = vpack.c.b16 %v1974, %v1973
      %v2026 = vpack.c.b16 %v1976, %v1975
      %v2027 = vpack.c.b16 %v1978, %v1977
      %v2028 = vpack.c.b16 %v1980, %v1979
      %v2029 = vpack.c.b16 %v1982, %v1981
      %v2030 = vpack.c.b16 %v1984, %v1983
      %v2031 = vpack.c.b16 %v1986, %v1985
      %v2032 = vpack.c.b16 %v1988, %v1987
      %v2033 = vpack.c.b16 %v1990, %v1989
      %v2034 = vpack.c.b16 %v1992, %v1991
      %v2035 = vpack.c.b16 %v1994, %v1993
      %v2036 = vpack.c.b16 %v1996, %v1995
      %v2037 = vpack.c.b16 %v1998, %v1997
      %v2038 = vpack.c.b16 %v2000, %v1999
      %v2039 = vpack.c.b16 %v2002, %v2001
      %v2040 = vpack.c.b16 %v2004, %v2003
      %v2078 = vsel %vm942, %v1714, 0
      %v2081 = vsel %vm942, %v1719, 0
      %v2084 = vsel %vm942, %v1724, 0
      %v2087 = vsel %vm942, %v1729, 0
      %v2090 = vsel %vm942, %v1734, 0
      %v2093 = vsel %vm942, %v1739, 0
      %v2096 = vsel %vm942, %v1744, 0
      %v2099 = vsel %vm942, %v1749, 0
      %v2102 = vsel %vm942, %v1753, 0
      %v2105 = vsel %vm942, %v1757, 0
      %v2108 = vsel %vm942, %v1761, 0
      %v2111 = vsel %vm942, %v1765, 0
      %v2114 = vsel %vm942, %v1769, 0
      %v2117 = vsel %vm942, %v1773, 0
      %v2120 = vsel %vm942, %v1777, 0
      %v2123 = vsel %vm942, %v1781, 0
      %2125 = vmatprep.subr.bf16.mxu0 0
      %2126 = vmatpush1.bf16.msra.mxu0 %v2012
      %2127 = vmatprep.subr.bf16.mxu0 0
      %2128 = vmatpush1.bf16.msra.mxu0 %v2011
      %2129 = vmatprep.subr.bf16.mxu0 0
      %2130 = vmatpush1.bf16.msra.mxu0 %v2010
      %2131 = vmatprep.subr.bf16.mxu0 0
      %2132 = vmatpush1.bf16.msra.mxu0 %v2009
      %2133 = vmatprep.subr.bf16.mxu0 0
      %2134 = vmatpush1.bf16.msra.mxu0 %v2008
      %2135 = vmatprep.subr.bf16.mxu0 0
      %2136 = vmatpush1.bf16.msra.mxu0 %v2007
      %2137 = vmatprep.subr.bf16.mxu0 0
      %2138 = vmatpush1.bf16.msra.mxu0 %v2006
      %2139 = vmatprep.subr.bf16.mxu0 0
      %2140 = vmatpush1.bf16.msra.mxu0 %v2005
      %2141 = vmatprep.subr.bf16.mxu0 0
      %2142 = vmatpush2.bf16.msra.mxu0 %v2020
      %2143 = vmatprep.subr.bf16.mxu0 0
      %2144 = vmatpush2.bf16.msra.mxu0 %v2019
      %2145 = vmatprep.subr.bf16.mxu0 0
      %2146 = vmatpush2.bf16.msra.mxu0 %v2018
      %2147 = vmatprep.subr.bf16.mxu0 0
      %2148 = vmatpush2.bf16.msra.mxu0 %v2017
      %2149 = vmatprep.subr.bf16.mxu0 0
      %2150 = vmatpush2.bf16.msra.mxu0 %v2016
      %2151 = vmatprep.subr.bf16.mxu0 0
      %2152 = vmatpush2.bf16.msra.mxu0 %v2015
      %2153 = vmatprep.subr.bf16.mxu0 0
      %2154 = vmatpush2.bf16.msra.mxu0 %v2014
      %2155 = vmatprep.subr.bf16.mxu0 0
      %2156 = vmatpush2.bf16.msra.mxu0 %v2013
      %2157 = vmatprep.mubr.bf16.mxu0 %v1711
      %2158 = vmatmul.mubr.bf16.gmra.mxu0 %v1710
      %v2159 = vpop.f32.mrf.mxu0
      %v2160 = vadd.f32 %v1859, %v2159
      %v2161 = vpop.f32.mrf.mxu0
      %v2162 = vpop.f32.mrf.mxu0
      %v2163 = vadd.f32 %v1859, %v2162
      %v2164 = vpop.f32.mrf.mxu0
      %2165 = vmatprep.mubr.bf16.mxu0 %v1716
      %2166 = vmatmul.mubr.bf16.gmra.mxu0 %v1715
      %v2167 = vpop.f32.mrf.mxu0
      %v2168 = vadd.f32 %v1859, %v2167
      %v2169 = vpop.f32.mrf.mxu0
      %v2170 = vpop.f32.mrf.mxu0
      %v2171 = vadd.f32 %v1859, %v2170
      %v2172 = vpop.f32.mrf.mxu0
      %2173 = vmatprep.mubr.bf16.mxu0 %v1721
      %2174 = vmatmul.mubr.bf16.gmra.mxu0 %v1720
      %v2175 = vpop.f32.mrf.mxu0
      %v2176 = vadd.f32 %v1859, %v2175
      %v2177 = vpop.f32.mrf.mxu0
      %v2178 = vpop.f32.mrf.mxu0
      %v2179 = vadd.f32 %v1859, %v2178
      %v2180 = vpop.f32.mrf.mxu0
      %2181 = vmatprep.mubr.bf16.mxu0 %v1726
      %2182 = vmatmul.mubr.bf16.gmra.mxu0 %v1725
      %v2183 = vpop.f32.mrf.mxu0
      %v2184 = vadd.f32 %v1859, %v2183
      %v2185 = vpop.f32.mrf.mxu0
      %v2186 = vpop.f32.mrf.mxu0
      %v2187 = vadd.f32 %v1859, %v2186
      %v2188 = vpop.f32.mrf.mxu0
      %2189 = vmatprep.mubr.bf16.mxu0 %v1731
      %2190 = vmatmul.mubr.bf16.gmra.mxu0 %v1730
      %v2191 = vpop.f32.mrf.mxu0
      %v2192 = vadd.f32 %v1859, %v2191
      %v2193 = vpop.f32.mrf.mxu0
      %v2194 = vpop.f32.mrf.mxu0
      %v2195 = vadd.f32 %v1859, %v2194
      %v2196 = vpop.f32.mrf.mxu0
      %2197 = vmatprep.mubr.bf16.mxu0 %v1736
      %2198 = vmatmul.mubr.bf16.gmra.mxu0 %v1735
      %v2199 = vpop.f32.mrf.mxu0
      %v2200 = vadd.f32 %v1859, %v2199
      %v2201 = vpop.f32.mrf.mxu0
      %v2202 = vpop.f32.mrf.mxu0
      %v2203 = vadd.f32 %v1859, %v2202
      %v2204 = vpop.f32.mrf.mxu0
      %2205 = vmatprep.mubr.bf16.mxu0 %v1741
      %2206 = vmatmul.mubr.bf16.gmra.mxu0 %v1740
      %v2207 = vpop.f32.mrf.mxu0
      %v2208 = vadd.f32 %v1859, %v2207
      %v2209 = vpop.f32.mrf.mxu0
      %v2210 = vpop.f32.mrf.mxu0
      %v2211 = vadd.f32 %v1859, %v2210
      %v2212 = vpop.f32.mrf.mxu0
      %2213 = vmatprep.mubr.bf16.mxu0 %v1746
      %2214 = vmatmul.mubr.bf16.gmra.mxu0 %v1745
      %v2215 = vpop.f32.mrf.mxu0
      %v2216 = vadd.f32 %v1859, %v2215
      %v2217 = vpop.f32.mrf.mxu0
      %v2218 = vpop.f32.mrf.mxu0
      %v2219 = vadd.f32 %v1859, %v2218
      %v2220 = vpop.f32.mrf.mxu0
      %2221 = vmatprep.mubr.bf16.mxu0 %v1751
      %2222 = vmatmul.mubr.bf16.gmra.mxu0 %v1750
      %v2223 = vpop.f32.mrf.mxu0
      %v2224 = vadd.f32 %v1859, %v2223
      %v2225 = vpop.f32.mrf.mxu0
      %v2226 = vpop.f32.mrf.mxu0
      %v2227 = vadd.f32 %v1859, %v2226
      %v2228 = vpop.f32.mrf.mxu0
      %2229 = vmatprep.mubr.bf16.mxu0 %v1755
      %2230 = vmatmul.mubr.bf16.gmra.mxu0 %v1754
      %v2231 = vpop.f32.mrf.mxu0
      %v2232 = vadd.f32 %v1859, %v2231
      %v2233 = vpop.f32.mrf.mxu0
      %v2234 = vpop.f32.mrf.mxu0
      %v2235 = vadd.f32 %v1859, %v2234
      %v2236 = vpop.f32.mrf.mxu0
      %2237 = vmatprep.mubr.bf16.mxu0 %v1759
      %2238 = vmatmul.mubr.bf16.gmra.mxu0 %v1758
      %v2239 = vpop.f32.mrf.mxu0
      %v2240 = vadd.f32 %v1859, %v2239
      %v2241 = vpop.f32.mrf.mxu0
      %v2242 = vpop.f32.mrf.mxu0
      %v2243 = vadd.f32 %v1859, %v2242
      %v2244 = vpop.f32.mrf.mxu0
      %2245 = vmatprep.mubr.bf16.mxu0 %v1763
      %2246 = vmatmul.mubr.bf16.gmra.mxu0 %v1762
      %v2247 = vpop.f32.mrf.mxu0
      %v2248 = vadd.f32 %v1859, %v2247
      %v2249 = vpop.f32.mrf.mxu0
      %v2250 = vpop.f32.mrf.mxu0
      %v2251 = vadd.f32 %v1859, %v2250
      %v2252 = vpop.f32.mrf.mxu0
      %2253 = vmatprep.mubr.bf16.mxu0 %v1766
      %2254 = vmatmul.mubr.bf16.gmra.mxu0 %v1712
      %v2255 = vpop.f32.mrf.mxu0
      %v2256 = vadd.f32 %v1859, %v2255
      %v2257 = vpop.f32.mrf.mxu0
      %v2258 = vpop.f32.mrf.mxu0
      %v2259 = vadd.f32 %v1859, %v2258
      %v2260 = vpop.f32.mrf.mxu0
      %2261 = vmatprep.mubr.bf16.mxu0 %v1770
      %2262 = vmatmul.mubr.bf16.gmra.mxu0 %v1717
      %v2263 = vpop.f32.mrf.mxu0
      %v2264 = vadd.f32 %v1859, %v2263
      %v2265 = vpop.f32.mrf.mxu0
      %v2266 = vpop.f32.mrf.mxu0
      %v2267 = vadd.f32 %v1859, %v2266
      %v2268 = vpop.f32.mrf.mxu0
      %2269 = vmatprep.mubr.bf16.mxu0 %v1774
      %2270 = vmatmul.mubr.bf16.gmra.mxu0 %v1722
      %v2271 = vpop.f32.mrf.mxu0
      %v2272 = vadd.f32 %v1859, %v2271
      %v2273 = vpop.f32.mrf.mxu0
      %v2274 = vpop.f32.mrf.mxu0
      %v2275 = vadd.f32 %v1859, %v2274
      %v2276 = vpop.f32.mrf.mxu0
      %2277 = vmatprep.mubr.bf16.mxu0 %v1778
      %2278 = vmatmul.mubr.bf16.gmra.mxu0 %v1727
      %v2279 = vpop.f32.mrf.mxu0
      %v2280 = vadd.f32 %v1859, %v2279
      %v2281 = vpop.f32.mrf.mxu0
      %v2282 = vpop.f32.mrf.mxu0
      %v2283 = vadd.f32 %v1859, %v2282
      %v2284 = vpop.f32.mrf.mxu0
      %2285 = vdwg.mxu0
      %2286 = vmatprep.subr.bf16.mxu0 0
      %2287 = vmatpush1.bf16.msra.mxu0 %v2028
      %2288 = vmatprep.subr.bf16.mxu0 0
      %2289 = vmatpush1.bf16.msra.mxu0 %v2027
      %2290 = vmatprep.subr.bf16.mxu0 0
      %2291 = vmatpush1.bf16.msra.mxu0 %v2026
      %2292 = vmatprep.subr.bf16.mxu0 0
      %2293 = vmatpush1.bf16.msra.mxu0 %v2025
      %2294 = vmatprep.subr.bf16.mxu0 0
      %2295 = vmatpush1.bf16.msra.mxu0 %v2024
      %2296 = vmatprep.subr.bf16.mxu0 0
      %2297 = vmatpush1.bf16.msra.mxu0 %v2023
      %2298 = vmatprep.subr.bf16.mxu0 0
      %2299 = vmatpush1.bf16.msra.mxu0 %v2022
      %2300 = vmatprep.subr.bf16.mxu0 0
      %2301 = vmatpush1.bf16.msra.mxu0 %v2021
      %2302 = vmatprep.subr.bf16.mxu0 0
      %2303 = vmatpush2.bf16.msra.mxu0 %v2036
      %2304 = vmatprep.subr.bf16.mxu0 0
      %2305 = vmatpush2.bf16.msra.mxu0 %v2035
      %2306 = vmatprep.subr.bf16.mxu0 0
      %2307 = vmatpush2.bf16.msra.mxu0 %v2034
      %2308 = vmatprep.subr.bf16.mxu0 0
      %2309 = vmatpush2.bf16.msra.mxu0 %v2033
      %2310 = vmatprep.subr.bf16.mxu0 0
      %2311 = vmatpush2.bf16.msra.mxu0 %v2032
      %2312 = vmatprep.subr.bf16.mxu0 0
      %2313 = vmatpush2.bf16.msra.mxu0 %v2031
      %2314 = vmatprep.subr.bf16.mxu0 0
      %2315 = vmatpush2.bf16.msra.mxu0 %v2030
      %2316 = vmatprep.subr.bf16.mxu0 0
      %2317 = vmatpush2.bf16.msra.mxu0 %v2029
      %2318 = vmatprep.mubr.bf16.mxu0 %v1713
      %2319 = vmatmul.mubr.bf16.gmra.mxu0 %v1712
      %v2320 = vpop.f32.mrf.mxu0
      %v2321 = vadd.f32 %v2160, %v2320
      %v2322 = vpop.f32.mrf.mxu0
      %v2323 = vpop.f32.mrf.mxu0
      %v2324 = vadd.f32 %v2163, %v2323
      %v2325 = vpop.f32.mrf.mxu0
      %2326 = vmatprep.mubr.bf16.mxu0 %v1718
      %2327 = vmatmul.mubr.bf16.gmra.mxu0 %v1717
      %v2328 = vpop.f32.mrf.mxu0
      %v2329 = vadd.f32 %v2168, %v2328
      %v2330 = vpop.f32.mrf.mxu0
      %v2331 = vpop.f32.mrf.mxu0
      %v2332 = vadd.f32 %v2171, %v2331
      %v2333 = vpop.f32.mrf.mxu0
      %2334 = vmatprep.mubr.bf16.mxu0 %v1723
      %2335 = vmatmul.mubr.bf16.gmra.mxu0 %v1722
      %v2336 = vpop.f32.mrf.mxu0
      %v2337 = vadd.f32 %v2176, %v2336
      %v2338 = vpop.f32.mrf.mxu0
      %v2339 = vpop.f32.mrf.mxu0
      %v2340 = vadd.f32 %v2179, %v2339
      %v2341 = vpop.f32.mrf.mxu0
      %2342 = vmatprep.mubr.bf16.mxu0 %v1728
      %2343 = vmatmul.mubr.bf16.gmra.mxu0 %v1727
      %v2344 = vpop.f32.mrf.mxu0
      %v2345 = vadd.f32 %v2184, %v2344
      %v2346 = vpop.f32.mrf.mxu0
      %v2347 = vpop.f32.mrf.mxu0
      %v2348 = vadd.f32 %v2187, %v2347
      %v2349 = vpop.f32.mrf.mxu0
      %2350 = vmatprep.mubr.bf16.mxu0 %v1733
      %2351 = vmatmul.mubr.bf16.gmra.mxu0 %v1732
      %v2352 = vpop.f32.mrf.mxu0
      %v2353 = vadd.f32 %v2192, %v2352
      %v2354 = vpop.f32.mrf.mxu0
      %v2355 = vpop.f32.mrf.mxu0
      %v2356 = vadd.f32 %v2195, %v2355
      %v2357 = vpop.f32.mrf.mxu0
      %2358 = vmatprep.mubr.bf16.mxu0 %v1738
      %2359 = vmatmul.mubr.bf16.gmra.mxu0 %v1737
      %v2360 = vpop.f32.mrf.mxu0
      %v2361 = vadd.f32 %v2200, %v2360
      %v2362 = vpop.f32.mrf.mxu0
      %v2363 = vpop.f32.mrf.mxu0
      %v2364 = vadd.f32 %v2203, %v2363
      %v2365 = vpop.f32.mrf.mxu0
      %2366 = vmatprep.mubr.bf16.mxu0 %v1743
      %2367 = vmatmul.mubr.bf16.gmra.mxu0 %v1742
      %v2368 = vpop.f32.mrf.mxu0
      %v2369 = vadd.f32 %v2208, %v2368
      %v2370 = vpop.f32.mrf.mxu0
      %v2371 = vpop.f32.mrf.mxu0
      %v2372 = vadd.f32 %v2211, %v2371
      %v2373 = vpop.f32.mrf.mxu0
      %2374 = vmatprep.mubr.bf16.mxu0 %v1748
      %2375 = vmatmul.mubr.bf16.gmra.mxu0 %v1747
      %v2376 = vpop.f32.mrf.mxu0
      %v2377 = vadd.f32 %v2216, %v2376
      %v2378 = vpop.f32.mrf.mxu0
      %v2379 = vpop.f32.mrf.mxu0
      %v2380 = vadd.f32 %v2219, %v2379
      %v2381 = vpop.f32.mrf.mxu0
      %2382 = vmatprep.mubr.bf16.mxu0 %v1752
      %2383 = vmatmul.mubr.bf16.gmra.mxu0 %v1733
      %v2384 = vpop.f32.mrf.mxu0
      %v2385 = vadd.f32 %v2224, %v2384
      %v2386 = vpop.f32.mrf.mxu0
      %v2387 = vpop.f32.mrf.mxu0
      %v2388 = vadd.f32 %v2227, %v2387
      %v2389 = vpop.f32.mrf.mxu0
      %2390 = vmatprep.mubr.bf16.mxu0 %v1756
      %2391 = vmatmul.mubr.bf16.gmra.mxu0 %v1738
      %v2392 = vpop.f32.mrf.mxu0
      %v2393 = vadd.f32 %v2232, %v2392
      %v2394 = vpop.f32.mrf.mxu0
      %v2395 = vpop.f32.mrf.mxu0
      %v2396 = vadd.f32 %v2235, %v2395
      %v2397 = vpop.f32.mrf.mxu0
      %2398 = vmatprep.mubr.bf16.mxu0 %v1760
      %2399 = vmatmul.mubr.bf16.gmra.mxu0 %v1743
      %v2400 = vpop.f32.mrf.mxu0
      %v2401 = vadd.f32 %v2240, %v2400
      %v2402 = vpop.f32.mrf.mxu0
      %v2403 = vpop.f32.mrf.mxu0
      %v2404 = vadd.f32 %v2243, %v2403
      %v2405 = vpop.f32.mrf.mxu0
      %2406 = vmatprep.mubr.bf16.mxu0 %v1764
      %2407 = vmatmul.mubr.bf16.gmra.mxu0 %v1748
      %v2408 = vpop.f32.mrf.mxu0
      %v2409 = vadd.f32 %v2248, %v2408
      %v2410 = vpop.f32.mrf.mxu0
      %v2411 = vpop.f32.mrf.mxu0
      %v2412 = vadd.f32 %v2251, %v2411
      %v2413 = vpop.f32.mrf.mxu0
      %2414 = vmatprep.mubr.bf16.mxu0 %v1768
      %2415 = vmatmul.mubr.bf16.gmra.mxu0 %v1767
      %v2416 = vpop.f32.mrf.mxu0
      %v2417 = vadd.f32 %v2256, %v2416
      %v2418 = vpop.f32.mrf.mxu0
      %v2419 = vpop.f32.mrf.mxu0
      %v2420 = vadd.f32 %v2259, %v2419
      %v2421 = vpop.f32.mrf.mxu0
      %2422 = vmatprep.mubr.bf16.mxu0 %v1772
      %2423 = vmatmul.mubr.bf16.gmra.mxu0 %v1771
      %v2424 = vpop.f32.mrf.mxu0
      %v2425 = vadd.f32 %v2264, %v2424
      %v2426 = vpop.f32.mrf.mxu0
      %v2427 = vpop.f32.mrf.mxu0
      %v2428 = vadd.f32 %v2267, %v2427
      %v2429 = vpop.f32.mrf.mxu0
      %2430 = vmatprep.mubr.bf16.mxu0 %v1776
      %2431 = vmatmul.mubr.bf16.gmra.mxu0 %v1775
      %v2432 = vpop.f32.mrf.mxu0
      %v2433 = vadd.f32 %v2272, %v2432
      %v2434 = vpop.f32.mrf.mxu0
      %v2435 = vpop.f32.mrf.mxu0
      %v2436 = vadd.f32 %v2275, %v2435
      %v2437 = vpop.f32.mrf.mxu0
      %2438 = vmatprep.mubr.bf16.mxu0 %v1780
      %2439 = vmatmul.mubr.bf16.gmra.mxu0 %v1779
      %v2440 = vpop.f32.mrf.mxu0
      %v2441 = vadd.f32 %v2280, %v2440
      %v2442 = vpop.f32.mrf.mxu0
      %v2443 = vpop.f32.mrf.mxu0
      %v2444 = vadd.f32 %v2283, %v2443
      %v2445 = vpop.f32.mrf.mxu0
      %2446 = vdwg.mxu0
      %2447 = vmatprep.subr.bf16.mxu0 0
      %2448 = vmatpush1.bf16.msra.mxu0 0
      %2449 = vmatprep.subr.bf16.mxu0 0
      %2450 = vmatpush1.bf16.msra.mxu0 0
      %2451 = vmatprep.subr.bf16.mxu0 0
      %2452 = vmatpush1.bf16.msra.mxu0 0
      %2453 = vmatprep.subr.bf16.mxu0 0
      %2454 = vmatpush1.bf16.msra.mxu0 0
      %2455 = vmatprep.subr.bf16.mxu0 0
      %2456 = vmatpush1.bf16.msra.mxu0 %v2040
      %2457 = vmatprep.subr.bf16.mxu0 0
      %2458 = vmatpush1.bf16.msra.mxu0 %v2039
      %2459 = vmatprep.subr.bf16.mxu0 0
      %2460 = vmatpush1.bf16.msra.mxu0 %v2038
      %2461 = vmatprep.subr.bf16.mxu0 0
      %2462 = vmatpush1.bf16.msra.mxu0 %v2037
      %2463 = vmatprep.subr.bf16.mxu0 0
      %2464 = vmatpush2.bf16.msra.mxu0 0
      %2465 = vmatprep.subr.bf16.mxu0 0
      %2466 = vmatpush2.bf16.msra.mxu0 0
      %2467 = vmatprep.subr.bf16.mxu0 0
      %2468 = vmatpush2.bf16.msra.mxu0 0
      %2469 = vmatprep.subr.bf16.mxu0 0
      %2470 = vmatpush2.bf16.msra.mxu0 0
      %2471 = vmatprep.subr.bf16.mxu0 0
      %2472 = vmatpush2.bf16.msra.mxu0 0
      %2473 = vmatprep.subr.bf16.mxu0 0
      %2474 = vmatpush2.bf16.msra.mxu0 0
      %2475 = vmatprep.subr.bf16.mxu0 0
      %2476 = vmatpush2.bf16.msra.mxu0 0
      %2477 = vmatprep.subr.bf16.mxu0 0
      %2478 = vmatpush2.bf16.msra.mxu0 0
      %2479 = vmatprep.mubr.bf16.mxu0 0
      %2480 = vmatmul.mubr.bf16.gmra.mxu0 %v2078
      %v2481 = vpop.f32.mrf.mxu0
      %v2482 = vadd.f32 %v2321, %v2481
      %v2483 = vpop.f32.mrf.mxu0
      %v2484 = vpop.f32.mrf.mxu0
      %v2485 = vadd.f32 %v2324, %v2484
      %v2486 = vpop.f32.mrf.mxu0
      %2487 = vmatprep.mubr.bf16.mxu0 0
      %2488 = vmatmul.mubr.bf16.gmra.mxu0 %v2081
      %v2489 = vpop.f32.mrf.mxu0
      %v2490 = vadd.f32 %v2329, %v2489
      %v2491 = vpop.f32.mrf.mxu0
      %v2492 = vpop.f32.mrf.mxu0
      %v2493 = vadd.f32 %v2332, %v2492
      %v2494 = vpop.f32.mrf.mxu0
      %2495 = vmatprep.mubr.bf16.mxu0 0
      %2496 = vmatmul.mubr.bf16.gmra.mxu0 %v2084
      %v2497 = vpop.f32.mrf.mxu0
      %v2498 = vadd.f32 %v2337, %v2497
      %v2499 = vpop.f32.mrf.mxu0
      %v2500 = vpop.f32.mrf.mxu0
      %v2501 = vadd.f32 %v2340, %v2500
      %v2502 = vpop.f32.mrf.mxu0
      %2503 = vmatprep.mubr.bf16.mxu0 0
      %2504 = vmatmul.mubr.bf16.gmra.mxu0 %v2087
      %v2505 = vpop.f32.mrf.mxu0
      %v2506 = vadd.f32 %v2345, %v2505
      %v2507 = vpop.f32.mrf.mxu0
      %v2508 = vpop.f32.mrf.mxu0
      %v2509 = vadd.f32 %v2348, %v2508
      %v2510 = vpop.f32.mrf.mxu0
      %2511 = vmatprep.mubr.bf16.mxu0 0
      %2512 = vmatmul.mubr.bf16.gmra.mxu0 %v2090
      %v2513 = vpop.f32.mrf.mxu0
      %v2514 = vadd.f32 %v2353, %v2513
      %v2515 = vpop.f32.mrf.mxu0
      %v2516 = vpop.f32.mrf.mxu0
      %v2517 = vadd.f32 %v2356, %v2516
      %v2518 = vpop.f32.mrf.mxu0
      %2519 = vmatprep.mubr.bf16.mxu0 0
      %2520 = vmatmul.mubr.bf16.gmra.mxu0 %v2093
      %v2521 = vpop.f32.mrf.mxu0
      %v2522 = vadd.f32 %v2361, %v2521
      %v2523 = vpop.f32.mrf.mxu0
      %v2524 = vpop.f32.mrf.mxu0
      %v2525 = vadd.f32 %v2364, %v2524
      %v2526 = vpop.f32.mrf.mxu0
      %2527 = vmatprep.mubr.bf16.mxu0 0
      %2528 = vmatmul.mubr.bf16.gmra.mxu0 %v2096
      %v2529 = vpop.f32.mrf.mxu0
      %v2530 = vadd.f32 %v2369, %v2529
      %v2531 = vpop.f32.mrf.mxu0
      %v2532 = vpop.f32.mrf.mxu0
      %v2533 = vadd.f32 %v2372, %v2532
      %v2534 = vpop.f32.mrf.mxu0
      %2535 = vmatprep.mubr.bf16.mxu0 0
      %2536 = vmatmul.mubr.bf16.gmra.mxu0 %v2099
      %v2537 = vpop.f32.mrf.mxu0
      %v2538 = vadd.f32 %v2377, %v2537
      %v2539 = vpop.f32.mrf.mxu0
      %v2540 = vpop.f32.mrf.mxu0
      %v2541 = vadd.f32 %v2380, %v2540
      %v2542 = vpop.f32.mrf.mxu0
      %2543 = vmatprep.mubr.bf16.mxu0 0
      %2544 = vmatmul.mubr.bf16.gmra.mxu0 %v2102
      %v2545 = vpop.f32.mrf.mxu0
      %v2546 = vadd.f32 %v2385, %v2545
      %v2547 = vpop.f32.mrf.mxu0
      %v2548 = vpop.f32.mrf.mxu0
      %v2549 = vadd.f32 %v2388, %v2548
      %v2550 = vpop.f32.mrf.mxu0
      %2551 = vmatprep.mubr.bf16.mxu0 0
      %2552 = vmatmul.mubr.bf16.gmra.mxu0 %v2105
      %v2553 = vpop.f32.mrf.mxu0
      %v2554 = vadd.f32 %v2393, %v2553
      %v2555 = vpop.f32.mrf.mxu0
      %v2556 = vpop.f32.mrf.mxu0
      %v2557 = vadd.f32 %v2396, %v2556
      %v2558 = vpop.f32.mrf.mxu0
      %2559 = vmatprep.mubr.bf16.mxu0 0
      %2560 = vmatmul.mubr.bf16.gmra.mxu0 %v2108
      %v2561 = vpop.f32.mrf.mxu0
      %v2562 = vadd.f32 %v2401, %v2561
      %v2563 = vpop.f32.mrf.mxu0
      %v2564 = vpop.f32.mrf.mxu0
      %v2565 = vadd.f32 %v2404, %v2564
      %v2566 = vpop.f32.mrf.mxu0
      %2567 = vmatprep.mubr.bf16.mxu0 0
      %2568 = vmatmul.mubr.bf16.gmra.mxu0 %v2111
      %v2569 = vpop.f32.mrf.mxu0
      %v2570 = vadd.f32 %v2409, %v2569
      %v2571 = vpop.f32.mrf.mxu0
      %v2572 = vpop.f32.mrf.mxu0
      %v2573 = vadd.f32 %v2412, %v2572
      %v2574 = vpop.f32.mrf.mxu0
      %2575 = vmatprep.mubr.bf16.mxu0 0
      %2576 = vmatmul.mubr.bf16.gmra.mxu0 %v2114
      %v2577 = vpop.f32.mrf.mxu0
      %v2578 = vadd.f32 %v2417, %v2577
      %v2579 = vpop.f32.mrf.mxu0
      %v2580 = vpop.f32.mrf.mxu0
      %v2581 = vadd.f32 %v2420, %v2580
      %v2582 = vpop.f32.mrf.mxu0
      %2583 = vmatprep.mubr.bf16.mxu0 0
      %2584 = vmatmul.mubr.bf16.gmra.mxu0 %v2117
      %v2585 = vpop.f32.mrf.mxu0
      %v2586 = vadd.f32 %v2425, %v2585
      %v2587 = vpop.f32.mrf.mxu0
      %v2588 = vpop.f32.mrf.mxu0
      %v2589 = vadd.f32 %v2428, %v2588
      %v2590 = vpop.f32.mrf.mxu0
      %2591 = vmatprep.mubr.bf16.mxu0 0
      %2592 = vmatmul.mubr.bf16.gmra.mxu0 %v2120
      %v2593 = vpop.f32.mrf.mxu0
      %v2594 = vadd.f32 %v2433, %v2593
      %v2595 = vpop.f32.mrf.mxu0
      %v2596 = vpop.f32.mrf.mxu0
      %v2597 = vadd.f32 %v2436, %v2596
      %v2598 = vpop.f32.mrf.mxu0
      %2599 = vmatprep.mubr.bf16.mxu0 0
      %2600 = vmatmul.mubr.bf16.gmra.mxu0 %v2123
      %v2601 = vpop.f32.mrf.mxu0
      %v2602 = vadd.f32 %v2441, %v2601
      %v2603 = vpop.f32.mrf.mxu0
      %v2604 = vpop.f32.mrf.mxu0
      %v2605 = vadd.f32 %v2444, %v2604
      %v2606 = vpop.f32.mrf.mxu0
      %2607 = vdwg.mxu0
      %vm2608 = vcmp.gt.f32.partialorder %v2482, 0.0
      %vm2609 = vcmp.gt.f32.partialorder %v2485, 0.0
      %vm2610 = vcmp.gt.f32.partialorder %v2490, 0.0
      %vm2611 = vcmp.gt.f32.partialorder %v2493, 0.0
      %vm2612 = vcmp.gt.f32.partialorder %v2498, 0.0
      %vm2613 = vcmp.gt.f32.partialorder %v2501, 0.0
      %vm2614 = vcmp.gt.f32.partialorder %v2506, 0.0
      %vm2615 = vcmp.gt.f32.partialorder %v2509, 0.0
      %vm2616 = vcmp.gt.f32.partialorder %v2514, 0.0
      %vm2617 = vcmp.gt.f32.partialorder %v2517, 0.0
      %vm2618 = vcmp.gt.f32.partialorder %v2522, 0.0
      %vm2619 = vcmp.gt.f32.partialorder %v2525, 0.0
      %vm2620 = vcmp.gt.f32.partialorder %v2530, 0.0
      %vm2621 = vcmp.gt.f32.partialorder %v2533, 0.0
      %vm2622 = vcmp.gt.f32.partialorder %v2538, 0.0
      %vm2623 = vcmp.gt.f32.partialorder %v2541, 0.0
      %vm2624 = vcmp.gt.f32.partialorder %v2546, 0.0
      %vm2625 = vcmp.gt.f32.partialorder %v2549, 0.0
      %vm2626 = vcmp.gt.f32.partialorder %v2554, 0.0
      %vm2627 = vcmp.gt.f32.partialorder %v2557, 0.0
      %vm2628 = vcmp.gt.f32.partialorder %v2562, 0.0
      %vm2629 = vcmp.gt.f32.partialorder %v2565, 0.0
      %vm2630 = vcmp.gt.f32.partialorder %v2570, 0.0
      %vm2631 = vcmp.gt.f32.partialorder %v2573, 0.0
      %vm2632 = vcmp.gt.f32.partialorder %v2578, 0.0
      %vm2633 = vcmp.gt.f32.partialorder %v2581, 0.0
      %vm2634 = vcmp.gt.f32.partialorder %v2586, 0.0
      %vm2635 = vcmp.gt.f32.partialorder %v2589, 0.0
      %vm2636 = vcmp.gt.f32.partialorder %v2594, 0.0
      %vm2637 = vcmp.gt.f32.partialorder %v2597, 0.0
      %vm2638 = vcmp.gt.f32.partialorder %v2602, 0.0
      %vm2639 = vcmp.gt.f32.partialorder %v2605, 0.0
      %v2640 = vmin.f32 %v2482, 0.0
      %v2641 = vmin.f32 %v2485, 0.0
      %v2642 = vmin.f32 %v2490, 0.0
      %v2643 = vmin.f32 %v2493, 0.0
      %v2644 = vmin.f32 %v2498, 0.0
      %v2645 = vmin.f32 %v2501, 0.0
      %v2646 = vmin.f32 %v2506, 0.0
      %v2647 = vmin.f32 %v2509, 0.0
      %v2648 = vmin.f32 %v2514, 0.0
      %v2649 = vmin.f32 %v2517, 0.0
      %v2650 = vmin.f32 %v2522, 0.0
      %v2651 = vmin.f32 %v2525, 0.0
      %v2652 = vmin.f32 %v2530, 0.0
      %v2653 = vmin.f32 %v2533, 0.0
      %v2654 = vmin.f32 %v2538, 0.0
      %v2655 = vmin.f32 %v2541, 0.0
      %v2656 = vmin.f32 %v2546, 0.0
      %v2657 = vmin.f32 %v2549, 0.0
      %v2658 = vmin.f32 %v2554, 0.0
      %v2659 = vmin.f32 %v2557, 0.0
      %v2660 = vmin.f32 %v2562, 0.0
      %v2661 = vmin.f32 %v2565, 0.0
      %v2662 = vmin.f32 %v2570, 0.0
      %v2663 = vmin.f32 %v2573, 0.0
      %v2664 = vmin.f32 %v2578, 0.0
      %v2665 = vmin.f32 %v2581, 0.0
      %v2666 = vmin.f32 %v2586, 0.0
      %v2667 = vmin.f32 %v2589, 0.0
      %v2668 = vmin.f32 %v2594, 0.0
      %v2669 = vmin.f32 %v2597, 0.0
      %v2670 = vmin.f32 %v2602, 0.0
      %v2671 = vmin.f32 %v2605, 0.0
      %v2672 = vmul.f32 %v2640, 1.442695
      %v2673 = vpow.pop %v2672
      %v2674 = vmul.f32 %v2641, 1.442695
      %v2675 = vpow.pop %v2674
      %v2676 = vmul.f32 %v2642, 1.442695
      %v2677 = vpow.pop %v2676
      %v2678 = vmul.f32 %v2643, 1.442695
      %v2679 = vpow.pop %v2678
      %v2680 = vmul.f32 %v2644, 1.442695
      %v2681 = vpow.pop %v2680
      %v2682 = vmul.f32 %v2645, 1.442695
      %v2683 = vpow.pop %v2682
      %v2684 = vmul.f32 %v2646, 1.442695
      %v2685 = vpow.pop %v2684
      %v2686 = vmul.f32 %v2647, 1.442695
      %v2687 = vpow.pop %v2686
      %v2688 = vmul.f32 %v2648, 1.442695
      %v2689 = vpow.pop %v2688
      %v2690 = vmul.f32 %v2649, 1.442695
      %v2691 = vpow.pop %v2690
      %v2692 = vmul.f32 %v2650, 1.442695
      %v2693 = vpow.pop %v2692
      %v2694 = vmul.f32 %v2651, 1.442695
      %v2695 = vpow.pop %v2694
      %v2696 = vmul.f32 %v2652, 1.442695
      %v2697 = vpow.pop %v2696
      %v2698 = vmul.f32 %v2653, 1.442695
      %v2699 = vpow.pop %v2698
      %v2700 = vmul.f32 %v2654, 1.442695
      %v2701 = vpow.pop %v2700
      %v2702 = vmul.f32 %v2655, 1.442695
      %v2703 = vpow.pop %v2702
      %v2704 = vmul.f32 %v2656, 1.442695
      %v2705 = vpow.pop %v2704
      %v2706 = vmul.f32 %v2657, 1.442695
      %v2707 = vpow.pop %v2706
      %v2708 = vmul.f32 %v2658, 1.442695
      %v2709 = vpow.pop %v2708
      %v2710 = vmul.f32 %v2659, 1.442695
      %v2711 = vpow.pop %v2710
      %v2712 = vmul.f32 %v2660, 1.442695
      %v2713 = vpow.pop %v2712
      %v2714 = vmul.f32 %v2661, 1.442695
      %v2715 = vpow.pop %v2714
      %v2716 = vmul.f32 %v2662, 1.442695
      %v2717 = vpow.pop %v2716
      %v2718 = vmul.f32 %v2663, 1.442695
      %v2719 = vpow.pop %v2718
      %v2720 = vmul.f32 %v2664, 1.442695
      %v2721 = vpow.pop %v2720
      %v2722 = vmul.f32 %v2665, 1.442695
      %v2723 = vpow.pop %v2722
      %v2724 = vmul.f32 %v2666, 1.442695
      %v2725 = vpow.pop %v2724
      %v2726 = vmul.f32 %v2667, 1.442695
      %v2727 = vpow.pop %v2726
      %v2728 = vmul.f32 %v2668, 1.442695
      %v2729 = vpow.pop %v2728
      %v2730 = vmul.f32 %v2669, 1.442695
      %v2731 = vpow.pop %v2730
      %v2732 = vmul.f32 %v2670, 1.442695
      %v2733 = vpow.pop %v2732
      %v2734 = vmul.f32 %v2671, 1.442695
      %v2735 = vpow.pop %v2734
      %v2736 = vsub.f32 %v2673, 1.0
      %v2737 = vsub.f32 %v2675, 1.0
      %v2738 = vsub.f32 %v2677, 1.0
      %v2739 = vsub.f32 %v2679, 1.0
      %v2740 = vsub.f32 %v2681, 1.0
      %v2741 = vsub.f32 %v2683, 1.0
      %v2742 = vsub.f32 %v2685, 1.0
      %v2743 = vsub.f32 %v2687, 1.0
      %v2744 = vsub.f32 %v2689, 1.0
      %v2745 = vsub.f32 %v2691, 1.0
      %v2746 = vsub.f32 %v2693, 1.0
      %v2747 = vsub.f32 %v2695, 1.0
      %v2748 = vsub.f32 %v2697, 1.0
      %v2749 = vsub.f32 %v2699, 1.0
      %v2750 = vsub.f32 %v2701, 1.0
      %v2751 = vsub.f32 %v2703, 1.0
      %v2752 = vsub.f32 %v2705, 1.0
      %v2753 = vsub.f32 %v2707, 1.0
      %v2754 = vsub.f32 %v2709, 1.0
      %v2755 = vsub.f32 %v2711, 1.0
      %v2756 = vsub.f32 %v2713, 1.0
      %v2757 = vsub.f32 %v2715, 1.0
      %v2758 = vsub.f32 %v2717, 1.0
      %v2759 = vsub.f32 %v2719, 1.0
      %v2760 = vsub.f32 %v2721, 1.0
      %v2761 = vsub.f32 %v2723, 1.0
      %v2762 = vsub.f32 %v2725, 1.0
      %v2763 = vsub.f32 %v2727, 1.0
      %v2764 = vsub.f32 %v2729, 1.0
      %v2765 = vsub.f32 %v2731, 1.0
      %v2766 = vsub.f32 %v2733, 1.0
      %v2767 = vsub.f32 %v2735, 1.0
      %v2768 = vsel %vm2608, %v2482, %v2736
      %v2769 = vsel %vm2609, %v2485, %v2737
      %v2770 = vsel %vm2610, %v2490, %v2738
      %v2771 = vsel %vm2611, %v2493, %v2739
      %v2772 = vsel %vm2612, %v2498, %v2740
      %v2773 = vsel %vm2613, %v2501, %v2741
      %v2774 = vsel %vm2614, %v2506, %v2742
      %v2775 = vsel %vm2615, %v2509, %v2743
      %v2776 = vsel %vm2616, %v2514, %v2744
      %v2777 = vsel %vm2617, %v2517, %v2745
      %v2778 = vsel %vm2618, %v2522, %v2746
      %v2779 = vsel %vm2619, %v2525, %v2747
      %v2780 = vsel %vm2620, %v2530, %v2748
      %v2781 = vsel %vm2621, %v2533, %v2749
      %v2782 = vsel %vm2622, %v2538, %v2750
      %v2783 = vsel %vm2623, %v2541, %v2751
      %v2784 = vsel %vm2624, %v2546, %v2752
      %v2785 = vsel %vm2625, %v2549, %v2753
      %v2786 = vsel %vm2626, %v2554, %v2754
      %v2787 = vsel %vm2627, %v2557, %v2755
      %v2788 = vsel %vm2628, %v2562, %v2756
      %v2789 = vsel %vm2629, %v2565, %v2757
      %v2790 = vsel %vm2630, %v2570, %v2758
      %v2791 = vsel %vm2631, %v2573, %v2759
      %v2792 = vsel %vm2632, %v2578, %v2760
      %v2793 = vsel %vm2633, %v2581, %v2761
      %v2794 = vsel %vm2634, %v2586, %v2762
      %v2795 = vsel %vm2635, %v2589, %v2763
      %v2796 = vsel %vm2636, %v2594, %v2764
      %v2797 = vsel %vm2637, %v2597, %v2765
      %v2798 = vsel %vm2638, %v2602, %v2766
      %v2799 = vsel %vm2639, %v2605, %v2767
      %v2800 = vmax.f32 %v2768, %v2776
      %v2801 = vmax.f32 %v2769, %v2777
      %v2802 = vmax.f32 %v2770, %v2778
      %v2803 = vmax.f32 %v2771, %v2779
      %v2804 = vmax.f32 %v2772, %v2780
      %v2805 = vmax.f32 %v2773, %v2781
      %v2806 = vmax.f32 %v2774, %v2782
      %v2807 = vmax.f32 %v2775, %v2783
      %v2808 = vmax.f32 %v2784, %v2792
      %v2809 = vmax.f32 %v2785, %v2793
      %v2810 = vmax.f32 %v2786, %v2794
      %v2811 = vmax.f32 %v2787, %v2795
      %v2812 = vmax.f32 %v2788, %v2796
      %v2813 = vmax.f32 %v2789, %v2797
      %v2814 = vmax.f32 %v2790, %v2798
      %v2815 = vmax.f32 %v2791, %v2799
      %v2816 = vmax.f32 %v2800, %v2808
      %v2817 = vmax.f32 %v2801, %v2809
      %v2818 = vmax.f32 %v2802, %v2810
      %v2819 = vmax.f32 %v2803, %v2811
      %v2820 = vmax.f32 %v2804, %v2812
      %v2821 = vmax.f32 %v2805, %v2813
      %v2822 = vmax.f32 %v2806, %v2814
      %v2823 = vmax.f32 %v2807, %v2815
      %v2824 = vpack.c.bf16 %v2817, %v2816
      %v2825 = vpack.c.bf16 %v2819, %v2818
      %v2826 = vpack.c.bf16 %v2821, %v2820
      %v2827 = vpack.c.bf16 %v2823, %v2822
      %v2828 = vld [vmem:[%s6] sm:$0xff]
      %v2829 = vld [vmem:[%s6 + $0x8] sm:$0xff]
      %v2830 = vld [vmem:[%s6 + $0x10] sm:$0xff]
      %v2831 = vld [vmem:[%s6 + $0x18] sm:$0xff]
      %v2832 = vld [vmem:[%s6 + $0x20] sm:$0xff]
      %v2833 = vld [vmem:[%s6 + $0x28] sm:$0xff]
      %v2834 = vld [vmem:[%s6 + $0x30] sm:$0xff]
      %v2835 = vld [vmem:[%s6 + $0x38] sm:$0xff]
      %v2836 = vld [vmem:[%s6 + $0x40] sm:$0xff]
      %v2837 = vld [vmem:[%s6 + $0x48] sm:$0xff]
      %v2838 = vld [vmem:[%s6 + $0x50] sm:$0xff]
      %v2839 = vld [vmem:[%s6 + $0x58] sm:$0xff]
      %v2840 = vld [vmem:[%s6 + $0x60] sm:$0xff]
      %v2841 = vld [vmem:[%s6 + $0x68] sm:$0xff]
      %v2842 = vld [vmem:[%s6 + $0x70] sm:$0xff]
      %v2843 = vld [vmem:[%s6 + $0x78] sm:$0xff]
      %v2844 = vld [vmem:[%s7] sm:$0x3]
      %v2846 = vlaneseq
      %v2847 = vshrl.u32 %v2846, 7
      %v2848 = vsub.s32 0, %v2847
      %v2849 = vrot.slane %v2844, %v2848
      %v2850 = vlaneseq
      %v2851 = vshrl.u32 %v2850, 7
      %v2852 = vsub.s32 1, %v2851
      %v2853 = vrot.slane %v2844, %v2852
      %v2872 = vunpack.c.l.b16 %v2828
      %v2873 = vunpack.c.h.b16 %v2828
      %v2874 = vunpack.c.l.b16 %v2829
      %v2875 = vunpack.c.h.b16 %v2829
      %v2876 = vunpack.c.l.b16 %v2830
      %v2877 = vunpack.c.h.b16 %v2830
      %v2878 = vunpack.c.l.b16 %v2831
      %v2879 = vunpack.c.h.b16 %v2831
      %v2880 = vunpack.c.l.b16 %v2832
      %v2881 = vunpack.c.h.b16 %v2832
      %v2882 = vunpack.c.l.b16 %v2833
      %v2883 = vunpack.c.h.b16 %v2833
      %v2884 = vunpack.c.l.b16 %v2834
      %v2885 = vunpack.c.h.b16 %v2834
      %v2886 = vunpack.c.l.b16 %v2835
      %v2887 = vunpack.c.h.b16 %v2835
      %v2888 = vunpack.c.l.b16 %v2836
      %v2889 = vunpack.c.h.b16 %v2836
      %v2890 = vunpack.c.l.b16 %v2837
      %v2891 = vunpack.c.h.b16 %v2837
      %v2892 = vunpack.c.l.b16 %v2838
      %v2893 = vunpack.c.h.b16 %v2838
      %v2894 = vunpack.c.l.b16 %v2839
      %v2895 = vunpack.c.h.b16 %v2839
      %v2896 = vunpack.c.l.b16 %v2840
      %v2897 = vunpack.c.h.b16 %v2840
      %v2898 = vunpack.c.l.b16 %v2841
      %v2899 = vunpack.c.h.b16 %v2841
      %v2900 = vunpack.c.l.b16 %v2842
      %v2901 = vunpack.c.h.b16 %v2842
      %v2902 = vunpack.c.l.b16 %v2843
      %v2903 = vunpack.c.h.b16 %v2843
      %v2904 = vpack.c.b16 %v2874, %v2872
      %v2905 = vpack.c.b16 %v2875, %v2873
      %v2906 = vpack.c.b16 %v2878, %v2876
      %v2907 = vpack.c.b16 %v2879, %v2877
      %v2908 = vpack.c.b16 %v2882, %v2880
      %v2909 = vpack.c.b16 %v2883, %v2881
      %v2910 = vpack.c.b16 %v2886, %v2884
      %v2911 = vpack.c.b16 %v2887, %v2885
      %v2912 = vpack.c.b16 %v2890, %v2888
      %v2913 = vpack.c.b16 %v2891, %v2889
      %v2914 = vpack.c.b16 %v2894, %v2892
      %v2915 = vpack.c.b16 %v2895, %v2893
      %v2916 = vpack.c.b16 %v2898, %v2896
      %v2917 = vpack.c.b16 %v2899, %v2897
      %v2918 = vpack.c.b16 %v2902, %v2900
      %v2919 = vpack.c.b16 %v2903, %v2901
      %2936 = vmatprep.subr.bf16.mxu0 %v2919
      %2937 = vmatpush1.bf16.msra.mxu0 %v2918
      %2938 = vmatprep.subr.bf16.mxu0 %v2917
      %2939 = vmatpush1.bf16.msra.mxu0 %v2916
      %2940 = vmatprep.subr.bf16.mxu0 %v2915
      %2941 = vmatpush1.bf16.msra.mxu0 %v2914
      %2942 = vmatprep.subr.bf16.mxu0 %v2913
      %2943 = vmatpush1.bf16.msra.mxu0 %v2912
      %2944 = vmatprep.subr.bf16.mxu0 %v2911
      %2945 = vmatpush1.bf16.msra.mxu0 %v2910
      %2946 = vmatprep.subr.bf16.mxu0 %v2909
      %2947 = vmatpush1.bf16.msra.mxu0 %v2908
      %2948 = vmatprep.subr.bf16.mxu0 %v2907
      %2949 = vmatpush1.bf16.msra.mxu0 %v2906
      %2950 = vmatprep.subr.bf16.mxu0 %v2905
      %2951 = vmatpush1.bf16.msra.mxu0 %v2904
      %2952 = vmatprep.subr.bf16.mxu0 0
      %2953 = vmatpush2.bf16.msra.mxu0 0
      %2954 = vmatprep.subr.bf16.mxu0 0
      %2955 = vmatpush2.bf16.msra.mxu0 0
      %2956 = vmatprep.subr.bf16.mxu0 0
      %2957 = vmatpush2.bf16.msra.mxu0 0
      %2958 = vmatprep.subr.bf16.mxu0 0
      %2959 = vmatpush2.bf16.msra.mxu0 0
      %2960 = vmatprep.subr.bf16.mxu0 0
      %2961 = vmatpush2.bf16.msra.mxu0 0
      %2962 = vmatprep.subr.bf16.mxu0 0
      %2963 = vmatpush2.bf16.msra.mxu0 0
      %2964 = vmatprep.subr.bf16.mxu0 0
      %2965 = vmatpush2.bf16.msra.mxu0 0
      %2966 = vmatprep.subr.bf16.mxu0 0
      %2967 = vmatpush2.bf16.msra.mxu0 0
      %2968 = vmatprep.mubr.bf16.mxu0 0
      %2969 = vmatmul.mubr.bf16.gmra.mxu0 %v2824
      %v2970 = vpop.f32.mrf.mxu0
      %v2971 = vadd.f32 %v2849, %v2970
      %v2972 = vpop.f32.mrf.mxu0
      %v2973 = vadd.f32 %v2853, %v2972
      %v2974 = vpop.f32.mrf.mxu0
      %v2975 = vadd.f32 %v2849, %v2974
      %v2976 = vpop.f32.mrf.mxu0
      %v2977 = vadd.f32 %v2853, %v2976
      %2978 = vmatprep.mubr.bf16.mxu0 0
      %2979 = vmatmul.mubr.bf16.gmra.mxu0 %v2825
      %v2980 = vpop.f32.mrf.mxu0
      %v2981 = vadd.f32 %v2849, %v2980
      %v2982 = vpop.f32.mrf.mxu0
      %v2983 = vadd.f32 %v2853, %v2982
      %v2984 = vpop.f32.mrf.mxu0
      %v2985 = vadd.f32 %v2849, %v2984
      %v2986 = vpop.f32.mrf.mxu0
      %v2987 = vadd.f32 %v2853, %v2986
      %2988 = vmatprep.mubr.bf16.mxu0 0
      %2989 = vmatmul.mubr.bf16.gmra.mxu0 %v2826
      %v2990 = vpop.f32.mrf.mxu0
      %v2991 = vadd.f32 %v2849, %v2990
      %v2992 = vpop.f32.mrf.mxu0
      %v2993 = vadd.f32 %v2853, %v2992
      %v2994 = vpop.f32.mrf.mxu0
      %v2995 = vadd.f32 %v2849, %v2994
      %v2996 = vpop.f32.mrf.mxu0
      %v2997 = vadd.f32 %v2853, %v2996
      %2998 = vmatprep.mubr.bf16.mxu0 0
      %2999 = vmatmul.mubr.bf16.gmra.mxu0 %v2827
      %v3000 = vpop.f32.mrf.mxu0
      %v3001 = vadd.f32 %v2849, %v3000
      %v3002 = vpop.f32.mrf.mxu0
      %v3003 = vadd.f32 %v2853, %v3002
      %v3004 = vpop.f32.mrf.mxu0
      %v3005 = vadd.f32 %v2849, %v3004
      %v3006 = vpop.f32.mrf.mxu0
      %v3007 = vadd.f32 %v2853, %v3006
      %3008 = vdwg.mxu0
      %vm3009 = vcmp.gt.f32.partialorder %v2971, 0.0
      %vm3010 = vcmp.gt.f32.partialorder %v2973, 0.0
      %vm3011 = vcmp.gt.f32.partialorder %v2975, 0.0
      %vm3012 = vcmp.gt.f32.partialorder %v2977, 0.0
      %vm3013 = vcmp.gt.f32.partialorder %v2981, 0.0
      %vm3014 = vcmp.gt.f32.partialorder %v2983, 0.0
      %vm3015 = vcmp.gt.f32.partialorder %v2985, 0.0
      %vm3016 = vcmp.gt.f32.partialorder %v2987, 0.0
      %vm3017 = vcmp.gt.f32.partialorder %v2991, 0.0
      %vm3018 = vcmp.gt.f32.partialorder %v2993, 0.0
      %vm3019 = vcmp.gt.f32.partialorder %v2995, 0.0
      %vm3020 = vcmp.gt.f32.partialorder %v2997, 0.0
      %vm3021 = vcmp.gt.f32.partialorder %v3001, 0.0
      %vm3022 = vcmp.gt.f32.partialorder %v3003, 0.0
      %vm3023 = vcmp.gt.f32.partialorder %v3005, 0.0
      %vm3024 = vcmp.gt.f32.partialorder %v3007, 0.0
      %v3025 = vmin.f32 %v2971, 0.0
      %v3026 = vmin.f32 %v2973, 0.0
      %v3027 = vmin.f32 %v2975, 0.0
      %v3028 = vmin.f32 %v2977, 0.0
      %v3029 = vmin.f32 %v2981, 0.0
      %v3030 = vmin.f32 %v2983, 0.0
      %v3031 = vmin.f32 %v2985, 0.0
      %v3032 = vmin.f32 %v2987, 0.0
      %v3033 = vmin.f32 %v2991, 0.0
      %v3034 = vmin.f32 %v2993, 0.0
      %v3035 = vmin.f32 %v2995, 0.0
      %v3036 = vmin.f32 %v2997, 0.0
      %v3037 = vmin.f32 %v3001, 0.0
      %v3038 = vmin.f32 %v3003, 0.0
      %v3039 = vmin.f32 %v3005, 0.0
      %v3040 = vmin.f32 %v3007, 0.0
      %v3041 = vmul.f32 %v3025, 1.442695
      %v3042 = vpow.pop %v3041
      %v3043 = vmul.f32 %v3026, 1.442695
      %v3044 = vpow.pop %v3043
      %v3045 = vmul.f32 %v3027, 1.442695
      %v3046 = vpow.pop %v3045
      %v3047 = vmul.f32 %v3028, 1.442695
      %v3048 = vpow.pop %v3047
      %v3049 = vmul.f32 %v3029, 1.442695
      %v3050 = vpow.pop %v3049
      %v3051 = vmul.f32 %v3030, 1.442695
      %v3052 = vpow.pop %v3051
      %v3053 = vmul.f32 %v3031, 1.442695
      %v3054 = vpow.pop %v3053
      %v3055 = vmul.f32 %v3032, 1.442695
      %v3056 = vpow.pop %v3055
      %v3057 = vmul.f32 %v3033, 1.442695
      %v3058 = vpow.pop %v3057
      %v3059 = vmul.f32 %v3034, 1.442695
      %v3060 = vpow.pop %v3059
      %v3061 = vmul.f32 %v3035, 1.442695
      %v3062 = vpow.pop %v3061
      %v3063 = vmul.f32 %v3036, 1.442695
      %v3064 = vpow.pop %v3063
      %v3065 = vmul.f32 %v3037, 1.442695
      %v3066 = vpow.pop %v3065
      %v3067 = vmul.f32 %v3038, 1.442695
      %v3068 = vpow.pop %v3067
      %v3069 = vmul.f32 %v3039, 1.442695
      %v3070 = vpow.pop %v3069
      %v3071 = vmul.f32 %v3040, 1.442695
      %v3072 = vpow.pop %v3071
      %v3073 = vsub.f32 %v3042, 1.0
      %v3074 = vsub.f32 %v3044, 1.0
      %v3075 = vsub.f32 %v3046, 1.0
      %v3076 = vsub.f32 %v3048, 1.0
      %v3077 = vsub.f32 %v3050, 1.0
      %v3078 = vsub.f32 %v3052, 1.0
      %v3079 = vsub.f32 %v3054, 1.0
      %v3080 = vsub.f32 %v3056, 1.0
      %v3081 = vsub.f32 %v3058, 1.0
      %v3082 = vsub.f32 %v3060, 1.0
      %v3083 = vsub.f32 %v3062, 1.0
      %v3084 = vsub.f32 %v3064, 1.0
      %v3085 = vsub.f32 %v3066, 1.0
      %v3086 = vsub.f32 %v3068, 1.0
      %v3087 = vsub.f32 %v3070, 1.0
      %v3088 = vsub.f32 %v3072, 1.0
      %v3089 = vsel %vm3009, %v2971, %v3073
      %v3090 = vsel %vm3010, %v2973, %v3074
      %v3091 = vsel %vm3011, %v2975, %v3075
      %v3092 = vsel %vm3012, %v2977, %v3076
      %v3093 = vsel %vm3013, %v2981, %v3077
      %v3094 = vsel %vm3014, %v2983, %v3078
      %v3095 = vsel %vm3015, %v2985, %v3079
      %v3096 = vsel %vm3016, %v2987, %v3080
      %v3097 = vsel %vm3017, %v2991, %v3081
      %v3098 = vsel %vm3018, %v2993, %v3082
      %v3099 = vsel %vm3019, %v2995, %v3083
      %v3100 = vsel %vm3020, %v2997, %v3084
      %v3101 = vsel %vm3021, %v3001, %v3085
      %v3102 = vsel %vm3022, %v3003, %v3086
      %v3103 = vsel %vm3023, %v3005, %v3087
      %v3104 = vsel %vm3024, %v3007, %v3088
      %3105 = vst.msk [vmem:[#allocation3] sm:$0xff] %vm942, 0.0
      %3106 = vst.msk [vmem:[#allocation3 + $0x8] sm:$0x3] %vm944, 0.0
      %s3107 = scalar_lea.vmem [#allocation3], 144
      %3108 = vst.msk [vmem:[%s3107] sm:$0xff] %vm942, 0.0
      %3109 = vst.msk [vmem:[%s3107 + $0x8] sm:$0x3] %vm944, 0.0
      %3110 = vst.msk [vmem:[#allocation3] sm:$0x1] %vm949, 0.0
      %3111 = vst.msk [vmem:[#allocation3 + $0x10] sm:$0x1] %vm949, 0.0
      %3112 = vst.msk [vmem:[#allocation3 + $0x20] sm:$0x1] %vm949, 0.0
      %3113 = vst.msk [vmem:[#allocation3 + $0x30] sm:$0x1] %vm949, 0.0
      %3114 = vst.msk [vmem:[#allocation3 + $0x40] sm:$0x1] %vm949, 0.0
      %3115 = vst.msk [vmem:[#allocation3 + $0x50] sm:$0x1] %vm949, 0.0
      %3116 = vst.msk [vmem:[#allocation3 + $0x60] sm:$0x1] %vm949, 0.0
      %3117 = vst.msk [vmem:[#allocation3 + $0x70] sm:$0x1] %vm949, 0.0
      %3118 = vst.msk [vmem:[#allocation3 + $0x80] sm:$0x1] %vm949, 0.0
      %3119 = vst.msk [vmem:[#allocation3 + $0x90] sm:$0x1] %vm949, 0.0
      %3120 = vst.msk [vmem:[#allocation3 + $0x9] sm:$0x1] %vm949, 0.0
      %3121 = vst.msk [vmem:[#allocation3 + $0x19] sm:$0x1] %vm949, 0.0
      %3122 = vst.msk [vmem:[#allocation3 + $0x29] sm:$0x1] %vm949, 0.0
      %3123 = vst.msk [vmem:[#allocation3 + $0x39] sm:$0x1] %vm949, 0.0
      %3124 = vst.msk [vmem:[#allocation3 + $0x49] sm:$0x1] %vm949, 0.0
      %3125 = vst.msk [vmem:[#allocation3 + $0x59] sm:$0x1] %vm949, 0.0
      %3126 = vst.msk [vmem:[#allocation3 + $0x69] sm:$0x1] %vm949, 0.0
      %3127 = vst.msk [vmem:[#allocation3 + $0x79] sm:$0x1] %vm949, 0.0
      %3128 = vst.msk [vmem:[#allocation3 + $0x89] sm:$0x1] %vm949, 0.0
      %3129 = vst.msk [vmem:[#allocation3 + $0x99] sm:$0x1] %vm949, 0.0
      %s3130 = scalar_lea.vmem [#allocation3], 160
      %3131 = vst.msk [vmem:[%s3130] sm:$0xff] %vm942, 0.0
      %3132 = vst.msk [vmem:[%s3130 + $0x8] sm:$0x3] %vm944, 0.0
      %s3133 = scalar_lea.vmem [#allocation3], 304
      %3134 = vst.msk [vmem:[%s3133] sm:$0xff] %vm942, 0.0
      %3135 = vst.msk [vmem:[%s3133 + $0x8] sm:$0x3] %vm944, 0.0
      %3136 = vst.msk [vmem:[%s3130] sm:$0x1] %vm949, 0.0
      %3137 = vst.msk [vmem:[%s3130 + $0x10] sm:$0x1] %vm949, 0.0
      %3138 = vst.msk [vmem:[%s3130 + $0x20] sm:$0x1] %vm949, 0.0
      %3139 = vst.msk [vmem:[%s3130 + $0x30] sm:$0x1] %vm949, 0.0
      %3140 = vst.msk [vmem:[%s3130 + $0x40] sm:$0x1] %vm949, 0.0
      %3141 = vst.msk [vmem:[%s3130 + $0x50] sm:$0x1] %vm949, 0.0
      %3142 = vst.msk [vmem:[%s3130 + $0x60] sm:$0x1] %vm949, 0.0
      %3143 = vst.msk [vmem:[%s3130 + $0x70] sm:$0x1] %vm949, 0.0
      %3144 = vst.msk [vmem:[%s3130 + $0x80] sm:$0x1] %vm949, 0.0
      %3145 = vst.msk [vmem:[%s3130 + $0x90] sm:$0x1] %vm949, 0.0
      %3146 = vst.msk [vmem:[%s3130 + $0x9] sm:$0x1] %vm949, 0.0
      %3147 = vst.msk [vmem:[%s3130 + $0x19] sm:$0x1] %vm949, 0.0
      %3148 = vst.msk [vmem:[%s3130 + $0x29] sm:$0x1] %vm949, 0.0
      %3149 = vst.msk [vmem:[%s3130 + $0x39] sm:$0x1] %vm949, 0.0
      %3150 = vst.msk [vmem:[%s3130 + $0x49] sm:$0x1] %vm949, 0.0
      %3151 = vst.msk [vmem:[%s3130 + $0x59] sm:$0x1] %vm949, 0.0
      %3152 = vst.msk [vmem:[%s3130 + $0x69] sm:$0x1] %vm949, 0.0
      %3153 = vst.msk [vmem:[%s3130 + $0x79] sm:$0x1] %vm949, 0.0
      %3154 = vst.msk [vmem:[%s3130 + $0x89] sm:$0x1] %vm949, 0.0
      %3155 = vst.msk [vmem:[%s3130 + $0x99] sm:$0x1] %vm949, 0.0
      %s3156 = scalar_lea.vmem [#allocation3], 320
      %3157 = vst.msk [vmem:[%s3156] sm:$0xff] %vm942, 0.0
      %3158 = vst.msk [vmem:[%s3156 + $0x8] sm:$0x3] %vm944, 0.0
      %s3159 = scalar_lea.vmem [#allocation3], 464
      %3160 = vst.msk [vmem:[%s3159] sm:$0xff] %vm942, 0.0
      %3161 = vst.msk [vmem:[%s3159 + $0x8] sm:$0x3] %vm944, 0.0
      %3162 = vst.msk [vmem:[%s3156] sm:$0x1] %vm949, 0.0
      %3163 = vst.msk [vmem:[%s3156 + $0x10] sm:$0x1] %vm949, 0.0
      %3164 = vst.msk [vmem:[%s3156 + $0x20] sm:$0x1] %vm949, 0.0
      %3165 = vst.msk [vmem:[%s3156 + $0x30] sm:$0x1] %vm949, 0.0
      %3166 = vst.msk [vmem:[%s3156 + $0x40] sm:$0x1] %vm949, 0.0
      %3167 = vst.msk [vmem:[%s3156 + $0x50] sm:$0x1] %vm949, 0.0
      %3168 = vst.msk [vmem:[%s3156 + $0x60] sm:$0x1] %vm949, 0.0
      %3169 = vst.msk [vmem:[%s3156 + $0x70] sm:$0x1] %vm949, 0.0
      %3170 = vst.msk [vmem:[%s3156 + $0x80] sm:$0x1] %vm949, 0.0
      %3171 = vst.msk [vmem:[%s3156 + $0x90] sm:$0x1] %vm949, 0.0
      %3172 = vst.msk [vmem:[%s3156 + $0x9] sm:$0x1] %vm949, 0.0
      %3173 = vst.msk [vmem:[%s3156 + $0x19] sm:$0x1] %vm949, 0.0
      %3174 = vst.msk [vmem:[%s3156 + $0x29] sm:$0x1] %vm949, 0.0
      %3175 = vst.msk [vmem:[%s3156 + $0x39] sm:$0x1] %vm949, 0.0
      %3176 = vst.msk [vmem:[%s3156 + $0x49] sm:$0x1] %vm949, 0.0
      %3177 = vst.msk [vmem:[%s3156 + $0x59] sm:$0x1] %vm949, 0.0
      %3178 = vst.msk [vmem:[%s3156 + $0x69] sm:$0x1] %vm949, 0.0
      %3179 = vst.msk [vmem:[%s3156 + $0x79] sm:$0x1] %vm949, 0.0
      %3180 = vst.msk [vmem:[%s3156 + $0x89] sm:$0x1] %vm949, 0.0
      %3181 = vst.msk [vmem:[%s3156 + $0x99] sm:$0x1] %vm949, 0.0
      %s3182 = scalar_lea.vmem [#allocation3], 480
      %3183 = vst.msk [vmem:[%s3182] sm:$0xff] %vm942, 0.0
      %3184 = vst.msk [vmem:[%s3182 + $0x8] sm:$0x3] %vm944, 0.0
      %s3185 = scalar_lea.vmem [#allocation3], 624
      %3186 = vst.msk [vmem:[%s3185] sm:$0xff] %vm942, 0.0
      %3187 = vst.msk [vmem:[%s3185 + $0x8] sm:$0x3] %vm944, 0.0
      %3188 = vst.msk [vmem:[%s3182] sm:$0x1] %vm949, 0.0
      %3189 = vst.msk [vmem:[%s3182 + $0x10] sm:$0x1] %vm949, 0.0
      %3190 = vst.msk [vmem:[%s3182 + $0x20] sm:$0x1] %vm949, 0.0
      %3191 = vst.msk [vmem:[%s3182 + $0x30] sm:$0x1] %vm949, 0.0
      %3192 = vst.msk [vmem:[%s3182 + $0x40] sm:$0x1] %vm949, 0.0
      %3193 = vst.msk [vmem:[%s3182 + $0x50] sm:$0x1] %vm949, 0.0
      %3194 = vst.msk [vmem:[%s3182 + $0x60] sm:$0x1] %vm949, 0.0
      %3195 = vst.msk [vmem:[%s3182 + $0x70] sm:$0x1] %vm949, 0.0
      %3196 = vst.msk [vmem:[%s3182 + $0x80] sm:$0x1] %vm949, 0.0
      %3197 = vst.msk [vmem:[%s3182 + $0x90] sm:$0x1] %vm949, 0.0
      %3198 = vst.msk [vmem:[%s3182 + $0x9] sm:$0x1] %vm949, 0.0
      %3199 = vst.msk [vmem:[%s3182 + $0x19] sm:$0x1] %vm949, 0.0
      %3200 = vst.msk [vmem:[%s3182 + $0x29] sm:$0x1] %vm949, 0.0
      %3201 = vst.msk [vmem:[%s3182 + $0x39] sm:$0x1] %vm949, 0.0
      %3202 = vst.msk [vmem:[%s3182 + $0x49] sm:$0x1] %vm949, 0.0
      %3203 = vst.msk [vmem:[%s3182 + $0x59] sm:$0x1] %vm949, 0.0
      %3204 = vst.msk [vmem:[%s3182 + $0x69] sm:$0x1] %vm949, 0.0
      %3205 = vst.msk [vmem:[%s3182 + $0x79] sm:$0x1] %vm949, 0.0
      %3206 = vst.msk [vmem:[%s3182 + $0x89] sm:$0x1] %vm949, 0.0
      %3207 = vst.msk [vmem:[%s3182 + $0x99] sm:$0x1] %vm949, 0.0
      %s3208 = scalar_lea.vmem [#allocation3], 16
      %3209 = vst.msk [vmem:[%s3208 + $0x1] sm:$0xff] %vm942, %v3089
      %3210 = vst.msk [vmem:[%s3208 + $0x11] sm:$0xff] %vm942, %v3091
      %3211 = vst.msk [vmem:[%s3208 + $0x21] sm:$0xff] %vm942, %v3093
      %3212 = vst.msk [vmem:[%s3208 + $0x31] sm:$0xff] %vm942, %v3095
      %3213 = vst.msk [vmem:[%s3208 + $0x41] sm:$0xff] %vm942, %v3097
      %3214 = vst.msk [vmem:[%s3208 + $0x51] sm:$0xff] %vm942, %v3099
      %3215 = vst.msk [vmem:[%s3208 + $0x61] sm:$0xff] %vm942, %v3101
      %3216 = vst.msk [vmem:[%s3208 + $0x71] sm:$0xff] %vm942, %v3103
      %3225 = vrot.lane.b32.xlu0 %v3089, 64
      %v3226 = vpop.permute.xlu0 %3225
      %3227 = vrot.lane.b32.xlu0 %v3091, 64
      %v3228 = vpop.permute.xlu0 %3227
      %3229 = vrot.lane.b32.xlu0 %v3093, 64
      %v3230 = vpop.permute.xlu0 %3229
      %3231 = vrot.lane.b32.xlu0 %v3095, 64
      %v3232 = vpop.permute.xlu0 %3231
      %3233 = vrot.lane.b32.xlu0 %v3097, 64
      %v3234 = vpop.permute.xlu0 %3233
      %3235 = vrot.lane.b32.xlu0 %v3099, 64
      %v3236 = vpop.permute.xlu0 %3235
      %3237 = vrot.lane.b32.xlu0 %v3101, 64
      %v3238 = vpop.permute.xlu0 %3237
      %3239 = vrot.lane.b32.xlu0 %v3103, 64
      %v3240 = vpop.permute.xlu0 %3239
      %s3249 = scalar_lea.vmem [#allocation3], 176
      %3250 = vst.msk [vmem:[%s3249 + $0x1] sm:$0xff] %vm942, %v3226
      %3251 = vst.msk [vmem:[%s3249 + $0x11] sm:$0xff] %vm942, %v3228
      %3252 = vst.msk [vmem:[%s3249 + $0x21] sm:$0xff] %vm942, %v3230
      %3253 = vst.msk [vmem:[%s3249 + $0x31] sm:$0xff] %vm942, %v3232
      %3254 = vst.msk [vmem:[%s3249 + $0x41] sm:$0xff] %vm942, %v3234
      %3255 = vst.msk [vmem:[%s3249 + $0x51] sm:$0xff] %vm942, %v3236
      %3256 = vst.msk [vmem:[%s3249 + $0x61] sm:$0xff] %vm942, %v3238
      %3257 = vst.msk [vmem:[%s3249 + $0x71] sm:$0xff] %vm942, %v3240
      %s3258 = scalar_lea.vmem [#allocation3], 336
      %3259 = vst.msk [vmem:[%s3258 + $0x1] sm:$0xff] %vm942, %v3090
      %3260 = vst.msk [vmem:[%s3258 + $0x11] sm:$0xff] %vm942, %v3092
      %3261 = vst.msk [vmem:[%s3258 + $0x21] sm:$0xff] %vm942, %v3094
      %3262 = vst.msk [vmem:[%s3258 + $0x31] sm:$0xff] %vm942, %v3096
      %3263 = vst.msk [vmem:[%s3258 + $0x41] sm:$0xff] %vm942, %v3098
      %3264 = vst.msk [vmem:[%s3258 + $0x51] sm:$0xff] %vm942, %v3100
      %3265 = vst.msk [vmem:[%s3258 + $0x61] sm:$0xff] %vm942, %v3102
      %3266 = vst.msk [vmem:[%s3258 + $0x71] sm:$0xff] %vm942, %v3104
      %3275 = vrot.lane.b32.xlu0 %v3090, 64
      %v3276 = vpop.permute.xlu0 %3275
      %3277 = vrot.lane.b32.xlu0 %v3092, 64
      %v3278 = vpop.permute.xlu0 %3277
      %3279 = vrot.lane.b32.xlu0 %v3094, 64
      %v3280 = vpop.permute.xlu0 %3279
      %3281 = vrot.lane.b32.xlu0 %v3096, 64
      %v3282 = vpop.permute.xlu0 %3281
      %3283 = vrot.lane.b32.xlu0 %v3098, 64
      %v3284 = vpop.permute.xlu0 %3283
      %3285 = vrot.lane.b32.xlu0 %v3100, 64
      %v3286 = vpop.permute.xlu0 %3285
      %3287 = vrot.lane.b32.xlu0 %v3102, 64
      %v3288 = vpop.permute.xlu0 %3287
      %3289 = vrot.lane.b32.xlu0 %v3104, 64
      %v3290 = vpop.permute.xlu0 %3289
      %s3299 = scalar_lea.vmem [#allocation3], 496
      %3300 = vst.msk [vmem:[%s3299 + $0x1] sm:$0xff] %vm942, %v3276
      %3301 = vst.msk [vmem:[%s3299 + $0x11] sm:$0xff] %vm942, %v3278
      %3302 = vst.msk [vmem:[%s3299 + $0x21] sm:$0xff] %vm942, %v3280
      %3303 = vst.msk [vmem:[%s3299 + $0x31] sm:$0xff] %vm942, %v3282
      %3304 = vst.msk [vmem:[%s3299 + $0x41] sm:$0xff] %vm942, %v3284
      %3305 = vst.msk [vmem:[%s3299 + $0x51] sm:$0xff] %vm942, %v3286
      %3306 = vst.msk [vmem:[%s3299 + $0x61] sm:$0xff] %vm942, %v3288
      %3307 = vst.msk [vmem:[%s3299 + $0x71] sm:$0xff] %vm942, %v3290
      %v3308 = vld [vmem:[%s3182] sm:$0xff]
      %v3309 = vld [vmem:[%s3182 + $0x10] sm:$0xff]
      %v3310 = vld [vmem:[%s3182 + $0x20] sm:$0xff]
      %v3311 = vld [vmem:[%s3182 + $0x30] sm:$0xff]
      %v3312 = vld [vmem:[%s3182 + $0x40] sm:$0xff]
      %v3313 = vld [vmem:[%s3182 + $0x50] sm:$0xff]
      %v3314 = vld [vmem:[%s3182 + $0x60] sm:$0xff]
      %v3315 = vld [vmem:[%s3182 + $0x70] sm:$0xff]
      %v3316 = vld [vmem:[%s3156 + $0x1] sm:$0xff]
      %v3317 = vld [vmem:[%s3156 + $0x11] sm:$0xff]
      %v3318 = vld [vmem:[%s3156 + $0x21] sm:$0xff]
      %v3319 = vld [vmem:[%s3156 + $0x31] sm:$0xff]
      %v3320 = vld [vmem:[%s3156 + $0x41] sm:$0xff]
      %v3321 = vld [vmem:[%s3156 + $0x51] sm:$0xff]
      %v3322 = vld [vmem:[%s3156 + $0x61] sm:$0xff]
      %v3323 = vld [vmem:[%s3156 + $0x71] sm:$0xff]
      %v3324 = vld [vmem:[%s3182 + $0x1] sm:$0xff]
      %v3325 = vld [vmem:[%s3182 + $0x11] sm:$0xff]
      %v3326 = vld [vmem:[%s3182 + $0x21] sm:$0xff]
      %v3327 = vld [vmem:[%s3182 + $0x31] sm:$0xff]
      %v3328 = vld [vmem:[%s3182 + $0x41] sm:$0xff]
      %v3329 = vld [vmem:[%s3182 + $0x51] sm:$0xff]
      %v3330 = vld [vmem:[%s3182 + $0x61] sm:$0xff]
      %v3331 = vld [vmem:[%s3182 + $0x71] sm:$0xff]
      %v3332 = vld [vmem:[%s3249] sm:$0xff]
      %v3333 = vld [vmem:[%s3249 + $0x10] sm:$0xff]
      %v3334 = vld [vmem:[%s3249 + $0x20] sm:$0xff]
      %v3335 = vld [vmem:[%s3249 + $0x30] sm:$0xff]
      %v3336 = vld [vmem:[%s3249 + $0x40] sm:$0xff]
      %v3337 = vld [vmem:[%s3249 + $0x50] sm:$0xff]
      %v3338 = vld [vmem:[%s3249 + $0x60] sm:$0xff]
      %v3339 = vld [vmem:[%s3249 + $0x70] sm:$0xff]
      %v3340 = vld [vmem:[%s3208 + $0x1] sm:$0xff]
      %v3341 = vld [vmem:[%s3208 + $0x11] sm:$0xff]
      %v3342 = vld [vmem:[%s3208 + $0x21] sm:$0xff]
      %v3343 = vld [vmem:[%s3208 + $0x31] sm:$0xff]
      %v3344 = vld [vmem:[%s3208 + $0x41] sm:$0xff]
      %v3345 = vld [vmem:[%s3208 + $0x51] sm:$0xff]
      %v3346 = vld [vmem:[%s3208 + $0x61] sm:$0xff]
      %v3347 = vld [vmem:[%s3208 + $0x71] sm:$0xff]
      %v3348 = vld [vmem:[%s3249 + $0x1] sm:$0xff]
      %v3349 = vld [vmem:[%s3249 + $0x11] sm:$0xff]
      %v3350 = vld [vmem:[%s3249 + $0x21] sm:$0xff]
      %v3351 = vld [vmem:[%s3249 + $0x31] sm:$0xff]
      %v3352 = vld [vmem:[%s3249 + $0x41] sm:$0xff]
      %v3353 = vld [vmem:[%s3249 + $0x51] sm:$0xff]
      %v3354 = vld [vmem:[%s3249 + $0x61] sm:$0xff]
      %v3355 = vld [vmem:[%s3249 + $0x71] sm:$0xff]
      %v3356 = vld [vmem:[%s3299] sm:$0xff]
      %v3357 = vld [vmem:[%s3299 + $0x10] sm:$0xff]
      %v3358 = vld [vmem:[%s3299 + $0x20] sm:$0xff]
      %v3359 = vld [vmem:[%s3299 + $0x30] sm:$0xff]
      %v3360 = vld [vmem:[%s3299 + $0x40] sm:$0xff]
      %v3361 = vld [vmem:[%s3299 + $0x50] sm:$0xff]
      %v3362 = vld [vmem:[%s3299 + $0x60] sm:$0xff]
      %v3363 = vld [vmem:[%s3299 + $0x70] sm:$0xff]
      %v3364 = vld [vmem:[%s3258 + $0x1] sm:$0xff]
      %v3365 = vld [vmem:[%s3258 + $0x11] sm:$0xff]
      %v3366 = vld [vmem:[%s3258 + $0x21] sm:$0xff]
      %v3367 = vld [vmem:[%s3258 + $0x31] sm:$0xff]
      %v3368 = vld [vmem:[%s3258 + $0x41] sm:$0xff]
      %v3369 = vld [vmem:[%s3258 + $0x51] sm:$0xff]
      %v3370 = vld [vmem:[%s3258 + $0x61] sm:$0xff]
      %v3371 = vld [vmem:[%s3258 + $0x71] sm:$0xff]
      %v3372 = vld [vmem:[%s3299 + $0x1] sm:$0xff]
      %v3373 = vld [vmem:[%s3299 + $0x11] sm:$0xff]
      %v3374 = vld [vmem:[%s3299 + $0x21] sm:$0xff]
      %v3375 = vld [vmem:[%s3299 + $0x31] sm:$0xff]
      %v3376 = vld [vmem:[%s3299 + $0x41] sm:$0xff]
      %v3377 = vld [vmem:[%s3299 + $0x51] sm:$0xff]
      %v3378 = vld [vmem:[%s3299 + $0x61] sm:$0xff]
      %v3379 = vld [vmem:[%s3299 + $0x71] sm:$0xff]
      %3388 = vrot.lane.b32.xlu0 %v3316, 64
      %v3389 = vpop.permute.xlu0 %3388
      %3390 = vrot.lane.b32.xlu0 %v3317, 64
      %v3391 = vpop.permute.xlu0 %3390
      %3392 = vrot.lane.b32.xlu0 %v3318, 64
      %v3393 = vpop.permute.xlu0 %3392
      %3394 = vrot.lane.b32.xlu0 %v3319, 64
      %v3395 = vpop.permute.xlu0 %3394
      %3396 = vrot.lane.b32.xlu0 %v3320, 64
      %v3397 = vpop.permute.xlu0 %3396
      %3398 = vrot.lane.b32.xlu0 %v3321, 64
      %v3399 = vpop.permute.xlu0 %3398
      %3400 = vrot.lane.b32.xlu0 %v3322, 64
      %v3401 = vpop.permute.xlu0 %3400
      %3402 = vrot.lane.b32.xlu0 %v3323, 64
      %v3403 = vpop.permute.xlu0 %3402
      %3420 = vrot.lane.b32.xlu0 %v3332, 64
      %v3421 = vpop.permute.xlu0 %3420
      %3422 = vrot.lane.b32.xlu0 %v3333, 64
      %v3423 = vpop.permute.xlu0 %3422
      %3424 = vrot.lane.b32.xlu0 %v3334, 64
      %v3425 = vpop.permute.xlu0 %3424
      %3426 = vrot.lane.b32.xlu0 %v3335, 64
      %v3427 = vpop.permute.xlu0 %3426
      %3428 = vrot.lane.b32.xlu0 %v3336, 64
      %v3429 = vpop.permute.xlu0 %3428
      %3430 = vrot.lane.b32.xlu0 %v3337, 64
      %v3431 = vpop.permute.xlu0 %3430
      %3432 = vrot.lane.b32.xlu0 %v3338, 64
      %v3433 = vpop.permute.xlu0 %3432
      %3434 = vrot.lane.b32.xlu0 %v3339, 64
      %v3435 = vpop.permute.xlu0 %3434
      %3452 = vrot.lane.b32.xlu0 %v3348, 64
      %v3453 = vpop.permute.xlu0 %3452
      %3454 = vrot.lane.b32.xlu0 %v3349, 64
      %v3455 = vpop.permute.xlu0 %3454
      %3456 = vrot.lane.b32.xlu0 %v3350, 64
      %v3457 = vpop.permute.xlu0 %3456
      %3458 = vrot.lane.b32.xlu0 %v3351, 64
      %v3459 = vpop.permute.xlu0 %3458
      %3460 = vrot.lane.b32.xlu0 %v3352, 64
      %v3461 = vpop.permute.xlu0 %3460
      %3462 = vrot.lane.b32.xlu0 %v3353, 64
      %v3463 = vpop.permute.xlu0 %3462
      %3464 = vrot.lane.b32.xlu0 %v3354, 64
      %v3465 = vpop.permute.xlu0 %3464
      %3466 = vrot.lane.b32.xlu0 %v3355, 64
      %v3467 = vpop.permute.xlu0 %3466
      %3484 = vrot.lane.b32.xlu0 %v3364, 64
      %v3485 = vpop.permute.xlu0 %3484
      %3486 = vrot.lane.b32.xlu0 %v3365, 64
      %v3487 = vpop.permute.xlu0 %3486
      %3488 = vrot.lane.b32.xlu0 %v3366, 64
      %v3489 = vpop.permute.xlu0 %3488
      %3490 = vrot.lane.b32.xlu0 %v3367, 64
      %v3491 = vpop.permute.xlu0 %3490
      %3492 = vrot.lane.b32.xlu0 %v3368, 64
      %v3493 = vpop.permute.xlu0 %3492
      %3494 = vrot.lane.b32.xlu0 %v3369, 64
      %v3495 = vpop.permute.xlu0 %3494
      %3496 = vrot.lane.b32.xlu0 %v3370, 64
      %v3497 = vpop.permute.xlu0 %3496
      %3498 = vrot.lane.b32.xlu0 %v3371, 64
      %v3499 = vpop.permute.xlu0 %3498
      %v3508 = vsel %vm942, %v3308, %v3389
      %v3509 = vsel %vm942, %v3309, %v3391
      %v3510 = vsel %vm942, %v3310, %v3393
      %v3511 = vsel %vm942, %v3311, %v3395
      %v3512 = vsel %vm942, %v3312, %v3397
      %v3513 = vsel %vm942, %v3313, %v3399
      %v3514 = vsel %vm942, %v3314, %v3401
      %v3515 = vsel %vm942, %v3315, %v3403
      %v3516 = vsel %vm942, %v3324, %v3421
      %v3517 = vsel %vm942, %v3325, %v3423
      %v3518 = vsel %vm942, %v3326, %v3425
      %v3519 = vsel %vm942, %v3327, %v3427
      %v3520 = vsel %vm942, %v3328, %v3429
      %v3521 = vsel %vm942, %v3329, %v3431
      %v3522 = vsel %vm942, %v3330, %v3433
      %v3523 = vsel %vm942, %v3331, %v3435
      %v3524 = vsel %vm942, %v3340, %v3453
      %v3525 = vsel %vm942, %v3341, %v3455
      %v3526 = vsel %vm942, %v3342, %v3457
      %v3527 = vsel %vm942, %v3343, %v3459
      %v3528 = vsel %vm942, %v3344, %v3461
      %v3529 = vsel %vm942, %v3345, %v3463
      %v3530 = vsel %vm942, %v3346, %v3465
      %v3531 = vsel %vm942, %v3347, %v3467
      %v3532 = vsel %vm942, %v3356, %v3485
      %v3533 = vsel %vm942, %v3357, %v3487
      %v3534 = vsel %vm942, %v3358, %v3489
      %v3535 = vsel %vm942, %v3359, %v3491
      %v3536 = vsel %vm942, %v3360, %v3493
      %v3537 = vsel %vm942, %v3361, %v3495
      %v3538 = vsel %vm942, %v3362, %v3497
      %v3539 = vsel %vm942, %v3363, %v3499
      %v3540 = vld [vmem:[%s3156 + $0x2] sm:$0xff]
      %v3541 = vld [vmem:[%s3156 + $0x12] sm:$0xff]
      %v3542 = vld [vmem:[%s3156 + $0x22] sm:$0xff]
      %v3543 = vld [vmem:[%s3156 + $0x32] sm:$0xff]
      %v3544 = vld [vmem:[%s3156 + $0x42] sm:$0xff]
      %v3545 = vld [vmem:[%s3156 + $0x52] sm:$0xff]
      %v3546 = vld [vmem:[%s3156 + $0x62] sm:$0xff]
      %v3547 = vld [vmem:[%s3156 + $0x72] sm:$0xff]
      %v3548 = vld [vmem:[%s3208 + $0x2] sm:$0xff]
      %v3549 = vld [vmem:[%s3208 + $0x12] sm:$0xff]
      %v3550 = vld [vmem:[%s3208 + $0x22] sm:$0xff]
      %v3551 = vld [vmem:[%s3208 + $0x32] sm:$0xff]
      %v3552 = vld [vmem:[%s3208 + $0x42] sm:$0xff]
      %v3553 = vld [vmem:[%s3208 + $0x52] sm:$0xff]
      %v3554 = vld [vmem:[%s3208 + $0x62] sm:$0xff]
      %v3555 = vld [vmem:[%s3208 + $0x72] sm:$0xff]
      %v3556 = vld [vmem:[%s3258 + $0x2] sm:$0xff]
      %v3557 = vld [vmem:[%s3258 + $0x12] sm:$0xff]
      %v3558 = vld [vmem:[%s3258 + $0x22] sm:$0xff]
      %v3559 = vld [vmem:[%s3258 + $0x32] sm:$0xff]
      %v3560 = vld [vmem:[%s3258 + $0x42] sm:$0xff]
      %v3561 = vld [vmem:[%s3258 + $0x52] sm:$0xff]
      %v3562 = vld [vmem:[%s3258 + $0x62] sm:$0xff]
      %v3563 = vld [vmem:[%s3258 + $0x72] sm:$0xff]
      %3572 = vrot.lane.b32.xlu0 %v3324, 64
      %v3573 = vpop.permute.xlu0 %3572
      %3574 = vrot.lane.b32.xlu0 %v3325, 64
      %v3575 = vpop.permute.xlu0 %3574
      %3576 = vrot.lane.b32.xlu0 %v3326, 64
      %v3577 = vpop.permute.xlu0 %3576
      %3578 = vrot.lane.b32.xlu0 %v3327, 64
      %v3579 = vpop.permute.xlu0 %3578
      %3580 = vrot.lane.b32.xlu0 %v3328, 64
      %v3581 = vpop.permute.xlu0 %3580
      %3582 = vrot.lane.b32.xlu0 %v3329, 64
      %v3583 = vpop.permute.xlu0 %3582
      %3584 = vrot.lane.b32.xlu0 %v3330, 64
      %v3585 = vpop.permute.xlu0 %3584
      %3586 = vrot.lane.b32.xlu0 %v3331, 64
      %v3587 = vpop.permute.xlu0 %3586
      %3604 = vrot.lane.b32.xlu0 %v3340, 64
      %v3605 = vpop.permute.xlu0 %3604
      %3606 = vrot.lane.b32.xlu0 %v3341, 64
      %v3607 = vpop.permute.xlu0 %3606
      %3608 = vrot.lane.b32.xlu0 %v3342, 64
      %v3609 = vpop.permute.xlu0 %3608
      %3610 = vrot.lane.b32.xlu0 %v3343, 64
      %v3611 = vpop.permute.xlu0 %3610
      %3612 = vrot.lane.b32.xlu0 %v3344, 64
      %v3613 = vpop.permute.xlu0 %3612
      %3614 = vrot.lane.b32.xlu0 %v3345, 64
      %v3615 = vpop.permute.xlu0 %3614
      %3616 = vrot.lane.b32.xlu0 %v3346, 64
      %v3617 = vpop.permute.xlu0 %3616
      %3618 = vrot.lane.b32.xlu0 %v3347, 64
      %v3619 = vpop.permute.xlu0 %3618
      %3636 = vrot.lane.b32.xlu0 %v3548, 64
      %v3637 = vpop.permute.xlu0 %3636
      %3638 = vrot.lane.b32.xlu0 %v3549, 64
      %v3639 = vpop.permute.xlu0 %3638
      %3640 = vrot.lane.b32.xlu0 %v3550, 64
      %v3641 = vpop.permute.xlu0 %3640
      %3642 = vrot.lane.b32.xlu0 %v3551, 64
      %v3643 = vpop.permute.xlu0 %3642
      %3644 = vrot.lane.b32.xlu0 %v3552, 64
      %v3645 = vpop.permute.xlu0 %3644
      %3646 = vrot.lane.b32.xlu0 %v3553, 64
      %v3647 = vpop.permute.xlu0 %3646
      %3648 = vrot.lane.b32.xlu0 %v3554, 64
      %v3649 = vpop.permute.xlu0 %3648
      %3650 = vrot.lane.b32.xlu0 %v3555, 64
      %v3651 = vpop.permute.xlu0 %3650
      %3668 = vrot.lane.b32.xlu0 %v3372, 64
      %v3669 = vpop.permute.xlu0 %3668
      %3670 = vrot.lane.b32.xlu0 %v3373, 64
      %v3671 = vpop.permute.xlu0 %3670
      %3672 = vrot.lane.b32.xlu0 %v3374, 64
      %v3673 = vpop.permute.xlu0 %3672
      %3674 = vrot.lane.b32.xlu0 %v3375, 64
      %v3675 = vpop.permute.xlu0 %3674
      %3676 = vrot.lane.b32.xlu0 %v3376, 64
      %v3677 = vpop.permute.xlu0 %3676
      %3678 = vrot.lane.b32.xlu0 %v3377, 64
      %v3679 = vpop.permute.xlu0 %3678
      %3680 = vrot.lane.b32.xlu0 %v3378, 64
      %v3681 = vpop.permute.xlu0 %3680
      %3682 = vrot.lane.b32.xlu0 %v3379, 64
      %v3683 = vpop.permute.xlu0 %3682
      %v3692 = vsel %vm942, %v3316, %v3573
      %v3693 = vsel %vm942, %v3317, %v3575
      %v3694 = vsel %vm942, %v3318, %v3577
      %v3695 = vsel %vm942, %v3319, %v3579
      %v3696 = vsel %vm942, %v3320, %v3581
      %v3697 = vsel %vm942, %v3321, %v3583
      %v3698 = vsel %vm942, %v3322, %v3585
      %v3699 = vsel %vm942, %v3323, %v3587
      %v3700 = vsel %vm942, %v3540, %v3605
      %v3701 = vsel %vm942, %v3541, %v3607
      %v3702 = vsel %vm942, %v3542, %v3609
      %v3703 = vsel %vm942, %v3543, %v3611
      %v3704 = vsel %vm942, %v3544, %v3613
      %v3705 = vsel %vm942, %v3545, %v3615
      %v3706 = vsel %vm942, %v3546, %v3617
      %v3707 = vsel %vm942, %v3547, %v3619
      %v3708 = vsel %vm942, %v3348, %v3637
      %v3709 = vsel %vm942, %v3349, %v3639
      %v3710 = vsel %vm942, %v3350, %v3641
      %v3711 = vsel %vm942, %v3351, %v3643
      %v3712 = vsel %vm942, %v3352, %v3645
      %v3713 = vsel %vm942, %v3353, %v3647
      %v3714 = vsel %vm942, %v3354, %v3649
      %v3715 = vsel %vm942, %v3355, %v3651
      %v3716 = vsel %vm942, %v3364, %v3669
      %v3717 = vsel %vm942, %v3365, %v3671
      %v3718 = vsel %vm942, %v3366, %v3673
      %v3719 = vsel %vm942, %v3367, %v3675
      %v3720 = vsel %vm942, %v3368, %v3677
      %v3721 = vsel %vm942, %v3369, %v3679
      %v3722 = vsel %vm942, %v3370, %v3681
      %v3723 = vsel %vm942, %v3371, %v3683
      %s3724 = scalar_lea.vmem [#allocation3], 192
      %v3725 = vld [vmem:[%s3724] sm:$0xff]
      %v3726 = vld [vmem:[%s3724 + $0x10] sm:$0xff]
      %v3727 = vld [vmem:[%s3724 + $0x20] sm:$0xff]
      %v3728 = vld [vmem:[%s3724 + $0x30] sm:$0xff]
      %v3729 = vld [vmem:[%s3724 + $0x40] sm:$0xff]
      %v3730 = vld [vmem:[%s3724 + $0x50] sm:$0xff]
      %v3731 = vld [vmem:[%s3724 + $0x60] sm:$0xff]
      %v3732 = vld [vmem:[%s3724 + $0x70] sm:$0xff]
      %s3733 = scalar_lea.vmem [#allocation3], 32
      %v3734 = vld [vmem:[%s3733 + $0x1] sm:$0xff]
      %v3735 = vld [vmem:[%s3733 + $0x11] sm:$0xff]
      %v3736 = vld [vmem:[%s3733 + $0x21] sm:$0xff]
      %v3737 = vld [vmem:[%s3733 + $0x31] sm:$0xff]
      %v3738 = vld [vmem:[%s3733 + $0x41] sm:$0xff]
      %v3739 = vld [vmem:[%s3733 + $0x51] sm:$0xff]
      %v3740 = vld [vmem:[%s3733 + $0x61] sm:$0xff]
      %v3741 = vld [vmem:[%s3733 + $0x71] sm:$0xff]
      %v3742 = vld [vmem:[%s3724 + $0x1] sm:$0xff]
      %v3743 = vld [vmem:[%s3724 + $0x11] sm:$0xff]
      %v3744 = vld [vmem:[%s3724 + $0x21] sm:$0xff]
      %v3745 = vld [vmem:[%s3724 + $0x31] sm:$0xff]
      %v3746 = vld [vmem:[%s3724 + $0x41] sm:$0xff]
      %v3747 = vld [vmem:[%s3724 + $0x51] sm:$0xff]
      %v3748 = vld [vmem:[%s3724 + $0x61] sm:$0xff]
      %v3749 = vld [vmem:[%s3724 + $0x71] sm:$0xff]
      %3758 = vrot.lane.b32.xlu0 %v3356, 64
      %v3759 = vpop.permute.xlu0 %3758
      %3760 = vrot.lane.b32.xlu0 %v3357, 64
      %v3761 = vpop.permute.xlu0 %3760
      %3762 = vrot.lane.b32.xlu0 %v3358, 64
      %v3763 = vpop.permute.xlu0 %3762
      %3764 = vrot.lane.b32.xlu0 %v3359, 64
      %v3765 = vpop.permute.xlu0 %3764
      %3766 = vrot.lane.b32.xlu0 %v3360, 64
      %v3767 = vpop.permute.xlu0 %3766
      %3768 = vrot.lane.b32.xlu0 %v3361, 64
      %v3769 = vpop.permute.xlu0 %3768
      %3770 = vrot.lane.b32.xlu0 %v3362, 64
      %v3771 = vpop.permute.xlu0 %3770
      %3772 = vrot.lane.b32.xlu0 %v3363, 64
      %v3773 = vpop.permute.xlu0 %3772
      %3790 = vrot.lane.b32.xlu0 %v3734, 64
      %v3791 = vpop.permute.xlu0 %3790
      %3792 = vrot.lane.b32.xlu0 %v3735, 64
      %v3793 = vpop.permute.xlu0 %3792
      %3794 = vrot.lane.b32.xlu0 %v3736, 64
      %v3795 = vpop.permute.xlu0 %3794
      %3796 = vrot.lane.b32.xlu0 %v3737, 64
      %v3797 = vpop.permute.xlu0 %3796
      %3798 = vrot.lane.b32.xlu0 %v3738, 64
      %v3799 = vpop.permute.xlu0 %3798
      %3800 = vrot.lane.b32.xlu0 %v3739, 64
      %v3801 = vpop.permute.xlu0 %3800
      %3802 = vrot.lane.b32.xlu0 %v3740, 64
      %v3803 = vpop.permute.xlu0 %3802
      %3804 = vrot.lane.b32.xlu0 %v3741, 64
      %v3805 = vpop.permute.xlu0 %3804
      %v3814 = vsel %vm942, %v3332, %v3605
      %v3815 = vsel %vm942, %v3333, %v3607
      %v3816 = vsel %vm942, %v3334, %v3609
      %v3817 = vsel %vm942, %v3335, %v3611
      %v3818 = vsel %vm942, %v3336, %v3613
      %v3819 = vsel %vm942, %v3337, %v3615
      %v3820 = vsel %vm942, %v3338, %v3617
      %v3821 = vsel %vm942, %v3339, %v3619
      %v3822 = vsel %vm942, %v3348, %v3759
      %v3823 = vsel %vm942, %v3349, %v3761
      %v3824 = vsel %vm942, %v3350, %v3763
      %v3825 = vsel %vm942, %v3351, %v3765
      %v3826 = vsel %vm942, %v3352, %v3767
      %v3827 = vsel %vm942, %v3353, %v3769
      %v3828 = vsel %vm942, %v3354, %v3771
      %v3829 = vsel %vm942, %v3355, %v3773
      %v3830 = vsel %vm942, %v3725, %v3791
      %v3831 = vsel %vm942, %v3726, %v3793
      %v3832 = vsel %vm942, %v3727, %v3795
      %v3833 = vsel %vm942, %v3728, %v3797
      %v3834 = vsel %vm942, %v3729, %v3799
      %v3835 = vsel %vm942, %v3730, %v3801
      %v3836 = vsel %vm942, %v3731, %v3803
      %v3837 = vsel %vm942, %v3732, %v3805
      %v3838 = vld [vmem:[%s3733 + $0x2] sm:$0xff]
      %v3839 = vld [vmem:[%s3733 + $0x12] sm:$0xff]
      %v3840 = vld [vmem:[%s3733 + $0x22] sm:$0xff]
      %v3841 = vld [vmem:[%s3733 + $0x32] sm:$0xff]
      %v3842 = vld [vmem:[%s3733 + $0x42] sm:$0xff]
      %v3843 = vld [vmem:[%s3733 + $0x52] sm:$0xff]
      %v3844 = vld [vmem:[%s3733 + $0x62] sm:$0xff]
      %v3845 = vld [vmem:[%s3733 + $0x72] sm:$0xff]
      %3854 = vrot.lane.b32.xlu0 %v3556, 64
      %v3855 = vpop.permute.xlu0 %3854
      %3856 = vrot.lane.b32.xlu0 %v3557, 64
      %v3857 = vpop.permute.xlu0 %3856
      %3858 = vrot.lane.b32.xlu0 %v3558, 64
      %v3859 = vpop.permute.xlu0 %3858
      %3860 = vrot.lane.b32.xlu0 %v3559, 64
      %v3861 = vpop.permute.xlu0 %3860
      %3862 = vrot.lane.b32.xlu0 %v3560, 64
      %v3863 = vpop.permute.xlu0 %3862
      %3864 = vrot.lane.b32.xlu0 %v3561, 64
      %v3865 = vpop.permute.xlu0 %3864
      %3866 = vrot.lane.b32.xlu0 %v3562, 64
      %v3867 = vpop.permute.xlu0 %3866
      %3868 = vrot.lane.b32.xlu0 %v3563, 64
      %v3869 = vpop.permute.xlu0 %3868
      %3886 = vrot.lane.b32.xlu0 %v3742, 64
      %v3887 = vpop.permute.xlu0 %3886
      %3888 = vrot.lane.b32.xlu0 %v3743, 64
      %v3889 = vpop.permute.xlu0 %3888
      %3890 = vrot.lane.b32.xlu0 %v3744, 64
      %v3891 = vpop.permute.xlu0 %3890
      %3892 = vrot.lane.b32.xlu0 %v3745, 64
      %v3893 = vpop.permute.xlu0 %3892
      %3894 = vrot.lane.b32.xlu0 %v3746, 64
      %v3895 = vpop.permute.xlu0 %3894
      %3896 = vrot.lane.b32.xlu0 %v3747, 64
      %v3897 = vpop.permute.xlu0 %3896
      %3898 = vrot.lane.b32.xlu0 %v3748, 64
      %v3899 = vpop.permute.xlu0 %3898
      %3900 = vrot.lane.b32.xlu0 %v3749, 64
      %v3901 = vpop.permute.xlu0 %3900
      %v3910 = vsel %vm942, %v3548, %v3485
      %v3911 = vsel %vm942, %v3549, %v3487
      %v3912 = vsel %vm942, %v3550, %v3489
      %v3913 = vsel %vm942, %v3551, %v3491
      %v3914 = vsel %vm942, %v3552, %v3493
      %v3915 = vsel %vm942, %v3553, %v3495
      %v3916 = vsel %vm942, %v3554, %v3497
      %v3917 = vsel %vm942, %v3555, %v3499
      %v3918 = vsel %vm942, %v3372, %v3855
      %v3919 = vsel %vm942, %v3373, %v3857
      %v3920 = vsel %vm942, %v3374, %v3859
      %v3921 = vsel %vm942, %v3375, %v3861
      %v3922 = vsel %vm942, %v3376, %v3863
      %v3923 = vsel %vm942, %v3377, %v3865
      %v3924 = vsel %vm942, %v3378, %v3867
      %v3925 = vsel %vm942, %v3379, %v3869
      %v3926 = vsel %vm942, %v3734, %v3887
      %v3927 = vsel %vm942, %v3735, %v3889
      %v3928 = vsel %vm942, %v3736, %v3891
      %v3929 = vsel %vm942, %v3737, %v3893
      %v3930 = vsel %vm942, %v3738, %v3895
      %v3931 = vsel %vm942, %v3739, %v3897
      %v3932 = vsel %vm942, %v3740, %v3899
      %v3933 = vsel %vm942, %v3741, %v3901
      %v3934 = vld [vmem:[%s8] sm:$0xff]
      %v3935 = vld [vmem:[%s8 + $0x8] sm:$0xff]
      %v3936 = vld [vmem:[%s8 + $0x10] sm:$0xff]
      %v3937 = vld [vmem:[%s8 + $0x18] sm:$0xff]
      %v3938 = vld [vmem:[%s8 + $0x20] sm:$0xff]
      %v3939 = vld [vmem:[%s8 + $0x28] sm:$0xff]
      %v3940 = vld [vmem:[%s8 + $0x30] sm:$0xff]
      %v3941 = vld [vmem:[%s8 + $0x38] sm:$0xff]
      %v3942 = vld [vmem:[%s8 + $0x40] sm:$0xff]
      %v3943 = vld [vmem:[%s8 + $0x48] sm:$0xff]
      %v3944 = vld [vmem:[%s8 + $0x50] sm:$0xff]
      %v3945 = vld [vmem:[%s8 + $0x58] sm:$0xff]
      %v3946 = vld [vmem:[%s8 + $0x60] sm:$0xff]
      %v3947 = vld [vmem:[%s8 + $0x68] sm:$0xff]
      %v3948 = vld [vmem:[%s8 + $0x70] sm:$0xff]
      %v3949 = vld [vmem:[%s8 + $0x78] sm:$0xff]
      %v3950 = vld [vmem:[%s8 + $0x80] sm:$0xff]
      %v3951 = vld [vmem:[%s8 + $0x88] sm:$0xff]
      %v3952 = vld [vmem:[%s8 + $0x90] sm:$0xff]
      %v3953 = vld [vmem:[%s8 + $0x98] sm:$0xff]
      %v3954 = vld [vmem:[%s8 + $0xa0] sm:$0xff]
      %v3955 = vld [vmem:[%s8 + $0xa8] sm:$0xff]
      %v3956 = vld [vmem:[%s8 + $0xb0] sm:$0xff]
      %v3957 = vld [vmem:[%s8 + $0xb8] sm:$0xff]
      %v3958 = vld [vmem:[%s8 + $0xc0] sm:$0xff]
      %v3959 = vld [vmem:[%s8 + $0xc8] sm:$0xff]
      %v3960 = vld [vmem:[%s8 + $0xd0] sm:$0xff]
      %v3961 = vld [vmem:[%s8 + $0xd8] sm:$0xff]
      %v3962 = vld [vmem:[%s8 + $0xe0] sm:$0xff]
      %v3963 = vld [vmem:[%s8 + $0xe8] sm:$0xff]
      %v3964 = vld [vmem:[%s8 + $0xf0] sm:$0xff]
      %v3965 = vld [vmem:[%s8 + $0xf8] sm:$0xff]
      %v3966 = vld [vmem:[%s8 + $0x100] sm:$0xff]
      %v3967 = vld [vmem:[%s8 + $0x108] sm:$0xff]
      %v3968 = vld [vmem:[%s8 + $0x110] sm:$0xff]
      %v3969 = vld [vmem:[%s8 + $0x118] sm:$0xff]
      %v3970 = vld [vmem:[%s8 + $0x120] sm:$0xff]
      %v3971 = vld [vmem:[%s8 + $0x128] sm:$0xff]
      %v3972 = vld [vmem:[%s8 + $0x130] sm:$0xff]
      %v3973 = vld [vmem:[%s8 + $0x138] sm:$0xff]
      %v3974 = vld [vmem:[%s8 + $0x140] sm:$0xff]
      %v3975 = vld [vmem:[%s8 + $0x148] sm:$0xff]
      %v3976 = vld [vmem:[%s8 + $0x150] sm:$0xff]
      %v3977 = vld [vmem:[%s8 + $0x158] sm:$0xff]
      %v3978 = vld [vmem:[%s8 + $0x160] sm:$0xff]
      %v3979 = vld [vmem:[%s8 + $0x168] sm:$0xff]
      %v3980 = vld [vmem:[%s8 + $0x170] sm:$0xff]
      %v3981 = vld [vmem:[%s8 + $0x178] sm:$0xff]
      %v3982 = vld [vmem:[%s8 + $0x180] sm:$0xff]
      %v3983 = vld [vmem:[%s8 + $0x188] sm:$0xff]
      %v3984 = vld [vmem:[%s8 + $0x190] sm:$0xff]
      %v3985 = vld [vmem:[%s8 + $0x198] sm:$0xff]
      %v3986 = vld [vmem:[%s8 + $0x1a0] sm:$0xff]
      %v3987 = vld [vmem:[%s8 + $0x1a8] sm:$0xff]
      %v3988 = vld [vmem:[%s8 + $0x1b0] sm:$0xff]
      %v3989 = vld [vmem:[%s8 + $0x1b8] sm:$0xff]
      %v3990 = vld [vmem:[%s8 + $0x1c0] sm:$0xff]
      %v3991 = vld [vmem:[%s8 + $0x1c8] sm:$0xff]
      %v3992 = vld [vmem:[%s8 + $0x1d0] sm:$0xff]
      %v3993 = vld [vmem:[%s8 + $0x1d8] sm:$0xff]
      %v3994 = vld [vmem:[%s8 + $0x1e0] sm:$0xff]
      %v3995 = vld [vmem:[%s8 + $0x1e8] sm:$0xff]
      %v3996 = vld [vmem:[%s8 + $0x1f0] sm:$0xff]
      %v3997 = vld [vmem:[%s8 + $0x1f8] sm:$0xff]
      %v3998 = vld [vmem:[%s8 + $0x200] sm:$0xff]
      %v3999 = vld [vmem:[%s8 + $0x208] sm:$0xff]
      %v4000 = vld [vmem:[%s8 + $0x210] sm:$0xff]
      %v4001 = vld [vmem:[%s8 + $0x218] sm:$0xff]
      %v4002 = vld [vmem:[%s8 + $0x220] sm:$0xff]
      %v4003 = vld [vmem:[%s8 + $0x228] sm:$0xff]
      %v4004 = vld [vmem:[%s8 + $0x230] sm:$0xff]
      %v4005 = vld [vmem:[%s8 + $0x238] sm:$0xff]
      %v4006 = vsel %vm942, %v3372, 0
      %v4008 = vsel %vm942, %v3373, 0
      %v4010 = vsel %vm942, %v3374, 0
      %v4012 = vsel %vm942, %v3375, 0
      %v4014 = vsel %vm942, %v3376, 0
      %v4016 = vsel %vm942, %v3377, 0
      %v4018 = vsel %vm942, %v3378, 0
      %v4020 = vsel %vm942, %v3379, 0
      %v4022 = vsel %vm942, %v3556, 0
      %v4024 = vsel %vm942, %v3557, 0
      %v4026 = vsel %vm942, %v3558, 0
      %v4028 = vsel %vm942, %v3559, 0
      %v4030 = vsel %vm942, %v3560, 0
      %v4032 = vsel %vm942, %v3561, 0
      %v4034 = vsel %vm942, %v3562, 0
      %v4036 = vsel %vm942, %v3563, 0
      %v4038 = vsel %vm942, %v3742, 0
      %v4040 = vsel %vm942, %v3743, 0
      %v4042 = vsel %vm942, %v3744, 0
      %v4044 = vsel %vm942, %v3745, 0
      %v4046 = vsel %vm942, %v3746, 0
      %v4048 = vsel %vm942, %v3747, 0
      %v4050 = vsel %vm942, %v3748, 0
      %v4052 = vsel %vm942, %v3749, 0
      %v4055 = vsel %vm942, %v3838, 0
      %v4058 = vsel %vm942, %v3839, 0
      %v4061 = vsel %vm942, %v3840, 0
      %v4064 = vsel %vm942, %v3841, 0
      %v4067 = vsel %vm942, %v3842, 0
      %v4070 = vsel %vm942, %v3843, 0
      %v4073 = vsel %vm942, %v3844, 0
      %v4076 = vsel %vm942, %v3845, 0
      %4078 = vmatprep.subr.mxu0 0.0
      %4079 = vmatpush1.msra.mxu0 %v3949
      %4080 = vmatprep.subr.mxu0 0.0
      %4081 = vmatpush1.msra.mxu0 %v3948
      %4082 = vmatprep.subr.mxu0 0.0
      %4083 = vmatpush1.msra.mxu0 %v3947
      %4084 = vmatprep.subr.mxu0 0.0
      %4085 = vmatpush1.msra.mxu0 %v3946
      %4086 = vmatprep.subr.mxu0 0.0
      %4087 = vmatpush1.msra.mxu0 %v3945
      %4088 = vmatprep.subr.mxu0 0.0
      %4089 = vmatpush1.msra.mxu0 %v3944
      %4090 = vmatprep.subr.mxu0 0.0
      %4091 = vmatpush1.msra.mxu0 %v3943
      %4092 = vmatprep.subr.mxu0 0.0
      %4093 = vmatpush1.msra.mxu0 %v3942
      %4094 = vmatprep.subr.mxu0 0.0
      %4095 = vmatpush1.msra.mxu0 %v3941
      %4096 = vmatprep.subr.mxu0 0.0
      %4097 = vmatpush1.msra.mxu0 %v3940
      %4098 = vmatprep.subr.mxu0 0.0
      %4099 = vmatpush1.msra.mxu0 %v3939
      %4100 = vmatprep.subr.mxu0 0.0
      %4101 = vmatpush1.msra.mxu0 %v3938
      %4102 = vmatprep.subr.mxu0 0.0
      %4103 = vmatpush1.msra.mxu0 %v3937
      %4104 = vmatprep.subr.mxu0 0.0
      %4105 = vmatpush1.msra.mxu0 %v3936
      %4106 = vmatprep.subr.mxu0 0.0
      %4107 = vmatpush1.msra.mxu0 %v3935
      %4108 = vmatprep.subr.mxu0 0.0
      %4109 = vmatpush1.msra.mxu0 %v3934
      %4110 = vmatprep.subr.mxu0 0.0
      %4111 = vmatpush2.msra.mxu0 %v3965
      %4112 = vmatprep.subr.mxu0 0.0
      %4113 = vmatpush2.msra.mxu0 %v3964
      %4114 = vmatprep.subr.mxu0 0.0
      %4115 = vmatpush2.msra.mxu0 %v3963
      %4116 = vmatprep.subr.mxu0 0.0
      %4117 = vmatpush2.msra.mxu0 %v3962
      %4118 = vmatprep.subr.mxu0 0.0
      %4119 = vmatpush2.msra.mxu0 %v3961
      %4120 = vmatprep.subr.mxu0 0.0
      %4121 = vmatpush2.msra.mxu0 %v3960
      %4122 = vmatprep.subr.mxu0 0.0
      %4123 = vmatpush2.msra.mxu0 %v3959
      %4124 = vmatprep.subr.mxu0 0.0
      %4125 = vmatpush2.msra.mxu0 %v3958
      %4126 = vmatprep.subr.mxu0 0.0
      %4127 = vmatpush2.msra.mxu0 %v3957
      %4128 = vmatprep.subr.mxu0 0.0
      %4129 = vmatpush2.msra.mxu0 %v3956
      %4130 = vmatprep.subr.mxu0 0.0
      %4131 = vmatpush2.msra.mxu0 %v3955
      %4132 = vmatprep.subr.mxu0 0.0
      %4133 = vmatpush2.msra.mxu0 %v3954
      %4134 = vmatprep.subr.mxu0 0.0
      %4135 = vmatpush2.msra.mxu0 %v3953
      %4136 = vmatprep.subr.mxu0 0.0
      %4137 = vmatpush2.msra.mxu0 %v3952
      %4138 = vmatprep.subr.mxu0 0.0
      %4139 = vmatpush2.msra.mxu0 %v3951
      %4140 = vmatprep.subr.mxu0 0.0
      %4141 = vmatpush2.msra.mxu0 %v3950
      %4142 = vmatprep.mubr.f32.mxu0 %v3516
      %4143 = vmatmul.mubr.f32.gmra.mxu0 %v3508
      %v4144 = vpop.f32.mrf.mxu0
      %v4145 = vadd.f32 0.0, %v4144
      %v4146 = vpop.f32.mrf.mxu0
      %4147 = vmatprep.mubr.f32.mxu0 %v3517
      %4148 = vmatmul.mubr.f32.gmra.mxu0 %v3509
      %v4149 = vpop.f32.mrf.mxu0
      %v4150 = vadd.f32 0.0, %v4149
      %v4151 = vpop.f32.mrf.mxu0
      %4152 = vmatprep.mubr.f32.mxu0 %v3518
      %4153 = vmatmul.mubr.f32.gmra.mxu0 %v3510
      %v4154 = vpop.f32.mrf.mxu0
      %v4155 = vadd.f32 0.0, %v4154
      %v4156 = vpop.f32.mrf.mxu0
      %4157 = vmatprep.mubr.f32.mxu0 %v3519
      %4158 = vmatmul.mubr.f32.gmra.mxu0 %v3511
      %v4159 = vpop.f32.mrf.mxu0
      %v4160 = vadd.f32 0.0, %v4159
      %v4161 = vpop.f32.mrf.mxu0
      %4162 = vmatprep.mubr.f32.mxu0 %v3520
      %4163 = vmatmul.mubr.f32.gmra.mxu0 %v3512
      %v4164 = vpop.f32.mrf.mxu0
      %v4165 = vadd.f32 0.0, %v4164
      %v4166 = vpop.f32.mrf.mxu0
      %4167 = vmatprep.mubr.f32.mxu0 %v3521
      %4168 = vmatmul.mubr.f32.gmra.mxu0 %v3513
      %v4169 = vpop.f32.mrf.mxu0
      %v4170 = vadd.f32 0.0, %v4169
      %v4171 = vpop.f32.mrf.mxu0
      %4172 = vmatprep.mubr.f32.mxu0 %v3522
      %4173 = vmatmul.mubr.f32.gmra.mxu0 %v3514
      %v4174 = vpop.f32.mrf.mxu0
      %v4175 = vadd.f32 0.0, %v4174
      %v4176 = vpop.f32.mrf.mxu0
      %4177 = vmatprep.mubr.f32.mxu0 %v3523
      %4178 = vmatmul.mubr.f32.gmra.mxu0 %v3515
      %v4179 = vpop.f32.mrf.mxu0
      %v4180 = vadd.f32 0.0, %v4179
      %v4181 = vpop.f32.mrf.mxu0
      %4182 = vmatprep.mubr.f32.mxu0 %v3700
      %4183 = vmatmul.mubr.f32.gmra.mxu0 %v3692
      %v4184 = vpop.f32.mrf.mxu0
      %v4185 = vadd.f32 0.0, %v4184
      %v4186 = vpop.f32.mrf.mxu0
      %4187 = vmatprep.mubr.f32.mxu0 %v3701
      %4188 = vmatmul.mubr.f32.gmra.mxu0 %v3693
      %v4189 = vpop.f32.mrf.mxu0
      %v4190 = vadd.f32 0.0, %v4189
      %v4191 = vpop.f32.mrf.mxu0
      %4192 = vmatprep.mubr.f32.mxu0 %v3702
      %4193 = vmatmul.mubr.f32.gmra.mxu0 %v3694
      %v4194 = vpop.f32.mrf.mxu0
      %v4195 = vadd.f32 0.0, %v4194
      %v4196 = vpop.f32.mrf.mxu0
      %4197 = vmatprep.mubr.f32.mxu0 %v3703
      %4198 = vmatmul.mubr.f32.gmra.mxu0 %v3695
      %v4199 = vpop.f32.mrf.mxu0
      %v4200 = vadd.f32 0.0, %v4199
      %v4201 = vpop.f32.mrf.mxu0
      %4202 = vmatprep.mubr.f32.mxu0 %v3704
      %4203 = vmatmul.mubr.f32.gmra.mxu0 %v3696
      %v4204 = vpop.f32.mrf.mxu0
      %v4205 = vadd.f32 0.0, %v4204
      %v4206 = vpop.f32.mrf.mxu0
      %4207 = vmatprep.mubr.f32.mxu0 %v3705
      %4208 = vmatmul.mubr.f32.gmra.mxu0 %v3697
      %v4209 = vpop.f32.mrf.mxu0
      %v4210 = vadd.f32 0.0, %v4209
      %v4211 = vpop.f32.mrf.mxu0
      %4212 = vmatprep.mubr.f32.mxu0 %v3706
      %4213 = vmatmul.mubr.f32.gmra.mxu0 %v3698
      %v4214 = vpop.f32.mrf.mxu0
      %v4215 = vadd.f32 0.0, %v4214
      %v4216 = vpop.f32.mrf.mxu0
      %4217 = vmatprep.mubr.f32.mxu0 %v3707
      %4218 = vmatmul.mubr.f32.gmra.mxu0 %v3699
      %v4219 = vpop.f32.mrf.mxu0
      %v4220 = vadd.f32 0.0, %v4219
      %v4221 = vpop.f32.mrf.mxu0
      %4222 = vmatprep.mubr.f32.mxu0 %v3822
      %4223 = vmatmul.mubr.f32.gmra.mxu0 %v3814
      %v4224 = vpop.f32.mrf.mxu0
      %v4225 = vadd.f32 0.0, %v4224
      %v4226 = vpop.f32.mrf.mxu0
      %4227 = vmatprep.mubr.f32.mxu0 %v3823
      %4228 = vmatmul.mubr.f32.gmra.mxu0 %v3815
      %v4229 = vpop.f32.mrf.mxu0
      %v4230 = vadd.f32 0.0, %v4229
      %v4231 = vpop.f32.mrf.mxu0
      %4232 = vmatprep.mubr.f32.mxu0 %v3824
      %4233 = vmatmul.mubr.f32.gmra.mxu0 %v3816
      %v4234 = vpop.f32.mrf.mxu0
      %v4235 = vadd.f32 0.0, %v4234
      %v4236 = vpop.f32.mrf.mxu0
      %4237 = vmatprep.mubr.f32.mxu0 %v3825
      %4238 = vmatmul.mubr.f32.gmra.mxu0 %v3817
      %v4239 = vpop.f32.mrf.mxu0
      %v4240 = vadd.f32 0.0, %v4239
      %v4241 = vpop.f32.mrf.mxu0
      %4242 = vmatprep.mubr.f32.mxu0 %v3826
      %4243 = vmatmul.mubr.f32.gmra.mxu0 %v3818
      %v4244 = vpop.f32.mrf.mxu0
      %v4245 = vadd.f32 0.0, %v4244
      %v4246 = vpop.f32.mrf.mxu0
      %4247 = vmatprep.mubr.f32.mxu0 %v3827
      %4248 = vmatmul.mubr.f32.gmra.mxu0 %v3819
      %v4249 = vpop.f32.mrf.mxu0
      %v4250 = vadd.f32 0.0, %v4249
      %v4251 = vpop.f32.mrf.mxu0
      %4252 = vmatprep.mubr.f32.mxu0 %v3828
      %4253 = vmatmul.mubr.f32.gmra.mxu0 %v3820
      %v4254 = vpop.f32.mrf.mxu0
      %v4255 = vadd.f32 0.0, %v4254
      %v4256 = vpop.f32.mrf.mxu0
      %4257 = vmatprep.mubr.f32.mxu0 %v3829
      %4258 = vmatmul.mubr.f32.gmra.mxu0 %v3821
      %v4259 = vpop.f32.mrf.mxu0
      %v4260 = vadd.f32 0.0, %v4259
      %v4261 = vpop.f32.mrf.mxu0
      %4262 = vmatprep.mubr.f32.mxu0 %v3910
      %4263 = vmatmul.mubr.f32.gmra.mxu0 %v3524
      %v4264 = vpop.f32.mrf.mxu0
      %v4265 = vadd.f32 0.0, %v4264
      %v4266 = vpop.f32.mrf.mxu0
      %4267 = vmatprep.mubr.f32.mxu0 %v3911
      %4268 = vmatmul.mubr.f32.gmra.mxu0 %v3525
      %v4269 = vpop.f32.mrf.mxu0
      %v4270 = vadd.f32 0.0, %v4269
      %v4271 = vpop.f32.mrf.mxu0
      %4272 = vmatprep.mubr.f32.mxu0 %v3912
      %4273 = vmatmul.mubr.f32.gmra.mxu0 %v3526
      %v4274 = vpop.f32.mrf.mxu0
      %v4275 = vadd.f32 0.0, %v4274
      %v4276 = vpop.f32.mrf.mxu0
      %4277 = vmatprep.mubr.f32.mxu0 %v3913
      %4278 = vmatmul.mubr.f32.gmra.mxu0 %v3527
      %v4279 = vpop.f32.mrf.mxu0
      %v4280 = vadd.f32 0.0, %v4279
      %v4281 = vpop.f32.mrf.mxu0
      %4282 = vmatprep.mubr.f32.mxu0 %v3914
      %4283 = vmatmul.mubr.f32.gmra.mxu0 %v3528
      %v4284 = vpop.f32.mrf.mxu0
      %v4285 = vadd.f32 0.0, %v4284
      %v4286 = vpop.f32.mrf.mxu0
      %4287 = vmatprep.mubr.f32.mxu0 %v3915
      %4288 = vmatmul.mubr.f32.gmra.mxu0 %v3529
      %v4289 = vpop.f32.mrf.mxu0
      %v4290 = vadd.f32 0.0, %v4289
      %v4291 = vpop.f32.mrf.mxu0
      %4292 = vmatprep.mubr.f32.mxu0 %v3916
      %4293 = vmatmul.mubr.f32.gmra.mxu0 %v3530
      %v4294 = vpop.f32.mrf.mxu0
      %v4295 = vadd.f32 0.0, %v4294
      %v4296 = vpop.f32.mrf.mxu0
      %4297 = vmatprep.mubr.f32.mxu0 %v3917
      %4298 = vmatmul.mubr.f32.gmra.mxu0 %v3531
      %v4299 = vpop.f32.mrf.mxu0
      %v4300 = vadd.f32 0.0, %v4299
      %v4301 = vpop.f32.mrf.mxu0
      %4302 = vdwg.mxu0
      %4303 = vmatprep.subr.mxu0 0.0
      %4304 = vmatpush1.msra.mxu0 %v3981
      %4305 = vmatprep.subr.mxu0 0.0
      %4306 = vmatpush1.msra.mxu0 %v3980
      %4307 = vmatprep.subr.mxu0 0.0
      %4308 = vmatpush1.msra.mxu0 %v3979
      %4309 = vmatprep.subr.mxu0 0.0
      %4310 = vmatpush1.msra.mxu0 %v3978
      %4311 = vmatprep.subr.mxu0 0.0
      %4312 = vmatpush1.msra.mxu0 %v3977
      %4313 = vmatprep.subr.mxu0 0.0
      %4314 = vmatpush1.msra.mxu0 %v3976
      %4315 = vmatprep.subr.mxu0 0.0
      %4316 = vmatpush1.msra.mxu0 %v3975
      %4317 = vmatprep.subr.mxu0 0.0
      %4318 = vmatpush1.msra.mxu0 %v3974
      %4319 = vmatprep.subr.mxu0 0.0
      %4320 = vmatpush1.msra.mxu0 %v3973
      %4321 = vmatprep.subr.mxu0 0.0
      %4322 = vmatpush1.msra.mxu0 %v3972
      %4323 = vmatprep.subr.mxu0 0.0
      %4324 = vmatpush1.msra.mxu0 %v3971
      %4325 = vmatprep.subr.mxu0 0.0
      %4326 = vmatpush1.msra.mxu0 %v3970
      %4327 = vmatprep.subr.mxu0 0.0
      %4328 = vmatpush1.msra.mxu0 %v3969
      %4329 = vmatprep.subr.mxu0 0.0
      %4330 = vmatpush1.msra.mxu0 %v3968
      %4331 = vmatprep.subr.mxu0 0.0
      %4332 = vmatpush1.msra.mxu0 %v3967
      %4333 = vmatprep.subr.mxu0 0.0
      %4334 = vmatpush1.msra.mxu0 %v3966
      %4335 = vmatprep.subr.mxu0 0.0
      %4336 = vmatpush2.msra.mxu0 %v3997
      %4337 = vmatprep.subr.mxu0 0.0
      %4338 = vmatpush2.msra.mxu0 %v3996
      %4339 = vmatprep.subr.mxu0 0.0
      %4340 = vmatpush2.msra.mxu0 %v3995
      %4341 = vmatprep.subr.mxu0 0.0
      %4342 = vmatpush2.msra.mxu0 %v3994
      %4343 = vmatprep.subr.mxu0 0.0
      %4344 = vmatpush2.msra.mxu0 %v3993
      %4345 = vmatprep.subr.mxu0 0.0
      %4346 = vmatpush2.msra.mxu0 %v3992
      %4347 = vmatprep.subr.mxu0 0.0
      %4348 = vmatpush2.msra.mxu0 %v3991
      %4349 = vmatprep.subr.mxu0 0.0
      %4350 = vmatpush2.msra.mxu0 %v3990
      %4351 = vmatprep.subr.mxu0 0.0
      %4352 = vmatpush2.msra.mxu0 %v3989
      %4353 = vmatprep.subr.mxu0 0.0
      %4354 = vmatpush2.msra.mxu0 %v3988
      %4355 = vmatprep.subr.mxu0 0.0
      %4356 = vmatpush2.msra.mxu0 %v3987
      %4357 = vmatprep.subr.mxu0 0.0
      %4358 = vmatpush2.msra.mxu0 %v3986
      %4359 = vmatprep.subr.mxu0 0.0
      %4360 = vmatpush2.msra.mxu0 %v3985
      %4361 = vmatprep.subr.mxu0 0.0
      %4362 = vmatpush2.msra.mxu0 %v3984
      %4363 = vmatprep.subr.mxu0 0.0
      %4364 = vmatpush2.msra.mxu0 %v3983
      %4365 = vmatprep.subr.mxu0 0.0
      %4366 = vmatpush2.msra.mxu0 %v3982
      %4367 = vmatprep.mubr.f32.mxu0 %v3532
      %4368 = vmatmul.mubr.f32.gmra.mxu0 %v3524
      %v4369 = vpop.f32.mrf.mxu0
      %v4370 = vadd.f32 %v4145, %v4369
      %v4371 = vpop.f32.mrf.mxu0
      %4372 = vmatprep.mubr.f32.mxu0 %v3533
      %4373 = vmatmul.mubr.f32.gmra.mxu0 %v3525
      %v4374 = vpop.f32.mrf.mxu0
      %v4375 = vadd.f32 %v4150, %v4374
      %v4376 = vpop.f32.mrf.mxu0
      %4377 = vmatprep.mubr.f32.mxu0 %v3534
      %4378 = vmatmul.mubr.f32.gmra.mxu0 %v3526
      %v4379 = vpop.f32.mrf.mxu0
      %v4380 = vadd.f32 %v4155, %v4379
      %v4381 = vpop.f32.mrf.mxu0
      %4382 = vmatprep.mubr.f32.mxu0 %v3535
      %4383 = vmatmul.mubr.f32.gmra.mxu0 %v3527
      %v4384 = vpop.f32.mrf.mxu0
      %v4385 = vadd.f32 %v4160, %v4384
      %v4386 = vpop.f32.mrf.mxu0
      %4387 = vmatprep.mubr.f32.mxu0 %v3536
      %4388 = vmatmul.mubr.f32.gmra.mxu0 %v3528
      %v4389 = vpop.f32.mrf.mxu0
      %v4390 = vadd.f32 %v4165, %v4389
      %v4391 = vpop.f32.mrf.mxu0
      %4392 = vmatprep.mubr.f32.mxu0 %v3537
      %4393 = vmatmul.mubr.f32.gmra.mxu0 %v3529
      %v4394 = vpop.f32.mrf.mxu0
      %v4395 = vadd.f32 %v4170, %v4394
      %v4396 = vpop.f32.mrf.mxu0
      %4397 = vmatprep.mubr.f32.mxu0 %v3538
      %4398 = vmatmul.mubr.f32.gmra.mxu0 %v3530
      %v4399 = vpop.f32.mrf.mxu0
      %v4400 = vadd.f32 %v4175, %v4399
      %v4401 = vpop.f32.mrf.mxu0
      %4402 = vmatprep.mubr.f32.mxu0 %v3539
      %4403 = vmatmul.mubr.f32.gmra.mxu0 %v3531
      %v4404 = vpop.f32.mrf.mxu0
      %v4405 = vadd.f32 %v4180, %v4404
      %v4406 = vpop.f32.mrf.mxu0
      %4407 = vmatprep.mubr.f32.mxu0 %v3716
      %4408 = vmatmul.mubr.f32.gmra.mxu0 %v3708
      %v4409 = vpop.f32.mrf.mxu0
      %v4410 = vadd.f32 %v4185, %v4409
      %v4411 = vpop.f32.mrf.mxu0
      %4412 = vmatprep.mubr.f32.mxu0 %v3717
      %4413 = vmatmul.mubr.f32.gmra.mxu0 %v3709
      %v4414 = vpop.f32.mrf.mxu0
      %v4415 = vadd.f32 %v4190, %v4414
      %v4416 = vpop.f32.mrf.mxu0
      %4417 = vmatprep.mubr.f32.mxu0 %v3718
      %4418 = vmatmul.mubr.f32.gmra.mxu0 %v3710
      %v4419 = vpop.f32.mrf.mxu0
      %v4420 = vadd.f32 %v4195, %v4419
      %v4421 = vpop.f32.mrf.mxu0
      %4422 = vmatprep.mubr.f32.mxu0 %v3719
      %4423 = vmatmul.mubr.f32.gmra.mxu0 %v3711
      %v4424 = vpop.f32.mrf.mxu0
      %v4425 = vadd.f32 %v4200, %v4424
      %v4426 = vpop.f32.mrf.mxu0
      %4427 = vmatprep.mubr.f32.mxu0 %v3720
      %4428 = vmatmul.mubr.f32.gmra.mxu0 %v3712
      %v4429 = vpop.f32.mrf.mxu0
      %v4430 = vadd.f32 %v4205, %v4429
      %v4431 = vpop.f32.mrf.mxu0
      %4432 = vmatprep.mubr.f32.mxu0 %v3721
      %4433 = vmatmul.mubr.f32.gmra.mxu0 %v3713
      %v4434 = vpop.f32.mrf.mxu0
      %v4435 = vadd.f32 %v4210, %v4434
      %v4436 = vpop.f32.mrf.mxu0
      %4437 = vmatprep.mubr.f32.mxu0 %v3722
      %4438 = vmatmul.mubr.f32.gmra.mxu0 %v3714
      %v4439 = vpop.f32.mrf.mxu0
      %v4440 = vadd.f32 %v4215, %v4439
      %v4441 = vpop.f32.mrf.mxu0
      %4442 = vmatprep.mubr.f32.mxu0 %v3723
      %4443 = vmatmul.mubr.f32.gmra.mxu0 %v3715
      %v4444 = vpop.f32.mrf.mxu0
      %v4445 = vadd.f32 %v4220, %v4444
      %v4446 = vpop.f32.mrf.mxu0
      %4447 = vmatprep.mubr.f32.mxu0 %v3830
      %4448 = vmatmul.mubr.f32.gmra.mxu0 %v3716
      %v4449 = vpop.f32.mrf.mxu0
      %v4450 = vadd.f32 %v4225, %v4449
      %v4451 = vpop.f32.mrf.mxu0
      %4452 = vmatprep.mubr.f32.mxu0 %v3831
      %4453 = vmatmul.mubr.f32.gmra.mxu0 %v3717
      %v4454 = vpop.f32.mrf.mxu0
      %v4455 = vadd.f32 %v4230, %v4454
      %v4456 = vpop.f32.mrf.mxu0
      %4457 = vmatprep.mubr.f32.mxu0 %v3832
      %4458 = vmatmul.mubr.f32.gmra.mxu0 %v3718
      %v4459 = vpop.f32.mrf.mxu0
      %v4460 = vadd.f32 %v4235, %v4459
      %v4461 = vpop.f32.mrf.mxu0
      %4462 = vmatprep.mubr.f32.mxu0 %v3833
      %4463 = vmatmul.mubr.f32.gmra.mxu0 %v3719
      %v4464 = vpop.f32.mrf.mxu0
      %v4465 = vadd.f32 %v4240, %v4464
      %v4466 = vpop.f32.mrf.mxu0
      %4467 = vmatprep.mubr.f32.mxu0 %v3834
      %4468 = vmatmul.mubr.f32.gmra.mxu0 %v3720
      %v4469 = vpop.f32.mrf.mxu0
      %v4470 = vadd.f32 %v4245, %v4469
      %v4471 = vpop.f32.mrf.mxu0
      %4472 = vmatprep.mubr.f32.mxu0 %v3835
      %4473 = vmatmul.mubr.f32.gmra.mxu0 %v3721
      %v4474 = vpop.f32.mrf.mxu0
      %v4475 = vadd.f32 %v4250, %v4474
      %v4476 = vpop.f32.mrf.mxu0
      %4477 = vmatprep.mubr.f32.mxu0 %v3836
      %4478 = vmatmul.mubr.f32.gmra.mxu0 %v3722
      %v4479 = vpop.f32.mrf.mxu0
      %v4480 = vadd.f32 %v4255, %v4479
      %v4481 = vpop.f32.mrf.mxu0
      %4482 = vmatprep.mubr.f32.mxu0 %v3837
      %4483 = vmatmul.mubr.f32.gmra.mxu0 %v3723
      %v4484 = vpop.f32.mrf.mxu0
      %v4485 = vadd.f32 %v4260, %v4484
      %v4486 = vpop.f32.mrf.mxu0
      %4487 = vmatprep.mubr.f32.mxu0 %v3926
      %4488 = vmatmul.mubr.f32.gmra.mxu0 %v3918
      %v4489 = vpop.f32.mrf.mxu0
      %v4490 = vadd.f32 %v4265, %v4489
      %v4491 = vpop.f32.mrf.mxu0
      %4492 = vmatprep.mubr.f32.mxu0 %v3927
      %4493 = vmatmul.mubr.f32.gmra.mxu0 %v3919
      %v4494 = vpop.f32.mrf.mxu0
      %v4495 = vadd.f32 %v4270, %v4494
      %v4496 = vpop.f32.mrf.mxu0
      %4497 = vmatprep.mubr.f32.mxu0 %v3928
      %4498 = vmatmul.mubr.f32.gmra.mxu0 %v3920
      %v4499 = vpop.f32.mrf.mxu0
      %v4500 = vadd.f32 %v4275, %v4499
      %v4501 = vpop.f32.mrf.mxu0
      %4502 = vmatprep.mubr.f32.mxu0 %v3929
      %4503 = vmatmul.mubr.f32.gmra.mxu0 %v3921
      %v4504 = vpop.f32.mrf.mxu0
      %v4505 = vadd.f32 %v4280, %v4504
      %v4506 = vpop.f32.mrf.mxu0
      %4507 = vmatprep.mubr.f32.mxu0 %v3930
      %4508 = vmatmul.mubr.f32.gmra.mxu0 %v3922
      %v4509 = vpop.f32.mrf.mxu0
      %v4510 = vadd.f32 %v4285, %v4509
      %v4511 = vpop.f32.mrf.mxu0
      %4512 = vmatprep.mubr.f32.mxu0 %v3931
      %4513 = vmatmul.mubr.f32.gmra.mxu0 %v3923
      %v4514 = vpop.f32.mrf.mxu0
      %v4515 = vadd.f32 %v4290, %v4514
      %v4516 = vpop.f32.mrf.mxu0
      %4517 = vmatprep.mubr.f32.mxu0 %v3932
      %4518 = vmatmul.mubr.f32.gmra.mxu0 %v3924
      %v4519 = vpop.f32.mrf.mxu0
      %v4520 = vadd.f32 %v4295, %v4519
      %v4521 = vpop.f32.mrf.mxu0
      %4522 = vmatprep.mubr.f32.mxu0 %v3933
      %4523 = vmatmul.mubr.f32.gmra.mxu0 %v3925
      %v4524 = vpop.f32.mrf.mxu0
      %v4525 = vadd.f32 %v4300, %v4524
      %v4526 = vpop.f32.mrf.mxu0
      %4527 = vdwg.mxu0
      %4528 = vmatprep.subr.mxu0 0.0
      %4529 = vmatpush1.msra.mxu0 0.0
      %4530 = vmatprep.subr.mxu0 0.0
      %4531 = vmatpush1.msra.mxu0 0.0
      %4532 = vmatprep.subr.mxu0 0.0
      %4533 = vmatpush1.msra.mxu0 0.0
      %4534 = vmatprep.subr.mxu0 0.0
      %4535 = vmatpush1.msra.mxu0 0.0
      %4536 = vmatprep.subr.mxu0 0.0
      %4537 = vmatpush1.msra.mxu0 0.0
      %4538 = vmatprep.subr.mxu0 0.0
      %4539 = vmatpush1.msra.mxu0 0.0
      %4540 = vmatprep.subr.mxu0 0.0
      %4541 = vmatpush1.msra.mxu0 0.0
      %4542 = vmatprep.subr.mxu0 0.0
      %4543 = vmatpush1.msra.mxu0 0.0
      %4544 = vmatprep.subr.mxu0 0.0
      %4545 = vmatpush1.msra.mxu0 %v4005
      %4546 = vmatprep.subr.mxu0 0.0
      %4547 = vmatpush1.msra.mxu0 %v4004
      %4548 = vmatprep.subr.mxu0 0.0
      %4549 = vmatpush1.msra.mxu0 %v4003
      %4550 = vmatprep.subr.mxu0 0.0
      %4551 = vmatpush1.msra.mxu0 %v4002
      %4552 = vmatprep.subr.mxu0 0.0
      %4553 = vmatpush1.msra.mxu0 %v4001
      %4554 = vmatprep.subr.mxu0 0.0
      %4555 = vmatpush1.msra.mxu0 %v4000
      %4556 = vmatprep.subr.mxu0 0.0
      %4557 = vmatpush1.msra.mxu0 %v3999
      %4558 = vmatprep.subr.mxu0 0.0
      %4559 = vmatpush1.msra.mxu0 %v3998
      %4560 = vmatprep.subr.mxu0 0.0
      %4561 = vmatpush2.msra.mxu0 0.0
      %4562 = vmatprep.subr.mxu0 0.0
      %4563 = vmatpush2.msra.mxu0 0.0
      %4564 = vmatprep.subr.mxu0 0.0
      %4565 = vmatpush2.msra.mxu0 0.0
      %4566 = vmatprep.subr.mxu0 0.0
      %4567 = vmatpush2.msra.mxu0 0.0
      %4568 = vmatprep.subr.mxu0 0.0
      %4569 = vmatpush2.msra.mxu0 0.0
      %4570 = vmatprep.subr.mxu0 0.0
      %4571 = vmatpush2.msra.mxu0 0.0
      %4572 = vmatprep.subr.mxu0 0.0
      %4573 = vmatpush2.msra.mxu0 0.0
      %4574 = vmatprep.subr.mxu0 0.0
      %4575 = vmatpush2.msra.mxu0 0.0
      %4576 = vmatprep.subr.mxu0 0.0
      %4577 = vmatpush2.msra.mxu0 0.0
      %4578 = vmatprep.subr.mxu0 0.0
      %4579 = vmatpush2.msra.mxu0 0.0
      %4580 = vmatprep.subr.mxu0 0.0
      %4581 = vmatpush2.msra.mxu0 0.0
      %4582 = vmatprep.subr.mxu0 0.0
      %4583 = vmatpush2.msra.mxu0 0.0
      %4584 = vmatprep.subr.mxu0 0.0
      %4585 = vmatpush2.msra.mxu0 0.0
      %4586 = vmatprep.subr.mxu0 0.0
      %4587 = vmatpush2.msra.mxu0 0.0
      %4588 = vmatprep.subr.mxu0 0.0
      %4589 = vmatpush2.msra.mxu0 0.0
      %4590 = vmatprep.subr.mxu0 0.0
      %4591 = vmatpush2.msra.mxu0 0.0
      %4592 = vmatprep.mubr.f32.mxu0 0.0
      %4593 = vmatmul.mubr.f32.gmra.mxu0 %v4006
      %v4594 = vpop.f32.mrf.mxu0
      %v4595 = vadd.f32 %v4370, %v4594
      %v4596 = vpop.f32.mrf.mxu0
      %4597 = vmatprep.mubr.f32.mxu0 0.0
      %4598 = vmatmul.mubr.f32.gmra.mxu0 %v4008
      %v4599 = vpop.f32.mrf.mxu0
      %v4600 = vadd.f32 %v4375, %v4599
      %v4601 = vpop.f32.mrf.mxu0
      %4602 = vmatprep.mubr.f32.mxu0 0.0
      %4603 = vmatmul.mubr.f32.gmra.mxu0 %v4010
      %v4604 = vpop.f32.mrf.mxu0
      %v4605 = vadd.f32 %v4380, %v4604
      %v4606 = vpop.f32.mrf.mxu0
      %4607 = vmatprep.mubr.f32.mxu0 0.0
      %4608 = vmatmul.mubr.f32.gmra.mxu0 %v4012
      %v4609 = vpop.f32.mrf.mxu0
      %v4610 = vadd.f32 %v4385, %v4609
      %v4611 = vpop.f32.mrf.mxu0
      %4612 = vmatprep.mubr.f32.mxu0 0.0
      %4613 = vmatmul.mubr.f32.gmra.mxu0 %v4014
      %v4614 = vpop.f32.mrf.mxu0
      %v4615 = vadd.f32 %v4390, %v4614
      %v4616 = vpop.f32.mrf.mxu0
      %4617 = vmatprep.mubr.f32.mxu0 0.0
      %4618 = vmatmul.mubr.f32.gmra.mxu0 %v4016
      %v4619 = vpop.f32.mrf.mxu0
      %v4620 = vadd.f32 %v4395, %v4619
      %v4621 = vpop.f32.mrf.mxu0
      %4622 = vmatprep.mubr.f32.mxu0 0.0
      %4623 = vmatmul.mubr.f32.gmra.mxu0 %v4018
      %v4624 = vpop.f32.mrf.mxu0
      %v4625 = vadd.f32 %v4400, %v4624
      %v4626 = vpop.f32.mrf.mxu0
      %4627 = vmatprep.mubr.f32.mxu0 0.0
      %4628 = vmatmul.mubr.f32.gmra.mxu0 %v4020
      %v4629 = vpop.f32.mrf.mxu0
      %v4630 = vadd.f32 %v4405, %v4629
      %v4631 = vpop.f32.mrf.mxu0
      %4632 = vmatprep.mubr.f32.mxu0 0.0
      %4633 = vmatmul.mubr.f32.gmra.mxu0 %v4022
      %v4634 = vpop.f32.mrf.mxu0
      %v4635 = vadd.f32 %v4410, %v4634
      %v4636 = vpop.f32.mrf.mxu0
      %4637 = vmatprep.mubr.f32.mxu0 0.0
      %4638 = vmatmul.mubr.f32.gmra.mxu0 %v4024
      %v4639 = vpop.f32.mrf.mxu0
      %v4640 = vadd.f32 %v4415, %v4639
      %v4641 = vpop.f32.mrf.mxu0
      %4642 = vmatprep.mubr.f32.mxu0 0.0
      %4643 = vmatmul.mubr.f32.gmra.mxu0 %v4026
      %v4644 = vpop.f32.mrf.mxu0
      %v4645 = vadd.f32 %v4420, %v4644
      %v4646 = vpop.f32.mrf.mxu0
      %4647 = vmatprep.mubr.f32.mxu0 0.0
      %4648 = vmatmul.mubr.f32.gmra.mxu0 %v4028
      %v4649 = vpop.f32.mrf.mxu0
      %v4650 = vadd.f32 %v4425, %v4649
      %v4651 = vpop.f32.mrf.mxu0
      %4652 = vmatprep.mubr.f32.mxu0 0.0
      %4653 = vmatmul.mubr.f32.gmra.mxu0 %v4030
      %v4654 = vpop.f32.mrf.mxu0
      %v4655 = vadd.f32 %v4430, %v4654
      %v4656 = vpop.f32.mrf.mxu0
      %4657 = vmatprep.mubr.f32.mxu0 0.0
      %4658 = vmatmul.mubr.f32.gmra.mxu0 %v4032
      %v4659 = vpop.f32.mrf.mxu0
      %v4660 = vadd.f32 %v4435, %v4659
      %v4661 = vpop.f32.mrf.mxu0
      %4662 = vmatprep.mubr.f32.mxu0 0.0
      %4663 = vmatmul.mubr.f32.gmra.mxu0 %v4034
      %v4664 = vpop.f32.mrf.mxu0
      %v4665 = vadd.f32 %v4440, %v4664
      %v4666 = vpop.f32.mrf.mxu0
      %4667 = vmatprep.mubr.f32.mxu0 0.0
      %4668 = vmatmul.mubr.f32.gmra.mxu0 %v4036
      %v4669 = vpop.f32.mrf.mxu0
      %v4670 = vadd.f32 %v4445, %v4669
      %v4671 = vpop.f32.mrf.mxu0
      %4672 = vmatprep.mubr.f32.mxu0 0.0
      %4673 = vmatmul.mubr.f32.gmra.mxu0 %v4038
      %v4674 = vpop.f32.mrf.mxu0
      %v4675 = vadd.f32 %v4450, %v4674
      %v4676 = vpop.f32.mrf.mxu0
      %4677 = vmatprep.mubr.f32.mxu0 0.0
      %4678 = vmatmul.mubr.f32.gmra.mxu0 %v4040
      %v4679 = vpop.f32.mrf.mxu0
      %v4680 = vadd.f32 %v4455, %v4679
      %v4681 = vpop.f32.mrf.mxu0
      %4682 = vmatprep.mubr.f32.mxu0 0.0
      %4683 = vmatmul.mubr.f32.gmra.mxu0 %v4042
      %v4684 = vpop.f32.mrf.mxu0
      %v4685 = vadd.f32 %v4460, %v4684
      %v4686 = vpop.f32.mrf.mxu0
      %4687 = vmatprep.mubr.f32.mxu0 0.0
      %4688 = vmatmul.mubr.f32.gmra.mxu0 %v4044
      %v4689 = vpop.f32.mrf.mxu0
      %v4690 = vadd.f32 %v4465, %v4689
      %v4691 = vpop.f32.mrf.mxu0
      %4692 = vmatprep.mubr.f32.mxu0 0.0
      %4693 = vmatmul.mubr.f32.gmra.mxu0 %v4046
      %v4694 = vpop.f32.mrf.mxu0
      %v4695 = vadd.f32 %v4470, %v4694
      %v4696 = vpop.f32.mrf.mxu0
      %4697 = vmatprep.mubr.f32.mxu0 0.0
      %4698 = vmatmul.mubr.f32.gmra.mxu0 %v4048
      %v4699 = vpop.f32.mrf.mxu0
      %v4700 = vadd.f32 %v4475, %v4699
      %v4701 = vpop.f32.mrf.mxu0
      %4702 = vmatprep.mubr.f32.mxu0 0.0
      %4703 = vmatmul.mubr.f32.gmra.mxu0 %v4050
      %v4704 = vpop.f32.mrf.mxu0
      %v4705 = vadd.f32 %v4480, %v4704
      %v4706 = vpop.f32.mrf.mxu0
      %4707 = vmatprep.mubr.f32.mxu0 0.0
      %4708 = vmatmul.mubr.f32.gmra.mxu0 %v4052
      %v4709 = vpop.f32.mrf.mxu0
      %v4710 = vadd.f32 %v4485, %v4709
      %v4711 = vpop.f32.mrf.mxu0
      %4712 = vmatprep.mubr.f32.mxu0 0.0
      %4713 = vmatmul.mubr.f32.gmra.mxu0 %v4055
      %v4714 = vpop.f32.mrf.mxu0
      %v4715 = vadd.f32 %v4490, %v4714
      %v4716 = vpop.f32.mrf.mxu0
      %4717 = vmatprep.mubr.f32.mxu0 0.0
      %4718 = vmatmul.mubr.f32.gmra.mxu0 %v4058
      %v4719 = vpop.f32.mrf.mxu0
      %v4720 = vadd.f32 %v4495, %v4719
      %v4721 = vpop.f32.mrf.mxu0
      %4722 = vmatprep.mubr.f32.mxu0 0.0
      %4723 = vmatmul.mubr.f32.gmra.mxu0 %v4061
      %v4724 = vpop.f32.mrf.mxu0
      %v4725 = vadd.f32 %v4500, %v4724
      %v4726 = vpop.f32.mrf.mxu0
      %4727 = vmatprep.mubr.f32.mxu0 0.0
      %4728 = vmatmul.mubr.f32.gmra.mxu0 %v4064
      %v4729 = vpop.f32.mrf.mxu0
      %v4730 = vadd.f32 %v4505, %v4729
      %v4731 = vpop.f32.mrf.mxu0
      %4732 = vmatprep.mubr.f32.mxu0 0.0
      %4733 = vmatmul.mubr.f32.gmra.mxu0 %v4067
      %v4734 = vpop.f32.mrf.mxu0
      %v4735 = vadd.f32 %v4510, %v4734
      %v4736 = vpop.f32.mrf.mxu0
      %4737 = vmatprep.mubr.f32.mxu0 0.0
      %4738 = vmatmul.mubr.f32.gmra.mxu0 %v4070
      %v4739 = vpop.f32.mrf.mxu0
      %v4740 = vadd.f32 %v4515, %v4739
      %v4741 = vpop.f32.mrf.mxu0
      %4742 = vmatprep.mubr.f32.mxu0 0.0
      %4743 = vmatmul.mubr.f32.gmra.mxu0 %v4073
      %v4744 = vpop.f32.mrf.mxu0
      %v4745 = vadd.f32 %v4520, %v4744
      %v4746 = vpop.f32.mrf.mxu0
      %4747 = vmatprep.mubr.f32.mxu0 0.0
      %4748 = vmatmul.mubr.f32.gmra.mxu0 %v4076
      %v4749 = vpop.f32.mrf.mxu0
      %v4750 = vadd.f32 %v4525, %v4749
      %v4751 = vpop.f32.mrf.mxu0
      %4752 = vdwg.mxu0
      %v4753 = vld [vmem:[#allocation4] sm:$0x1]
      %v4755 = vlaneseq
      %v4756 = vshrl.u32 %v4755, 7
      %v4757 = vsub.s32 0, %v4756
      %v4758 = vrot.slane %v4753, %v4757
      %v4760 = vadd.f32 %v4595, %v4758
      %v4761 = vadd.f32 %v4600, %v4758
      %v4762 = vadd.f32 %v4605, %v4758
      %v4763 = vadd.f32 %v4610, %v4758
      %v4764 = vadd.f32 %v4615, %v4758
      %v4765 = vadd.f32 %v4620, %v4758
      %v4766 = vadd.f32 %v4625, %v4758
      %v4767 = vadd.f32 %v4630, %v4758
      %v4768 = vadd.f32 %v4635, %v4758
      %v4769 = vadd.f32 %v4640, %v4758
      %v4770 = vadd.f32 %v4645, %v4758
      %v4771 = vadd.f32 %v4650, %v4758
      %v4772 = vadd.f32 %v4655, %v4758
      %v4773 = vadd.f32 %v4660, %v4758
      %v4774 = vadd.f32 %v4665, %v4758
      %v4775 = vadd.f32 %v4670, %v4758
      %v4776 = vadd.f32 %v4675, %v4758
      %v4777 = vadd.f32 %v4680, %v4758
      %v4778 = vadd.f32 %v4685, %v4758
      %v4779 = vadd.f32 %v4690, %v4758
      %v4780 = vadd.f32 %v4695, %v4758
      %v4781 = vadd.f32 %v4700, %v4758
      %v4782 = vadd.f32 %v4705, %v4758
      %v4783 = vadd.f32 %v4710, %v4758
      %v4784 = vadd.f32 %v4715, %v4758
      %v4785 = vadd.f32 %v4720, %v4758
      %v4786 = vadd.f32 %v4725, %v4758
      %v4787 = vadd.f32 %v4730, %v4758
      %v4788 = vadd.f32 %v4735, %v4758
      %v4789 = vadd.f32 %v4740, %v4758
      %v4790 = vadd.f32 %v4745, %v4758
      %v4791 = vadd.f32 %v4750, %v4758
      %v4792 = vsub.f32 0.0, %v4760
      %v4793 = vsub.f32 0.0, %v4761
      %v4794 = vsub.f32 0.0, %v4762
      %v4795 = vsub.f32 0.0, %v4763
      %v4796 = vsub.f32 0.0, %v4764
      %v4797 = vsub.f32 0.0, %v4765
      %v4798 = vsub.f32 0.0, %v4766
      %v4799 = vsub.f32 0.0, %v4767
      %v4800 = vsub.f32 0.0, %v4768
      %v4801 = vsub.f32 0.0, %v4769
      %v4802 = vsub.f32 0.0, %v4770
      %v4803 = vsub.f32 0.0, %v4771
      %v4804 = vsub.f32 0.0, %v4772
      %v4805 = vsub.f32 0.0, %v4773
      %v4806 = vsub.f32 0.0, %v4774
      %v4807 = vsub.f32 0.0, %v4775
      %v4808 = vsub.f32 0.0, %v4776
      %v4809 = vsub.f32 0.0, %v4777
      %v4810 = vsub.f32 0.0, %v4778
      %v4811 = vsub.f32 0.0, %v4779
      %v4812 = vsub.f32 0.0, %v4780
      %v4813 = vsub.f32 0.0, %v4781
      %v4814 = vsub.f32 0.0, %v4782
      %v4815 = vsub.f32 0.0, %v4783
      %v4816 = vsub.f32 0.0, %v4784
      %v4817 = vsub.f32 0.0, %v4785
      %v4818 = vsub.f32 0.0, %v4786
      %v4819 = vsub.f32 0.0, %v4787
      %v4820 = vsub.f32 0.0, %v4788
      %v4821 = vsub.f32 0.0, %v4789
      %v4822 = vsub.f32 0.0, %v4790
      %v4823 = vsub.f32 0.0, %v4791
      %v4824 = vmul.f32 %v4792, 1.442695
      %v4825 = vpow.pop %v4824
      %v4826 = vmul.f32 %v4793, 1.442695
      %v4827 = vpow.pop %v4826
      %v4828 = vmul.f32 %v4794, 1.442695
      %v4829 = vpow.pop %v4828
      %v4830 = vmul.f32 %v4795, 1.442695
      %v4831 = vpow.pop %v4830
      %v4832 = vmul.f32 %v4796, 1.442695
      %v4833 = vpow.pop %v4832
      %v4834 = vmul.f32 %v4797, 1.442695
      %v4835 = vpow.pop %v4834
      %v4836 = vmul.f32 %v4798, 1.442695
      %v4837 = vpow.pop %v4836
      %v4838 = vmul.f32 %v4799, 1.442695
      %v4839 = vpow.pop %v4838
      %v4840 = vmul.f32 %v4800, 1.442695
      %v4841 = vpow.pop %v4840
      %v4842 = vmul.f32 %v4801, 1.442695
      %v4843 = vpow.pop %v4842
      %v4844 = vmul.f32 %v4802, 1.442695
      %v4845 = vpow.pop %v4844
      %v4846 = vmul.f32 %v4803, 1.442695
      %v4847 = vpow.pop %v4846
      %v4848 = vmul.f32 %v4804, 1.442695
      %v4849 = vpow.pop %v4848
      %v4850 = vmul.f32 %v4805, 1.442695
      %v4851 = vpow.pop %v4850
      %v4852 = vmul.f32 %v4806, 1.442695
      %v4853 = vpow.pop %v4852
      %v4854 = vmul.f32 %v4807, 1.442695
      %v4855 = vpow.pop %v4854
      %v4856 = vmul.f32 %v4808, 1.442695
      %v4857 = vpow.pop %v4856
      %v4858 = vmul.f32 %v4809, 1.442695
      %v4859 = vpow.pop %v4858
      %v4860 = vmul.f32 %v4810, 1.442695
      %v4861 = vpow.pop %v4860
      %v4862 = vmul.f32 %v4811, 1.442695
      %v4863 = vpow.pop %v4862
      %v4864 = vmul.f32 %v4812, 1.442695
      %v4865 = vpow.pop %v4864
      %v4866 = vmul.f32 %v4813, 1.442695
      %v4867 = vpow.pop %v4866
      %v4868 = vmul.f32 %v4814, 1.442695
      %v4869 = vpow.pop %v4868
      %v4870 = vmul.f32 %v4815, 1.442695
      %v4871 = vpow.pop %v4870
      %v4872 = vmul.f32 %v4816, 1.442695
      %v4873 = vpow.pop %v4872
      %v4874 = vmul.f32 %v4817, 1.442695
      %v4875 = vpow.pop %v4874
      %v4876 = vmul.f32 %v4818, 1.442695
      %v4877 = vpow.pop %v4876
      %v4878 = vmul.f32 %v4819, 1.442695
      %v4879 = vpow.pop %v4878
      %v4880 = vmul.f32 %v4820, 1.442695
      %v4881 = vpow.pop %v4880
      %v4882 = vmul.f32 %v4821, 1.442695
      %v4883 = vpow.pop %v4882
      %v4884 = vmul.f32 %v4822, 1.442695
      %v4885 = vpow.pop %v4884
      %v4886 = vmul.f32 %v4823, 1.442695
      %v4887 = vpow.pop %v4886
      %v4888 = vadd.f32 %v4825, 1.0
      %v4889 = vadd.f32 %v4827, 1.0
      %v4890 = vadd.f32 %v4829, 1.0
      %v4891 = vadd.f32 %v4831, 1.0
      %v4892 = vadd.f32 %v4833, 1.0
      %v4893 = vadd.f32 %v4835, 1.0
      %v4894 = vadd.f32 %v4837, 1.0
      %v4895 = vadd.f32 %v4839, 1.0
      %v4896 = vadd.f32 %v4841, 1.0
      %v4897 = vadd.f32 %v4843, 1.0
      %v4898 = vadd.f32 %v4845, 1.0
      %v4899 = vadd.f32 %v4847, 1.0
      %v4900 = vadd.f32 %v4849, 1.0
      %v4901 = vadd.f32 %v4851, 1.0
      %v4902 = vadd.f32 %v4853, 1.0
      %v4903 = vadd.f32 %v4855, 1.0
      %v4904 = vadd.f32 %v4857, 1.0
      %v4905 = vadd.f32 %v4859, 1.0
      %v4906 = vadd.f32 %v4861, 1.0
      %v4907 = vadd.f32 %v4863, 1.0
      %v4908 = vadd.f32 %v4865, 1.0
      %v4909 = vadd.f32 %v4867, 1.0
      %v4910 = vadd.f32 %v4869, 1.0
      %v4911 = vadd.f32 %v4871, 1.0
      %v4912 = vadd.f32 %v4873, 1.0
      %v4913 = vadd.f32 %v4875, 1.0
      %v4914 = vadd.f32 %v4877, 1.0
      %v4915 = vadd.f32 %v4879, 1.0
      %v4916 = vadd.f32 %v4881, 1.0
      %v4917 = vadd.f32 %v4883, 1.0
      %v4918 = vadd.f32 %v4885, 1.0
      %v4919 = vadd.f32 %v4887, 1.0
      %v4920 = vrcp.pop %v4888
      %v4921 = vmul.f32 1.0, %v4920
      %v4922 = vrcp.pop %v4889
      %v4923 = vmul.f32 1.0, %v4922
      %v4924 = vrcp.pop %v4890
      %v4925 = vmul.f32 1.0, %v4924
      %v4926 = vrcp.pop %v4891
      %v4927 = vmul.f32 1.0, %v4926
      %v4928 = vrcp.pop %v4892
      %v4929 = vmul.f32 1.0, %v4928
      %v4930 = vrcp.pop %v4893
      %v4931 = vmul.f32 1.0, %v4930
      %v4932 = vrcp.pop %v4894
      %v4933 = vmul.f32 1.0, %v4932
      %v4934 = vrcp.pop %v4895
      %v4935 = vmul.f32 1.0, %v4934
      %v4936 = vrcp.pop %v4896
      %v4937 = vmul.f32 1.0, %v4936
      %v4938 = vrcp.pop %v4897
      %v4939 = vmul.f32 1.0, %v4938
      %v4940 = vrcp.pop %v4898
      %v4941 = vmul.f32 1.0, %v4940
      %v4942 = vrcp.pop %v4899
      %v4943 = vmul.f32 1.0, %v4942
      %v4944 = vrcp.pop %v4900
      %v4945 = vmul.f32 1.0, %v4944
      %v4946 = vrcp.pop %v4901
      %v4947 = vmul.f32 1.0, %v4946
      %v4948 = vrcp.pop %v4902
      %v4949 = vmul.f32 1.0, %v4948
      %v4950 = vrcp.pop %v4903
      %v4951 = vmul.f32 1.0, %v4950
      %v4952 = vrcp.pop %v4904
      %v4953 = vmul.f32 1.0, %v4952
      %v4954 = vrcp.pop %v4905
      %v4955 = vmul.f32 1.0, %v4954
      %v4956 = vrcp.pop %v4906
      %v4957 = vmul.f32 1.0, %v4956
      %v4958 = vrcp.pop %v4907
      %v4959 = vmul.f32 1.0, %v4958
      %v4960 = vrcp.pop %v4908
      %v4961 = vmul.f32 1.0, %v4960
      %v4962 = vrcp.pop %v4909
      %v4963 = vmul.f32 1.0, %v4962
      %v4964 = vrcp.pop %v4910
      %v4965 = vmul.f32 1.0, %v4964
      %v4966 = vrcp.pop %v4911
      %v4967 = vmul.f32 1.0, %v4966
      %v4968 = vrcp.pop %v4912
      %v4969 = vmul.f32 1.0, %v4968
      %v4970 = vrcp.pop %v4913
      %v4971 = vmul.f32 1.0, %v4970
      %v4972 = vrcp.pop %v4914
      %v4973 = vmul.f32 1.0, %v4972
      %v4974 = vrcp.pop %v4915
      %v4975 = vmul.f32 1.0, %v4974
      %v4976 = vrcp.pop %v4916
      %v4977 = vmul.f32 1.0, %v4976
      %v4978 = vrcp.pop %v4917
      %v4979 = vmul.f32 1.0, %v4978
      %v4980 = vrcp.pop %v4918
      %v4981 = vmul.f32 1.0, %v4980
      %v4982 = vrcp.pop %v4919
      %v4983 = vmul.f32 1.0, %v4982
      %v4984 = vld [vmem:[%s376] sm:$0xff]
      %v4985 = vld [vmem:[%s376 + $0x8] sm:$0xff]
      %v4986 = vld [vmem:[%s376 + $0x10] sm:$0xff]
      %v4987 = vld [vmem:[%s376 + $0x18] sm:$0xff]
      %v4988 = vld [vmem:[%s376 + $0x20] sm:$0xff]
      %v4989 = vld [vmem:[%s376 + $0x28] sm:$0xff]
      %v4990 = vld [vmem:[%s376 + $0x30] sm:$0xff]
      %v4991 = vld [vmem:[%s376 + $0x38] sm:$0xff]
      %v4992 = vld [vmem:[%s376 + $0x40] sm:$0xff]
      %v4993 = vld [vmem:[%s376 + $0x48] sm:$0xff]
      %v4994 = vld [vmem:[%s376 + $0x50] sm:$0xff]
      %v4995 = vld [vmem:[%s376 + $0x58] sm:$0xff]
      %v4996 = vld [vmem:[%s376 + $0x60] sm:$0xff]
      %v4997 = vld [vmem:[%s376 + $0x68] sm:$0xff]
      %v4998 = vld [vmem:[%s376 + $0x70] sm:$0xff]
      %v4999 = vld [vmem:[%s376 + $0x78] sm:$0xff]
      %v5000 = vld [vmem:[%s376 + $0x80] sm:$0xff]
      %v5001 = vld [vmem:[%s376 + $0x88] sm:$0xff]
      %v5002 = vld [vmem:[%s376 + $0x90] sm:$0xff]
      %v5003 = vld [vmem:[%s376 + $0x98] sm:$0xff]
      %v5004 = vld [vmem:[%s376 + $0xa0] sm:$0xff]
      %v5005 = vld [vmem:[%s376 + $0xa8] sm:$0xff]
      %v5006 = vld [vmem:[%s376 + $0xb0] sm:$0xff]
      %v5007 = vld [vmem:[%s376 + $0xb8] sm:$0xff]
      %v5008 = vld [vmem:[%s376 + $0xc0] sm:$0xff]
      %v5009 = vld [vmem:[%s376 + $0xc8] sm:$0xff]
      %v5010 = vld [vmem:[%s376 + $0xd0] sm:$0xff]
      %v5011 = vld [vmem:[%s376 + $0xd8] sm:$0xff]
      %v5012 = vld [vmem:[%s376 + $0xe0] sm:$0xff]
      %v5013 = vld [vmem:[%s376 + $0xe8] sm:$0xff]
      %v5014 = vld [vmem:[%s376 + $0xf0] sm:$0xff]
      %v5015 = vld [vmem:[%s376 + $0xf8] sm:$0xff]
      %v5016 = vadd.f32 %v4921, %v4984
      %v5017 = vadd.f32 %v4923, %v4985
      %v5018 = vadd.f32 %v4925, %v4986
      %v5019 = vadd.f32 %v4927, %v4987
      %v5020 = vadd.f32 %v4929, %v4988
      %v5021 = vadd.f32 %v4931, %v4989
      %v5022 = vadd.f32 %v4933, %v4990
      %v5023 = vadd.f32 %v4935, %v4991
      %v5024 = vadd.f32 %v4937, %v4992
      %v5025 = vadd.f32 %v4939, %v4993
      %v5026 = vadd.f32 %v4941, %v4994
      %v5027 = vadd.f32 %v4943, %v4995
      %v5028 = vadd.f32 %v4945, %v4996
      %v5029 = vadd.f32 %v4947, %v4997
      %v5030 = vadd.f32 %v4949, %v4998
      %v5031 = vadd.f32 %v4951, %v4999
      %v5032 = vadd.f32 %v4953, %v5000
      %v5033 = vadd.f32 %v4955, %v5001
      %v5034 = vadd.f32 %v4957, %v5002
      %v5035 = vadd.f32 %v4959, %v5003
      %v5036 = vadd.f32 %v4961, %v5004
      %v5037 = vadd.f32 %v4963, %v5005
      %v5038 = vadd.f32 %v4965, %v5006
      %v5039 = vadd.f32 %v4967, %v5007
      %v5040 = vadd.f32 %v4969, %v5008
      %v5041 = vadd.f32 %v4971, %v5009
      %v5042 = vadd.f32 %v4973, %v5010
      %v5043 = vadd.f32 %v4975, %v5011
      %v5044 = vadd.f32 %v4977, %v5012
      %v5045 = vadd.f32 %v4979, %v5013
      %v5046 = vadd.f32 %v4981, %v5014
      %v5047 = vadd.f32 %v4983, %v5015
      %vm5048 = vcmask 7168
      %5049 = vst.msk [vmem:[%s381] sm:$0xff] %vm5048, %v5016
      %5050 = vst.msk [vmem:[%s381 + $0x8] sm:$0xff] %vm5048, %v5017
      %5051 = vst.msk [vmem:[%s381 + $0x10] sm:$0xff] %vm5048, %v5018
      %5052 = vst.msk [vmem:[%s381 + $0x18] sm:$0xff] %vm5048, %v5019
      %5053 = vst.msk [vmem:[%s381 + $0x20] sm:$0xff] %vm5048, %v5020
      %5054 = vst.msk [vmem:[%s381 + $0x28] sm:$0xff] %vm5048, %v5021
      %5055 = vst.msk [vmem:[%s381 + $0x30] sm:$0xff] %vm5048, %v5022
      %5056 = vst.msk [vmem:[%s381 + $0x38] sm:$0xff] %vm5048, %v5023
      %5057 = vst.msk [vmem:[%s381 + $0x40] sm:$0xff] %vm5048, %v5024
      %5058 = vst.msk [vmem:[%s381 + $0x48] sm:$0xff] %vm5048, %v5025
      %5059 = vst.msk [vmem:[%s381 + $0x50] sm:$0xff] %vm5048, %v5026
      %5060 = vst.msk [vmem:[%s381 + $0x58] sm:$0xff] %vm5048, %v5027
      %5061 = vst.msk [vmem:[%s381 + $0x60] sm:$0xff] %vm5048, %v5028
      %5062 = vst.msk [vmem:[%s381 + $0x68] sm:$0xff] %vm5048, %v5029
      %5063 = vst.msk [vmem:[%s381 + $0x70] sm:$0xff] %vm5048, %v5030
      %5064 = vst.msk [vmem:[%s381 + $0x78] sm:$0xff] %vm5048, %v5031
      %5065 = vst.msk [vmem:[%s381 + $0x80] sm:$0xff] %vm5048, %v5032
      %5066 = vst.msk [vmem:[%s381 + $0x88] sm:$0xff] %vm5048, %v5033
      %5067 = vst.msk [vmem:[%s381 + $0x90] sm:$0xff] %vm5048, %v5034
      %5068 = vst.msk [vmem:[%s381 + $0x98] sm:$0xff] %vm5048, %v5035
      %5069 = vst.msk [vmem:[%s381 + $0xa0] sm:$0xff] %vm5048, %v5036
      %5070 = vst.msk [vmem:[%s381 + $0xa8] sm:$0xff] %vm5048, %v5037
      %5071 = vst.msk [vmem:[%s381 + $0xb0] sm:$0xff] %vm5048, %v5038
      %5072 = vst.msk [vmem:[%s381 + $0xb8] sm:$0xff] %vm5048, %v5039
      %5073 = vst.msk [vmem:[%s381 + $0xc0] sm:$0xff] %vm5048, %v5040
      %5074 = vst.msk [vmem:[%s381 + $0xc8] sm:$0xff] %vm5048, %v5041
      %5075 = vst.msk [vmem:[%s381 + $0xd0] sm:$0xff] %vm5048, %v5042
      %5076 = vst.msk [vmem:[%s381 + $0xd8] sm:$0xff] %vm5048, %v5043
      %5077 = vst.msk [vmem:[%s381 + $0xe0] sm:$0xff] %vm5048, %v5044
      %5078 = vst.msk [vmem:[%s381 + $0xe8] sm:$0xff] %vm5048, %v5045
      %5079 = vst.msk [vmem:[%s381 + $0xf0] sm:$0xff] %vm5048, %v5046
      %5080 = vst.msk [vmem:[%s381 + $0xf8] sm:$0xff] %vm5048, %v5047
      %p5081 = scmp.lt.s32.totalorder %s23, 1
      %s5082 = scalar_select %p5081, %s23, 1
      %s5083 = smul.addr %s5082, 32
      %s5084 = smul.addr %s5083, 8
      %s5085 = scalar_lea.vmem %s10, %s5084
      // Predicated region
      $region61: #{depthmap_cnn_forward.1} parent=59 // pred_check
        %p5086 = pneg %p261
      $region62: #{depthmap_cnn_forward.1} parent=59 // pred_check_branch
        %5088 = sbr.rel (%p5086) target = $region64
      $region63: #{depthmap_cnn_forward.1} parent=59 // pred_region
        _
      $region64: #{depthmap_cnn_forward.1} parent=59 // pred_fallthru
        _
    $region60: #{depthmap_cnn_forward.1} parent=5 // pred_fallthru
      _
    %p5089 = scmp.le.s32.totalorder 2, %s18
    // Predicated region
    $region65: #{depthmap_cnn_forward.1} parent=5 // pred_check
      %p5090 = pneg %p5089
    $region66: #{depthmap_cnn_forward.1} parent=5 // pred_check_branch
      %5092 = sbr.rel (%p5090) target = $region68
    $region67: #{depthmap_cnn_forward.1} parent=5 // pred_region
      %s5093 = ssub.s32 %s18, 2
      // Predicated region
      $region69: #{depthmap_cnn_forward.1} parent=67 // pred_check
        %p5094 = pneg %p267
      $region70: #{depthmap_cnn_forward.1} parent=67 // pred_check_branch
        %5096 = sbr.rel (%p5094) target = $region72
      $region71: #{depthmap_cnn_forward.1} parent=67 // pred_region
        %p5097 = scmp.lt.s32.totalorder %s24, 1
        %s5098 = scalar_select %p5097, %s24, 1
        %s5099 = smul.addr %s5098, 32
        %s5100 = smul.addr %s5099, 8
        %s5101 = scalar_lea.vmem %s10, %s5100
      $region72: #{depthmap_cnn_forward.1} parent=67 // pred_fallthru
        _
    $region68: #{depthmap_cnn_forward.1} parent=5 // pred_fallthru
      _
  $region6: #{depthmap_cnn_forward.1} parent=0 // loop_footer
    %s22 = sadd.s32 1, %s18
  $region7: #{depthmap_cnn_forward.1} parent=0 // loop_footer_branch
    %17 = sbr.rel target = $region3
  $region8: #{depthmap_cnn_forward.1} parent=0 // loop_exit
    _

</llo_original>
